<compile_context>
chip_gen: v5e
topology: v5e:2x2
jax: 0.10.0
libtpu: 0.0.40
codegen_flags: <defaults>
</compile_context>

<pallas_src>
import jax
import jax.numpy as jnp
from jax import lax
from jax.experimental import pallas as pl
from jax.experimental.pallas import tpu as pltpu


def linear_kernel(x_ref, w_ref, b_ref, o_ref):
    # x_ref: (tm, K) row block of the flattened input   (VMEM)
    # w_ref: (K, N)  pre-transposed weight, full array   (VMEM)
    # b_ref: (1, N)  bias row                            (VMEM)
    # o_ref: (tm, N) output row block
    acc = jnp.dot(
        x_ref[...], w_ref[...],
        preferred_element_type=jnp.float32,
        precision=lax.Precision.HIGHEST,
    )
    o_ref[...] = (acc + b_ref[...]).astype(o_ref.dtype)


def _default_row_blocks():
    """2 row blocks on v7x (2 TensorCores/chip), 1 elsewhere."""
    try:
        kind = jax.devices()[0].device_kind.lower()
    except Exception:
        kind = ""
    return 2 if any(tag in kind for tag in ("v7", "7x", "tpu7")) else 1


def linear_pallas(x, weight, bias, *, row_blocks=None, compute_dtype=None):
    """y = x @ weight.T + bias, matching torch.nn.Linear semantics.

    x:      [B, S, K] float32
    weight: [N, K]    float32  (PyTorch Linear layout)
    bias:   [N]       float32
    compute_dtype: optionally cast x/weight (e.g. jnp.bfloat16) to halve DMA
        bytes; defaults to None = keep f32 so numerics match the PyTorch module.
    """
    B, S, K = x.shape
    N = weight.shape[0]
    M = B * S

    x2d = x.reshape(M, K)
    w_kn = weight.T                      # one-time [K, N] layout for the MXU
    b2d = bias.reshape(1, N)

    if compute_dtype is not None:
        x2d = x2d.astype(compute_dtype)
        w_kn = w_kn.astype(compute_dtype)

    if row_blocks is None:
        row_blocks = _default_row_blocks()

    # Row-block size: ceil(M / row_blocks), rounded up to sublane multiple (8).
    tm = -(-M // row_blocks)
    tm = ((tm + 7) // 8) * 8
    M_pad = tm * row_blocks
    if M_pad != M:
        # Only materialized for awkward sequence lengths; M=384 -> no-op.
        x2d = jnp.pad(x2d, ((0, M_pad - M), (0, 0)))

    itemsize = jnp.dtype(x2d.dtype).itemsize
    cost = pl.CostEstimate(
        flops=2 * M_pad * K * N,
        transcendentals=0,
        bytes_accessed=(M_pad * K + K * N) * itemsize + (N + M_pad * N) * 4,
    )

    out2d = pl.pallas_call(
        linear_kernel,
        out_shape=jax.ShapeDtypeStruct((M_pad, N), x.dtype),
        grid=(row_blocks,),
        in_specs=[
            pl.BlockSpec((tm, K), lambda i: (i, 0)),   # x row block
            pl.BlockSpec((K, N), lambda i: (0, 0)),    # weight [K, N], full
            pl.BlockSpec((1, N), lambda i: (0, 0)),    # bias, full
        ],
        out_specs=pl.BlockSpec((tm, N), lambda i: (i, 0)),
        compiler_params=pltpu.CompilerParams(
            dimension_semantics=("parallel",),
        ),
        cost_estimate=cost,
    )(x2d, w_kn, b2d)

    if M_pad != M:
        out2d = out2d[:M]
    return out2d.reshape(B, S, N)


if __name__ == "__main__":
    key = jax.random.PRNGKey(0)
    k_x, k_w, k_b = jax.random.split(key, 3)

    B, S, H_IN, H_OUT = 1, 384, 256, 256

    x = jax.random.normal(k_x, (B, S, H_IN), dtype=jnp.float32)
    # Deterministic parameter init (PyTorch-style uniform bound 1/sqrt(fan_in))
    bound = 1.0 / (H_IN ** 0.5)
    weight = jax.random.uniform(k_w, (H_OUT, H_IN), minval=-bound, maxval=bound,
                                dtype=jnp.float32)
    bias = jax.random.uniform(k_b, (H_OUT,), minval=-bound, maxval=bound,
                              dtype=jnp.float32)

    y = linear_pallas(x, weight, bias)
    y = jax.block_until_ready(y)

    # Sanity check against a high-precision plain-JAX reference
    # (torch.nn.Linear semantics: y = x @ W^T + b).
    y_ref = jnp.dot(x.reshape(-1, H_IN), weight.T,
                    precision=lax.Precision.HIGHEST).reshape(B, S, H_OUT) + bias
    assert y.shape == (B, S, H_OUT)
    assert jnp.allclose(y, y_ref, atol=1e-4, rtol=1e-4)

    print("KERNEL_OK")
</pallas_src>

<mosaic_0001>
module attributes {stable_mosaic.version = 11 : i64} {
  func.func @linear_kernel(%arg0: i32, %arg1: memref<384x256xf32, #tpu.memory_space<vmem>>, %arg2: memref<256x256xf32, #tpu.memory_space<vmem>>, %arg3: memref<1x256xf32, #tpu.memory_space<vmem>>, %arg4: memref<384x256xf32, #tpu.memory_space<vmem>>) attributes {dimension_semantics = [#tpu.dimension_semantics<parallel>], iteration_bounds = array<i64: 1>, scalar_prefetch = 0 : i64, scratch_operands = 0 : i64, tpu.core_type = #tpu.core_type<tc>, window_params = [{transform_indices = @transform_0, window_bounds = array<i64: 384, 256>}, {pipeline_mode = #tpu.pipeline_mode<synchronous>, transform_indices = @transform_1, window_bounds = array<i64: 256, 256>}, {pipeline_mode = #tpu.pipeline_mode<synchronous>, transform_indices = @transform_2, window_bounds = array<i64: 1, 256>}, {transform_indices = @transform_3, window_bounds = array<i64: 384, 256>}]} {
    %c0 = arith.constant 0 : index
    %c0_0 = arith.constant 0 : index
    %0 = vector.load %arg1[%c0, %c0_0] : memref<384x256xf32, #tpu.memory_space<vmem>>, vector<384x256xf32>
    %c0_1 = arith.constant 0 : index
    %c0_2 = arith.constant 0 : index
    %1 = vector.load %arg2[%c0_1, %c0_2] : memref<256x256xf32, #tpu.memory_space<vmem>>, vector<256x256xf32>
    %cst = arith.constant dense<0.000000e+00> : vector<384x256xf32>
    %2 = tpu.matmul %0, %1, %cst {dimension_numbers = #tpu.dot_dimension_numbers<[1], [0], [0], [1], [0, 0, 1, 1], [], []>, precision = #tpu.contract_precision<fp32>} : vector<384x256xf32>, vector<256x256xf32>, vector<384x256xf32> -> vector<384x256xf32>
    %c0_3 = arith.constant 0 : index
    %c0_4 = arith.constant 0 : index
    %3 = vector.load %arg3[%c0_3, %c0_4] : memref<1x256xf32, #tpu.memory_space<vmem>>, vector<1x256xf32>
    %4 = vector.broadcast %3 : vector<1x256xf32> to vector<384x256xf32>
    %5 = arith.addf %2, %4 : vector<384x256xf32>
    %c0_5 = arith.constant 0 : index
    %c0_6 = arith.constant 0 : index
    %6 = vector.load %arg4[%c0_5, %c0_6] : memref<384x256xf32, #tpu.memory_space<vmem>>, vector<384x256xf32>
    tpu.vector_store %arg4[%c0_5, %c0_6], %5 {strides = array<i32>} : memref<384x256xf32, #tpu.memory_space<vmem>>, vector<384x256xf32>,
    return
  }
  func.func @transform_0(%arg0: i32) -> (i32, i32) {
    %c0_i32 = arith.constant 0 : i32
    %c0_i32_0 = arith.constant 0 : i32
    return %arg0, %c0_i32 : i32, i32
  }
  func.func @transform_1(%arg0: i32) -> (i32, i32) {
    %c0_i32 = arith.constant 0 : i32
    %c0_i32_0 = arith.constant 0 : i32
    %c0_i32_1 = arith.constant 0 : i32
    return %c0_i32, %c0_i32_0 : i32, i32
  }
  func.func @transform_2(%arg0: i32) -> (i32, i32) {
    %c0_i32 = arith.constant 0 : i32
    %c0_i32_0 = arith.constant 0 : i32
    %c0_i32_1 = arith.constant 0 : i32
    return %c0_i32, %c0_i32_0 : i32, i32
  }
  func.func @transform_3(%arg0: i32) -> (i32, i32) {
    %c0_i32 = arith.constant 0 : i32
    %c0_i32_0 = arith.constant 0 : i32
    return %arg0, %c0_i32 : i32, i32
  }
}

</mosaic_0001>

<llo_original>
// kernel: tpu_custom_call.1
$region0: #{tpu_custom_call.1}
  #allocation0 [shape = 'u32[]', space=smem, size = 0x4, offset = 0x4, fixed_abs, tag = 'smem constant byte address 0x4 - core index']
  #allocation1 [shape = 'u32[72,128]{1,0:T(1,128)}', space=vmem, size = 0x9000, scoped, tag = 'internal scratch']
  %s0 = inlined_call_operand.hbm [shape: f32[384,256], index: 0, kind: input, shape index: {}]
  %s1 = inlined_call_operand.hbm [shape: f32[256,256], index: 1, kind: input, shape index: {}]
  %s2 = inlined_call_operand.hbm [shape: f32[1,256], index: 2, kind: input, shape index: {}]
  %s3 = inlined_call_operand.hbm [shape: f32[384,256], index: 3, kind: output, shape index: {}]
  %s4 = sld [smem:[#allocation0]]
  $region34: #{tpu_custom_call.1} parent=0
    _
  %s6 = ssub.s32 1, %s4
  %s7 = scalar_select 0, %s6, %s4
  $region1: #{tpu_custom_call.1} parent=0
    #allocation2 [shape = 'u8[393216]{0}', space=vmem, size = 0x60000, scoped, tag = 'input window, operand 0, single buffered']
    #allocation3 [shape = 's32[1]{0}', space=sflag, size = 0x4, scoped, tag = 'scoped memory for tpu_custom_call.1']
    #allocation4 [shape = 's32[1]{0}', space=sflag, size = 0x4, scoped, tag = 'scoped memory for tpu_custom_call.1']
    #allocation5 [shape = 'u8[262144]{0}', space=vmem, size = 0x40000, scoped, tag = 'input window, operand 1, single buffered']
    #allocation6 [shape = 's32[1]{0}', space=sflag, size = 0x4, scoped, tag = 'scoped memory for tpu_custom_call.1']
    #allocation7 [shape = 'u8[1024]{0}', space=vmem, size = 0x400, scoped, tag = 'input window, operand 2, single buffered']
    #allocation8 [shape = 'u8[393216]{0}', space=vmem, size = 0x60000, scoped, tag = 'output window, operand 0, single buffered']
    %8 = vsyncpa [#allocation3], 0
    %9 = vsyncpa [#allocation6], 0
    %10 = vsyncpa [#allocation4], 0
    // Predicated region
    $region2: #{tpu_custom_call.1} parent=1 // pred_check
      _
    $region3: #{tpu_custom_call.1} parent=1 // pred_check_branch
      %12 = sbr.rel (0) target = $region5
    $region4: #{tpu_custom_call.1} parent=1 // pred_region
      %14 = vsyncadd [#allocation3], 0
      %s15 = sshll.u32 %s0, 4
      %s16 = int_to_ptr.hbm [resolvable:$true] %s15
      %s17 = sshll.u32 [#allocation2], 4
      %s18 = int_to_ptr.vmem [resolvable:$true] %s17
      %23 = dma.hbm_to_vmem [thread:$0]  %s16, 12288, %s18, [#allocation3], 256, 256, 16
    $region5: #{tpu_custom_call.1} parent=1 // pred_fallthru
      _
    // Predicated region
    $region6: #{tpu_custom_call.1} parent=1 // pred_check
      _
    $region7: #{tpu_custom_call.1} parent=1 // pred_check_branch
      %25 = sbr.rel (0) target = $region9
    $region8: #{tpu_custom_call.1} parent=1 // pred_region
      %27 = vsyncadd [#allocation6], 0
      %s28 = sshll.u32 %s1, 4
      %s29 = int_to_ptr.hbm [resolvable:$true] %s28
      %s30 = sshll.u32 [#allocation5], 4
      %s31 = int_to_ptr.vmem [resolvable:$true] %s30
      %36 = dma.hbm_to_vmem [thread:$0]  %s29, 8192, %s31, [#allocation6], 256, 256, 16
    $region9: #{tpu_custom_call.1} parent=1 // pred_fallthru
      _
    // Predicated region
    $region10: #{tpu_custom_call.1} parent=1 // pred_check
      _
    $region11: #{tpu_custom_call.1} parent=1 // pred_check_branch
      %38 = sbr.rel (0) target = $region13
    $region12: #{tpu_custom_call.1} parent=1 // pred_region
      %40 = vsyncadd [#allocation6], 0
      %s42 = sshll.u32 %s2, 4
      %s43 = int_to_ptr.hbm [resolvable:$true] %s42
      %s44 = sshll.u32 [#allocation7], 4
      %s45 = int_to_ptr.vmem [resolvable:$true] %s44
      %47 = dma.hbm_to_vmem [thread:$0]  %s43, 32, %s45, [#allocation6]
    $region13: #{tpu_custom_call.1} parent=1 // pred_fallthru
      _
    // Predicated region
    $region14: #{tpu_custom_call.1} parent=1 // pred_check
      _
    $region15: #{tpu_custom_call.1} parent=1 // pred_check_branch
      %49 = sbr.rel (0) target = $region17
    $region16: #{tpu_custom_call.1} parent=1 // pred_region
      %51 = dma.done [#allocation3], 12288
    $region17: #{tpu_custom_call.1} parent=1 // pred_fallthru
      _
    // Predicated region
    $region18: #{tpu_custom_call.1} parent=1 // pred_check
      _
    $region19: #{tpu_custom_call.1} parent=1 // pred_check_branch
      %53 = sbr.rel (0) target = $region21
    $region20: #{tpu_custom_call.1} parent=1 // pred_region
      %55 = dma.done [#allocation6], 8192
    $region21: #{tpu_custom_call.1} parent=1 // pred_fallthru
      _
    // Predicated region
    $region22: #{tpu_custom_call.1} parent=1 // pred_check
      _
    $region23: #{tpu_custom_call.1} parent=1 // pred_check_branch
      %57 = sbr.rel (0) target = $region25
    $region24: #{tpu_custom_call.1} parent=1 // pred_region
      %59 = dma.done [#allocation6], 32
    $region25: #{tpu_custom_call.1} parent=1 // pred_fallthru
      _
    %v60 = vld [vmem:[#allocation2] sm:$0xff]
    %v61 = vld [vmem:[#allocation2 + $0x8] sm:$0xff]
    %v62 = vld [vmem:[#allocation2 + $0x10] sm:$0xff]
    %v63 = vld [vmem:[#allocation2 + $0x18] sm:$0xff]
    %v64 = vld [vmem:[#allocation2 + $0x20] sm:$0xff]
    %v65 = vld [vmem:[#allocation2 + $0x28] sm:$0xff]
    %v66 = vld [vmem:[#allocation2 + $0x30] sm:$0xff]
    %v67 = vld [vmem:[#allocation2 + $0x38] sm:$0xff]
    %v68 = vld [vmem:[#allocation2 + $0x40] sm:$0xff]
    %v69 = vld [vmem:[#allocation2 + $0x48] sm:$0xff]
    %v70 = vld [vmem:[#allocation2 + $0x50] sm:$0xff]
    %v71 = vld [vmem:[#allocation2 + $0x58] sm:$0xff]
    %v72 = vld [vmem:[#allocation2 + $0x60] sm:$0xff]
    %v73 = vld [vmem:[#allocation2 + $0x68] sm:$0xff]
    %v74 = vld [vmem:[#allocation2 + $0x70] sm:$0xff]
    %v75 = vld [vmem:[#allocation2 + $0x78] sm:$0xff]
    %v76 = vld [vmem:[#allocation2 + $0x80] sm:$0xff]
    %v77 = vld [vmem:[#allocation2 + $0x88] sm:$0xff]
    %v78 = vld [vmem:[#allocation2 + $0x90] sm:$0xff]
    %v79 = vld [vmem:[#allocation2 + $0x98] sm:$0xff]
    %v80 = vld [vmem:[#allocation2 + $0xa0] sm:$0xff]
    %v81 = vld [vmem:[#allocation2 + $0xa8] sm:$0xff]
    %v82 = vld [vmem:[#allocation2 + $0xb0] sm:$0xff]
    %v83 = vld [vmem:[#allocation2 + $0xb8] sm:$0xff]
    %v84 = vld [vmem:[#allocation2 + $0xc0] sm:$0xff]
    %v85 = vld [vmem:[#allocation2 + $0xc8] sm:$0xff]
    %v86 = vld [vmem:[#allocation2 + $0xd0] sm:$0xff]
    %v87 = vld [vmem:[#allocation2 + $0xd8] sm:$0xff]
    %v88 = vld [vmem:[#allocation2 + $0xe0] sm:$0xff]
    %v89 = vld [vmem:[#allocation2 + $0xe8] sm:$0xff]
    %v90 = vld [vmem:[#allocation2 + $0xf0] sm:$0xff]
    %v91 = vld [vmem:[#allocation2 + $0xf8] sm:$0xff]
    %v92 = vld [vmem:[#allocation2 + $0x100] sm:$0xff]
    %v93 = vld [vmem:[#allocation2 + $0x108] sm:$0xff]
    %v94 = vld [vmem:[#allocation2 + $0x110] sm:$0xff]
    %v95 = vld [vmem:[#allocation2 + $0x118] sm:$0xff]
    %v96 = vld [vmem:[#allocation2 + $0x120] sm:$0xff]
    %v97 = vld [vmem:[#allocation2 + $0x128] sm:$0xff]
    %v98 = vld [vmem:[#allocation2 + $0x130] sm:$0xff]
    %v99 = vld [vmem:[#allocation2 + $0x138] sm:$0xff]
    %v100 = vld [vmem:[#allocation2 + $0x140] sm:$0xff]
    %v101 = vld [vmem:[#allocation2 + $0x148] sm:$0xff]
    %v102 = vld [vmem:[#allocation2 + $0x150] sm:$0xff]
    %v103 = vld [vmem:[#allocation2 + $0x158] sm:$0xff]
    %v104 = vld [vmem:[#allocation2 + $0x160] sm:$0xff]
    %v105 = vld [vmem:[#allocation2 + $0x168] sm:$0xff]
    %v106 = vld [vmem:[#allocation2 + $0x170] sm:$0xff]
    %v107 = vld [vmem:[#allocation2 + $0x178] sm:$0xff]
    %v108 = vld [vmem:[#allocation2 + $0x180] sm:$0xff]
    %v109 = vld [vmem:[#allocation2 + $0x188] sm:$0xff]
    %v110 = vld [vmem:[#allocation2 + $0x190] sm:$0xff]
    %v111 = vld [vmem:[#allocation2 + $0x198] sm:$0xff]
    %v112 = vld [vmem:[#allocation2 + $0x1a0] sm:$0xff]
    %v113 = vld [vmem:[#allocation2 + $0x1a8] sm:$0xff]
    %v114 = vld [vmem:[#allocation2 + $0x1b0] sm:$0xff]
    %v115 = vld [vmem:[#allocation2 + $0x1b8] sm:$0xff]
    %v116 = vld [vmem:[#allocation2 + $0x1c0] sm:$0xff]
    %v117 = vld [vmem:[#allocation2 + $0x1c8] sm:$0xff]
    %v118 = vld [vmem:[#allocation2 + $0x1d0] sm:$0xff]
    %v119 = vld [vmem:[#allocation2 + $0x1d8] sm:$0xff]
    %v120 = vld [vmem:[#allocation2 + $0x1e0] sm:$0xff]
    %v121 = vld [vmem:[#allocation2 + $0x1e8] sm:$0xff]
    %v122 = vld [vmem:[#allocation2 + $0x1f0] sm:$0xff]
    %v123 = vld [vmem:[#allocation2 + $0x1f8] sm:$0xff]
    %v124 = vld [vmem:[#allocation2 + $0x200] sm:$0xff]
    %v125 = vld [vmem:[#allocation2 + $0x208] sm:$0xff]
    %v126 = vld [vmem:[#allocation2 + $0x210] sm:$0xff]
    %v127 = vld [vmem:[#allocation2 + $0x218] sm:$0xff]
    %v128 = vld [vmem:[#allocation2 + $0x220] sm:$0xff]
    %v129 = vld [vmem:[#allocation2 + $0x228] sm:$0xff]
    %v130 = vld [vmem:[#allocation2 + $0x230] sm:$0xff]
    %v131 = vld [vmem:[#allocation2 + $0x238] sm:$0xff]
    %v132 = vld [vmem:[#allocation2 + $0x240] sm:$0xff]
    %v133 = vld [vmem:[#allocation2 + $0x248] sm:$0xff]
    %v134 = vld [vmem:[#allocation2 + $0x250] sm:$0xff]
    %v135 = vld [vmem:[#allocation2 + $0x258] sm:$0xff]
    %v136 = vld [vmem:[#allocation2 + $0x260] sm:$0xff]
    %v137 = vld [vmem:[#allocation2 + $0x268] sm:$0xff]
    %v138 = vld [vmem:[#allocation2 + $0x270] sm:$0xff]
    %v139 = vld [vmem:[#allocation2 + $0x278] sm:$0xff]
    %v140 = vld [vmem:[#allocation2 + $0x280] sm:$0xff]
    %v141 = vld [vmem:[#allocation2 + $0x288] sm:$0xff]
    %v142 = vld [vmem:[#allocation2 + $0x290] sm:$0xff]
    %v143 = vld [vmem:[#allocation2 + $0x298] sm:$0xff]
    %v144 = vld [vmem:[#allocation2 + $0x2a0] sm:$0xff]
    %v145 = vld [vmem:[#allocation2 + $0x2a8] sm:$0xff]
    %v146 = vld [vmem:[#allocation2 + $0x2b0] sm:$0xff]
    %v147 = vld [vmem:[#allocation2 + $0x2b8] sm:$0xff]
    %v148 = vld [vmem:[#allocation2 + $0x2c0] sm:$0xff]
    %v149 = vld [vmem:[#allocation2 + $0x2c8] sm:$0xff]
    %v150 = vld [vmem:[#allocation2 + $0x2d0] sm:$0xff]
    %v151 = vld [vmem:[#allocation2 + $0x2d8] sm:$0xff]
    %v152 = vld [vmem:[#allocation2 + $0x2e0] sm:$0xff]
    %v153 = vld [vmem:[#allocation2 + $0x2e8] sm:$0xff]
    %v154 = vld [vmem:[#allocation2 + $0x2f0] sm:$0xff]
    %v155 = vld [vmem:[#allocation2 + $0x2f8] sm:$0xff]
    %v156 = vld [vmem:[#allocation5] sm:$0xff]
    %v157 = vld [vmem:[#allocation5 + $0x8] sm:$0xff]
    %v158 = vld [vmem:[#allocation5 + $0x10] sm:$0xff]
    %v159 = vld [vmem:[#allocation5 + $0x18] sm:$0xff]
    %v160 = vld [vmem:[#allocation5 + $0x20] sm:$0xff]
    %v161 = vld [vmem:[#allocation5 + $0x28] sm:$0xff]
    %v162 = vld [vmem:[#allocation5 + $0x30] sm:$0xff]
    %v163 = vld [vmem:[#allocation5 + $0x38] sm:$0xff]
    %v164 = vld [vmem:[#allocation5 + $0x40] sm:$0xff]
    %v165 = vld [vmem:[#allocation5 + $0x48] sm:$0xff]
    %v166 = vld [vmem:[#allocation5 + $0x50] sm:$0xff]
    %v167 = vld [vmem:[#allocation5 + $0x58] sm:$0xff]
    %v168 = vld [vmem:[#allocation5 + $0x60] sm:$0xff]
    %v169 = vld [vmem:[#allocation5 + $0x68] sm:$0xff]
    %v170 = vld [vmem:[#allocation5 + $0x70] sm:$0xff]
    %v171 = vld [vmem:[#allocation5 + $0x78] sm:$0xff]
    %v172 = vld [vmem:[#allocation5 + $0x80] sm:$0xff]
    %v173 = vld [vmem:[#allocation5 + $0x88] sm:$0xff]
    %v174 = vld [vmem:[#allocation5 + $0x90] sm:$0xff]
    %v175 = vld [vmem:[#allocation5 + $0x98] sm:$0xff]
    %v176 = vld [vmem:[#allocation5 + $0xa0] sm:$0xff]
    %v177 = vld [vmem:[#allocation5 + $0xa8] sm:$0xff]
    %v178 = vld [vmem:[#allocation5 + $0xb0] sm:$0xff]
    %v179 = vld [vmem:[#allocation5 + $0xb8] sm:$0xff]
    %v180 = vld [vmem:[#allocation5 + $0xc0] sm:$0xff]
    %v181 = vld [vmem:[#allocation5 + $0xc8] sm:$0xff]
    %v182 = vld [vmem:[#allocation5 + $0xd0] sm:$0xff]
    %v183 = vld [vmem:[#allocation5 + $0xd8] sm:$0xff]
    %v184 = vld [vmem:[#allocation5 + $0xe0] sm:$0xff]
    %v185 = vld [vmem:[#allocation5 + $0xe8] sm:$0xff]
    %v186 = vld [vmem:[#allocation5 + $0xf0] sm:$0xff]
    %v187 = vld [vmem:[#allocation5 + $0xf8] sm:$0xff]
    %v188 = vld [vmem:[#allocation5 + $0x100] sm:$0xff]
    %v189 = vld [vmem:[#allocation5 + $0x108] sm:$0xff]
    %v190 = vld [vmem:[#allocation5 + $0x110] sm:$0xff]
    %v191 = vld [vmem:[#allocation5 + $0x118] sm:$0xff]
    %v192 = vld [vmem:[#allocation5 + $0x120] sm:$0xff]
    %v193 = vld [vmem:[#allocation5 + $0x128] sm:$0xff]
    %v194 = vld [vmem:[#allocation5 + $0x130] sm:$0xff]
    %v195 = vld [vmem:[#allocation5 + $0x138] sm:$0xff]
    %v196 = vld [vmem:[#allocation5 + $0x140] sm:$0xff]
    %v197 = vld [vmem:[#allocation5 + $0x148] sm:$0xff]
    %v198 = vld [vmem:[#allocation5 + $0x150] sm:$0xff]
    %v199 = vld [vmem:[#allocation5 + $0x158] sm:$0xff]
    %v200 = vld [vmem:[#allocation5 + $0x160] sm:$0xff]
    %v201 = vld [vmem:[#allocation5 + $0x168] sm:$0xff]
    %v202 = vld [vmem:[#allocation5 + $0x170] sm:$0xff]
    %v203 = vld [vmem:[#allocation5 + $0x178] sm:$0xff]
    %v204 = vld [vmem:[#allocation5 + $0x180] sm:$0xff]
    %v205 = vld [vmem:[#allocation5 + $0x188] sm:$0xff]
    %v206 = vld [vmem:[#allocation5 + $0x190] sm:$0xff]
    %v207 = vld [vmem:[#allocation5 + $0x198] sm:$0xff]
    %v208 = vld [vmem:[#allocation5 + $0x1a0] sm:$0xff]
    %v209 = vld [vmem:[#allocation5 + $0x1a8] sm:$0xff]
    %v210 = vld [vmem:[#allocation5 + $0x1b0] sm:$0xff]
    %v211 = vld [vmem:[#allocation5 + $0x1b8] sm:$0xff]
    %v212 = vld [vmem:[#allocation5 + $0x1c0] sm:$0xff]
    %v213 = vld [vmem:[#allocation5 + $0x1c8] sm:$0xff]
    %v214 = vld [vmem:[#allocation5 + $0x1d0] sm:$0xff]
    %v215 = vld [vmem:[#allocation5 + $0x1d8] sm:$0xff]
    %v216 = vld [vmem:[#allocation5 + $0x1e0] sm:$0xff]
    %v217 = vld [vmem:[#allocation5 + $0x1e8] sm:$0xff]
    %v218 = vld [vmem:[#allocation5 + $0x1f0] sm:$0xff]
    %v219 = vld [vmem:[#allocation5 + $0x1f8] sm:$0xff]
    %v220 = vld [vmem:[#allocation7] sm:$0x3]
    %v222 = vperm.slane %v220, 0
    %v223 = vperm.slane %v220, 1
    %v226 = vand.u32 %v186, 4294901760
    %227 = vmatpush.msra.mxu0 %v226
    %v228 = vand.u32 %v184, 4294901760
    %229 = vmatpush.msra.mxu0 %v228
    %v230 = vand.u32 %v182, 4294901760
    %231 = vmatpush.msra.mxu0 %v230
    %v232 = vand.u32 %v180, 4294901760
    %233 = vmatpush.msra.mxu0 %v232
    %v234 = vand.u32 %v178, 4294901760
    %235 = vmatpush.msra.mxu0 %v234
    %v236 = vand.u32 %v176, 4294901760
    %237 = vmatpush.msra.mxu0 %v236
    %v238 = vand.u32 %v174, 4294901760
    %239 = vmatpush.msra.mxu0 %v238
    %v240 = vand.u32 %v172, 4294901760
    %241 = vmatpush.msra.mxu0 %v240
    %v242 = vand.u32 %v170, 4294901760
    %243 = vmatpush.msra.mxu0 %v242
    %v244 = vand.u32 %v168, 4294901760
    %245 = vmatpush.msra.mxu0 %v244
    %v246 = vand.u32 %v166, 4294901760
    %247 = vmatpush.msra.mxu0 %v246
    %v248 = vand.u32 %v164, 4294901760
    %249 = vmatpush.msra.mxu0 %v248
    %v250 = vand.u32 %v162, 4294901760
    %251 = vmatpush.msra.mxu0 %v250
    %v252 = vand.u32 %v160, 4294901760
    %253 = vmatpush.msra.mxu0 %v252
    %v254 = vand.u32 %v158, 4294901760
    %255 = vmatpush.msra.mxu0 %v254
    %v256 = vand.u32 %v156, 4294901760
    %257 = vmatpush.msra.mxu0 %v256
    %v258 = vand.u32 %v60, 4294901760
    %v259 = vsub.f32 %v60, %v258
    %v260 = vand.u32 %v259, 4294901760
    %v261 = vsub.f32 %v259, %v260
    %v262 = vand.u32 %v261, 4294901760
    %263 = vmatmul.f32.gmra.mxu0 %v262
    %v264 = vpop.f32.mrf.mxu0
    %v265 = vadd.f32 %v222, %v264
    %v266 = vand.u32 %v62, 4294901760
    %v267 = vsub.f32 %v62, %v266
    %v268 = vand.u32 %v267, 4294901760
    %v269 = vsub.f32 %v267, %v268
    %v270 = vand.u32 %v269, 4294901760
    %271 = vmatmul.f32.gmra.mxu0 %v270
    %v272 = vpop.f32.mrf.mxu0
    %v273 = vadd.f32 %v222, %v272
    %v274 = vand.u32 %v64, 4294901760
    %v275 = vsub.f32 %v64, %v274
    %v276 = vand.u32 %v275, 4294901760
    %v277 = vsub.f32 %v275, %v276
    %v278 = vand.u32 %v277, 4294901760
    %279 = vmatmul.f32.gmra.mxu0 %v278
    %v280 = vpop.f32.mrf.mxu0
    %v281 = vadd.f32 %v222, %v280
    %v282 = vand.u32 %v66, 4294901760
    %v283 = vsub.f32 %v66, %v282
    %v284 = vand.u32 %v283, 4294901760
    %v285 = vsub.f32 %v283, %v284
    %v286 = vand.u32 %v285, 4294901760
    %287 = vmatmul.f32.gmra.mxu0 %v286
    %v288 = vpop.f32.mrf.mxu0
    %v289 = vadd.f32 %v222, %v288
    %v290 = vand.u32 %v68, 4294901760
    %v291 = vsub.f32 %v68, %v290
    %v292 = vand.u32 %v291, 4294901760
    %v293 = vsub.f32 %v291, %v292
    %v294 = vand.u32 %v293, 4294901760
    %295 = vmatmul.f32.gmra.mxu0 %v294
    %v296 = vpop.f32.mrf.mxu0
    %v297 = vadd.f32 %v222, %v296
    %v298 = vand.u32 %v70, 4294901760
    %v299 = vsub.f32 %v70, %v298
    %v300 = vand.u32 %v299, 4294901760
    %v301 = vsub.f32 %v299, %v300
    %v302 = vand.u32 %v301, 4294901760
    %303 = vmatmul.f32.gmra.mxu0 %v302
    %v304 = vpop.f32.mrf.mxu0
    %v305 = vadd.f32 %v222, %v304
    %v306 = vand.u32 %v72, 4294901760
    %v307 = vsub.f32 %v72, %v306
    %v308 = vand.u32 %v307, 4294901760
    %v309 = vsub.f32 %v307, %v308
    %v310 = vand.u32 %v309, 4294901760
    %311 = vmatmul.f32.gmra.mxu0 %v310
    %v312 = vpop.f32.mrf.mxu0
    %v313 = vadd.f32 %v222, %v312
    %v314 = vand.u32 %v74, 4294901760
    %v315 = vsub.f32 %v74, %v314
    %v316 = vand.u32 %v315, 4294901760
    %v317 = vsub.f32 %v315, %v316
    %v318 = vand.u32 %v317, 4294901760
    %319 = vmatmul.f32.gmra.mxu0 %v318
    %v320 = vpop.f32.mrf.mxu0
    %v321 = vadd.f32 %v222, %v320
    %v322 = vand.u32 %v76, 4294901760
    %v323 = vsub.f32 %v76, %v322
    %v324 = vand.u32 %v323, 4294901760
    %v325 = vsub.f32 %v323, %v324
    %v326 = vand.u32 %v325, 4294901760
    %327 = vmatmul.f32.gmra.mxu0 %v326
    %v328 = vpop.f32.mrf.mxu0
    %v329 = vadd.f32 %v222, %v328
    %v330 = vand.u32 %v78, 4294901760
    %v331 = vsub.f32 %v78, %v330
    %v332 = vand.u32 %v331, 4294901760
    %v333 = vsub.f32 %v331, %v332
    %v334 = vand.u32 %v333, 4294901760
    %335 = vmatmul.f32.gmra.mxu0 %v334
    %v336 = vpop.f32.mrf.mxu0
    %v337 = vadd.f32 %v222, %v336
    %v338 = vand.u32 %v80, 4294901760
    %v339 = vsub.f32 %v80, %v338
    %v340 = vand.u32 %v339, 4294901760
    %v341 = vsub.f32 %v339, %v340
    %v342 = vand.u32 %v341, 4294901760
    %343 = vmatmul.f32.gmra.mxu0 %v342
    %v344 = vpop.f32.mrf.mxu0
    %v345 = vadd.f32 %v222, %v344
    %v346 = vand.u32 %v82, 4294901760
    %v347 = vsub.f32 %v82, %v346
    %v348 = vand.u32 %v347, 4294901760
    %v349 = vsub.f32 %v347, %v348
    %v350 = vand.u32 %v349, 4294901760
    %351 = vmatmul.f32.gmra.mxu0 %v350
    %v352 = vpop.f32.mrf.mxu0
    %v353 = vadd.f32 %v222, %v352
    %v354 = vand.u32 %v84, 4294901760
    %v355 = vsub.f32 %v84, %v354
    %v356 = vand.u32 %v355, 4294901760
    %v357 = vsub.f32 %v355, %v356
    %v358 = vand.u32 %v357, 4294901760
    %359 = vmatmul.f32.gmra.mxu0 %v358
    %v360 = vpop.f32.mrf.mxu0
    %v361 = vadd.f32 %v222, %v360
    %v362 = vand.u32 %v86, 4294901760
    %v363 = vsub.f32 %v86, %v362
    %v364 = vand.u32 %v363, 4294901760
    %v365 = vsub.f32 %v363, %v364
    %v366 = vand.u32 %v365, 4294901760
    %367 = vmatmul.f32.gmra.mxu0 %v366
    %v368 = vpop.f32.mrf.mxu0
    %v369 = vadd.f32 %v222, %v368
    %v370 = vand.u32 %v88, 4294901760
    %v371 = vsub.f32 %v88, %v370
    %v372 = vand.u32 %v371, 4294901760
    %v373 = vsub.f32 %v371, %v372
    %v374 = vand.u32 %v373, 4294901760
    %375 = vmatmul.f32.gmra.mxu0 %v374
    %v376 = vpop.f32.mrf.mxu0
    %v377 = vadd.f32 %v222, %v376
    %v378 = vand.u32 %v90, 4294901760
    %v379 = vsub.f32 %v90, %v378
    %v380 = vand.u32 %v379, 4294901760
    %v381 = vsub.f32 %v379, %v380
    %v382 = vand.u32 %v381, 4294901760
    %383 = vmatmul.f32.gmra.mxu0 %v382
    %v384 = vpop.f32.mrf.mxu0
    %v385 = vadd.f32 %v222, %v384
    %v386 = vand.u32 %v92, 4294901760
    %v387 = vsub.f32 %v92, %v386
    %v388 = vand.u32 %v387, 4294901760
    %v389 = vsub.f32 %v387, %v388
    %v390 = vand.u32 %v389, 4294901760
    %391 = vmatmul.f32.gmra.mxu0 %v390
    %v392 = vpop.f32.mrf.mxu0
    %v393 = vadd.f32 %v222, %v392
    %v394 = vand.u32 %v94, 4294901760
    %v395 = vsub.f32 %v94, %v394
    %v396 = vand.u32 %v395, 4294901760
    %v397 = vsub.f32 %v395, %v396
    %v398 = vand.u32 %v397, 4294901760
    %399 = vmatmul.f32.gmra.mxu0 %v398
    %v400 = vpop.f32.mrf.mxu0
    %v401 = vadd.f32 %v222, %v400
    %v402 = vand.u32 %v96, 4294901760
    %v403 = vsub.f32 %v96, %v402
    %v404 = vand.u32 %v403, 4294901760
    %v405 = vsub.f32 %v403, %v404
    %v406 = vand.u32 %v405, 4294901760
    %407 = vmatmul.f32.gmra.mxu0 %v406
    %v408 = vpop.f32.mrf.mxu0
    %v409 = vadd.f32 %v222, %v408
    %v410 = vand.u32 %v98, 4294901760
    %v411 = vsub.f32 %v98, %v410
    %v412 = vand.u32 %v411, 4294901760
    %v413 = vsub.f32 %v411, %v412
    %v414 = vand.u32 %v413, 4294901760
    %415 = vmatmul.f32.gmra.mxu0 %v414
    %v416 = vpop.f32.mrf.mxu0
    %v417 = vadd.f32 %v222, %v416
    %v418 = vand.u32 %v100, 4294901760
    %v419 = vsub.f32 %v100, %v418
    %v420 = vand.u32 %v419, 4294901760
    %v421 = vsub.f32 %v419, %v420
    %v422 = vand.u32 %v421, 4294901760
    %423 = vmatmul.f32.gmra.mxu0 %v422
    %v424 = vpop.f32.mrf.mxu0
    %v425 = vadd.f32 %v222, %v424
    %v426 = vand.u32 %v102, 4294901760
    %v427 = vsub.f32 %v102, %v426
    %v428 = vand.u32 %v427, 4294901760
    %v429 = vsub.f32 %v427, %v428
    %v430 = vand.u32 %v429, 4294901760
    %431 = vmatmul.f32.gmra.mxu0 %v430
    %v432 = vpop.f32.mrf.mxu0
    %v433 = vadd.f32 %v222, %v432
    %v434 = vand.u32 %v104, 4294901760
    %v435 = vsub.f32 %v104, %v434
    %v436 = vand.u32 %v435, 4294901760
    %v437 = vsub.f32 %v435, %v436
    %v438 = vand.u32 %v437, 4294901760
    %439 = vmatmul.f32.gmra.mxu0 %v438
    %v440 = vpop.f32.mrf.mxu0
    %v441 = vadd.f32 %v222, %v440
    %v442 = vand.u32 %v106, 4294901760
    %v443 = vsub.f32 %v106, %v442
    %v444 = vand.u32 %v443, 4294901760
    %v445 = vsub.f32 %v443, %v444
    %v446 = vand.u32 %v445, 4294901760
    %447 = vmatmul.f32.gmra.mxu0 %v446
    %v448 = vpop.f32.mrf.mxu0
    %v449 = vadd.f32 %v222, %v448
    %v450 = vand.u32 %v108, 4294901760
    %v451 = vsub.f32 %v108, %v450
    %v452 = vand.u32 %v451, 4294901760
    %v453 = vsub.f32 %v451, %v452
    %v454 = vand.u32 %v453, 4294901760
    %455 = vmatmul.f32.gmra.mxu0 %v454
    %v456 = vpop.f32.mrf.mxu0
    %v457 = vadd.f32 %v222, %v456
    %v458 = vand.u32 %v110, 4294901760
    %v459 = vsub.f32 %v110, %v458
    %v460 = vand.u32 %v459, 4294901760
    %v461 = vsub.f32 %v459, %v460
    %v462 = vand.u32 %v461, 4294901760
    %463 = vmatmul.f32.gmra.mxu0 %v462
    %v464 = vpop.f32.mrf.mxu0
    %v465 = vadd.f32 %v222, %v464
    %v466 = vand.u32 %v112, 4294901760
    %v467 = vsub.f32 %v112, %v466
    %v468 = vand.u32 %v467, 4294901760
    %v469 = vsub.f32 %v467, %v468
    %v470 = vand.u32 %v469, 4294901760
    %471 = vmatmul.f32.gmra.mxu0 %v470
    %v472 = vpop.f32.mrf.mxu0
    %v473 = vadd.f32 %v222, %v472
    %v474 = vand.u32 %v114, 4294901760
    %v475 = vsub.f32 %v114, %v474
    %v476 = vand.u32 %v475, 4294901760
    %v477 = vsub.f32 %v475, %v476
    %v478 = vand.u32 %v477, 4294901760
    %479 = vmatmul.f32.gmra.mxu0 %v478
    %v480 = vpop.f32.mrf.mxu0
    %v481 = vadd.f32 %v222, %v480
    %v482 = vand.u32 %v116, 4294901760
    %v483 = vsub.f32 %v116, %v482
    %v484 = vand.u32 %v483, 4294901760
    %v485 = vsub.f32 %v483, %v484
    %v486 = vand.u32 %v485, 4294901760
    %487 = vmatmul.f32.gmra.mxu0 %v486
    %v488 = vpop.f32.mrf.mxu0
    %v489 = vadd.f32 %v222, %v488
    %v490 = vand.u32 %v118, 4294901760
    %v491 = vsub.f32 %v118, %v490
    %v492 = vand.u32 %v491, 4294901760
    %v493 = vsub.f32 %v491, %v492
    %v494 = vand.u32 %v493, 4294901760
    %495 = vmatmul.f32.gmra.mxu0 %v494
    %v496 = vpop.f32.mrf.mxu0
    %v497 = vadd.f32 %v222, %v496
    %v498 = vand.u32 %v120, 4294901760
    %v499 = vsub.f32 %v120, %v498
    %v500 = vand.u32 %v499, 4294901760
    %v501 = vsub.f32 %v499, %v500
    %v502 = vand.u32 %v501, 4294901760
    %503 = vmatmul.f32.gmra.mxu0 %v502
    %v504 = vpop.f32.mrf.mxu0
    %v505 = vadd.f32 %v222, %v504
    %v506 = vand.u32 %v122, 4294901760
    %v507 = vsub.f32 %v122, %v506
    %v508 = vand.u32 %v507, 4294901760
    %v509 = vsub.f32 %v507, %v508
    %v510 = vand.u32 %v509, 4294901760
    %511 = vmatmul.f32.gmra.mxu0 %v510
    %v512 = vpop.f32.mrf.mxu0
    %v513 = vadd.f32 %v222, %v512
    %v514 = vand.u32 %v124, 4294901760
    %v515 = vsub.f32 %v124, %v514
    %v516 = vand.u32 %v515, 4294901760
    %v517 = vsub.f32 %v515, %v516
    %v518 = vand.u32 %v517, 4294901760
    %519 = vmatmul.f32.gmra.mxu0 %v518
    %v520 = vpop.f32.mrf.mxu0
    %v521 = vadd.f32 %v222, %v520
    %v522 = vand.u32 %v126, 4294901760
    %v523 = vsub.f32 %v126, %v522
    %v524 = vand.u32 %v523, 4294901760
    %v525 = vsub.f32 %v523, %v524
    %v526 = vand.u32 %v525, 4294901760
    %527 = vmatmul.f32.gmra.mxu0 %v526
    %v528 = vpop.f32.mrf.mxu0
    %v529 = vadd.f32 %v222, %v528
    %v530 = vand.u32 %v128, 4294901760
    %v531 = vsub.f32 %v128, %v530
    %v532 = vand.u32 %v531, 4294901760
    %v533 = vsub.f32 %v531, %v532
    %v534 = vand.u32 %v533, 4294901760
    %535 = vmatmul.f32.gmra.mxu0 %v534
    %v536 = vpop.f32.mrf.mxu0
    %v537 = vadd.f32 %v222, %v536
    %v538 = vand.u32 %v130, 4294901760
    %v539 = vsub.f32 %v130, %v538
    %v540 = vand.u32 %v539, 4294901760
    %v541 = vsub.f32 %v539, %v540
    %v542 = vand.u32 %v541, 4294901760
    %543 = vmatmul.f32.gmra.mxu0 %v542
    %v544 = vpop.f32.mrf.mxu0
    %v545 = vadd.f32 %v222, %v544
    %v546 = vand.u32 %v132, 4294901760
    %v547 = vsub.f32 %v132, %v546
    %v548 = vand.u32 %v547, 4294901760
    %v549 = vsub.f32 %v547, %v548
    %v550 = vand.u32 %v549, 4294901760
    %551 = vmatmul.f32.gmra.mxu0 %v550
    %v552 = vpop.f32.mrf.mxu0
    %v553 = vadd.f32 %v222, %v552
    %v554 = vand.u32 %v134, 4294901760
    %v555 = vsub.f32 %v134, %v554
    %v556 = vand.u32 %v555, 4294901760
    %v557 = vsub.f32 %v555, %v556
    %v558 = vand.u32 %v557, 4294901760
    %559 = vmatmul.f32.gmra.mxu0 %v558
    %v560 = vpop.f32.mrf.mxu0
    %v561 = vadd.f32 %v222, %v560
    %v562 = vand.u32 %v136, 4294901760
    %v563 = vsub.f32 %v136, %v562
    %v564 = vand.u32 %v563, 4294901760
    %v565 = vsub.f32 %v563, %v564
    %v566 = vand.u32 %v565, 4294901760
    %567 = vmatmul.f32.gmra.mxu0 %v566
    %v568 = vpop.f32.mrf.mxu0
    %v569 = vadd.f32 %v222, %v568
    %v570 = vand.u32 %v138, 4294901760
    %v571 = vsub.f32 %v138, %v570
    %v572 = vand.u32 %v571, 4294901760
    %v573 = vsub.f32 %v571, %v572
    %v574 = vand.u32 %v573, 4294901760
    %575 = vmatmul.f32.gmra.mxu0 %v574
    %v576 = vpop.f32.mrf.mxu0
    %v577 = vadd.f32 %v222, %v576
    %v578 = vand.u32 %v140, 4294901760
    %v579 = vsub.f32 %v140, %v578
    %v580 = vand.u32 %v579, 4294901760
    %v581 = vsub.f32 %v579, %v580
    %v582 = vand.u32 %v581, 4294901760
    %583 = vmatmul.f32.gmra.mxu0 %v582
    %v584 = vpop.f32.mrf.mxu0
    %v585 = vadd.f32 %v222, %v584
    %v586 = vand.u32 %v142, 4294901760
    %v587 = vsub.f32 %v142, %v586
    %v588 = vand.u32 %v587, 4294901760
    %v589 = vsub.f32 %v587, %v588
    %v590 = vand.u32 %v589, 4294901760
    %591 = vmatmul.f32.gmra.mxu0 %v590
    %v592 = vpop.f32.mrf.mxu0
    %v593 = vadd.f32 %v222, %v592
    %v594 = vand.u32 %v144, 4294901760
    %v595 = vsub.f32 %v144, %v594
    %v596 = vand.u32 %v595, 4294901760
    %v597 = vsub.f32 %v595, %v596
    %v598 = vand.u32 %v597, 4294901760
    %599 = vmatmul.f32.gmra.mxu0 %v598
    %v600 = vpop.f32.mrf.mxu0
    %v601 = vadd.f32 %v222, %v600
    %v602 = vand.u32 %v146, 4294901760
    %v603 = vsub.f32 %v146, %v602
    %v604 = vand.u32 %v603, 4294901760
    %v605 = vsub.f32 %v603, %v604
    %v606 = vand.u32 %v605, 4294901760
    %607 = vmatmul.f32.gmra.mxu0 %v606
    %v608 = vpop.f32.mrf.mxu0
    %v609 = vadd.f32 %v222, %v608
    %v610 = vand.u32 %v148, 4294901760
    %v611 = vsub.f32 %v148, %v610
    %v612 = vand.u32 %v611, 4294901760
    %v613 = vsub.f32 %v611, %v612
    %v614 = vand.u32 %v613, 4294901760
    %615 = vmatmul.f32.gmra.mxu0 %v614
    %v616 = vpop.f32.mrf.mxu0
    %v617 = vadd.f32 %v222, %v616
    %v618 = vand.u32 %v150, 4294901760
    %v619 = vsub.f32 %v150, %v618
    %v620 = vand.u32 %v619, 4294901760
    %v621 = vsub.f32 %v619, %v620
    %v622 = vand.u32 %v621, 4294901760
    %623 = vmatmul.f32.gmra.mxu0 %v622
    %v624 = vpop.f32.mrf.mxu0
    %v625 = vadd.f32 %v222, %v624
    %v626 = vand.u32 %v152, 4294901760
    %v627 = vsub.f32 %v152, %v626
    %v628 = vand.u32 %v627, 4294901760
    %v629 = vsub.f32 %v627, %v628
    %v630 = vand.u32 %v629, 4294901760
    %631 = vmatmul.f32.gmra.mxu0 %v630
    %v632 = vpop.f32.mrf.mxu0
    %v633 = vadd.f32 %v222, %v632
    %v634 = vand.u32 %v154, 4294901760
    %v635 = vsub.f32 %v154, %v634
    %v636 = vand.u32 %v635, 4294901760
    %v637 = vsub.f32 %v635, %v636
    %v638 = vand.u32 %v637, 4294901760
    %639 = vmatmul.f32.gmra.mxu0 %v638
    %v640 = vpop.f32.mrf.mxu0
    %v641 = vadd.f32 %v222, %v640
    %642 = vdwg.mxu0
    %v643 = vand.u32 %v186, 4294901760
    %v644 = vsub.f32 %v186, %v643
    %v645 = vand.u32 %v644, 4294901760
    %v646 = vsub.f32 %v644, %v645
    %v647 = vand.u32 %v646, 4294901760
    %648 = vmatpush.msra.mxu0 %v647
    %v649 = vand.u32 %v184, 4294901760
    %v650 = vsub.f32 %v184, %v649
    %v651 = vand.u32 %v650, 4294901760
    %v652 = vsub.f32 %v650, %v651
    %v653 = vand.u32 %v652, 4294901760
    %654 = vmatpush.msra.mxu0 %v653
    %v655 = vand.u32 %v182, 4294901760
    %v656 = vsub.f32 %v182, %v655
    %v657 = vand.u32 %v656, 4294901760
    %v658 = vsub.f32 %v656, %v657
    %v659 = vand.u32 %v658, 4294901760
    %660 = vmatpush.msra.mxu0 %v659
    %v661 = vand.u32 %v180, 4294901760
    %v662 = vsub.f32 %v180, %v661
    %v663 = vand.u32 %v662, 4294901760
    %v664 = vsub.f32 %v662, %v663
    %v665 = vand.u32 %v664, 4294901760
    %666 = vmatpush.msra.mxu0 %v665
    %v667 = vand.u32 %v178, 4294901760
    %v668 = vsub.f32 %v178, %v667
    %v669 = vand.u32 %v668, 4294901760
    %v670 = vsub.f32 %v668, %v669
    %v671 = vand.u32 %v670, 4294901760
    %672 = vmatpush.msra.mxu0 %v671
    %v673 = vand.u32 %v176, 4294901760
    %v674 = vsub.f32 %v176, %v673
    %v675 = vand.u32 %v674, 4294901760
    %v676 = vsub.f32 %v674, %v675
    %v677 = vand.u32 %v676, 4294901760
    %678 = vmatpush.msra.mxu0 %v677
    %v679 = vand.u32 %v174, 4294901760
    %v680 = vsub.f32 %v174, %v679
    %v681 = vand.u32 %v680, 4294901760
    %v682 = vsub.f32 %v680, %v681
    %v683 = vand.u32 %v682, 4294901760
    %684 = vmatpush.msra.mxu0 %v683
    %v685 = vand.u32 %v172, 4294901760
    %v686 = vsub.f32 %v172, %v685
    %v687 = vand.u32 %v686, 4294901760
    %v688 = vsub.f32 %v686, %v687
    %v689 = vand.u32 %v688, 4294901760
    %690 = vmatpush.msra.mxu0 %v689
    %v691 = vand.u32 %v170, 4294901760
    %v692 = vsub.f32 %v170, %v691
    %v693 = vand.u32 %v692, 4294901760
    %v694 = vsub.f32 %v692, %v693
    %v695 = vand.u32 %v694, 4294901760
    %696 = vmatpush.msra.mxu0 %v695
    %v697 = vand.u32 %v168, 4294901760
    %v698 = vsub.f32 %v168, %v697
    %v699 = vand.u32 %v698, 4294901760
    %v700 = vsub.f32 %v698, %v699
    %v701 = vand.u32 %v700, 4294901760
    %702 = vmatpush.msra.mxu0 %v701
    %v703 = vand.u32 %v166, 4294901760
    %v704 = vsub.f32 %v166, %v703
    %v705 = vand.u32 %v704, 4294901760
    %v706 = vsub.f32 %v704, %v705
    %v707 = vand.u32 %v706, 4294901760
    %708 = vmatpush.msra.mxu0 %v707
    %v709 = vand.u32 %v164, 4294901760
    %v710 = vsub.f32 %v164, %v709
    %v711 = vand.u32 %v710, 4294901760
    %v712 = vsub.f32 %v710, %v711
    %v713 = vand.u32 %v712, 4294901760
    %714 = vmatpush.msra.mxu0 %v713
    %v715 = vand.u32 %v162, 4294901760
    %v716 = vsub.f32 %v162, %v715
    %v717 = vand.u32 %v716, 4294901760
    %v718 = vsub.f32 %v716, %v717
    %v719 = vand.u32 %v718, 4294901760
    %720 = vmatpush.msra.mxu0 %v719
    %v721 = vand.u32 %v160, 4294901760
    %v722 = vsub.f32 %v160, %v721
    %v723 = vand.u32 %v722, 4294901760
    %v724 = vsub.f32 %v722, %v723
    %v725 = vand.u32 %v724, 4294901760
    %726 = vmatpush.msra.mxu0 %v725
    %v727 = vand.u32 %v158, 4294901760
    %v728 = vsub.f32 %v158, %v727
    %v729 = vand.u32 %v728, 4294901760
    %v730 = vsub.f32 %v728, %v729
    %v731 = vand.u32 %v730, 4294901760
    %732 = vmatpush.msra.mxu0 %v731
    %v733 = vand.u32 %v156, 4294901760
    %v734 = vsub.f32 %v156, %v733
    %v735 = vand.u32 %v734, 4294901760
    %v736 = vsub.f32 %v734, %v735
    %v737 = vand.u32 %v736, 4294901760
    %738 = vmatpush.msra.mxu0 %v737
    %v739 = vand.u32 %v60, 4294901760
    %740 = vmatmul.f32.gmra.mxu0 %v739
    %v741 = vpop.f32.mrf.mxu0
    %v742 = vadd.f32 %v265, %v741
    %v743 = vand.u32 %v62, 4294901760
    %744 = vmatmul.f32.gmra.mxu0 %v743
    %v745 = vpop.f32.mrf.mxu0
    %v746 = vadd.f32 %v273, %v745
    %v747 = vand.u32 %v64, 4294901760
    %748 = vmatmul.f32.gmra.mxu0 %v747
    %v749 = vpop.f32.mrf.mxu0
    %v750 = vadd.f32 %v281, %v749
    %v751 = vand.u32 %v66, 4294901760
    %752 = vmatmul.f32.gmra.mxu0 %v751
    %v753 = vpop.f32.mrf.mxu0
    %v754 = vadd.f32 %v289, %v753
    %v755 = vand.u32 %v68, 4294901760
    %756 = vmatmul.f32.gmra.mxu0 %v755
    %v757 = vpop.f32.mrf.mxu0
    %v758 = vadd.f32 %v297, %v757
    %v759 = vand.u32 %v70, 4294901760
    %760 = vmatmul.f32.gmra.mxu0 %v759
    %v761 = vpop.f32.mrf.mxu0
    %v762 = vadd.f32 %v305, %v761
    %v763 = vand.u32 %v72, 4294901760
    %764 = vmatmul.f32.gmra.mxu0 %v763
    %v765 = vpop.f32.mrf.mxu0
    %v766 = vadd.f32 %v313, %v765
    %v767 = vand.u32 %v74, 4294901760
    %768 = vmatmul.f32.gmra.mxu0 %v767
    %v769 = vpop.f32.mrf.mxu0
    %v770 = vadd.f32 %v321, %v769
    %v771 = vand.u32 %v76, 4294901760
    %772 = vmatmul.f32.gmra.mxu0 %v771
    %v773 = vpop.f32.mrf.mxu0
    %v774 = vadd.f32 %v329, %v773
    %v775 = vand.u32 %v78, 4294901760
    %776 = vmatmul.f32.gmra.mxu0 %v775
    %v777 = vpop.f32.mrf.mxu0
    %v778 = vadd.f32 %v337, %v777
    %v779 = vand.u32 %v80, 4294901760
    %780 = vmatmul.f32.gmra.mxu0 %v779
    %v781 = vpop.f32.mrf.mxu0
    %v782 = vadd.f32 %v345, %v781
    %v783 = vand.u32 %v82, 4294901760
    %784 = vmatmul.f32.gmra.mxu0 %v783
    %v785 = vpop.f32.mrf.mxu0
    %v786 = vadd.f32 %v353, %v785
    %v787 = vand.u32 %v84, 4294901760
    %788 = vmatmul.f32.gmra.mxu0 %v787
    %v789 = vpop.f32.mrf.mxu0
    %v790 = vadd.f32 %v361, %v789
    %v791 = vand.u32 %v86, 4294901760
    %792 = vmatmul.f32.gmra.mxu0 %v791
    %v793 = vpop.f32.mrf.mxu0
    %v794 = vadd.f32 %v369, %v793
    %v795 = vand.u32 %v88, 4294901760
    %796 = vmatmul.f32.gmra.mxu0 %v795
    %v797 = vpop.f32.mrf.mxu0
    %v798 = vadd.f32 %v377, %v797
    %v799 = vand.u32 %v90, 4294901760
    %800 = vmatmul.f32.gmra.mxu0 %v799
    %v801 = vpop.f32.mrf.mxu0
    %v802 = vadd.f32 %v385, %v801
    %v803 = vand.u32 %v92, 4294901760
    %804 = vmatmul.f32.gmra.mxu0 %v803
    %v805 = vpop.f32.mrf.mxu0
    %v806 = vadd.f32 %v393, %v805
    %v807 = vand.u32 %v94, 4294901760
    %808 = vmatmul.f32.gmra.mxu0 %v807
    %v809 = vpop.f32.mrf.mxu0
    %v810 = vadd.f32 %v401, %v809
    %v811 = vand.u32 %v96, 4294901760
    %812 = vmatmul.f32.gmra.mxu0 %v811
    %v813 = vpop.f32.mrf.mxu0
    %v814 = vadd.f32 %v409, %v813
    %v815 = vand.u32 %v98, 4294901760
    %816 = vmatmul.f32.gmra.mxu0 %v815
    %v817 = vpop.f32.mrf.mxu0
    %v818 = vadd.f32 %v417, %v817
    %v819 = vand.u32 %v100, 4294901760
    %820 = vmatmul.f32.gmra.mxu0 %v819
    %v821 = vpop.f32.mrf.mxu0
    %v822 = vadd.f32 %v425, %v821
    %v823 = vand.u32 %v102, 4294901760
    %824 = vmatmul.f32.gmra.mxu0 %v823
    %v825 = vpop.f32.mrf.mxu0
    %v826 = vadd.f32 %v433, %v825
    %v827 = vand.u32 %v104, 4294901760
    %828 = vmatmul.f32.gmra.mxu0 %v827
    %v829 = vpop.f32.mrf.mxu0
    %v830 = vadd.f32 %v441, %v829
    %v831 = vand.u32 %v106, 4294901760
    %832 = vmatmul.f32.gmra.mxu0 %v831
    %v833 = vpop.f32.mrf.mxu0
    %v834 = vadd.f32 %v449, %v833
    %v835 = vand.u32 %v108, 4294901760
    %836 = vmatmul.f32.gmra.mxu0 %v835
    %v837 = vpop.f32.mrf.mxu0
    %v838 = vadd.f32 %v457, %v837
    %v839 = vand.u32 %v110, 4294901760
    %840 = vmatmul.f32.gmra.mxu0 %v839
    %v841 = vpop.f32.mrf.mxu0
    %v842 = vadd.f32 %v465, %v841
    %v843 = vand.u32 %v112, 4294901760
    %844 = vmatmul.f32.gmra.mxu0 %v843
    %v845 = vpop.f32.mrf.mxu0
    %v846 = vadd.f32 %v473, %v845
    %v847 = vand.u32 %v114, 4294901760
    %848 = vmatmul.f32.gmra.mxu0 %v847
    %v849 = vpop.f32.mrf.mxu0
    %v850 = vadd.f32 %v481, %v849
    %v851 = vand.u32 %v116, 4294901760
    %852 = vmatmul.f32.gmra.mxu0 %v851
    %v853 = vpop.f32.mrf.mxu0
    %v854 = vadd.f32 %v489, %v853
    %v855 = vand.u32 %v118, 4294901760
    %856 = vmatmul.f32.gmra.mxu0 %v855
    %v857 = vpop.f32.mrf.mxu0
    %v858 = vadd.f32 %v497, %v857
    %v859 = vand.u32 %v120, 4294901760
    %860 = vmatmul.f32.gmra.mxu0 %v859
    %v861 = vpop.f32.mrf.mxu0
    %v862 = vadd.f32 %v505, %v861
    %v863 = vand.u32 %v122, 4294901760
    %864 = vmatmul.f32.gmra.mxu0 %v863
    %v865 = vpop.f32.mrf.mxu0
    %v866 = vadd.f32 %v513, %v865
    %v867 = vand.u32 %v124, 4294901760
    %868 = vmatmul.f32.gmra.mxu0 %v867
    %v869 = vpop.f32.mrf.mxu0
    %v870 = vadd.f32 %v521, %v869
    %v871 = vand.u32 %v126, 4294901760
    %872 = vmatmul.f32.gmra.mxu0 %v871
    %v873 = vpop.f32.mrf.mxu0
    %v874 = vadd.f32 %v529, %v873
    %v875 = vand.u32 %v128, 4294901760
    %876 = vmatmul.f32.gmra.mxu0 %v875
    %v877 = vpop.f32.mrf.mxu0
    %v878 = vadd.f32 %v537, %v877
    %v879 = vand.u32 %v130, 4294901760
    %880 = vmatmul.f32.gmra.mxu0 %v879
    %v881 = vpop.f32.mrf.mxu0
    %v882 = vadd.f32 %v545, %v881
    %v883 = vand.u32 %v132, 4294901760
    %884 = vmatmul.f32.gmra.mxu0 %v883
    %v885 = vpop.f32.mrf.mxu0
    %v886 = vadd.f32 %v553, %v885
    %v887 = vand.u32 %v134, 4294901760
    %888 = vmatmul.f32.gmra.mxu0 %v887
    %v889 = vpop.f32.mrf.mxu0
    %v890 = vadd.f32 %v561, %v889
    %v891 = vand.u32 %v136, 4294901760
    %892 = vmatmul.f32.gmra.mxu0 %v891
    %v893 = vpop.f32.mrf.mxu0
    %v894 = vadd.f32 %v569, %v893
    %v895 = vand.u32 %v138, 4294901760
    %896 = vmatmul.f32.gmra.mxu0 %v895
    %v897 = vpop.f32.mrf.mxu0
    %v898 = vadd.f32 %v577, %v897
    %v899 = vand.u32 %v140, 4294901760
    %900 = vmatmul.f32.gmra.mxu0 %v899
    %v901 = vpop.f32.mrf.mxu0
    %v902 = vadd.f32 %v585, %v901
    %v903 = vand.u32 %v142, 4294901760
    %904 = vmatmul.f32.gmra.mxu0 %v903
    %v905 = vpop.f32.mrf.mxu0
    %v906 = vadd.f32 %v593, %v905
    %v907 = vand.u32 %v144, 4294901760
    %908 = vmatmul.f32.gmra.mxu0 %v907
    %v909 = vpop.f32.mrf.mxu0
    %v910 = vadd.f32 %v601, %v909
    %v911 = vand.u32 %v146, 4294901760
    %912 = vmatmul.f32.gmra.mxu0 %v911
    %v913 = vpop.f32.mrf.mxu0
    %v914 = vadd.f32 %v609, %v913
    %v915 = vand.u32 %v148, 4294901760
    %916 = vmatmul.f32.gmra.mxu0 %v915
    %v917 = vpop.f32.mrf.mxu0
    %v918 = vadd.f32 %v617, %v917
    %v919 = vand.u32 %v150, 4294901760
    %920 = vmatmul.f32.gmra.mxu0 %v919
    %v921 = vpop.f32.mrf.mxu0
    %v922 = vadd.f32 %v625, %v921
    %v923 = vand.u32 %v152, 4294901760
    %924 = vmatmul.f32.gmra.mxu0 %v923
    %v925 = vpop.f32.mrf.mxu0
    %v926 = vadd.f32 %v633, %v925
    %v927 = vand.u32 %v154, 4294901760
    %928 = vmatmul.f32.gmra.mxu0 %v927
    %v929 = vpop.f32.mrf.mxu0
    %v930 = vadd.f32 %v641, %v929
    %931 = vdwg.mxu0
    %v932 = vand.u32 %v186, 4294901760
    %v933 = vsub.f32 %v186, %v932
    %934 = vmatpush.msra.mxu0 %v933
    %v935 = vand.u32 %v184, 4294901760
    %v936 = vsub.f32 %v184, %v935
    %937 = vmatpush.msra.mxu0 %v936
    %v938 = vand.u32 %v182, 4294901760
    %v939 = vsub.f32 %v182, %v938
    %940 = vmatpush.msra.mxu0 %v939
    %v941 = vand.u32 %v180, 4294901760
    %v942 = vsub.f32 %v180, %v941
    %943 = vmatpush.msra.mxu0 %v942
    %v944 = vand.u32 %v178, 4294901760
    %v945 = vsub.f32 %v178, %v944
    %946 = vmatpush.msra.mxu0 %v945
    %v947 = vand.u32 %v176, 4294901760
    %v948 = vsub.f32 %v176, %v947
    %949 = vmatpush.msra.mxu0 %v948
    %v950 = vand.u32 %v174, 4294901760
    %v951 = vsub.f32 %v174, %v950
    %952 = vmatpush.msra.mxu0 %v951
    %v953 = vand.u32 %v172, 4294901760
    %v954 = vsub.f32 %v172, %v953
    %955 = vmatpush.msra.mxu0 %v954
    %v956 = vand.u32 %v170, 4294901760
    %v957 = vsub.f32 %v170, %v956
    %958 = vmatpush.msra.mxu0 %v957
    %v959 = vand.u32 %v168, 4294901760
    %v960 = vsub.f32 %v168, %v959
    %961 = vmatpush.msra.mxu0 %v960
    %v962 = vand.u32 %v166, 4294901760
    %v963 = vsub.f32 %v166, %v962
    %964 = vmatpush.msra.mxu0 %v963
    %v965 = vand.u32 %v164, 4294901760
    %v966 = vsub.f32 %v164, %v965
    %967 = vmatpush.msra.mxu0 %v966
    %v968 = vand.u32 %v162, 4294901760
    %v969 = vsub.f32 %v162, %v968
    %970 = vmatpush.msra.mxu0 %v969
    %v971 = vand.u32 %v160, 4294901760
    %v972 = vsub.f32 %v160, %v971
    %973 = vmatpush.msra.mxu0 %v972
    %v974 = vand.u32 %v158, 4294901760
    %v975 = vsub.f32 %v158, %v974
    %976 = vmatpush.msra.mxu0 %v975
    %v977 = vand.u32 %v156, 4294901760
    %v978 = vsub.f32 %v156, %v977
    %979 = vmatpush.msra.mxu0 %v978
    %v980 = vand.u32 %v60, 4294901760
    %v981 = vsub.f32 %v60, %v980
    %982 = vmatmul.f32.gmra.mxu0 %v981
    %v983 = vpop.f32.mrf.mxu0
    %v984 = vadd.f32 %v742, %v983
    %v985 = vand.u32 %v62, 4294901760
    %v986 = vsub.f32 %v62, %v985
    %987 = vmatmul.f32.gmra.mxu0 %v986
    %v988 = vpop.f32.mrf.mxu0
    %v989 = vadd.f32 %v746, %v988
    %v990 = vand.u32 %v64, 4294901760
    %v991 = vsub.f32 %v64, %v990
    %992 = vmatmul.f32.gmra.mxu0 %v991
    %v993 = vpop.f32.mrf.mxu0
    %v994 = vadd.f32 %v750, %v993
    %v995 = vand.u32 %v66, 4294901760
    %v996 = vsub.f32 %v66, %v995
    %997 = vmatmul.f32.gmra.mxu0 %v996
    %v998 = vpop.f32.mrf.mxu0
    %v999 = vadd.f32 %v754, %v998
    %v1000 = vand.u32 %v68, 4294901760
    %v1001 = vsub.f32 %v68, %v1000
    %1002 = vmatmul.f32.gmra.mxu0 %v1001
    %v1003 = vpop.f32.mrf.mxu0
    %v1004 = vadd.f32 %v758, %v1003
    %v1005 = vand.u32 %v70, 4294901760
    %v1006 = vsub.f32 %v70, %v1005
    %1007 = vmatmul.f32.gmra.mxu0 %v1006
    %v1008 = vpop.f32.mrf.mxu0
    %v1009 = vadd.f32 %v762, %v1008
    %v1010 = vand.u32 %v72, 4294901760
    %v1011 = vsub.f32 %v72, %v1010
    %1012 = vmatmul.f32.gmra.mxu0 %v1011
    %v1013 = vpop.f32.mrf.mxu0
    %v1014 = vadd.f32 %v766, %v1013
    %v1015 = vand.u32 %v74, 4294901760
    %v1016 = vsub.f32 %v74, %v1015
    %1017 = vmatmul.f32.gmra.mxu0 %v1016
    %v1018 = vpop.f32.mrf.mxu0
    %v1019 = vadd.f32 %v770, %v1018
    %v1020 = vand.u32 %v76, 4294901760
    %v1021 = vsub.f32 %v76, %v1020
    %1022 = vmatmul.f32.gmra.mxu0 %v1021
    %v1023 = vpop.f32.mrf.mxu0
    %v1024 = vadd.f32 %v774, %v1023
    %v1025 = vand.u32 %v78, 4294901760
    %v1026 = vsub.f32 %v78, %v1025
    %1027 = vmatmul.f32.gmra.mxu0 %v1026
    %v1028 = vpop.f32.mrf.mxu0
    %v1029 = vadd.f32 %v778, %v1028
    %v1030 = vand.u32 %v80, 4294901760
    %v1031 = vsub.f32 %v80, %v1030
    %1032 = vmatmul.f32.gmra.mxu0 %v1031
    %v1033 = vpop.f32.mrf.mxu0
    %v1034 = vadd.f32 %v782, %v1033
    %v1035 = vand.u32 %v82, 4294901760
    %v1036 = vsub.f32 %v82, %v1035
    %1037 = vmatmul.f32.gmra.mxu0 %v1036
    %v1038 = vpop.f32.mrf.mxu0
    %v1039 = vadd.f32 %v786, %v1038
    %v1040 = vand.u32 %v84, 4294901760
    %v1041 = vsub.f32 %v84, %v1040
    %1042 = vmatmul.f32.gmra.mxu0 %v1041
    %v1043 = vpop.f32.mrf.mxu0
    %v1044 = vadd.f32 %v790, %v1043
    %v1045 = vand.u32 %v86, 4294901760
    %v1046 = vsub.f32 %v86, %v1045
    %1047 = vmatmul.f32.gmra.mxu0 %v1046
    %v1048 = vpop.f32.mrf.mxu0
    %v1049 = vadd.f32 %v794, %v1048
    %v1050 = vand.u32 %v88, 4294901760
    %v1051 = vsub.f32 %v88, %v1050
    %1052 = vmatmul.f32.gmra.mxu0 %v1051
    %v1053 = vpop.f32.mrf.mxu0
    %v1054 = vadd.f32 %v798, %v1053
    %v1055 = vand.u32 %v90, 4294901760
    %v1056 = vsub.f32 %v90, %v1055
    %1057 = vmatmul.f32.gmra.mxu0 %v1056
    %v1058 = vpop.f32.mrf.mxu0
    %v1059 = vadd.f32 %v802, %v1058
    %v1060 = vand.u32 %v92, 4294901760
    %v1061 = vsub.f32 %v92, %v1060
    %1062 = vmatmul.f32.gmra.mxu0 %v1061
    %v1063 = vpop.f32.mrf.mxu0
    %v1064 = vadd.f32 %v806, %v1063
    %v1065 = vand.u32 %v94, 4294901760
    %v1066 = vsub.f32 %v94, %v1065
    %1067 = vmatmul.f32.gmra.mxu0 %v1066
    %v1068 = vpop.f32.mrf.mxu0
    %v1069 = vadd.f32 %v810, %v1068
    %v1070 = vand.u32 %v96, 4294901760
    %v1071 = vsub.f32 %v96, %v1070
    %1072 = vmatmul.f32.gmra.mxu0 %v1071
    %v1073 = vpop.f32.mrf.mxu0
    %v1074 = vadd.f32 %v814, %v1073
    %v1075 = vand.u32 %v98, 4294901760
    %v1076 = vsub.f32 %v98, %v1075
    %1077 = vmatmul.f32.gmra.mxu0 %v1076
    %v1078 = vpop.f32.mrf.mxu0
    %v1079 = vadd.f32 %v818, %v1078
    %v1080 = vand.u32 %v100, 4294901760
    %v1081 = vsub.f32 %v100, %v1080
    %1082 = vmatmul.f32.gmra.mxu0 %v1081
    %v1083 = vpop.f32.mrf.mxu0
    %v1084 = vadd.f32 %v822, %v1083
    %v1085 = vand.u32 %v102, 4294901760
    %v1086 = vsub.f32 %v102, %v1085
    %1087 = vmatmul.f32.gmra.mxu0 %v1086
    %v1088 = vpop.f32.mrf.mxu0
    %v1089 = vadd.f32 %v826, %v1088
    %v1090 = vand.u32 %v104, 4294901760
    %v1091 = vsub.f32 %v104, %v1090
    %1092 = vmatmul.f32.gmra.mxu0 %v1091
    %v1093 = vpop.f32.mrf.mxu0
    %v1094 = vadd.f32 %v830, %v1093
    %v1095 = vand.u32 %v106, 4294901760
    %v1096 = vsub.f32 %v106, %v1095
    %1097 = vmatmul.f32.gmra.mxu0 %v1096
    %v1098 = vpop.f32.mrf.mxu0
    %v1099 = vadd.f32 %v834, %v1098
    %v1100 = vand.u32 %v108, 4294901760
    %v1101 = vsub.f32 %v108, %v1100
    %1102 = vmatmul.f32.gmra.mxu0 %v1101
    %v1103 = vpop.f32.mrf.mxu0
    %v1104 = vadd.f32 %v838, %v1103
    %v1105 = vand.u32 %v110, 4294901760
    %v1106 = vsub.f32 %v110, %v1105
    %1107 = vmatmul.f32.gmra.mxu0 %v1106
    %v1108 = vpop.f32.mrf.mxu0
    %v1109 = vadd.f32 %v842, %v1108
    %v1110 = vand.u32 %v112, 4294901760
    %v1111 = vsub.f32 %v112, %v1110
    %1112 = vmatmul.f32.gmra.mxu0 %v1111
    %v1113 = vpop.f32.mrf.mxu0
    %v1114 = vadd.f32 %v846, %v1113
    %v1115 = vand.u32 %v114, 4294901760
    %v1116 = vsub.f32 %v114, %v1115
    %1117 = vmatmul.f32.gmra.mxu0 %v1116
    %v1118 = vpop.f32.mrf.mxu0
    %v1119 = vadd.f32 %v850, %v1118
    %v1120 = vand.u32 %v116, 4294901760
    %v1121 = vsub.f32 %v116, %v1120
    %1122 = vmatmul.f32.gmra.mxu0 %v1121
    %v1123 = vpop.f32.mrf.mxu0
    %v1124 = vadd.f32 %v854, %v1123
    %v1125 = vand.u32 %v118, 4294901760
    %v1126 = vsub.f32 %v118, %v1125
    %1127 = vmatmul.f32.gmra.mxu0 %v1126
    %v1128 = vpop.f32.mrf.mxu0
    %v1129 = vadd.f32 %v858, %v1128
    %v1130 = vand.u32 %v120, 4294901760
    %v1131 = vsub.f32 %v120, %v1130
    %1132 = vmatmul.f32.gmra.mxu0 %v1131
    %v1133 = vpop.f32.mrf.mxu0
    %v1134 = vadd.f32 %v862, %v1133
    %v1135 = vand.u32 %v122, 4294901760
    %v1136 = vsub.f32 %v122, %v1135
    %1137 = vmatmul.f32.gmra.mxu0 %v1136
    %v1138 = vpop.f32.mrf.mxu0
    %v1139 = vadd.f32 %v866, %v1138
    %v1140 = vand.u32 %v124, 4294901760
    %v1141 = vsub.f32 %v124, %v1140
    %1142 = vmatmul.f32.gmra.mxu0 %v1141
    %v1143 = vpop.f32.mrf.mxu0
    %v1144 = vadd.f32 %v870, %v1143
    %v1145 = vand.u32 %v126, 4294901760
    %v1146 = vsub.f32 %v126, %v1145
    %1147 = vmatmul.f32.gmra.mxu0 %v1146
    %v1148 = vpop.f32.mrf.mxu0
    %v1149 = vadd.f32 %v874, %v1148
    %v1150 = vand.u32 %v128, 4294901760
    %v1151 = vsub.f32 %v128, %v1150
    %1152 = vmatmul.f32.gmra.mxu0 %v1151
    %v1153 = vpop.f32.mrf.mxu0
    %v1154 = vadd.f32 %v878, %v1153
    %v1155 = vand.u32 %v130, 4294901760
    %v1156 = vsub.f32 %v130, %v1155
    %1157 = vmatmul.f32.gmra.mxu0 %v1156
    %v1158 = vpop.f32.mrf.mxu0
    %v1159 = vadd.f32 %v882, %v1158
    %v1160 = vand.u32 %v132, 4294901760
    %v1161 = vsub.f32 %v132, %v1160
    %1162 = vmatmul.f32.gmra.mxu0 %v1161
    %v1163 = vpop.f32.mrf.mxu0
    %v1164 = vadd.f32 %v886, %v1163
    %v1165 = vand.u32 %v134, 4294901760
    %v1166 = vsub.f32 %v134, %v1165
    %1167 = vmatmul.f32.gmra.mxu0 %v1166
    %v1168 = vpop.f32.mrf.mxu0
    %v1169 = vadd.f32 %v890, %v1168
    %v1170 = vand.u32 %v136, 4294901760
    %v1171 = vsub.f32 %v136, %v1170
    %1172 = vmatmul.f32.gmra.mxu0 %v1171
    %v1173 = vpop.f32.mrf.mxu0
    %v1174 = vadd.f32 %v894, %v1173
    %v1175 = vand.u32 %v138, 4294901760
    %v1176 = vsub.f32 %v138, %v1175
    %1177 = vmatmul.f32.gmra.mxu0 %v1176
    %v1178 = vpop.f32.mrf.mxu0
    %v1179 = vadd.f32 %v898, %v1178
    %v1180 = vand.u32 %v140, 4294901760
    %v1181 = vsub.f32 %v140, %v1180
    %1182 = vmatmul.f32.gmra.mxu0 %v1181
    %v1183 = vpop.f32.mrf.mxu0
    %v1184 = vadd.f32 %v902, %v1183
    %v1185 = vand.u32 %v142, 4294901760
    %v1186 = vsub.f32 %v142, %v1185
    %1187 = vmatmul.f32.gmra.mxu0 %v1186
    %v1188 = vpop.f32.mrf.mxu0
    %v1189 = vadd.f32 %v906, %v1188
    %v1190 = vand.u32 %v144, 4294901760
    %v1191 = vsub.f32 %v144, %v1190
    %1192 = vmatmul.f32.gmra.mxu0 %v1191
    %v1193 = vpop.f32.mrf.mxu0
    %v1194 = vadd.f32 %v910, %v1193
    %v1195 = vand.u32 %v146, 4294901760
    %v1196 = vsub.f32 %v146, %v1195
    %1197 = vmatmul.f32.gmra.mxu0 %v1196
    %v1198 = vpop.f32.mrf.mxu0
    %v1199 = vadd.f32 %v914, %v1198
    %v1200 = vand.u32 %v148, 4294901760
    %v1201 = vsub.f32 %v148, %v1200
    %1202 = vmatmul.f32.gmra.mxu0 %v1201
    %v1203 = vpop.f32.mrf.mxu0
    %v1204 = vadd.f32 %v918, %v1203
    %v1205 = vand.u32 %v150, 4294901760
    %v1206 = vsub.f32 %v150, %v1205
    %1207 = vmatmul.f32.gmra.mxu0 %v1206
    %v1208 = vpop.f32.mrf.mxu0
    %v1209 = vadd.f32 %v922, %v1208
    %v1210 = vand.u32 %v152, 4294901760
    %v1211 = vsub.f32 %v152, %v1210
    %1212 = vmatmul.f32.gmra.mxu0 %v1211
    %v1213 = vpop.f32.mrf.mxu0
    %v1214 = vadd.f32 %v926, %v1213
    %v1215 = vand.u32 %v154, 4294901760
    %v1216 = vsub.f32 %v154, %v1215
    %1217 = vmatmul.f32.gmra.mxu0 %v1216
    %v1218 = vpop.f32.mrf.mxu0
    %v1219 = vadd.f32 %v930, %v1218
    %1220 = vdwg.mxu0
    %v1221 = vand.u32 %v186, 4294901760
    %1222 = vmatpush.msra.mxu0 %v1221
    %v1223 = vand.u32 %v184, 4294901760
    %1224 = vmatpush.msra.mxu0 %v1223
    %v1225 = vand.u32 %v182, 4294901760
    %1226 = vmatpush.msra.mxu0 %v1225
    %v1227 = vand.u32 %v180, 4294901760
    %1228 = vmatpush.msra.mxu0 %v1227
    %v1229 = vand.u32 %v178, 4294901760
    %1230 = vmatpush.msra.mxu0 %v1229
    %v1231 = vand.u32 %v176, 4294901760
    %1232 = vmatpush.msra.mxu0 %v1231
    %v1233 = vand.u32 %v174, 4294901760
    %1234 = vmatpush.msra.mxu0 %v1233
    %v1235 = vand.u32 %v172, 4294901760
    %1236 = vmatpush.msra.mxu0 %v1235
    %v1237 = vand.u32 %v170, 4294901760
    %1238 = vmatpush.msra.mxu0 %v1237
    %v1239 = vand.u32 %v168, 4294901760
    %1240 = vmatpush.msra.mxu0 %v1239
    %v1241 = vand.u32 %v166, 4294901760
    %1242 = vmatpush.msra.mxu0 %v1241
    %v1243 = vand.u32 %v164, 4294901760
    %1244 = vmatpush.msra.mxu0 %v1243
    %v1245 = vand.u32 %v162, 4294901760
    %1246 = vmatpush.msra.mxu0 %v1245
    %v1247 = vand.u32 %v160, 4294901760
    %1248 = vmatpush.msra.mxu0 %v1247
    %v1249 = vand.u32 %v158, 4294901760
    %1250 = vmatpush.msra.mxu0 %v1249
    %v1251 = vand.u32 %v156, 4294901760
    %1252 = vmatpush.msra.mxu0 %v1251
    %v1253 = vand.u32 %v60, 4294901760
    %v1254 = vsub.f32 %v60, %v1253
    %v1255 = vand.u32 %v1254, 4294901760
    %1256 = vmatmul.f32.gmra.mxu0 %v1255
    %v1257 = vpop.f32.mrf.mxu0
    %v1258 = vadd.f32 %v984, %v1257
    %v1259 = vand.u32 %v62, 4294901760
    %v1260 = vsub.f32 %v62, %v1259
    %v1261 = vand.u32 %v1260, 4294901760
    %1262 = vmatmul.f32.gmra.mxu0 %v1261
    %v1263 = vpop.f32.mrf.mxu0
    %v1264 = vadd.f32 %v989, %v1263
    %v1265 = vand.u32 %v64, 4294901760
    %v1266 = vsub.f32 %v64, %v1265
    %v1267 = vand.u32 %v1266, 4294901760
    %1268 = vmatmul.f32.gmra.mxu0 %v1267
    %v1269 = vpop.f32.mrf.mxu0
    %v1270 = vadd.f32 %v994, %v1269
    %v1271 = vand.u32 %v66, 4294901760
    %v1272 = vsub.f32 %v66, %v1271
    %v1273 = vand.u32 %v1272, 4294901760
    %1274 = vmatmul.f32.gmra.mxu0 %v1273
    %v1275 = vpop.f32.mrf.mxu0
    %v1276 = vadd.f32 %v999, %v1275
    %v1277 = vand.u32 %v68, 4294901760
    %v1278 = vsub.f32 %v68, %v1277
    %v1279 = vand.u32 %v1278, 4294901760
    %1280 = vmatmul.f32.gmra.mxu0 %v1279
    %v1281 = vpop.f32.mrf.mxu0
    %v1282 = vadd.f32 %v1004, %v1281
    %v1283 = vand.u32 %v70, 4294901760
    %v1284 = vsub.f32 %v70, %v1283
    %v1285 = vand.u32 %v1284, 4294901760
    %1286 = vmatmul.f32.gmra.mxu0 %v1285
    %v1287 = vpop.f32.mrf.mxu0
    %v1288 = vadd.f32 %v1009, %v1287
    %v1289 = vand.u32 %v72, 4294901760
    %v1290 = vsub.f32 %v72, %v1289
    %v1291 = vand.u32 %v1290, 4294901760
    %1292 = vmatmul.f32.gmra.mxu0 %v1291
    %v1293 = vpop.f32.mrf.mxu0
    %v1294 = vadd.f32 %v1014, %v1293
    %v1295 = vand.u32 %v74, 4294901760
    %v1296 = vsub.f32 %v74, %v1295
    %v1297 = vand.u32 %v1296, 4294901760
    %1298 = vmatmul.f32.gmra.mxu0 %v1297
    %v1299 = vpop.f32.mrf.mxu0
    %v1300 = vadd.f32 %v1019, %v1299
    %v1301 = vand.u32 %v76, 4294901760
    %v1302 = vsub.f32 %v76, %v1301
    %v1303 = vand.u32 %v1302, 4294901760
    %1304 = vmatmul.f32.gmra.mxu0 %v1303
    %v1305 = vpop.f32.mrf.mxu0
    %v1306 = vadd.f32 %v1024, %v1305
    %v1307 = vand.u32 %v78, 4294901760
    %v1308 = vsub.f32 %v78, %v1307
    %v1309 = vand.u32 %v1308, 4294901760
    %1310 = vmatmul.f32.gmra.mxu0 %v1309
    %v1311 = vpop.f32.mrf.mxu0
    %v1312 = vadd.f32 %v1029, %v1311
    %v1313 = vand.u32 %v80, 4294901760
    %v1314 = vsub.f32 %v80, %v1313
    %v1315 = vand.u32 %v1314, 4294901760
    %1316 = vmatmul.f32.gmra.mxu0 %v1315
    %v1317 = vpop.f32.mrf.mxu0
    %v1318 = vadd.f32 %v1034, %v1317
    %v1319 = vand.u32 %v82, 4294901760
    %v1320 = vsub.f32 %v82, %v1319
    %v1321 = vand.u32 %v1320, 4294901760
    %1322 = vmatmul.f32.gmra.mxu0 %v1321
    %v1323 = vpop.f32.mrf.mxu0
    %v1324 = vadd.f32 %v1039, %v1323
    %v1325 = vand.u32 %v84, 4294901760
    %v1326 = vsub.f32 %v84, %v1325
    %v1327 = vand.u32 %v1326, 4294901760
    %1328 = vmatmul.f32.gmra.mxu0 %v1327
    %v1329 = vpop.f32.mrf.mxu0
    %v1330 = vadd.f32 %v1044, %v1329
    %v1331 = vand.u32 %v86, 4294901760
    %v1332 = vsub.f32 %v86, %v1331
    %v1333 = vand.u32 %v1332, 4294901760
    %1334 = vmatmul.f32.gmra.mxu0 %v1333
    %v1335 = vpop.f32.mrf.mxu0
    %v1336 = vadd.f32 %v1049, %v1335
    %v1337 = vand.u32 %v88, 4294901760
    %v1338 = vsub.f32 %v88, %v1337
    %v1339 = vand.u32 %v1338, 4294901760
    %1340 = vmatmul.f32.gmra.mxu0 %v1339
    %v1341 = vpop.f32.mrf.mxu0
    %v1342 = vadd.f32 %v1054, %v1341
    %v1343 = vand.u32 %v90, 4294901760
    %v1344 = vsub.f32 %v90, %v1343
    %v1345 = vand.u32 %v1344, 4294901760
    %1346 = vmatmul.f32.gmra.mxu0 %v1345
    %v1347 = vpop.f32.mrf.mxu0
    %v1348 = vadd.f32 %v1059, %v1347
    %v1349 = vand.u32 %v92, 4294901760
    %v1350 = vsub.f32 %v92, %v1349
    %v1351 = vand.u32 %v1350, 4294901760
    %1352 = vmatmul.f32.gmra.mxu0 %v1351
    %v1353 = vpop.f32.mrf.mxu0
    %v1354 = vadd.f32 %v1064, %v1353
    %v1355 = vand.u32 %v94, 4294901760
    %v1356 = vsub.f32 %v94, %v1355
    %v1357 = vand.u32 %v1356, 4294901760
    %1358 = vmatmul.f32.gmra.mxu0 %v1357
    %v1359 = vpop.f32.mrf.mxu0
    %v1360 = vadd.f32 %v1069, %v1359
    %v1361 = vand.u32 %v96, 4294901760
    %v1362 = vsub.f32 %v96, %v1361
    %v1363 = vand.u32 %v1362, 4294901760
    %1364 = vmatmul.f32.gmra.mxu0 %v1363
    %v1365 = vpop.f32.mrf.mxu0
    %v1366 = vadd.f32 %v1074, %v1365
    %v1367 = vand.u32 %v98, 4294901760
    %v1368 = vsub.f32 %v98, %v1367
    %v1369 = vand.u32 %v1368, 4294901760
    %1370 = vmatmul.f32.gmra.mxu0 %v1369
    %v1371 = vpop.f32.mrf.mxu0
    %v1372 = vadd.f32 %v1079, %v1371
    %v1373 = vand.u32 %v100, 4294901760
    %v1374 = vsub.f32 %v100, %v1373
    %v1375 = vand.u32 %v1374, 4294901760
    %1376 = vmatmul.f32.gmra.mxu0 %v1375
    %v1377 = vpop.f32.mrf.mxu0
    %v1378 = vadd.f32 %v1084, %v1377
    %v1379 = vand.u32 %v102, 4294901760
    %v1380 = vsub.f32 %v102, %v1379
    %v1381 = vand.u32 %v1380, 4294901760
    %1382 = vmatmul.f32.gmra.mxu0 %v1381
    %v1383 = vpop.f32.mrf.mxu0
    %v1384 = vadd.f32 %v1089, %v1383
    %v1385 = vand.u32 %v104, 4294901760
    %v1386 = vsub.f32 %v104, %v1385
    %v1387 = vand.u32 %v1386, 4294901760
    %1388 = vmatmul.f32.gmra.mxu0 %v1387
    %v1389 = vpop.f32.mrf.mxu0
    %v1390 = vadd.f32 %v1094, %v1389
    %v1391 = vand.u32 %v106, 4294901760
    %v1392 = vsub.f32 %v106, %v1391
    %v1393 = vand.u32 %v1392, 4294901760
    %1394 = vmatmul.f32.gmra.mxu0 %v1393
    %v1395 = vpop.f32.mrf.mxu0
    %v1396 = vadd.f32 %v1099, %v1395
    %v1397 = vand.u32 %v108, 4294901760
    %v1398 = vsub.f32 %v108, %v1397
    %v1399 = vand.u32 %v1398, 4294901760
    %1400 = vmatmul.f32.gmra.mxu0 %v1399
    %v1401 = vpop.f32.mrf.mxu0
    %v1402 = vadd.f32 %v1104, %v1401
    %v1403 = vand.u32 %v110, 4294901760
    %v1404 = vsub.f32 %v110, %v1403
    %v1405 = vand.u32 %v1404, 4294901760
    %1406 = vmatmul.f32.gmra.mxu0 %v1405
    %v1407 = vpop.f32.mrf.mxu0
    %v1408 = vadd.f32 %v1109, %v1407
    %v1409 = vand.u32 %v112, 4294901760
    %v1410 = vsub.f32 %v112, %v1409
    %v1411 = vand.u32 %v1410, 4294901760
    %1412 = vmatmul.f32.gmra.mxu0 %v1411
    %v1413 = vpop.f32.mrf.mxu0
    %v1414 = vadd.f32 %v1114, %v1413
    %v1415 = vand.u32 %v114, 4294901760
    %v1416 = vsub.f32 %v114, %v1415
    %v1417 = vand.u32 %v1416, 4294901760
    %1418 = vmatmul.f32.gmra.mxu0 %v1417
    %v1419 = vpop.f32.mrf.mxu0
    %v1420 = vadd.f32 %v1119, %v1419
    %v1421 = vand.u32 %v116, 4294901760
    %v1422 = vsub.f32 %v116, %v1421
    %v1423 = vand.u32 %v1422, 4294901760
    %1424 = vmatmul.f32.gmra.mxu0 %v1423
    %v1425 = vpop.f32.mrf.mxu0
    %v1426 = vadd.f32 %v1124, %v1425
    %v1427 = vand.u32 %v118, 4294901760
    %v1428 = vsub.f32 %v118, %v1427
    %v1429 = vand.u32 %v1428, 4294901760
    %1430 = vmatmul.f32.gmra.mxu0 %v1429
    %v1431 = vpop.f32.mrf.mxu0
    %v1432 = vadd.f32 %v1129, %v1431
    %v1433 = vand.u32 %v120, 4294901760
    %v1434 = vsub.f32 %v120, %v1433
    %v1435 = vand.u32 %v1434, 4294901760
    %1436 = vmatmul.f32.gmra.mxu0 %v1435
    %v1437 = vpop.f32.mrf.mxu0
    %v1438 = vadd.f32 %v1134, %v1437
    %v1439 = vand.u32 %v122, 4294901760
    %v1440 = vsub.f32 %v122, %v1439
    %v1441 = vand.u32 %v1440, 4294901760
    %1442 = vmatmul.f32.gmra.mxu0 %v1441
    %v1443 = vpop.f32.mrf.mxu0
    %v1444 = vadd.f32 %v1139, %v1443
    %v1445 = vand.u32 %v124, 4294901760
    %v1446 = vsub.f32 %v124, %v1445
    %v1447 = vand.u32 %v1446, 4294901760
    %1448 = vmatmul.f32.gmra.mxu0 %v1447
    %v1449 = vpop.f32.mrf.mxu0
    %v1450 = vadd.f32 %v1144, %v1449
    %v1451 = vand.u32 %v126, 4294901760
    %v1452 = vsub.f32 %v126, %v1451
    %v1453 = vand.u32 %v1452, 4294901760
    %1454 = vmatmul.f32.gmra.mxu0 %v1453
    %v1455 = vpop.f32.mrf.mxu0
    %v1456 = vadd.f32 %v1149, %v1455
    %v1457 = vand.u32 %v128, 4294901760
    %v1458 = vsub.f32 %v128, %v1457
    %v1459 = vand.u32 %v1458, 4294901760
    %1460 = vmatmul.f32.gmra.mxu0 %v1459
    %v1461 = vpop.f32.mrf.mxu0
    %v1462 = vadd.f32 %v1154, %v1461
    %v1463 = vand.u32 %v130, 4294901760
    %v1464 = vsub.f32 %v130, %v1463
    %v1465 = vand.u32 %v1464, 4294901760
    %1466 = vmatmul.f32.gmra.mxu0 %v1465
    %v1467 = vpop.f32.mrf.mxu0
    %v1468 = vadd.f32 %v1159, %v1467
    %v1469 = vand.u32 %v132, 4294901760
    %v1470 = vsub.f32 %v132, %v1469
    %v1471 = vand.u32 %v1470, 4294901760
    %1472 = vmatmul.f32.gmra.mxu0 %v1471
    %v1473 = vpop.f32.mrf.mxu0
    %v1474 = vadd.f32 %v1164, %v1473
    %v1475 = vand.u32 %v134, 4294901760
    %v1476 = vsub.f32 %v134, %v1475
    %v1477 = vand.u32 %v1476, 4294901760
    %1478 = vmatmul.f32.gmra.mxu0 %v1477
    %v1479 = vpop.f32.mrf.mxu0
    %v1480 = vadd.f32 %v1169, %v1479
    %v1481 = vand.u32 %v136, 4294901760
    %v1482 = vsub.f32 %v136, %v1481
    %v1483 = vand.u32 %v1482, 4294901760
    %1484 = vmatmul.f32.gmra.mxu0 %v1483
    %v1485 = vpop.f32.mrf.mxu0
    %v1486 = vadd.f32 %v1174, %v1485
    %v1487 = vand.u32 %v138, 4294901760
    %v1488 = vsub.f32 %v138, %v1487
    %v1489 = vand.u32 %v1488, 4294901760
    %1490 = vmatmul.f32.gmra.mxu0 %v1489
    %v1491 = vpop.f32.mrf.mxu0
    %v1492 = vadd.f32 %v1179, %v1491
    %v1493 = vand.u32 %v140, 4294901760
    %v1494 = vsub.f32 %v140, %v1493
    %v1495 = vand.u32 %v1494, 4294901760
    %1496 = vmatmul.f32.gmra.mxu0 %v1495
    %v1497 = vpop.f32.mrf.mxu0
    %v1498 = vadd.f32 %v1184, %v1497
    %v1499 = vand.u32 %v142, 4294901760
    %v1500 = vsub.f32 %v142, %v1499
    %v1501 = vand.u32 %v1500, 4294901760
    %1502 = vmatmul.f32.gmra.mxu0 %v1501
    %v1503 = vpop.f32.mrf.mxu0
    %v1504 = vadd.f32 %v1189, %v1503
    %v1505 = vand.u32 %v144, 4294901760
    %v1506 = vsub.f32 %v144, %v1505
    %v1507 = vand.u32 %v1506, 4294901760
    %1508 = vmatmul.f32.gmra.mxu0 %v1507
    %v1509 = vpop.f32.mrf.mxu0
    %v1510 = vadd.f32 %v1194, %v1509
    %v1511 = vand.u32 %v146, 4294901760
    %v1512 = vsub.f32 %v146, %v1511
    %v1513 = vand.u32 %v1512, 4294901760
    %1514 = vmatmul.f32.gmra.mxu0 %v1513
    %v1515 = vpop.f32.mrf.mxu0
    %v1516 = vadd.f32 %v1199, %v1515
    %v1517 = vand.u32 %v148, 4294901760
    %v1518 = vsub.f32 %v148, %v1517
    %v1519 = vand.u32 %v1518, 4294901760
    %1520 = vmatmul.f32.gmra.mxu0 %v1519
    %v1521 = vpop.f32.mrf.mxu0
    %v1522 = vadd.f32 %v1204, %v1521
    %v1523 = vand.u32 %v150, 4294901760
    %v1524 = vsub.f32 %v150, %v1523
    %v1525 = vand.u32 %v1524, 4294901760
    %1526 = vmatmul.f32.gmra.mxu0 %v1525
    %v1527 = vpop.f32.mrf.mxu0
    %v1528 = vadd.f32 %v1209, %v1527
    %v1529 = vand.u32 %v152, 4294901760
    %v1530 = vsub.f32 %v152, %v1529
    %v1531 = vand.u32 %v1530, 4294901760
    %1532 = vmatmul.f32.gmra.mxu0 %v1531
    %v1533 = vpop.f32.mrf.mxu0
    %v1534 = vadd.f32 %v1214, %v1533
    %v1535 = vand.u32 %v154, 4294901760
    %v1536 = vsub.f32 %v154, %v1535
    %v1537 = vand.u32 %v1536, 4294901760
    %1538 = vmatmul.f32.gmra.mxu0 %v1537
    %v1539 = vpop.f32.mrf.mxu0
    %v1540 = vadd.f32 %v1219, %v1539
    %1541 = vdwg.mxu0
    %v1542 = vand.u32 %v186, 4294901760
    %v1543 = vsub.f32 %v186, %v1542
    %v1544 = vand.u32 %v1543, 4294901760
    %1545 = vmatpush.msra.mxu0 %v1544
    %v1546 = vand.u32 %v184, 4294901760
    %v1547 = vsub.f32 %v184, %v1546
    %v1548 = vand.u32 %v1547, 4294901760
    %1549 = vmatpush.msra.mxu0 %v1548
    %v1550 = vand.u32 %v182, 4294901760
    %v1551 = vsub.f32 %v182, %v1550
    %v1552 = vand.u32 %v1551, 4294901760
    %1553 = vmatpush.msra.mxu0 %v1552
    %v1554 = vand.u32 %v180, 4294901760
    %v1555 = vsub.f32 %v180, %v1554
    %v1556 = vand.u32 %v1555, 4294901760
    %1557 = vmatpush.msra.mxu0 %v1556
    %v1558 = vand.u32 %v178, 4294901760
    %v1559 = vsub.f32 %v178, %v1558
    %v1560 = vand.u32 %v1559, 4294901760
    %1561 = vmatpush.msra.mxu0 %v1560
    %v1562 = vand.u32 %v176, 4294901760
    %v1563 = vsub.f32 %v176, %v1562
    %v1564 = vand.u32 %v1563, 4294901760
    %1565 = vmatpush.msra.mxu0 %v1564
    %v1566 = vand.u32 %v174, 4294901760
    %v1567 = vsub.f32 %v174, %v1566
    %v1568 = vand.u32 %v1567, 4294901760
    %1569 = vmatpush.msra.mxu0 %v1568
    %v1570 = vand.u32 %v172, 4294901760
    %v1571 = vsub.f32 %v172, %v1570
    %v1572 = vand.u32 %v1571, 4294901760
    %1573 = vmatpush.msra.mxu0 %v1572
    %v1574 = vand.u32 %v170, 4294901760
    %v1575 = vsub.f32 %v170, %v1574
    %v1576 = vand.u32 %v1575, 4294901760
    %1577 = vmatpush.msra.mxu0 %v1576
    %v1578 = vand.u32 %v168, 4294901760
    %v1579 = vsub.f32 %v168, %v1578
    %v1580 = vand.u32 %v1579, 4294901760
    %1581 = vmatpush.msra.mxu0 %v1580
    %v1582 = vand.u32 %v166, 4294901760
    %v1583 = vsub.f32 %v166, %v1582
    %v1584 = vand.u32 %v1583, 4294901760
    %1585 = vmatpush.msra.mxu0 %v1584
    %v1586 = vand.u32 %v164, 4294901760
    %v1587 = vsub.f32 %v164, %v1586
    %v1588 = vand.u32 %v1587, 4294901760
    %1589 = vmatpush.msra.mxu0 %v1588
    %v1590 = vand.u32 %v162, 4294901760
    %v1591 = vsub.f32 %v162, %v1590
    %v1592 = vand.u32 %v1591, 4294901760
    %1593 = vmatpush.msra.mxu0 %v1592
    %v1594 = vand.u32 %v160, 4294901760
    %v1595 = vsub.f32 %v160, %v1594
    %v1596 = vand.u32 %v1595, 4294901760
    %1597 = vmatpush.msra.mxu0 %v1596
    %v1598 = vand.u32 %v158, 4294901760
    %v1599 = vsub.f32 %v158, %v1598
    %v1600 = vand.u32 %v1599, 4294901760
    %1601 = vmatpush.msra.mxu0 %v1600
    %v1602 = vand.u32 %v156, 4294901760
    %v1603 = vsub.f32 %v156, %v1602
    %v1604 = vand.u32 %v1603, 4294901760
    %1605 = vmatpush.msra.mxu0 %v1604
    %v1606 = vand.u32 %v60, 4294901760
    %1607 = vmatmul.f32.gmra.mxu0 %v1606
    %v1608 = vpop.f32.mrf.mxu0
    %v1609 = vadd.f32 %v1258, %v1608
    %v1610 = vand.u32 %v62, 4294901760
    %1611 = vmatmul.f32.gmra.mxu0 %v1610
    %v1612 = vpop.f32.mrf.mxu0
    %v1613 = vadd.f32 %v1264, %v1612
    %v1614 = vand.u32 %v64, 4294901760
    %1615 = vmatmul.f32.gmra.mxu0 %v1614
    %v1616 = vpop.f32.mrf.mxu0
    %v1617 = vadd.f32 %v1270, %v1616
    %v1618 = vand.u32 %v66, 4294901760
    %1619 = vmatmul.f32.gmra.mxu0 %v1618
    %v1620 = vpop.f32.mrf.mxu0
    %v1621 = vadd.f32 %v1276, %v1620
    %v1622 = vand.u32 %v68, 4294901760
    %1623 = vmatmul.f32.gmra.mxu0 %v1622
    %v1624 = vpop.f32.mrf.mxu0
    %v1625 = vadd.f32 %v1282, %v1624
    %v1626 = vand.u32 %v70, 4294901760
    %1627 = vmatmul.f32.gmra.mxu0 %v1626
    %v1628 = vpop.f32.mrf.mxu0
    %v1629 = vadd.f32 %v1288, %v1628
    %v1630 = vand.u32 %v72, 4294901760
    %1631 = vmatmul.f32.gmra.mxu0 %v1630
    %v1632 = vpop.f32.mrf.mxu0
    %v1633 = vadd.f32 %v1294, %v1632
    %v1634 = vand.u32 %v74, 4294901760
    %1635 = vmatmul.f32.gmra.mxu0 %v1634
    %v1636 = vpop.f32.mrf.mxu0
    %v1637 = vadd.f32 %v1300, %v1636
    %v1638 = vand.u32 %v76, 4294901760
    %1639 = vmatmul.f32.gmra.mxu0 %v1638
    %v1640 = vpop.f32.mrf.mxu0
    %v1641 = vadd.f32 %v1306, %v1640
    %v1642 = vand.u32 %v78, 4294901760
    %1643 = vmatmul.f32.gmra.mxu0 %v1642
    %v1644 = vpop.f32.mrf.mxu0
    %v1645 = vadd.f32 %v1312, %v1644
    %v1646 = vand.u32 %v80, 4294901760
    %1647 = vmatmul.f32.gmra.mxu0 %v1646
    %v1648 = vpop.f32.mrf.mxu0
    %v1649 = vadd.f32 %v1318, %v1648
    %v1650 = vand.u32 %v82, 4294901760
    %1651 = vmatmul.f32.gmra.mxu0 %v1650
    %v1652 = vpop.f32.mrf.mxu0
    %v1653 = vadd.f32 %v1324, %v1652
    %v1654 = vand.u32 %v84, 4294901760
    %1655 = vmatmul.f32.gmra.mxu0 %v1654
    %v1656 = vpop.f32.mrf.mxu0
    %v1657 = vadd.f32 %v1330, %v1656
    %v1658 = vand.u32 %v86, 4294901760
    %1659 = vmatmul.f32.gmra.mxu0 %v1658
    %v1660 = vpop.f32.mrf.mxu0
    %v1661 = vadd.f32 %v1336, %v1660
    %v1662 = vand.u32 %v88, 4294901760
    %1663 = vmatmul.f32.gmra.mxu0 %v1662
    %v1664 = vpop.f32.mrf.mxu0
    %v1665 = vadd.f32 %v1342, %v1664
    %v1666 = vand.u32 %v90, 4294901760
    %1667 = vmatmul.f32.gmra.mxu0 %v1666
    %v1668 = vpop.f32.mrf.mxu0
    %v1669 = vadd.f32 %v1348, %v1668
    %v1670 = vand.u32 %v92, 4294901760
    %1671 = vmatmul.f32.gmra.mxu0 %v1670
    %v1672 = vpop.f32.mrf.mxu0
    %v1673 = vadd.f32 %v1354, %v1672
    %v1674 = vand.u32 %v94, 4294901760
    %1675 = vmatmul.f32.gmra.mxu0 %v1674
    %v1676 = vpop.f32.mrf.mxu0
    %v1677 = vadd.f32 %v1360, %v1676
    %v1678 = vand.u32 %v96, 4294901760
    %1679 = vmatmul.f32.gmra.mxu0 %v1678
    %v1680 = vpop.f32.mrf.mxu0
    %v1681 = vadd.f32 %v1366, %v1680
    %v1682 = vand.u32 %v98, 4294901760
    %1683 = vmatmul.f32.gmra.mxu0 %v1682
    %v1684 = vpop.f32.mrf.mxu0
    %v1685 = vadd.f32 %v1372, %v1684
    %v1686 = vand.u32 %v100, 4294901760
    %1687 = vmatmul.f32.gmra.mxu0 %v1686
    %v1688 = vpop.f32.mrf.mxu0
    %v1689 = vadd.f32 %v1378, %v1688
    %v1690 = vand.u32 %v102, 4294901760
    %1691 = vmatmul.f32.gmra.mxu0 %v1690
    %v1692 = vpop.f32.mrf.mxu0
    %v1693 = vadd.f32 %v1384, %v1692
    %v1694 = vand.u32 %v104, 4294901760
    %1695 = vmatmul.f32.gmra.mxu0 %v1694
    %v1696 = vpop.f32.mrf.mxu0
    %v1697 = vadd.f32 %v1390, %v1696
    %v1698 = vand.u32 %v106, 4294901760
    %1699 = vmatmul.f32.gmra.mxu0 %v1698
    %v1700 = vpop.f32.mrf.mxu0
    %v1701 = vadd.f32 %v1396, %v1700
    %v1702 = vand.u32 %v108, 4294901760
    %1703 = vmatmul.f32.gmra.mxu0 %v1702
    %v1704 = vpop.f32.mrf.mxu0
    %v1705 = vadd.f32 %v1402, %v1704
    %v1706 = vand.u32 %v110, 4294901760
    %1707 = vmatmul.f32.gmra.mxu0 %v1706
    %v1708 = vpop.f32.mrf.mxu0
    %v1709 = vadd.f32 %v1408, %v1708
    %v1710 = vand.u32 %v112, 4294901760
    %1711 = vmatmul.f32.gmra.mxu0 %v1710
    %v1712 = vpop.f32.mrf.mxu0
    %v1713 = vadd.f32 %v1414, %v1712
    %v1714 = vand.u32 %v114, 4294901760
    %1715 = vmatmul.f32.gmra.mxu0 %v1714
    %v1716 = vpop.f32.mrf.mxu0
    %v1717 = vadd.f32 %v1420, %v1716
    %v1718 = vand.u32 %v116, 4294901760
    %1719 = vmatmul.f32.gmra.mxu0 %v1718
    %v1720 = vpop.f32.mrf.mxu0
    %v1721 = vadd.f32 %v1426, %v1720
    %v1722 = vand.u32 %v118, 4294901760
    %1723 = vmatmul.f32.gmra.mxu0 %v1722
    %v1724 = vpop.f32.mrf.mxu0
    %v1725 = vadd.f32 %v1432, %v1724
    %v1726 = vand.u32 %v120, 4294901760
    %1727 = vmatmul.f32.gmra.mxu0 %v1726
    %v1728 = vpop.f32.mrf.mxu0
    %v1729 = vadd.f32 %v1438, %v1728
    %v1730 = vand.u32 %v122, 4294901760
    %1731 = vmatmul.f32.gmra.mxu0 %v1730
    %v1732 = vpop.f32.mrf.mxu0
    %v1733 = vadd.f32 %v1444, %v1732
    %v1734 = vand.u32 %v124, 4294901760
    %1735 = vmatmul.f32.gmra.mxu0 %v1734
    %v1736 = vpop.f32.mrf.mxu0
    %v1737 = vadd.f32 %v1450, %v1736
    %v1738 = vand.u32 %v126, 4294901760
    %1739 = vmatmul.f32.gmra.mxu0 %v1738
    %v1740 = vpop.f32.mrf.mxu0
    %v1741 = vadd.f32 %v1456, %v1740
    %v1742 = vand.u32 %v128, 4294901760
    %1743 = vmatmul.f32.gmra.mxu0 %v1742
    %v1744 = vpop.f32.mrf.mxu0
    %v1745 = vadd.f32 %v1462, %v1744
    %v1746 = vand.u32 %v130, 4294901760
    %1747 = vmatmul.f32.gmra.mxu0 %v1746
    %v1748 = vpop.f32.mrf.mxu0
    %v1749 = vadd.f32 %v1468, %v1748
    %v1750 = vand.u32 %v132, 4294901760
    %1751 = vmatmul.f32.gmra.mxu0 %v1750
    %v1752 = vpop.f32.mrf.mxu0
    %v1753 = vadd.f32 %v1474, %v1752
    %v1754 = vand.u32 %v134, 4294901760
    %1755 = vmatmul.f32.gmra.mxu0 %v1754
    %v1756 = vpop.f32.mrf.mxu0
    %v1757 = vadd.f32 %v1480, %v1756
    %v1758 = vand.u32 %v136, 4294901760
    %1759 = vmatmul.f32.gmra.mxu0 %v1758
    %v1760 = vpop.f32.mrf.mxu0
    %v1761 = vadd.f32 %v1486, %v1760
    %v1762 = vand.u32 %v138, 4294901760
    %1763 = vmatmul.f32.gmra.mxu0 %v1762
    %v1764 = vpop.f32.mrf.mxu0
    %v1765 = vadd.f32 %v1492, %v1764
    %v1766 = vand.u32 %v140, 4294901760
    %1767 = vmatmul.f32.gmra.mxu0 %v1766
    %v1768 = vpop.f32.mrf.mxu0
    %v1769 = vadd.f32 %v1498, %v1768
    %v1770 = vand.u32 %v142, 4294901760
    %1771 = vmatmul.f32.gmra.mxu0 %v1770
    %v1772 = vpop.f32.mrf.mxu0
    %v1773 = vadd.f32 %v1504, %v1772
    %v1774 = vand.u32 %v144, 4294901760
    %1775 = vmatmul.f32.gmra.mxu0 %v1774
    %v1776 = vpop.f32.mrf.mxu0
    %v1777 = vadd.f32 %v1510, %v1776
    %v1778 = vand.u32 %v146, 4294901760
    %1779 = vmatmul.f32.gmra.mxu0 %v1778
    %v1780 = vpop.f32.mrf.mxu0
    %v1781 = vadd.f32 %v1516, %v1780
    %v1782 = vand.u32 %v148, 4294901760
    %1783 = vmatmul.f32.gmra.mxu0 %v1782
    %v1784 = vpop.f32.mrf.mxu0
    %v1785 = vadd.f32 %v1522, %v1784
    %v1786 = vand.u32 %v150, 4294901760
    %1787 = vmatmul.f32.gmra.mxu0 %v1786
    %v1788 = vpop.f32.mrf.mxu0
    %v1789 = vadd.f32 %v1528, %v1788
    %v1790 = vand.u32 %v152, 4294901760
    %1791 = vmatmul.f32.gmra.mxu0 %v1790
    %v1792 = vpop.f32.mrf.mxu0
    %v1793 = vadd.f32 %v1534, %v1792
    %v1794 = vand.u32 %v154, 4294901760
    %1795 = vmatmul.f32.gmra.mxu0 %v1794
    %v1796 = vpop.f32.mrf.mxu0
    %v1797 = vadd.f32 %v1540, %v1796
    %1798 = vdwg.mxu0
    %v1799 = vand.u32 %v186, 4294901760
    %1800 = vmatpush.msra.mxu0 %v1799
    %v1801 = vand.u32 %v184, 4294901760
    %1802 = vmatpush.msra.mxu0 %v1801
    %v1803 = vand.u32 %v182, 4294901760
    %1804 = vmatpush.msra.mxu0 %v1803
    %v1805 = vand.u32 %v180, 4294901760
    %1806 = vmatpush.msra.mxu0 %v1805
    %v1807 = vand.u32 %v178, 4294901760
    %1808 = vmatpush.msra.mxu0 %v1807
    %v1809 = vand.u32 %v176, 4294901760
    %1810 = vmatpush.msra.mxu0 %v1809
    %v1811 = vand.u32 %v174, 4294901760
    %1812 = vmatpush.msra.mxu0 %v1811
    %v1813 = vand.u32 %v172, 4294901760
    %1814 = vmatpush.msra.mxu0 %v1813
    %v1815 = vand.u32 %v170, 4294901760
    %1816 = vmatpush.msra.mxu0 %v1815
    %v1817 = vand.u32 %v168, 4294901760
    %1818 = vmatpush.msra.mxu0 %v1817
    %v1819 = vand.u32 %v166, 4294901760
    %1820 = vmatpush.msra.mxu0 %v1819
    %v1821 = vand.u32 %v164, 4294901760
    %1822 = vmatpush.msra.mxu0 %v1821
    %v1823 = vand.u32 %v162, 4294901760
    %1824 = vmatpush.msra.mxu0 %v1823
    %v1825 = vand.u32 %v160, 4294901760
    %1826 = vmatpush.msra.mxu0 %v1825
    %v1827 = vand.u32 %v158, 4294901760
    %1828 = vmatpush.msra.mxu0 %v1827
    %v1829 = vand.u32 %v156, 4294901760
    %1830 = vmatpush.msra.mxu0 %v1829
    %v1831 = vand.u32 %v60, 4294901760
    %1832 = vmatmul.f32.gmra.mxu0 %v1831
    %v1833 = vpop.f32.mrf.mxu0
    %v1834 = vadd.f32 %v1609, %v1833
    %v1835 = vand.u32 %v62, 4294901760
    %1836 = vmatmul.f32.gmra.mxu0 %v1835
    %v1837 = vpop.f32.mrf.mxu0
    %v1838 = vadd.f32 %v1613, %v1837
    %v1839 = vand.u32 %v64, 4294901760
    %1840 = vmatmul.f32.gmra.mxu0 %v1839
    %v1841 = vpop.f32.mrf.mxu0
    %v1842 = vadd.f32 %v1617, %v1841
    %v1843 = vand.u32 %v66, 4294901760
    %1844 = vmatmul.f32.gmra.mxu0 %v1843
    %v1845 = vpop.f32.mrf.mxu0
    %v1846 = vadd.f32 %v1621, %v1845
    %v1847 = vand.u32 %v68, 4294901760
    %1848 = vmatmul.f32.gmra.mxu0 %v1847
    %v1849 = vpop.f32.mrf.mxu0
    %v1850 = vadd.f32 %v1625, %v1849
    %v1851 = vand.u32 %v70, 4294901760
    %1852 = vmatmul.f32.gmra.mxu0 %v1851
    %v1853 = vpop.f32.mrf.mxu0
    %v1854 = vadd.f32 %v1629, %v1853
    %v1855 = vand.u32 %v72, 4294901760
    %1856 = vmatmul.f32.gmra.mxu0 %v1855
    %v1857 = vpop.f32.mrf.mxu0
    %v1858 = vadd.f32 %v1633, %v1857
    %v1859 = vand.u32 %v74, 4294901760
    %1860 = vmatmul.f32.gmra.mxu0 %v1859
    %v1861 = vpop.f32.mrf.mxu0
    %v1862 = vadd.f32 %v1637, %v1861
    %v1863 = vand.u32 %v76, 4294901760
    %1864 = vmatmul.f32.gmra.mxu0 %v1863
    %v1865 = vpop.f32.mrf.mxu0
    %v1866 = vadd.f32 %v1641, %v1865
    %v1867 = vand.u32 %v78, 4294901760
    %1868 = vmatmul.f32.gmra.mxu0 %v1867
    %v1869 = vpop.f32.mrf.mxu0
    %v1870 = vadd.f32 %v1645, %v1869
    %v1871 = vand.u32 %v80, 4294901760
    %1872 = vmatmul.f32.gmra.mxu0 %v1871
    %v1873 = vpop.f32.mrf.mxu0
    %v1874 = vadd.f32 %v1649, %v1873
    %v1875 = vand.u32 %v82, 4294901760
    %1876 = vmatmul.f32.gmra.mxu0 %v1875
    %v1877 = vpop.f32.mrf.mxu0
    %v1878 = vadd.f32 %v1653, %v1877
    %v1879 = vand.u32 %v84, 4294901760
    %1880 = vmatmul.f32.gmra.mxu0 %v1879
    %v1881 = vpop.f32.mrf.mxu0
    %v1882 = vadd.f32 %v1657, %v1881
    %v1883 = vand.u32 %v86, 4294901760
    %1884 = vmatmul.f32.gmra.mxu0 %v1883
    %v1885 = vpop.f32.mrf.mxu0
    %v1886 = vadd.f32 %v1661, %v1885
    %v1887 = vand.u32 %v88, 4294901760
    %1888 = vmatmul.f32.gmra.mxu0 %v1887
    %v1889 = vpop.f32.mrf.mxu0
    %v1890 = vadd.f32 %v1665, %v1889
    %v1891 = vand.u32 %v90, 4294901760
    %1892 = vmatmul.f32.gmra.mxu0 %v1891
    %v1893 = vpop.f32.mrf.mxu0
    %v1894 = vadd.f32 %v1669, %v1893
    %v1895 = vand.u32 %v92, 4294901760
    %1896 = vmatmul.f32.gmra.mxu0 %v1895
    %v1897 = vpop.f32.mrf.mxu0
    %v1898 = vadd.f32 %v1673, %v1897
    %v1899 = vand.u32 %v94, 4294901760
    %1900 = vmatmul.f32.gmra.mxu0 %v1899
    %v1901 = vpop.f32.mrf.mxu0
    %v1902 = vadd.f32 %v1677, %v1901
    %v1903 = vand.u32 %v96, 4294901760
    %1904 = vmatmul.f32.gmra.mxu0 %v1903
    %v1905 = vpop.f32.mrf.mxu0
    %v1906 = vadd.f32 %v1681, %v1905
    %v1907 = vand.u32 %v98, 4294901760
    %1908 = vmatmul.f32.gmra.mxu0 %v1907
    %v1909 = vpop.f32.mrf.mxu0
    %v1910 = vadd.f32 %v1685, %v1909
    %v1911 = vand.u32 %v100, 4294901760
    %1912 = vmatmul.f32.gmra.mxu0 %v1911
    %v1913 = vpop.f32.mrf.mxu0
    %v1914 = vadd.f32 %v1689, %v1913
    %v1915 = vand.u32 %v102, 4294901760
    %1916 = vmatmul.f32.gmra.mxu0 %v1915
    %v1917 = vpop.f32.mrf.mxu0
    %v1918 = vadd.f32 %v1693, %v1917
    %v1919 = vand.u32 %v104, 4294901760
    %1920 = vmatmul.f32.gmra.mxu0 %v1919
    %v1921 = vpop.f32.mrf.mxu0
    %v1922 = vadd.f32 %v1697, %v1921
    %v1923 = vand.u32 %v106, 4294901760
    %1924 = vmatmul.f32.gmra.mxu0 %v1923
    %v1925 = vpop.f32.mrf.mxu0
    %v1926 = vadd.f32 %v1701, %v1925
    %v1927 = vand.u32 %v108, 4294901760
    %1928 = vmatmul.f32.gmra.mxu0 %v1927
    %v1929 = vpop.f32.mrf.mxu0
    %v1930 = vadd.f32 %v1705, %v1929
    %v1931 = vand.u32 %v110, 4294901760
    %1932 = vmatmul.f32.gmra.mxu0 %v1931
    %v1933 = vpop.f32.mrf.mxu0
    %v1934 = vadd.f32 %v1709, %v1933
    %v1935 = vand.u32 %v112, 4294901760
    %1936 = vmatmul.f32.gmra.mxu0 %v1935
    %v1937 = vpop.f32.mrf.mxu0
    %v1938 = vadd.f32 %v1713, %v1937
    %v1939 = vand.u32 %v114, 4294901760
    %1940 = vmatmul.f32.gmra.mxu0 %v1939
    %v1941 = vpop.f32.mrf.mxu0
    %v1942 = vadd.f32 %v1717, %v1941
    %v1943 = vand.u32 %v116, 4294901760
    %1944 = vmatmul.f32.gmra.mxu0 %v1943
    %v1945 = vpop.f32.mrf.mxu0
    %v1946 = vadd.f32 %v1721, %v1945
    %v1947 = vand.u32 %v118, 4294901760
    %1948 = vmatmul.f32.gmra.mxu0 %v1947
    %v1949 = vpop.f32.mrf.mxu0
    %v1950 = vadd.f32 %v1725, %v1949
    %v1951 = vand.u32 %v120, 4294901760
    %1952 = vmatmul.f32.gmra.mxu0 %v1951
    %v1953 = vpop.f32.mrf.mxu0
    %v1954 = vadd.f32 %v1729, %v1953
    %v1955 = vand.u32 %v122, 4294901760
    %1956 = vmatmul.f32.gmra.mxu0 %v1955
    %v1957 = vpop.f32.mrf.mxu0
    %v1958 = vadd.f32 %v1733, %v1957
    %v1959 = vand.u32 %v124, 4294901760
    %1960 = vmatmul.f32.gmra.mxu0 %v1959
    %v1961 = vpop.f32.mrf.mxu0
    %v1962 = vadd.f32 %v1737, %v1961
    %v1963 = vand.u32 %v126, 4294901760
    %1964 = vmatmul.f32.gmra.mxu0 %v1963
    %v1965 = vpop.f32.mrf.mxu0
    %v1966 = vadd.f32 %v1741, %v1965
    %v1967 = vand.u32 %v128, 4294901760
    %1968 = vmatmul.f32.gmra.mxu0 %v1967
    %v1969 = vpop.f32.mrf.mxu0
    %v1970 = vadd.f32 %v1745, %v1969
    %v1971 = vand.u32 %v130, 4294901760
    %1972 = vmatmul.f32.gmra.mxu0 %v1971
    %v1973 = vpop.f32.mrf.mxu0
    %v1974 = vadd.f32 %v1749, %v1973
    %v1975 = vand.u32 %v132, 4294901760
    %1976 = vmatmul.f32.gmra.mxu0 %v1975
    %v1977 = vpop.f32.mrf.mxu0
    %v1978 = vadd.f32 %v1753, %v1977
    %v1979 = vand.u32 %v134, 4294901760
    %1980 = vmatmul.f32.gmra.mxu0 %v1979
    %v1981 = vpop.f32.mrf.mxu0
    %v1982 = vadd.f32 %v1757, %v1981
    %v1983 = vand.u32 %v136, 4294901760
    %1984 = vmatmul.f32.gmra.mxu0 %v1983
    %v1985 = vpop.f32.mrf.mxu0
    %v1986 = vadd.f32 %v1761, %v1985
    %v1987 = vand.u32 %v138, 4294901760
    %1988 = vmatmul.f32.gmra.mxu0 %v1987
    %v1989 = vpop.f32.mrf.mxu0
    %v1990 = vadd.f32 %v1765, %v1989
    %v1991 = vand.u32 %v140, 4294901760
    %1992 = vmatmul.f32.gmra.mxu0 %v1991
    %v1993 = vpop.f32.mrf.mxu0
    %v1994 = vadd.f32 %v1769, %v1993
    %v1995 = vand.u32 %v142, 4294901760
    %1996 = vmatmul.f32.gmra.mxu0 %v1995
    %v1997 = vpop.f32.mrf.mxu0
    %v1998 = vadd.f32 %v1773, %v1997
    %v1999 = vand.u32 %v144, 4294901760
    %2000 = vmatmul.f32.gmra.mxu0 %v1999
    %v2001 = vpop.f32.mrf.mxu0
    %v2002 = vadd.f32 %v1777, %v2001
    %v2003 = vand.u32 %v146, 4294901760
    %2004 = vmatmul.f32.gmra.mxu0 %v2003
    %v2005 = vpop.f32.mrf.mxu0
    %v2006 = vadd.f32 %v1781, %v2005
    %v2007 = vand.u32 %v148, 4294901760
    %2008 = vmatmul.f32.gmra.mxu0 %v2007
    %v2009 = vpop.f32.mrf.mxu0
    %v2010 = vadd.f32 %v1785, %v2009
    %v2011 = vand.u32 %v150, 4294901760
    %2012 = vmatmul.f32.gmra.mxu0 %v2011
    %v2013 = vpop.f32.mrf.mxu0
    %v2014 = vadd.f32 %v1789, %v2013
    %v2015 = vand.u32 %v152, 4294901760
    %2016 = vmatmul.f32.gmra.mxu0 %v2015
    %v2017 = vpop.f32.mrf.mxu0
    %v2018 = vadd.f32 %v1793, %v2017
    %v2019 = vand.u32 %v154, 4294901760
    %2020 = vmatmul.f32.gmra.mxu0 %v2019
    %v2021 = vpop.f32.mrf.mxu0
    %v2022 = vadd.f32 %v1797, %v2021
    %2023 = vdwg.mxu0
    %v2024 = vand.u32 %v218, 4294901760
    %2025 = vmatpush.msra.mxu0 %v2024
    %v2026 = vand.u32 %v216, 4294901760
    %2027 = vmatpush.msra.mxu0 %v2026
    %v2028 = vand.u32 %v214, 4294901760
    %2029 = vmatpush.msra.mxu0 %v2028
    %v2030 = vand.u32 %v212, 4294901760
    %2031 = vmatpush.msra.mxu0 %v2030
    %v2032 = vand.u32 %v210, 4294901760
    %2033 = vmatpush.msra.mxu0 %v2032
    %v2034 = vand.u32 %v208, 4294901760
    %2035 = vmatpush.msra.mxu0 %v2034
    %v2036 = vand.u32 %v206, 4294901760
    %2037 = vmatpush.msra.mxu0 %v2036
    %v2038 = vand.u32 %v204, 4294901760
    %2039 = vmatpush.msra.mxu0 %v2038
    %v2040 = vand.u32 %v202, 4294901760
    %2041 = vmatpush.msra.mxu0 %v2040
    %v2042 = vand.u32 %v200, 4294901760
    %2043 = vmatpush.msra.mxu0 %v2042
    %v2044 = vand.u32 %v198, 4294901760
    %2045 = vmatpush.msra.mxu0 %v2044
    %v2046 = vand.u32 %v196, 4294901760
    %2047 = vmatpush.msra.mxu0 %v2046
    %v2048 = vand.u32 %v194, 4294901760
    %2049 = vmatpush.msra.mxu0 %v2048
    %v2050 = vand.u32 %v192, 4294901760
    %2051 = vmatpush.msra.mxu0 %v2050
    %v2052 = vand.u32 %v190, 4294901760
    %2053 = vmatpush.msra.mxu0 %v2052
    %v2054 = vand.u32 %v188, 4294901760
    %2055 = vmatpush.msra.mxu0 %v2054
    %v2056 = vand.u32 %v61, 4294901760
    %v2057 = vsub.f32 %v61, %v2056
    %v2058 = vand.u32 %v2057, 4294901760
    %v2059 = vsub.f32 %v2057, %v2058
    %v2060 = vand.u32 %v2059, 4294901760
    %2061 = vmatmul.f32.gmra.mxu0 %v2060
    %v2062 = vpop.f32.mrf.mxu0
    %v2063 = vadd.f32 %v1834, %v2062
    %v2064 = vand.u32 %v63, 4294901760
    %v2065 = vsub.f32 %v63, %v2064
    %v2066 = vand.u32 %v2065, 4294901760
    %v2067 = vsub.f32 %v2065, %v2066
    %v2068 = vand.u32 %v2067, 4294901760
    %2069 = vmatmul.f32.gmra.mxu0 %v2068
    %v2070 = vpop.f32.mrf.mxu0
    %v2071 = vadd.f32 %v1838, %v2070
    %v2072 = vand.u32 %v65, 4294901760
    %v2073 = vsub.f32 %v65, %v2072
    %v2074 = vand.u32 %v2073, 4294901760
    %v2075 = vsub.f32 %v2073, %v2074
    %v2076 = vand.u32 %v2075, 4294901760
    %2077 = vmatmul.f32.gmra.mxu0 %v2076
    %v2078 = vpop.f32.mrf.mxu0
    %v2079 = vadd.f32 %v1842, %v2078
    %v2080 = vand.u32 %v67, 4294901760
    %v2081 = vsub.f32 %v67, %v2080
    %v2082 = vand.u32 %v2081, 4294901760
    %v2083 = vsub.f32 %v2081, %v2082
    %v2084 = vand.u32 %v2083, 4294901760
    %2085 = vmatmul.f32.gmra.mxu0 %v2084
    %v2086 = vpop.f32.mrf.mxu0
    %v2087 = vadd.f32 %v1846, %v2086
    %v2088 = vand.u32 %v69, 4294901760
    %v2089 = vsub.f32 %v69, %v2088
    %v2090 = vand.u32 %v2089, 4294901760
    %v2091 = vsub.f32 %v2089, %v2090
    %v2092 = vand.u32 %v2091, 4294901760
    %2093 = vmatmul.f32.gmra.mxu0 %v2092
    %v2094 = vpop.f32.mrf.mxu0
    %v2095 = vadd.f32 %v1850, %v2094
    %v2096 = vand.u32 %v71, 4294901760
    %v2097 = vsub.f32 %v71, %v2096
    %v2098 = vand.u32 %v2097, 4294901760
    %v2099 = vsub.f32 %v2097, %v2098
    %v2100 = vand.u32 %v2099, 4294901760
    %2101 = vmatmul.f32.gmra.mxu0 %v2100
    %v2102 = vpop.f32.mrf.mxu0
    %v2103 = vadd.f32 %v1854, %v2102
    %v2104 = vand.u32 %v73, 4294901760
    %v2105 = vsub.f32 %v73, %v2104
    %v2106 = vand.u32 %v2105, 4294901760
    %v2107 = vsub.f32 %v2105, %v2106
    %v2108 = vand.u32 %v2107, 4294901760
    %2109 = vmatmul.f32.gmra.mxu0 %v2108
    %v2110 = vpop.f32.mrf.mxu0
    %v2111 = vadd.f32 %v1858, %v2110
    %v2112 = vand.u32 %v75, 4294901760
    %v2113 = vsub.f32 %v75, %v2112
    %v2114 = vand.u32 %v2113, 4294901760
    %v2115 = vsub.f32 %v2113, %v2114
    %v2116 = vand.u32 %v2115, 4294901760
    %2117 = vmatmul.f32.gmra.mxu0 %v2116
    %v2118 = vpop.f32.mrf.mxu0
    %v2119 = vadd.f32 %v1862, %v2118
    %v2120 = vand.u32 %v77, 4294901760
    %v2121 = vsub.f32 %v77, %v2120
    %v2122 = vand.u32 %v2121, 4294901760
    %v2123 = vsub.f32 %v2121, %v2122
    %v2124 = vand.u32 %v2123, 4294901760
    %2125 = vmatmul.f32.gmra.mxu0 %v2124
    %v2126 = vpop.f32.mrf.mxu0
    %v2127 = vadd.f32 %v1866, %v2126
    %v2128 = vand.u32 %v79, 4294901760
    %v2129 = vsub.f32 %v79, %v2128
    %v2130 = vand.u32 %v2129, 4294901760
    %v2131 = vsub.f32 %v2129, %v2130
    %v2132 = vand.u32 %v2131, 4294901760
    %2133 = vmatmul.f32.gmra.mxu0 %v2132
    %v2134 = vpop.f32.mrf.mxu0
    %v2135 = vadd.f32 %v1870, %v2134
    %v2136 = vand.u32 %v81, 4294901760
    %v2137 = vsub.f32 %v81, %v2136
    %v2138 = vand.u32 %v2137, 4294901760
    %v2139 = vsub.f32 %v2137, %v2138
    %v2140 = vand.u32 %v2139, 4294901760
    %2141 = vmatmul.f32.gmra.mxu0 %v2140
    %v2142 = vpop.f32.mrf.mxu0
    %v2143 = vadd.f32 %v1874, %v2142
    %v2144 = vand.u32 %v83, 4294901760
    %v2145 = vsub.f32 %v83, %v2144
    %v2146 = vand.u32 %v2145, 4294901760
    %v2147 = vsub.f32 %v2145, %v2146
    %v2148 = vand.u32 %v2147, 4294901760
    %2149 = vmatmul.f32.gmra.mxu0 %v2148
    %v2150 = vpop.f32.mrf.mxu0
    %v2151 = vadd.f32 %v1878, %v2150
    %v2152 = vand.u32 %v85, 4294901760
    %v2153 = vsub.f32 %v85, %v2152
    %v2154 = vand.u32 %v2153, 4294901760
    %v2155 = vsub.f32 %v2153, %v2154
    %v2156 = vand.u32 %v2155, 4294901760
    %2157 = vmatmul.f32.gmra.mxu0 %v2156
    %v2158 = vpop.f32.mrf.mxu0
    %v2159 = vadd.f32 %v1882, %v2158
    %v2160 = vand.u32 %v87, 4294901760
    %v2161 = vsub.f32 %v87, %v2160
    %v2162 = vand.u32 %v2161, 4294901760
    %v2163 = vsub.f32 %v2161, %v2162
    %v2164 = vand.u32 %v2163, 4294901760
    %2165 = vmatmul.f32.gmra.mxu0 %v2164
    %v2166 = vpop.f32.mrf.mxu0
    %v2167 = vadd.f32 %v1886, %v2166
    %v2168 = vand.u32 %v89, 4294901760
    %v2169 = vsub.f32 %v89, %v2168
    %v2170 = vand.u32 %v2169, 4294901760
    %v2171 = vsub.f32 %v2169, %v2170
    %v2172 = vand.u32 %v2171, 4294901760
    %2173 = vmatmul.f32.gmra.mxu0 %v2172
    %v2174 = vpop.f32.mrf.mxu0
    %v2175 = vadd.f32 %v1890, %v2174
    %v2176 = vand.u32 %v91, 4294901760
    %v2177 = vsub.f32 %v91, %v2176
    %v2178 = vand.u32 %v2177, 4294901760
    %v2179 = vsub.f32 %v2177, %v2178
    %v2180 = vand.u32 %v2179, 4294901760
    %2181 = vmatmul.f32.gmra.mxu0 %v2180
    %v2182 = vpop.f32.mrf.mxu0
    %v2183 = vadd.f32 %v1894, %v2182
    %v2184 = vand.u32 %v93, 4294901760
    %v2185 = vsub.f32 %v93, %v2184
    %v2186 = vand.u32 %v2185, 4294901760
    %v2187 = vsub.f32 %v2185, %v2186
    %v2188 = vand.u32 %v2187, 4294901760
    %2189 = vmatmul.f32.gmra.mxu0 %v2188
    %v2190 = vpop.f32.mrf.mxu0
    %v2191 = vadd.f32 %v1898, %v2190
    %v2192 = vand.u32 %v95, 4294901760
    %v2193 = vsub.f32 %v95, %v2192
    %v2194 = vand.u32 %v2193, 4294901760
    %v2195 = vsub.f32 %v2193, %v2194
    %v2196 = vand.u32 %v2195, 4294901760
    %2197 = vmatmul.f32.gmra.mxu0 %v2196
    %v2198 = vpop.f32.mrf.mxu0
    %v2199 = vadd.f32 %v1902, %v2198
    %v2200 = vand.u32 %v97, 4294901760
    %v2201 = vsub.f32 %v97, %v2200
    %v2202 = vand.u32 %v2201, 4294901760
    %v2203 = vsub.f32 %v2201, %v2202
    %v2204 = vand.u32 %v2203, 4294901760
    %2205 = vmatmul.f32.gmra.mxu0 %v2204
    %v2206 = vpop.f32.mrf.mxu0
    %v2207 = vadd.f32 %v1906, %v2206
    %v2208 = vand.u32 %v99, 4294901760
    %v2209 = vsub.f32 %v99, %v2208
    %v2210 = vand.u32 %v2209, 4294901760
    %v2211 = vsub.f32 %v2209, %v2210
    %v2212 = vand.u32 %v2211, 4294901760
    %2213 = vmatmul.f32.gmra.mxu0 %v2212
    %v2214 = vpop.f32.mrf.mxu0
    %v2215 = vadd.f32 %v1910, %v2214
    %v2216 = vand.u32 %v101, 4294901760
    %v2217 = vsub.f32 %v101, %v2216
    %v2218 = vand.u32 %v2217, 4294901760
    %v2219 = vsub.f32 %v2217, %v2218
    %v2220 = vand.u32 %v2219, 4294901760
    %2221 = vmatmul.f32.gmra.mxu0 %v2220
    %v2222 = vpop.f32.mrf.mxu0
    %v2223 = vadd.f32 %v1914, %v2222
    %v2224 = vand.u32 %v103, 4294901760
    %v2225 = vsub.f32 %v103, %v2224
    %v2226 = vand.u32 %v2225, 4294901760
    %v2227 = vsub.f32 %v2225, %v2226
    %v2228 = vand.u32 %v2227, 4294901760
    %2229 = vmatmul.f32.gmra.mxu0 %v2228
    %v2230 = vpop.f32.mrf.mxu0
    %v2231 = vadd.f32 %v1918, %v2230
    %v2232 = vand.u32 %v105, 4294901760
    %v2233 = vsub.f32 %v105, %v2232
    %v2234 = vand.u32 %v2233, 4294901760
    %v2235 = vsub.f32 %v2233, %v2234
    %v2236 = vand.u32 %v2235, 4294901760
    %2237 = vmatmul.f32.gmra.mxu0 %v2236
    %v2238 = vpop.f32.mrf.mxu0
    %v2239 = vadd.f32 %v1922, %v2238
    %v2240 = vand.u32 %v107, 4294901760
    %v2241 = vsub.f32 %v107, %v2240
    %v2242 = vand.u32 %v2241, 4294901760
    %v2243 = vsub.f32 %v2241, %v2242
    %v2244 = vand.u32 %v2243, 4294901760
    %2245 = vmatmul.f32.gmra.mxu0 %v2244
    %v2246 = vpop.f32.mrf.mxu0
    %v2247 = vadd.f32 %v1926, %v2246
    %v2248 = vand.u32 %v109, 4294901760
    %v2249 = vsub.f32 %v109, %v2248
    %v2250 = vand.u32 %v2249, 4294901760
    %v2251 = vsub.f32 %v2249, %v2250
    %v2252 = vand.u32 %v2251, 4294901760
    %2253 = vmatmul.f32.gmra.mxu0 %v2252
    %v2254 = vpop.f32.mrf.mxu0
    %v2255 = vadd.f32 %v1930, %v2254
    %v2256 = vand.u32 %v111, 4294901760
    %v2257 = vsub.f32 %v111, %v2256
    %v2258 = vand.u32 %v2257, 4294901760
    %v2259 = vsub.f32 %v2257, %v2258
    %v2260 = vand.u32 %v2259, 4294901760
    %2261 = vmatmul.f32.gmra.mxu0 %v2260
    %v2262 = vpop.f32.mrf.mxu0
    %v2263 = vadd.f32 %v1934, %v2262
    %v2264 = vand.u32 %v113, 4294901760
    %v2265 = vsub.f32 %v113, %v2264
    %v2266 = vand.u32 %v2265, 4294901760
    %v2267 = vsub.f32 %v2265, %v2266
    %v2268 = vand.u32 %v2267, 4294901760
    %2269 = vmatmul.f32.gmra.mxu0 %v2268
    %v2270 = vpop.f32.mrf.mxu0
    %v2271 = vadd.f32 %v1938, %v2270
    %v2272 = vand.u32 %v115, 4294901760
    %v2273 = vsub.f32 %v115, %v2272
    %v2274 = vand.u32 %v2273, 4294901760
    %v2275 = vsub.f32 %v2273, %v2274
    %v2276 = vand.u32 %v2275, 4294901760
    %2277 = vmatmul.f32.gmra.mxu0 %v2276
    %v2278 = vpop.f32.mrf.mxu0
    %v2279 = vadd.f32 %v1942, %v2278
    %v2280 = vand.u32 %v117, 4294901760
    %v2281 = vsub.f32 %v117, %v2280
    %v2282 = vand.u32 %v2281, 4294901760
    %v2283 = vsub.f32 %v2281, %v2282
    %v2284 = vand.u32 %v2283, 4294901760
    %2285 = vmatmul.f32.gmra.mxu0 %v2284
    %v2286 = vpop.f32.mrf.mxu0
    %v2287 = vadd.f32 %v1946, %v2286
    %v2288 = vand.u32 %v119, 4294901760
    %v2289 = vsub.f32 %v119, %v2288
    %v2290 = vand.u32 %v2289, 4294901760
    %v2291 = vsub.f32 %v2289, %v2290
    %v2292 = vand.u32 %v2291, 4294901760
    %2293 = vmatmul.f32.gmra.mxu0 %v2292
    %v2294 = vpop.f32.mrf.mxu0
    %v2295 = vadd.f32 %v1950, %v2294
    %v2296 = vand.u32 %v121, 4294901760
    %v2297 = vsub.f32 %v121, %v2296
    %v2298 = vand.u32 %v2297, 4294901760
    %v2299 = vsub.f32 %v2297, %v2298
    %v2300 = vand.u32 %v2299, 4294901760
    %2301 = vmatmul.f32.gmra.mxu0 %v2300
    %v2302 = vpop.f32.mrf.mxu0
    %v2303 = vadd.f32 %v1954, %v2302
    %v2304 = vand.u32 %v123, 4294901760
    %v2305 = vsub.f32 %v123, %v2304
    %v2306 = vand.u32 %v2305, 4294901760
    %v2307 = vsub.f32 %v2305, %v2306
    %v2308 = vand.u32 %v2307, 4294901760
    %2309 = vmatmul.f32.gmra.mxu0 %v2308
    %v2310 = vpop.f32.mrf.mxu0
    %v2311 = vadd.f32 %v1958, %v2310
    %v2312 = vand.u32 %v125, 4294901760
    %v2313 = vsub.f32 %v125, %v2312
    %v2314 = vand.u32 %v2313, 4294901760
    %v2315 = vsub.f32 %v2313, %v2314
    %v2316 = vand.u32 %v2315, 4294901760
    %2317 = vmatmul.f32.gmra.mxu0 %v2316
    %v2318 = vpop.f32.mrf.mxu0
    %v2319 = vadd.f32 %v1962, %v2318
    %v2320 = vand.u32 %v127, 4294901760
    %v2321 = vsub.f32 %v127, %v2320
    %v2322 = vand.u32 %v2321, 4294901760
    %v2323 = vsub.f32 %v2321, %v2322
    %v2324 = vand.u32 %v2323, 4294901760
    %2325 = vmatmul.f32.gmra.mxu0 %v2324
    %v2326 = vpop.f32.mrf.mxu0
    %v2327 = vadd.f32 %v1966, %v2326
    %v2328 = vand.u32 %v129, 4294901760
    %v2329 = vsub.f32 %v129, %v2328
    %v2330 = vand.u32 %v2329, 4294901760
    %v2331 = vsub.f32 %v2329, %v2330
    %v2332 = vand.u32 %v2331, 4294901760
    %2333 = vmatmul.f32.gmra.mxu0 %v2332
    %v2334 = vpop.f32.mrf.mxu0
    %v2335 = vadd.f32 %v1970, %v2334
    %v2336 = vand.u32 %v131, 4294901760
    %v2337 = vsub.f32 %v131, %v2336
    %v2338 = vand.u32 %v2337, 4294901760
    %v2339 = vsub.f32 %v2337, %v2338
    %v2340 = vand.u32 %v2339, 4294901760
    %2341 = vmatmul.f32.gmra.mxu0 %v2340
    %v2342 = vpop.f32.mrf.mxu0
    %v2343 = vadd.f32 %v1974, %v2342
    %v2344 = vand.u32 %v133, 4294901760
    %v2345 = vsub.f32 %v133, %v2344
    %v2346 = vand.u32 %v2345, 4294901760
    %v2347 = vsub.f32 %v2345, %v2346
    %v2348 = vand.u32 %v2347, 4294901760
    %2349 = vmatmul.f32.gmra.mxu0 %v2348
    %v2350 = vpop.f32.mrf.mxu0
    %v2351 = vadd.f32 %v1978, %v2350
    %v2352 = vand.u32 %v135, 4294901760
    %v2353 = vsub.f32 %v135, %v2352
    %v2354 = vand.u32 %v2353, 4294901760
    %v2355 = vsub.f32 %v2353, %v2354
    %v2356 = vand.u32 %v2355, 4294901760
    %2357 = vmatmul.f32.gmra.mxu0 %v2356
    %v2358 = vpop.f32.mrf.mxu0
    %v2359 = vadd.f32 %v1982, %v2358
    %v2360 = vand.u32 %v137, 4294901760
    %v2361 = vsub.f32 %v137, %v2360
    %v2362 = vand.u32 %v2361, 4294901760
    %v2363 = vsub.f32 %v2361, %v2362
    %v2364 = vand.u32 %v2363, 4294901760
    %2365 = vmatmul.f32.gmra.mxu0 %v2364
    %v2366 = vpop.f32.mrf.mxu0
    %v2367 = vadd.f32 %v1986, %v2366
    %v2368 = vand.u32 %v139, 4294901760
    %v2369 = vsub.f32 %v139, %v2368
    %v2370 = vand.u32 %v2369, 4294901760
    %v2371 = vsub.f32 %v2369, %v2370
    %v2372 = vand.u32 %v2371, 4294901760
    %2373 = vmatmul.f32.gmra.mxu0 %v2372
    %v2374 = vpop.f32.mrf.mxu0
    %v2375 = vadd.f32 %v1990, %v2374
    %v2376 = vand.u32 %v141, 4294901760
    %v2377 = vsub.f32 %v141, %v2376
    %v2378 = vand.u32 %v2377, 4294901760
    %v2379 = vsub.f32 %v2377, %v2378
    %v2380 = vand.u32 %v2379, 4294901760
    %2381 = vmatmul.f32.gmra.mxu0 %v2380
    %v2382 = vpop.f32.mrf.mxu0
    %v2383 = vadd.f32 %v1994, %v2382
    %v2384 = vand.u32 %v143, 4294901760
    %v2385 = vsub.f32 %v143, %v2384
    %v2386 = vand.u32 %v2385, 4294901760
    %v2387 = vsub.f32 %v2385, %v2386
    %v2388 = vand.u32 %v2387, 4294901760
    %2389 = vmatmul.f32.gmra.mxu0 %v2388
    %v2390 = vpop.f32.mrf.mxu0
    %v2391 = vadd.f32 %v1998, %v2390
    %v2392 = vand.u32 %v145, 4294901760
    %v2393 = vsub.f32 %v145, %v2392
    %v2394 = vand.u32 %v2393, 4294901760
    %v2395 = vsub.f32 %v2393, %v2394
    %v2396 = vand.u32 %v2395, 4294901760
    %2397 = vmatmul.f32.gmra.mxu0 %v2396
    %v2398 = vpop.f32.mrf.mxu0
    %v2399 = vadd.f32 %v2002, %v2398
    %v2400 = vand.u32 %v147, 4294901760
    %v2401 = vsub.f32 %v147, %v2400
    %v2402 = vand.u32 %v2401, 4294901760
    %v2403 = vsub.f32 %v2401, %v2402
    %v2404 = vand.u32 %v2403, 4294901760
    %2405 = vmatmul.f32.gmra.mxu0 %v2404
    %v2406 = vpop.f32.mrf.mxu0
    %v2407 = vadd.f32 %v2006, %v2406
    %v2408 = vand.u32 %v149, 4294901760
    %v2409 = vsub.f32 %v149, %v2408
    %v2410 = vand.u32 %v2409, 4294901760
    %v2411 = vsub.f32 %v2409, %v2410
    %v2412 = vand.u32 %v2411, 4294901760
    %2413 = vmatmul.f32.gmra.mxu0 %v2412
    %v2414 = vpop.f32.mrf.mxu0
    %v2415 = vadd.f32 %v2010, %v2414
    %v2416 = vand.u32 %v151, 4294901760
    %v2417 = vsub.f32 %v151, %v2416
    %v2418 = vand.u32 %v2417, 4294901760
    %v2419 = vsub.f32 %v2417, %v2418
    %v2420 = vand.u32 %v2419, 4294901760
    %2421 = vmatmul.f32.gmra.mxu0 %v2420
    %v2422 = vpop.f32.mrf.mxu0
    %v2423 = vadd.f32 %v2014, %v2422
    %v2424 = vand.u32 %v153, 4294901760
    %v2425 = vsub.f32 %v153, %v2424
    %v2426 = vand.u32 %v2425, 4294901760
    %v2427 = vsub.f32 %v2425, %v2426
    %v2428 = vand.u32 %v2427, 4294901760
    %2429 = vmatmul.f32.gmra.mxu0 %v2428
    %v2430 = vpop.f32.mrf.mxu0
    %v2431 = vadd.f32 %v2018, %v2430
    %v2432 = vand.u32 %v155, 4294901760
    %v2433 = vsub.f32 %v155, %v2432
    %v2434 = vand.u32 %v2433, 4294901760
    %v2435 = vsub.f32 %v2433, %v2434
    %v2436 = vand.u32 %v2435, 4294901760
    %2437 = vmatmul.f32.gmra.mxu0 %v2436
    %v2438 = vpop.f32.mrf.mxu0
    %v2439 = vadd.f32 %v2022, %v2438
    %2440 = vdwg.mxu0
    %v2441 = vand.u32 %v218, 4294901760
    %v2442 = vsub.f32 %v218, %v2441
    %v2443 = vand.u32 %v2442, 4294901760
    %v2444 = vsub.f32 %v2442, %v2443
    %v2445 = vand.u32 %v2444, 4294901760
    %2446 = vmatpush.msra.mxu0 %v2445
    %v2447 = vand.u32 %v216, 4294901760
    %v2448 = vsub.f32 %v216, %v2447
    %v2449 = vand.u32 %v2448, 4294901760
    %v2450 = vsub.f32 %v2448, %v2449
    %v2451 = vand.u32 %v2450, 4294901760
    %2452 = vmatpush.msra.mxu0 %v2451
    %v2453 = vand.u32 %v214, 4294901760
    %v2454 = vsub.f32 %v214, %v2453
    %v2455 = vand.u32 %v2454, 4294901760
    %v2456 = vsub.f32 %v2454, %v2455
    %v2457 = vand.u32 %v2456, 4294901760
    %2458 = vmatpush.msra.mxu0 %v2457
    %v2459 = vand.u32 %v212, 4294901760
    %v2460 = vsub.f32 %v212, %v2459
    %v2461 = vand.u32 %v2460, 4294901760
    %v2462 = vsub.f32 %v2460, %v2461
    %v2463 = vand.u32 %v2462, 4294901760
    %2464 = vmatpush.msra.mxu0 %v2463
    %v2465 = vand.u32 %v210, 4294901760
    %v2466 = vsub.f32 %v210, %v2465
    %v2467 = vand.u32 %v2466, 4294901760
    %v2468 = vsub.f32 %v2466, %v2467
    %v2469 = vand.u32 %v2468, 4294901760
    %2470 = vmatpush.msra.mxu0 %v2469
    %v2471 = vand.u32 %v208, 4294901760
    %v2472 = vsub.f32 %v208, %v2471
    %v2473 = vand.u32 %v2472, 4294901760
    %v2474 = vsub.f32 %v2472, %v2473
    %v2475 = vand.u32 %v2474, 4294901760
    %2476 = vmatpush.msra.mxu0 %v2475
    %v2477 = vand.u32 %v206, 4294901760
    %v2478 = vsub.f32 %v206, %v2477
    %v2479 = vand.u32 %v2478, 4294901760
    %v2480 = vsub.f32 %v2478, %v2479
    %v2481 = vand.u32 %v2480, 4294901760
    %2482 = vmatpush.msra.mxu0 %v2481
    %v2483 = vand.u32 %v204, 4294901760
    %v2484 = vsub.f32 %v204, %v2483
    %v2485 = vand.u32 %v2484, 4294901760
    %v2486 = vsub.f32 %v2484, %v2485
    %v2487 = vand.u32 %v2486, 4294901760
    %2488 = vmatpush.msra.mxu0 %v2487
    %v2489 = vand.u32 %v202, 4294901760
    %v2490 = vsub.f32 %v202, %v2489
    %v2491 = vand.u32 %v2490, 4294901760
    %v2492 = vsub.f32 %v2490, %v2491
    %v2493 = vand.u32 %v2492, 4294901760
    %2494 = vmatpush.msra.mxu0 %v2493
    %v2495 = vand.u32 %v200, 4294901760
    %v2496 = vsub.f32 %v200, %v2495
    %v2497 = vand.u32 %v2496, 4294901760
    %v2498 = vsub.f32 %v2496, %v2497
    %v2499 = vand.u32 %v2498, 4294901760
    %2500 = vmatpush.msra.mxu0 %v2499
    %v2501 = vand.u32 %v198, 4294901760
    %v2502 = vsub.f32 %v198, %v2501
    %v2503 = vand.u32 %v2502, 4294901760
    %v2504 = vsub.f32 %v2502, %v2503
    %v2505 = vand.u32 %v2504, 4294901760
    %2506 = vmatpush.msra.mxu0 %v2505
    %v2507 = vand.u32 %v196, 4294901760
    %v2508 = vsub.f32 %v196, %v2507
    %v2509 = vand.u32 %v2508, 4294901760
    %v2510 = vsub.f32 %v2508, %v2509
    %v2511 = vand.u32 %v2510, 4294901760
    %2512 = vmatpush.msra.mxu0 %v2511
    %v2513 = vand.u32 %v194, 4294901760
    %v2514 = vsub.f32 %v194, %v2513
    %v2515 = vand.u32 %v2514, 4294901760
    %v2516 = vsub.f32 %v2514, %v2515
    %v2517 = vand.u32 %v2516, 4294901760
    %2518 = vmatpush.msra.mxu0 %v2517
    %v2519 = vand.u32 %v192, 4294901760
    %v2520 = vsub.f32 %v192, %v2519
    %v2521 = vand.u32 %v2520, 4294901760
    %v2522 = vsub.f32 %v2520, %v2521
    %v2523 = vand.u32 %v2522, 4294901760
    %2524 = vmatpush.msra.mxu0 %v2523
    %v2525 = vand.u32 %v190, 4294901760
    %v2526 = vsub.f32 %v190, %v2525
    %v2527 = vand.u32 %v2526, 4294901760
    %v2528 = vsub.f32 %v2526, %v2527
    %v2529 = vand.u32 %v2528, 4294901760
    %2530 = vmatpush.msra.mxu0 %v2529
    %v2531 = vand.u32 %v188, 4294901760
    %v2532 = vsub.f32 %v188, %v2531
    %v2533 = vand.u32 %v2532, 4294901760
    %v2534 = vsub.f32 %v2532, %v2533
    %v2535 = vand.u32 %v2534, 4294901760
    %2536 = vmatpush.msra.mxu0 %v2535
    %v2537 = vand.u32 %v61, 4294901760
    %2538 = vmatmul.f32.gmra.mxu0 %v2537
    %v2539 = vpop.f32.mrf.mxu0
    %v2540 = vadd.f32 %v2063, %v2539
    %v2541 = vand.u32 %v63, 4294901760
    %2542 = vmatmul.f32.gmra.mxu0 %v2541
    %v2543 = vpop.f32.mrf.mxu0
    %v2544 = vadd.f32 %v2071, %v2543
    %v2545 = vand.u32 %v65, 4294901760
    %2546 = vmatmul.f32.gmra.mxu0 %v2545
    %v2547 = vpop.f32.mrf.mxu0
    %v2548 = vadd.f32 %v2079, %v2547
    %v2549 = vand.u32 %v67, 4294901760
    %2550 = vmatmul.f32.gmra.mxu0 %v2549
    %v2551 = vpop.f32.mrf.mxu0
    %v2552 = vadd.f32 %v2087, %v2551
    %v2553 = vand.u32 %v69, 4294901760
    %2554 = vmatmul.f32.gmra.mxu0 %v2553
    %v2555 = vpop.f32.mrf.mxu0
    %v2556 = vadd.f32 %v2095, %v2555
    %v2557 = vand.u32 %v71, 4294901760
    %2558 = vmatmul.f32.gmra.mxu0 %v2557
    %v2559 = vpop.f32.mrf.mxu0
    %v2560 = vadd.f32 %v2103, %v2559
    %v2561 = vand.u32 %v73, 4294901760
    %2562 = vmatmul.f32.gmra.mxu0 %v2561
    %v2563 = vpop.f32.mrf.mxu0
    %v2564 = vadd.f32 %v2111, %v2563
    %v2565 = vand.u32 %v75, 4294901760
    %2566 = vmatmul.f32.gmra.mxu0 %v2565
    %v2567 = vpop.f32.mrf.mxu0
    %v2568 = vadd.f32 %v2119, %v2567
    %v2569 = vand.u32 %v77, 4294901760
    %2570 = vmatmul.f32.gmra.mxu0 %v2569
    %v2571 = vpop.f32.mrf.mxu0
    %v2572 = vadd.f32 %v2127, %v2571
    %v2573 = vand.u32 %v79, 4294901760
    %2574 = vmatmul.f32.gmra.mxu0 %v2573
    %v2575 = vpop.f32.mrf.mxu0
    %v2576 = vadd.f32 %v2135, %v2575
    %v2577 = vand.u32 %v81, 4294901760
    %2578 = vmatmul.f32.gmra.mxu0 %v2577
    %v2579 = vpop.f32.mrf.mxu0
    %v2580 = vadd.f32 %v2143, %v2579
    %v2581 = vand.u32 %v83, 4294901760
    %2582 = vmatmul.f32.gmra.mxu0 %v2581
    %v2583 = vpop.f32.mrf.mxu0
    %v2584 = vadd.f32 %v2151, %v2583
    %v2585 = vand.u32 %v85, 4294901760
    %2586 = vmatmul.f32.gmra.mxu0 %v2585
    %v2587 = vpop.f32.mrf.mxu0
    %v2588 = vadd.f32 %v2159, %v2587
    %v2589 = vand.u32 %v87, 4294901760
    %2590 = vmatmul.f32.gmra.mxu0 %v2589
    %v2591 = vpop.f32.mrf.mxu0
    %v2592 = vadd.f32 %v2167, %v2591
    %v2593 = vand.u32 %v89, 4294901760
    %2594 = vmatmul.f32.gmra.mxu0 %v2593
    %v2595 = vpop.f32.mrf.mxu0
    %v2596 = vadd.f32 %v2175, %v2595
    %v2597 = vand.u32 %v91, 4294901760
    %2598 = vmatmul.f32.gmra.mxu0 %v2597
    %v2599 = vpop.f32.mrf.mxu0
    %v2600 = vadd.f32 %v2183, %v2599
    %v2601 = vand.u32 %v93, 4294901760
    %2602 = vmatmul.f32.gmra.mxu0 %v2601
    %v2603 = vpop.f32.mrf.mxu0
    %v2604 = vadd.f32 %v2191, %v2603
    %v2605 = vand.u32 %v95, 4294901760
    %2606 = vmatmul.f32.gmra.mxu0 %v2605
    %v2607 = vpop.f32.mrf.mxu0
    %v2608 = vadd.f32 %v2199, %v2607
    %v2609 = vand.u32 %v97, 4294901760
    %2610 = vmatmul.f32.gmra.mxu0 %v2609
    %v2611 = vpop.f32.mrf.mxu0
    %v2612 = vadd.f32 %v2207, %v2611
    %v2613 = vand.u32 %v99, 4294901760
    %2614 = vmatmul.f32.gmra.mxu0 %v2613
    %v2615 = vpop.f32.mrf.mxu0
    %v2616 = vadd.f32 %v2215, %v2615
    %v2617 = vand.u32 %v101, 4294901760
    %2618 = vmatmul.f32.gmra.mxu0 %v2617
    %v2619 = vpop.f32.mrf.mxu0
    %v2620 = vadd.f32 %v2223, %v2619
    %v2621 = vand.u32 %v103, 4294901760
    %2622 = vmatmul.f32.gmra.mxu0 %v2621
    %v2623 = vpop.f32.mrf.mxu0
    %v2624 = vadd.f32 %v2231, %v2623
    %v2625 = vand.u32 %v105, 4294901760
    %2626 = vmatmul.f32.gmra.mxu0 %v2625
    %v2627 = vpop.f32.mrf.mxu0
    %v2628 = vadd.f32 %v2239, %v2627
    %v2629 = vand.u32 %v107, 4294901760
    %2630 = vmatmul.f32.gmra.mxu0 %v2629
    %v2631 = vpop.f32.mrf.mxu0
    %v2632 = vadd.f32 %v2247, %v2631
    %v2633 = vand.u32 %v109, 4294901760
    %2634 = vmatmul.f32.gmra.mxu0 %v2633
    %v2635 = vpop.f32.mrf.mxu0
    %v2636 = vadd.f32 %v2255, %v2635
    %v2637 = vand.u32 %v111, 4294901760
    %2638 = vmatmul.f32.gmra.mxu0 %v2637
    %v2639 = vpop.f32.mrf.mxu0
    %v2640 = vadd.f32 %v2263, %v2639
    %v2641 = vand.u32 %v113, 4294901760
    %2642 = vmatmul.f32.gmra.mxu0 %v2641
    %v2643 = vpop.f32.mrf.mxu0
    %v2644 = vadd.f32 %v2271, %v2643
    %v2645 = vand.u32 %v115, 4294901760
    %2646 = vmatmul.f32.gmra.mxu0 %v2645
    %v2647 = vpop.f32.mrf.mxu0
    %v2648 = vadd.f32 %v2279, %v2647
    %v2649 = vand.u32 %v117, 4294901760
    %2650 = vmatmul.f32.gmra.mxu0 %v2649
    %v2651 = vpop.f32.mrf.mxu0
    %v2652 = vadd.f32 %v2287, %v2651
    %v2653 = vand.u32 %v119, 4294901760
    %2654 = vmatmul.f32.gmra.mxu0 %v2653
    %v2655 = vpop.f32.mrf.mxu0
    %v2656 = vadd.f32 %v2295, %v2655
    %v2657 = vand.u32 %v121, 4294901760
    %2658 = vmatmul.f32.gmra.mxu0 %v2657
    %v2659 = vpop.f32.mrf.mxu0
    %v2660 = vadd.f32 %v2303, %v2659
    %v2661 = vand.u32 %v123, 4294901760
    %2662 = vmatmul.f32.gmra.mxu0 %v2661
    %v2663 = vpop.f32.mrf.mxu0
    %v2664 = vadd.f32 %v2311, %v2663
    %v2665 = vand.u32 %v125, 4294901760
    %2666 = vmatmul.f32.gmra.mxu0 %v2665
    %v2667 = vpop.f32.mrf.mxu0
    %v2668 = vadd.f32 %v2319, %v2667
    %v2669 = vand.u32 %v127, 4294901760
    %2670 = vmatmul.f32.gmra.mxu0 %v2669
    %v2671 = vpop.f32.mrf.mxu0
    %v2672 = vadd.f32 %v2327, %v2671
    %v2673 = vand.u32 %v129, 4294901760
    %2674 = vmatmul.f32.gmra.mxu0 %v2673
    %v2675 = vpop.f32.mrf.mxu0
    %v2676 = vadd.f32 %v2335, %v2675
    %v2677 = vand.u32 %v131, 4294901760
    %2678 = vmatmul.f32.gmra.mxu0 %v2677
    %v2679 = vpop.f32.mrf.mxu0
    %v2680 = vadd.f32 %v2343, %v2679
    %v2681 = vand.u32 %v133, 4294901760
    %2682 = vmatmul.f32.gmra.mxu0 %v2681
    %v2683 = vpop.f32.mrf.mxu0
    %v2684 = vadd.f32 %v2351, %v2683
    %v2685 = vand.u32 %v135, 4294901760
    %2686 = vmatmul.f32.gmra.mxu0 %v2685
    %v2687 = vpop.f32.mrf.mxu0
    %v2688 = vadd.f32 %v2359, %v2687
    %v2689 = vand.u32 %v137, 4294901760
    %2690 = vmatmul.f32.gmra.mxu0 %v2689
    %v2691 = vpop.f32.mrf.mxu0
    %v2692 = vadd.f32 %v2367, %v2691
    %v2693 = vand.u32 %v139, 4294901760
    %2694 = vmatmul.f32.gmra.mxu0 %v2693
    %v2695 = vpop.f32.mrf.mxu0
    %v2696 = vadd.f32 %v2375, %v2695
    %v2697 = vand.u32 %v141, 4294901760
    %2698 = vmatmul.f32.gmra.mxu0 %v2697
    %v2699 = vpop.f32.mrf.mxu0
    %v2700 = vadd.f32 %v2383, %v2699
    %v2701 = vand.u32 %v143, 4294901760
    %2702 = vmatmul.f32.gmra.mxu0 %v2701
    %v2703 = vpop.f32.mrf.mxu0
    %v2704 = vadd.f32 %v2391, %v2703
    %v2705 = vand.u32 %v145, 4294901760
    %2706 = vmatmul.f32.gmra.mxu0 %v2705
    %v2707 = vpop.f32.mrf.mxu0
    %v2708 = vadd.f32 %v2399, %v2707
    %v2709 = vand.u32 %v147, 4294901760
    %2710 = vmatmul.f32.gmra.mxu0 %v2709
    %v2711 = vpop.f32.mrf.mxu0
    %v2712 = vadd.f32 %v2407, %v2711
    %v2713 = vand.u32 %v149, 4294901760
    %2714 = vmatmul.f32.gmra.mxu0 %v2713
    %v2715 = vpop.f32.mrf.mxu0
    %v2716 = vadd.f32 %v2415, %v2715
    %v2717 = vand.u32 %v151, 4294901760
    %2718 = vmatmul.f32.gmra.mxu0 %v2717
    %v2719 = vpop.f32.mrf.mxu0
    %v2720 = vadd.f32 %v2423, %v2719
    %v2721 = vand.u32 %v153, 4294901760
    %2722 = vmatmul.f32.gmra.mxu0 %v2721
    %v2723 = vpop.f32.mrf.mxu0
    %v2724 = vadd.f32 %v2431, %v2723
    %v2725 = vand.u32 %v155, 4294901760
    %2726 = vmatmul.f32.gmra.mxu0 %v2725
    %v2727 = vpop.f32.mrf.mxu0
    %v2728 = vadd.f32 %v2439, %v2727
    %2729 = vdwg.mxu0
    %v2730 = vand.u32 %v218, 4294901760
    %v2731 = vsub.f32 %v218, %v2730
    %2732 = vmatpush.msra.mxu0 %v2731
    %v2733 = vand.u32 %v216, 4294901760
    %v2734 = vsub.f32 %v216, %v2733
    %2735 = vmatpush.msra.mxu0 %v2734
    %v2736 = vand.u32 %v214, 4294901760
    %v2737 = vsub.f32 %v214, %v2736
    %2738 = vmatpush.msra.mxu0 %v2737
    %v2739 = vand.u32 %v212, 4294901760
    %v2740 = vsub.f32 %v212, %v2739
    %2741 = vmatpush.msra.mxu0 %v2740
    %v2742 = vand.u32 %v210, 4294901760
    %v2743 = vsub.f32 %v210, %v2742
    %2744 = vmatpush.msra.mxu0 %v2743
    %v2745 = vand.u32 %v208, 4294901760
    %v2746 = vsub.f32 %v208, %v2745
    %2747 = vmatpush.msra.mxu0 %v2746
    %v2748 = vand.u32 %v206, 4294901760
    %v2749 = vsub.f32 %v206, %v2748
    %2750 = vmatpush.msra.mxu0 %v2749
    %v2751 = vand.u32 %v204, 4294901760
    %v2752 = vsub.f32 %v204, %v2751
    %2753 = vmatpush.msra.mxu0 %v2752
    %v2754 = vand.u32 %v202, 4294901760
    %v2755 = vsub.f32 %v202, %v2754
    %2756 = vmatpush.msra.mxu0 %v2755
    %v2757 = vand.u32 %v200, 4294901760
    %v2758 = vsub.f32 %v200, %v2757
    %2759 = vmatpush.msra.mxu0 %v2758
    %v2760 = vand.u32 %v198, 4294901760
    %v2761 = vsub.f32 %v198, %v2760
    %2762 = vmatpush.msra.mxu0 %v2761
    %v2763 = vand.u32 %v196, 4294901760
    %v2764 = vsub.f32 %v196, %v2763
    %2765 = vmatpush.msra.mxu0 %v2764
    %v2766 = vand.u32 %v194, 4294901760
    %v2767 = vsub.f32 %v194, %v2766
    %2768 = vmatpush.msra.mxu0 %v2767
    %v2769 = vand.u32 %v192, 4294901760
    %v2770 = vsub.f32 %v192, %v2769
    %2771 = vmatpush.msra.mxu0 %v2770
    %v2772 = vand.u32 %v190, 4294901760
    %v2773 = vsub.f32 %v190, %v2772
    %2774 = vmatpush.msra.mxu0 %v2773
    %v2775 = vand.u32 %v188, 4294901760
    %v2776 = vsub.f32 %v188, %v2775
    %2777 = vmatpush.msra.mxu0 %v2776
    %v2778 = vand.u32 %v61, 4294901760
    %v2779 = vsub.f32 %v61, %v2778
    %2780 = vmatmul.f32.gmra.mxu0 %v2779
    %v2781 = vpop.f32.mrf.mxu0
    %v2782 = vadd.f32 %v2540, %v2781
    %v2783 = vand.u32 %v63, 4294901760
    %v2784 = vsub.f32 %v63, %v2783
    %2785 = vmatmul.f32.gmra.mxu0 %v2784
    %v2786 = vpop.f32.mrf.mxu0
    %v2787 = vadd.f32 %v2544, %v2786
    %v2788 = vand.u32 %v65, 4294901760
    %v2789 = vsub.f32 %v65, %v2788
    %2790 = vmatmul.f32.gmra.mxu0 %v2789
    %v2791 = vpop.f32.mrf.mxu0
    %v2792 = vadd.f32 %v2548, %v2791
    %v2793 = vand.u32 %v67, 4294901760
    %v2794 = vsub.f32 %v67, %v2793
    %2795 = vmatmul.f32.gmra.mxu0 %v2794
    %v2796 = vpop.f32.mrf.mxu0
    %v2797 = vadd.f32 %v2552, %v2796
    %v2798 = vand.u32 %v69, 4294901760
    %v2799 = vsub.f32 %v69, %v2798
    %2800 = vmatmul.f32.gmra.mxu0 %v2799
    %v2801 = vpop.f32.mrf.mxu0
    %v2802 = vadd.f32 %v2556, %v2801
    %v2803 = vand.u32 %v71, 4294901760
    %v2804 = vsub.f32 %v71, %v2803
    %2805 = vmatmul.f32.gmra.mxu0 %v2804
    %v2806 = vpop.f32.mrf.mxu0
    %v2807 = vadd.f32 %v2560, %v2806
    %v2808 = vand.u32 %v73, 4294901760
    %v2809 = vsub.f32 %v73, %v2808
    %2810 = vmatmul.f32.gmra.mxu0 %v2809
    %v2811 = vpop.f32.mrf.mxu0
    %v2812 = vadd.f32 %v2564, %v2811
    %v2813 = vand.u32 %v75, 4294901760
    %v2814 = vsub.f32 %v75, %v2813
    %2815 = vmatmul.f32.gmra.mxu0 %v2814
    %v2816 = vpop.f32.mrf.mxu0
    %v2817 = vadd.f32 %v2568, %v2816
    %v2818 = vand.u32 %v77, 4294901760
    %v2819 = vsub.f32 %v77, %v2818
    %2820 = vmatmul.f32.gmra.mxu0 %v2819
    %v2821 = vpop.f32.mrf.mxu0
    %v2822 = vadd.f32 %v2572, %v2821
    %v2823 = vand.u32 %v79, 4294901760
    %v2824 = vsub.f32 %v79, %v2823
    %2825 = vmatmul.f32.gmra.mxu0 %v2824
    %v2826 = vpop.f32.mrf.mxu0
    %v2827 = vadd.f32 %v2576, %v2826
    %v2828 = vand.u32 %v81, 4294901760
    %v2829 = vsub.f32 %v81, %v2828
    %2830 = vmatmul.f32.gmra.mxu0 %v2829
    %v2831 = vpop.f32.mrf.mxu0
    %v2832 = vadd.f32 %v2580, %v2831
    %v2833 = vand.u32 %v83, 4294901760
    %v2834 = vsub.f32 %v83, %v2833
    %2835 = vmatmul.f32.gmra.mxu0 %v2834
    %v2836 = vpop.f32.mrf.mxu0
    %v2837 = vadd.f32 %v2584, %v2836
    %v2838 = vand.u32 %v85, 4294901760
    %v2839 = vsub.f32 %v85, %v2838
    %2840 = vmatmul.f32.gmra.mxu0 %v2839
    %v2841 = vpop.f32.mrf.mxu0
    %v2842 = vadd.f32 %v2588, %v2841
    %v2843 = vand.u32 %v87, 4294901760
    %v2844 = vsub.f32 %v87, %v2843
    %2845 = vmatmul.f32.gmra.mxu0 %v2844
    %v2846 = vpop.f32.mrf.mxu0
    %v2847 = vadd.f32 %v2592, %v2846
    %v2848 = vand.u32 %v89, 4294901760
    %v2849 = vsub.f32 %v89, %v2848
    %2850 = vmatmul.f32.gmra.mxu0 %v2849
    %v2851 = vpop.f32.mrf.mxu0
    %v2852 = vadd.f32 %v2596, %v2851
    %v2853 = vand.u32 %v91, 4294901760
    %v2854 = vsub.f32 %v91, %v2853
    %2855 = vmatmul.f32.gmra.mxu0 %v2854
    %v2856 = vpop.f32.mrf.mxu0
    %v2857 = vadd.f32 %v2600, %v2856
    %v2858 = vand.u32 %v93, 4294901760
    %v2859 = vsub.f32 %v93, %v2858
    %2860 = vmatmul.f32.gmra.mxu0 %v2859
    %v2861 = vpop.f32.mrf.mxu0
    %v2862 = vadd.f32 %v2604, %v2861
    %v2863 = vand.u32 %v95, 4294901760
    %v2864 = vsub.f32 %v95, %v2863
    %2865 = vmatmul.f32.gmra.mxu0 %v2864
    %v2866 = vpop.f32.mrf.mxu0
    %v2867 = vadd.f32 %v2608, %v2866
    %v2868 = vand.u32 %v97, 4294901760
    %v2869 = vsub.f32 %v97, %v2868
    %2870 = vmatmul.f32.gmra.mxu0 %v2869
    %v2871 = vpop.f32.mrf.mxu0
    %v2872 = vadd.f32 %v2612, %v2871
    %v2873 = vand.u32 %v99, 4294901760
    %v2874 = vsub.f32 %v99, %v2873
    %2875 = vmatmul.f32.gmra.mxu0 %v2874
    %v2876 = vpop.f32.mrf.mxu0
    %v2877 = vadd.f32 %v2616, %v2876
    %v2878 = vand.u32 %v101, 4294901760
    %v2879 = vsub.f32 %v101, %v2878
    %2880 = vmatmul.f32.gmra.mxu0 %v2879
    %v2881 = vpop.f32.mrf.mxu0
    %v2882 = vadd.f32 %v2620, %v2881
    %v2883 = vand.u32 %v103, 4294901760
    %v2884 = vsub.f32 %v103, %v2883
    %2885 = vmatmul.f32.gmra.mxu0 %v2884
    %v2886 = vpop.f32.mrf.mxu0
    %v2887 = vadd.f32 %v2624, %v2886
    %v2888 = vand.u32 %v105, 4294901760
    %v2889 = vsub.f32 %v105, %v2888
    %2890 = vmatmul.f32.gmra.mxu0 %v2889
    %v2891 = vpop.f32.mrf.mxu0
    %v2892 = vadd.f32 %v2628, %v2891
    %v2893 = vand.u32 %v107, 4294901760
    %v2894 = vsub.f32 %v107, %v2893
    %2895 = vmatmul.f32.gmra.mxu0 %v2894
    %v2896 = vpop.f32.mrf.mxu0
    %v2897 = vadd.f32 %v2632, %v2896
    %v2898 = vand.u32 %v109, 4294901760
    %v2899 = vsub.f32 %v109, %v2898
    %2900 = vmatmul.f32.gmra.mxu0 %v2899
    %v2901 = vpop.f32.mrf.mxu0
    %v2902 = vadd.f32 %v2636, %v2901
    %v2903 = vand.u32 %v111, 4294901760
    %v2904 = vsub.f32 %v111, %v2903
    %2905 = vmatmul.f32.gmra.mxu0 %v2904
    %v2906 = vpop.f32.mrf.mxu0
    %v2907 = vadd.f32 %v2640, %v2906
    %v2908 = vand.u32 %v113, 4294901760
    %v2909 = vsub.f32 %v113, %v2908
    %2910 = vmatmul.f32.gmra.mxu0 %v2909
    %v2911 = vpop.f32.mrf.mxu0
    %v2912 = vadd.f32 %v2644, %v2911
    %v2913 = vand.u32 %v115, 4294901760
    %v2914 = vsub.f32 %v115, %v2913
    %2915 = vmatmul.f32.gmra.mxu0 %v2914
    %v2916 = vpop.f32.mrf.mxu0
    %v2917 = vadd.f32 %v2648, %v2916
    %v2918 = vand.u32 %v117, 4294901760
    %v2919 = vsub.f32 %v117, %v2918
    %2920 = vmatmul.f32.gmra.mxu0 %v2919
    %v2921 = vpop.f32.mrf.mxu0
    %v2922 = vadd.f32 %v2652, %v2921
    %v2923 = vand.u32 %v119, 4294901760
    %v2924 = vsub.f32 %v119, %v2923
    %2925 = vmatmul.f32.gmra.mxu0 %v2924
    %v2926 = vpop.f32.mrf.mxu0
    %v2927 = vadd.f32 %v2656, %v2926
    %v2928 = vand.u32 %v121, 4294901760
    %v2929 = vsub.f32 %v121, %v2928
    %2930 = vmatmul.f32.gmra.mxu0 %v2929
    %v2931 = vpop.f32.mrf.mxu0
    %v2932 = vadd.f32 %v2660, %v2931
    %v2933 = vand.u32 %v123, 4294901760
    %v2934 = vsub.f32 %v123, %v2933
    %2935 = vmatmul.f32.gmra.mxu0 %v2934
    %v2936 = vpop.f32.mrf.mxu0
    %v2937 = vadd.f32 %v2664, %v2936
    %v2938 = vand.u32 %v125, 4294901760
    %v2939 = vsub.f32 %v125, %v2938
    %2940 = vmatmul.f32.gmra.mxu0 %v2939
    %v2941 = vpop.f32.mrf.mxu0
    %v2942 = vadd.f32 %v2668, %v2941
    %v2943 = vand.u32 %v127, 4294901760
    %v2944 = vsub.f32 %v127, %v2943
    %2945 = vmatmul.f32.gmra.mxu0 %v2944
    %v2946 = vpop.f32.mrf.mxu0
    %v2947 = vadd.f32 %v2672, %v2946
    %v2948 = vand.u32 %v129, 4294901760
    %v2949 = vsub.f32 %v129, %v2948
    %2950 = vmatmul.f32.gmra.mxu0 %v2949
    %v2951 = vpop.f32.mrf.mxu0
    %v2952 = vadd.f32 %v2676, %v2951
    %v2953 = vand.u32 %v131, 4294901760
    %v2954 = vsub.f32 %v131, %v2953
    %2955 = vmatmul.f32.gmra.mxu0 %v2954
    %v2956 = vpop.f32.mrf.mxu0
    %v2957 = vadd.f32 %v2680, %v2956
    %v2958 = vand.u32 %v133, 4294901760
    %v2959 = vsub.f32 %v133, %v2958
    %2960 = vmatmul.f32.gmra.mxu0 %v2959
    %v2961 = vpop.f32.mrf.mxu0
    %v2962 = vadd.f32 %v2684, %v2961
    %v2963 = vand.u32 %v135, 4294901760
    %v2964 = vsub.f32 %v135, %v2963
    %2965 = vmatmul.f32.gmra.mxu0 %v2964
    %v2966 = vpop.f32.mrf.mxu0
    %v2967 = vadd.f32 %v2688, %v2966
    %v2968 = vand.u32 %v137, 4294901760
    %v2969 = vsub.f32 %v137, %v2968
    %2970 = vmatmul.f32.gmra.mxu0 %v2969
    %v2971 = vpop.f32.mrf.mxu0
    %v2972 = vadd.f32 %v2692, %v2971
    %v2973 = vand.u32 %v139, 4294901760
    %v2974 = vsub.f32 %v139, %v2973
    %2975 = vmatmul.f32.gmra.mxu0 %v2974
    %v2976 = vpop.f32.mrf.mxu0
    %v2977 = vadd.f32 %v2696, %v2976
    %v2978 = vand.u32 %v141, 4294901760
    %v2979 = vsub.f32 %v141, %v2978
    %2980 = vmatmul.f32.gmra.mxu0 %v2979
    %v2981 = vpop.f32.mrf.mxu0
    %v2982 = vadd.f32 %v2700, %v2981
    %v2983 = vand.u32 %v143, 4294901760
    %v2984 = vsub.f32 %v143, %v2983
    %2985 = vmatmul.f32.gmra.mxu0 %v2984
    %v2986 = vpop.f32.mrf.mxu0
    %v2987 = vadd.f32 %v2704, %v2986
    %v2988 = vand.u32 %v145, 4294901760
    %v2989 = vsub.f32 %v145, %v2988
    %2990 = vmatmul.f32.gmra.mxu0 %v2989
    %v2991 = vpop.f32.mrf.mxu0
    %v2992 = vadd.f32 %v2708, %v2991
    %v2993 = vand.u32 %v147, 4294901760
    %v2994 = vsub.f32 %v147, %v2993
    %2995 = vmatmul.f32.gmra.mxu0 %v2994
    %v2996 = vpop.f32.mrf.mxu0
    %v2997 = vadd.f32 %v2712, %v2996
    %v2998 = vand.u32 %v149, 4294901760
    %v2999 = vsub.f32 %v149, %v2998
    %3000 = vmatmul.f32.gmra.mxu0 %v2999
    %v3001 = vpop.f32.mrf.mxu0
    %v3002 = vadd.f32 %v2716, %v3001
    %v3003 = vand.u32 %v151, 4294901760
    %v3004 = vsub.f32 %v151, %v3003
    %3005 = vmatmul.f32.gmra.mxu0 %v3004
    %v3006 = vpop.f32.mrf.mxu0
    %v3007 = vadd.f32 %v2720, %v3006
    %v3008 = vand.u32 %v153, 4294901760
    %v3009 = vsub.f32 %v153, %v3008
    %3010 = vmatmul.f32.gmra.mxu0 %v3009
    %v3011 = vpop.f32.mrf.mxu0
    %v3012 = vadd.f32 %v2724, %v3011
    %v3013 = vand.u32 %v155, 4294901760
    %v3014 = vsub.f32 %v155, %v3013
    %3015 = vmatmul.f32.gmra.mxu0 %v3014
    %v3016 = vpop.f32.mrf.mxu0
    %v3017 = vadd.f32 %v2728, %v3016
    %3018 = vdwg.mxu0
    %v3019 = vand.u32 %v218, 4294901760
    %3020 = vmatpush.msra.mxu0 %v3019
    %v3021 = vand.u32 %v216, 4294901760
    %3022 = vmatpush.msra.mxu0 %v3021
    %v3023 = vand.u32 %v214, 4294901760
    %3024 = vmatpush.msra.mxu0 %v3023
    %v3025 = vand.u32 %v212, 4294901760
    %3026 = vmatpush.msra.mxu0 %v3025
    %v3027 = vand.u32 %v210, 4294901760
    %3028 = vmatpush.msra.mxu0 %v3027
    %v3029 = vand.u32 %v208, 4294901760
    %3030 = vmatpush.msra.mxu0 %v3029
    %v3031 = vand.u32 %v206, 4294901760
    %3032 = vmatpush.msra.mxu0 %v3031
    %v3033 = vand.u32 %v204, 4294901760
    %3034 = vmatpush.msra.mxu0 %v3033
    %v3035 = vand.u32 %v202, 4294901760
    %3036 = vmatpush.msra.mxu0 %v3035
    %v3037 = vand.u32 %v200, 4294901760
    %3038 = vmatpush.msra.mxu0 %v3037
    %v3039 = vand.u32 %v198, 4294901760
    %3040 = vmatpush.msra.mxu0 %v3039
    %v3041 = vand.u32 %v196, 4294901760
    %3042 = vmatpush.msra.mxu0 %v3041
    %v3043 = vand.u32 %v194, 4294901760
    %3044 = vmatpush.msra.mxu0 %v3043
    %v3045 = vand.u32 %v192, 4294901760
    %3046 = vmatpush.msra.mxu0 %v3045
    %v3047 = vand.u32 %v190, 4294901760
    %3048 = vmatpush.msra.mxu0 %v3047
    %v3049 = vand.u32 %v188, 4294901760
    %3050 = vmatpush.msra.mxu0 %v3049
    %v3051 = vand.u32 %v61, 4294901760
    %v3052 = vsub.f32 %v61, %v3051
    %v3053 = vand.u32 %v3052, 4294901760
    %3054 = vmatmul.f32.gmra.mxu0 %v3053
    %v3055 = vpop.f32.mrf.mxu0
    %v3056 = vadd.f32 %v2782, %v3055
    %v3057 = vand.u32 %v63, 4294901760
    %v3058 = vsub.f32 %v63, %v3057
    %v3059 = vand.u32 %v3058, 4294901760
    %3060 = vmatmul.f32.gmra.mxu0 %v3059
    %v3061 = vpop.f32.mrf.mxu0
    %v3062 = vadd.f32 %v2787, %v3061
    %v3063 = vand.u32 %v65, 4294901760
    %v3064 = vsub.f32 %v65, %v3063
    %v3065 = vand.u32 %v3064, 4294901760
    %3066 = vmatmul.f32.gmra.mxu0 %v3065
    %v3067 = vpop.f32.mrf.mxu0
    %v3068 = vadd.f32 %v2792, %v3067
    %v3069 = vand.u32 %v67, 4294901760
    %v3070 = vsub.f32 %v67, %v3069
    %v3071 = vand.u32 %v3070, 4294901760
    %3072 = vmatmul.f32.gmra.mxu0 %v3071
    %v3073 = vpop.f32.mrf.mxu0
    %v3074 = vadd.f32 %v2797, %v3073
    %v3075 = vand.u32 %v69, 4294901760
    %v3076 = vsub.f32 %v69, %v3075
    %v3077 = vand.u32 %v3076, 4294901760
    %3078 = vmatmul.f32.gmra.mxu0 %v3077
    %v3079 = vpop.f32.mrf.mxu0
    %v3080 = vadd.f32 %v2802, %v3079
    %v3081 = vand.u32 %v71, 4294901760
    %v3082 = vsub.f32 %v71, %v3081
    %v3083 = vand.u32 %v3082, 4294901760
    %3084 = vmatmul.f32.gmra.mxu0 %v3083
    %v3085 = vpop.f32.mrf.mxu0
    %v3086 = vadd.f32 %v2807, %v3085
    %v3087 = vand.u32 %v73, 4294901760
    %v3088 = vsub.f32 %v73, %v3087
    %v3089 = vand.u32 %v3088, 4294901760
    %3090 = vmatmul.f32.gmra.mxu0 %v3089
    %v3091 = vpop.f32.mrf.mxu0
    %v3092 = vadd.f32 %v2812, %v3091
    %v3093 = vand.u32 %v75, 4294901760
    %v3094 = vsub.f32 %v75, %v3093
    %v3095 = vand.u32 %v3094, 4294901760
    %3096 = vmatmul.f32.gmra.mxu0 %v3095
    %v3097 = vpop.f32.mrf.mxu0
    %v3098 = vadd.f32 %v2817, %v3097
    %v3099 = vand.u32 %v77, 4294901760
    %v3100 = vsub.f32 %v77, %v3099
    %v3101 = vand.u32 %v3100, 4294901760
    %3102 = vmatmul.f32.gmra.mxu0 %v3101
    %v3103 = vpop.f32.mrf.mxu0
    %v3104 = vadd.f32 %v2822, %v3103
    %v3105 = vand.u32 %v79, 4294901760
    %v3106 = vsub.f32 %v79, %v3105
    %v3107 = vand.u32 %v3106, 4294901760
    %3108 = vmatmul.f32.gmra.mxu0 %v3107
    %v3109 = vpop.f32.mrf.mxu0
    %v3110 = vadd.f32 %v2827, %v3109
    %v3111 = vand.u32 %v81, 4294901760
    %v3112 = vsub.f32 %v81, %v3111
    %v3113 = vand.u32 %v3112, 4294901760
    %3114 = vmatmul.f32.gmra.mxu0 %v3113
    %v3115 = vpop.f32.mrf.mxu0
    %v3116 = vadd.f32 %v2832, %v3115
    %v3117 = vand.u32 %v83, 4294901760
    %v3118 = vsub.f32 %v83, %v3117
    %v3119 = vand.u32 %v3118, 4294901760
    %3120 = vmatmul.f32.gmra.mxu0 %v3119
    %v3121 = vpop.f32.mrf.mxu0
    %v3122 = vadd.f32 %v2837, %v3121
    %v3123 = vand.u32 %v85, 4294901760
    %v3124 = vsub.f32 %v85, %v3123
    %v3125 = vand.u32 %v3124, 4294901760
    %3126 = vmatmul.f32.gmra.mxu0 %v3125
    %v3127 = vpop.f32.mrf.mxu0
    %v3128 = vadd.f32 %v2842, %v3127
    %v3129 = vand.u32 %v87, 4294901760
    %v3130 = vsub.f32 %v87, %v3129
    %v3131 = vand.u32 %v3130, 4294901760
    %3132 = vmatmul.f32.gmra.mxu0 %v3131
    %v3133 = vpop.f32.mrf.mxu0
    %v3134 = vadd.f32 %v2847, %v3133
    %v3135 = vand.u32 %v89, 4294901760
    %v3136 = vsub.f32 %v89, %v3135
    %v3137 = vand.u32 %v3136, 4294901760
    %3138 = vmatmul.f32.gmra.mxu0 %v3137
    %v3139 = vpop.f32.mrf.mxu0
    %v3140 = vadd.f32 %v2852, %v3139
    %v3141 = vand.u32 %v91, 4294901760
    %v3142 = vsub.f32 %v91, %v3141
    %v3143 = vand.u32 %v3142, 4294901760
    %3144 = vmatmul.f32.gmra.mxu0 %v3143
    %v3145 = vpop.f32.mrf.mxu0
    %v3146 = vadd.f32 %v2857, %v3145
    %v3147 = vand.u32 %v93, 4294901760
    %v3148 = vsub.f32 %v93, %v3147
    %v3149 = vand.u32 %v3148, 4294901760
    %3150 = vmatmul.f32.gmra.mxu0 %v3149
    %v3151 = vpop.f32.mrf.mxu0
    %v3152 = vadd.f32 %v2862, %v3151
    %v3153 = vand.u32 %v95, 4294901760
    %v3154 = vsub.f32 %v95, %v3153
    %v3155 = vand.u32 %v3154, 4294901760
    %3156 = vmatmul.f32.gmra.mxu0 %v3155
    %v3157 = vpop.f32.mrf.mxu0
    %v3158 = vadd.f32 %v2867, %v3157
    %v3159 = vand.u32 %v97, 4294901760
    %v3160 = vsub.f32 %v97, %v3159
    %v3161 = vand.u32 %v3160, 4294901760
    %3162 = vmatmul.f32.gmra.mxu0 %v3161
    %v3163 = vpop.f32.mrf.mxu0
    %v3164 = vadd.f32 %v2872, %v3163
    %v3165 = vand.u32 %v99, 4294901760
    %v3166 = vsub.f32 %v99, %v3165
    %v3167 = vand.u32 %v3166, 4294901760
    %3168 = vmatmul.f32.gmra.mxu0 %v3167
    %v3169 = vpop.f32.mrf.mxu0
    %v3170 = vadd.f32 %v2877, %v3169
    %v3171 = vand.u32 %v101, 4294901760
    %v3172 = vsub.f32 %v101, %v3171
    %v3173 = vand.u32 %v3172, 4294901760
    %3174 = vmatmul.f32.gmra.mxu0 %v3173
    %v3175 = vpop.f32.mrf.mxu0
    %v3176 = vadd.f32 %v2882, %v3175
    %v3177 = vand.u32 %v103, 4294901760
    %v3178 = vsub.f32 %v103, %v3177
    %v3179 = vand.u32 %v3178, 4294901760
    %3180 = vmatmul.f32.gmra.mxu0 %v3179
    %v3181 = vpop.f32.mrf.mxu0
    %v3182 = vadd.f32 %v2887, %v3181
    %v3183 = vand.u32 %v105, 4294901760
    %v3184 = vsub.f32 %v105, %v3183
    %v3185 = vand.u32 %v3184, 4294901760
    %3186 = vmatmul.f32.gmra.mxu0 %v3185
    %v3187 = vpop.f32.mrf.mxu0
    %v3188 = vadd.f32 %v2892, %v3187
    %v3189 = vand.u32 %v107, 4294901760
    %v3190 = vsub.f32 %v107, %v3189
    %v3191 = vand.u32 %v3190, 4294901760
    %3192 = vmatmul.f32.gmra.mxu0 %v3191
    %v3193 = vpop.f32.mrf.mxu0
    %v3194 = vadd.f32 %v2897, %v3193
    %v3195 = vand.u32 %v109, 4294901760
    %v3196 = vsub.f32 %v109, %v3195
    %v3197 = vand.u32 %v3196, 4294901760
    %3198 = vmatmul.f32.gmra.mxu0 %v3197
    %v3199 = vpop.f32.mrf.mxu0
    %v3200 = vadd.f32 %v2902, %v3199
    %v3201 = vand.u32 %v111, 4294901760
    %v3202 = vsub.f32 %v111, %v3201
    %v3203 = vand.u32 %v3202, 4294901760
    %3204 = vmatmul.f32.gmra.mxu0 %v3203
    %v3205 = vpop.f32.mrf.mxu0
    %v3206 = vadd.f32 %v2907, %v3205
    %v3207 = vand.u32 %v113, 4294901760
    %v3208 = vsub.f32 %v113, %v3207
    %v3209 = vand.u32 %v3208, 4294901760
    %3210 = vmatmul.f32.gmra.mxu0 %v3209
    %v3211 = vpop.f32.mrf.mxu0
    %v3212 = vadd.f32 %v2912, %v3211
    %v3213 = vand.u32 %v115, 4294901760
    %v3214 = vsub.f32 %v115, %v3213
    %v3215 = vand.u32 %v3214, 4294901760
    %3216 = vmatmul.f32.gmra.mxu0 %v3215
    %v3217 = vpop.f32.mrf.mxu0
    %v3218 = vadd.f32 %v2917, %v3217
    %v3219 = vand.u32 %v117, 4294901760
    %v3220 = vsub.f32 %v117, %v3219
    %v3221 = vand.u32 %v3220, 4294901760
    %3222 = vmatmul.f32.gmra.mxu0 %v3221
    %v3223 = vpop.f32.mrf.mxu0
    %v3224 = vadd.f32 %v2922, %v3223
    %v3225 = vand.u32 %v119, 4294901760
    %v3226 = vsub.f32 %v119, %v3225
    %v3227 = vand.u32 %v3226, 4294901760
    %3228 = vmatmul.f32.gmra.mxu0 %v3227
    %v3229 = vpop.f32.mrf.mxu0
    %v3230 = vadd.f32 %v2927, %v3229
    %v3231 = vand.u32 %v121, 4294901760
    %v3232 = vsub.f32 %v121, %v3231
    %v3233 = vand.u32 %v3232, 4294901760
    %3234 = vmatmul.f32.gmra.mxu0 %v3233
    %v3235 = vpop.f32.mrf.mxu0
    %v3236 = vadd.f32 %v2932, %v3235
    %v3237 = vand.u32 %v123, 4294901760
    %v3238 = vsub.f32 %v123, %v3237
    %v3239 = vand.u32 %v3238, 4294901760
    %3240 = vmatmul.f32.gmra.mxu0 %v3239
    %v3241 = vpop.f32.mrf.mxu0
    %v3242 = vadd.f32 %v2937, %v3241
    %v3243 = vand.u32 %v125, 4294901760
    %v3244 = vsub.f32 %v125, %v3243
    %v3245 = vand.u32 %v3244, 4294901760
    %3246 = vmatmul.f32.gmra.mxu0 %v3245
    %v3247 = vpop.f32.mrf.mxu0
    %v3248 = vadd.f32 %v2942, %v3247
    %v3249 = vand.u32 %v127, 4294901760
    %v3250 = vsub.f32 %v127, %v3249
    %v3251 = vand.u32 %v3250, 4294901760
    %3252 = vmatmul.f32.gmra.mxu0 %v3251
    %v3253 = vpop.f32.mrf.mxu0
    %v3254 = vadd.f32 %v2947, %v3253
    %v3255 = vand.u32 %v129, 4294901760
    %v3256 = vsub.f32 %v129, %v3255
    %v3257 = vand.u32 %v3256, 4294901760
    %3258 = vmatmul.f32.gmra.mxu0 %v3257
    %v3259 = vpop.f32.mrf.mxu0
    %v3260 = vadd.f32 %v2952, %v3259
    %v3261 = vand.u32 %v131, 4294901760
    %v3262 = vsub.f32 %v131, %v3261
    %v3263 = vand.u32 %v3262, 4294901760
    %3264 = vmatmul.f32.gmra.mxu0 %v3263
    %v3265 = vpop.f32.mrf.mxu0
    %v3266 = vadd.f32 %v2957, %v3265
    %v3267 = vand.u32 %v133, 4294901760
    %v3268 = vsub.f32 %v133, %v3267
    %v3269 = vand.u32 %v3268, 4294901760
    %3270 = vmatmul.f32.gmra.mxu0 %v3269
    %v3271 = vpop.f32.mrf.mxu0
    %v3272 = vadd.f32 %v2962, %v3271
    %v3273 = vand.u32 %v135, 4294901760
    %v3274 = vsub.f32 %v135, %v3273
    %v3275 = vand.u32 %v3274, 4294901760
    %3276 = vmatmul.f32.gmra.mxu0 %v3275
    %v3277 = vpop.f32.mrf.mxu0
    %v3278 = vadd.f32 %v2967, %v3277
    %v3279 = vand.u32 %v137, 4294901760
    %v3280 = vsub.f32 %v137, %v3279
    %v3281 = vand.u32 %v3280, 4294901760
    %3282 = vmatmul.f32.gmra.mxu0 %v3281
    %v3283 = vpop.f32.mrf.mxu0
    %v3284 = vadd.f32 %v2972, %v3283
    %v3285 = vand.u32 %v139, 4294901760
    %v3286 = vsub.f32 %v139, %v3285
    %v3287 = vand.u32 %v3286, 4294901760
    %3288 = vmatmul.f32.gmra.mxu0 %v3287
    %v3289 = vpop.f32.mrf.mxu0
    %v3290 = vadd.f32 %v2977, %v3289
    %v3291 = vand.u32 %v141, 4294901760
    %v3292 = vsub.f32 %v141, %v3291
    %v3293 = vand.u32 %v3292, 4294901760
    %3294 = vmatmul.f32.gmra.mxu0 %v3293
    %v3295 = vpop.f32.mrf.mxu0
    %v3296 = vadd.f32 %v2982, %v3295
    %v3297 = vand.u32 %v143, 4294901760
    %v3298 = vsub.f32 %v143, %v3297
    %v3299 = vand.u32 %v3298, 4294901760
    %3300 = vmatmul.f32.gmra.mxu0 %v3299
    %v3301 = vpop.f32.mrf.mxu0
    %v3302 = vadd.f32 %v2987, %v3301
    %v3303 = vand.u32 %v145, 4294901760
    %v3304 = vsub.f32 %v145, %v3303
    %v3305 = vand.u32 %v3304, 4294901760
    %3306 = vmatmul.f32.gmra.mxu0 %v3305
    %v3307 = vpop.f32.mrf.mxu0
    %v3308 = vadd.f32 %v2992, %v3307
    %v3309 = vand.u32 %v147, 4294901760
    %v3310 = vsub.f32 %v147, %v3309
    %v3311 = vand.u32 %v3310, 4294901760
    %3312 = vmatmul.f32.gmra.mxu0 %v3311
    %v3313 = vpop.f32.mrf.mxu0
    %v3314 = vadd.f32 %v2997, %v3313
    %v3315 = vand.u32 %v149, 4294901760
    %v3316 = vsub.f32 %v149, %v3315
    %v3317 = vand.u32 %v3316, 4294901760
    %3318 = vmatmul.f32.gmra.mxu0 %v3317
    %v3319 = vpop.f32.mrf.mxu0
    %v3320 = vadd.f32 %v3002, %v3319
    %v3321 = vand.u32 %v151, 4294901760
    %v3322 = vsub.f32 %v151, %v3321
    %v3323 = vand.u32 %v3322, 4294901760
    %3324 = vmatmul.f32.gmra.mxu0 %v3323
    %v3325 = vpop.f32.mrf.mxu0
    %v3326 = vadd.f32 %v3007, %v3325
    %v3327 = vand.u32 %v153, 4294901760
    %v3328 = vsub.f32 %v153, %v3327
    %v3329 = vand.u32 %v3328, 4294901760
    %3330 = vmatmul.f32.gmra.mxu0 %v3329
    %v3331 = vpop.f32.mrf.mxu0
    %v3332 = vadd.f32 %v3012, %v3331
    %v3333 = vand.u32 %v155, 4294901760
    %v3334 = vsub.f32 %v155, %v3333
    %v3335 = vand.u32 %v3334, 4294901760
    %3336 = vmatmul.f32.gmra.mxu0 %v3335
    %v3337 = vpop.f32.mrf.mxu0
    %v3338 = vadd.f32 %v3017, %v3337
    %3339 = vdwg.mxu0
    %v3340 = vand.u32 %v218, 4294901760
    %v3341 = vsub.f32 %v218, %v3340
    %v3342 = vand.u32 %v3341, 4294901760
    %3343 = vmatpush.msra.mxu0 %v3342
    %v3344 = vand.u32 %v216, 4294901760
    %v3345 = vsub.f32 %v216, %v3344
    %v3346 = vand.u32 %v3345, 4294901760
    %3347 = vmatpush.msra.mxu0 %v3346
    %v3348 = vand.u32 %v214, 4294901760
    %v3349 = vsub.f32 %v214, %v3348
    %v3350 = vand.u32 %v3349, 4294901760
    %3351 = vmatpush.msra.mxu0 %v3350
    %v3352 = vand.u32 %v212, 4294901760
    %v3353 = vsub.f32 %v212, %v3352
    %v3354 = vand.u32 %v3353, 4294901760
    %3355 = vmatpush.msra.mxu0 %v3354
    %v3356 = vand.u32 %v210, 4294901760
    %v3357 = vsub.f32 %v210, %v3356
    %v3358 = vand.u32 %v3357, 4294901760
    %3359 = vmatpush.msra.mxu0 %v3358
    %v3360 = vand.u32 %v208, 4294901760
    %v3361 = vsub.f32 %v208, %v3360
    %v3362 = vand.u32 %v3361, 4294901760
    %3363 = vmatpush.msra.mxu0 %v3362
    %v3364 = vand.u32 %v206, 4294901760
    %v3365 = vsub.f32 %v206, %v3364
    %v3366 = vand.u32 %v3365, 4294901760
    %3367 = vmatpush.msra.mxu0 %v3366
    %v3368 = vand.u32 %v204, 4294901760
    %v3369 = vsub.f32 %v204, %v3368
    %v3370 = vand.u32 %v3369, 4294901760
    %3371 = vmatpush.msra.mxu0 %v3370
    %v3372 = vand.u32 %v202, 4294901760
    %v3373 = vsub.f32 %v202, %v3372
    %v3374 = vand.u32 %v3373, 4294901760
    %3375 = vmatpush.msra.mxu0 %v3374
    %v3376 = vand.u32 %v200, 4294901760
    %v3377 = vsub.f32 %v200, %v3376
    %v3378 = vand.u32 %v3377, 4294901760
    %3379 = vmatpush.msra.mxu0 %v3378
    %v3380 = vand.u32 %v198, 4294901760
    %v3381 = vsub.f32 %v198, %v3380
    %v3382 = vand.u32 %v3381, 4294901760
    %3383 = vmatpush.msra.mxu0 %v3382
    %v3384 = vand.u32 %v196, 4294901760
    %v3385 = vsub.f32 %v196, %v3384
    %v3386 = vand.u32 %v3385, 4294901760
    %3387 = vmatpush.msra.mxu0 %v3386
    %v3388 = vand.u32 %v194, 4294901760
    %v3389 = vsub.f32 %v194, %v3388
    %v3390 = vand.u32 %v3389, 4294901760
    %3391 = vmatpush.msra.mxu0 %v3390
    %v3392 = vand.u32 %v192, 4294901760
    %v3393 = vsub.f32 %v192, %v3392
    %v3394 = vand.u32 %v3393, 4294901760
    %3395 = vmatpush.msra.mxu0 %v3394
    %v3396 = vand.u32 %v190, 4294901760
    %v3397 = vsub.f32 %v190, %v3396
    %v3398 = vand.u32 %v3397, 4294901760
    %3399 = vmatpush.msra.mxu0 %v3398
    %v3400 = vand.u32 %v188, 4294901760
    %v3401 = vsub.f32 %v188, %v3400
    %v3402 = vand.u32 %v3401, 4294901760
    %3403 = vmatpush.msra.mxu0 %v3402
    %v3404 = vand.u32 %v61, 4294901760
    %3405 = vmatmul.f32.gmra.mxu0 %v3404
    %v3406 = vpop.f32.mrf.mxu0
    %v3407 = vadd.f32 %v3056, %v3406
    %v3408 = vand.u32 %v63, 4294901760
    %3409 = vmatmul.f32.gmra.mxu0 %v3408
    %v3410 = vpop.f32.mrf.mxu0
    %v3411 = vadd.f32 %v3062, %v3410
    %v3412 = vand.u32 %v65, 4294901760
    %3413 = vmatmul.f32.gmra.mxu0 %v3412
    %v3414 = vpop.f32.mrf.mxu0
    %v3415 = vadd.f32 %v3068, %v3414
    %v3416 = vand.u32 %v67, 4294901760
    %3417 = vmatmul.f32.gmra.mxu0 %v3416
    %v3418 = vpop.f32.mrf.mxu0
    %v3419 = vadd.f32 %v3074, %v3418
    %v3420 = vand.u32 %v69, 4294901760
    %3421 = vmatmul.f32.gmra.mxu0 %v3420
    %v3422 = vpop.f32.mrf.mxu0
    %v3423 = vadd.f32 %v3080, %v3422
    %v3424 = vand.u32 %v71, 4294901760
    %3425 = vmatmul.f32.gmra.mxu0 %v3424
    %v3426 = vpop.f32.mrf.mxu0
    %v3427 = vadd.f32 %v3086, %v3426
    %v3428 = vand.u32 %v73, 4294901760
    %3429 = vmatmul.f32.gmra.mxu0 %v3428
    %v3430 = vpop.f32.mrf.mxu0
    %v3431 = vadd.f32 %v3092, %v3430
    %v3432 = vand.u32 %v75, 4294901760
    %3433 = vmatmul.f32.gmra.mxu0 %v3432
    %v3434 = vpop.f32.mrf.mxu0
    %v3435 = vadd.f32 %v3098, %v3434
    %v3436 = vand.u32 %v77, 4294901760
    %3437 = vmatmul.f32.gmra.mxu0 %v3436
    %v3438 = vpop.f32.mrf.mxu0
    %v3439 = vadd.f32 %v3104, %v3438
    %v3440 = vand.u32 %v79, 4294901760
    %3441 = vmatmul.f32.gmra.mxu0 %v3440
    %v3442 = vpop.f32.mrf.mxu0
    %v3443 = vadd.f32 %v3110, %v3442
    %v3444 = vand.u32 %v81, 4294901760
    %3445 = vmatmul.f32.gmra.mxu0 %v3444
    %v3446 = vpop.f32.mrf.mxu0
    %v3447 = vadd.f32 %v3116, %v3446
    %v3448 = vand.u32 %v83, 4294901760
    %3449 = vmatmul.f32.gmra.mxu0 %v3448
    %v3450 = vpop.f32.mrf.mxu0
    %v3451 = vadd.f32 %v3122, %v3450
    %v3452 = vand.u32 %v85, 4294901760
    %3453 = vmatmul.f32.gmra.mxu0 %v3452
    %v3454 = vpop.f32.mrf.mxu0
    %v3455 = vadd.f32 %v3128, %v3454
    %v3456 = vand.u32 %v87, 4294901760
    %3457 = vmatmul.f32.gmra.mxu0 %v3456
    %v3458 = vpop.f32.mrf.mxu0
    %v3459 = vadd.f32 %v3134, %v3458
    %v3460 = vand.u32 %v89, 4294901760
    %3461 = vmatmul.f32.gmra.mxu0 %v3460
    %v3462 = vpop.f32.mrf.mxu0
    %v3463 = vadd.f32 %v3140, %v3462
    %v3464 = vand.u32 %v91, 4294901760
    %3465 = vmatmul.f32.gmra.mxu0 %v3464
    %v3466 = vpop.f32.mrf.mxu0
    %v3467 = vadd.f32 %v3146, %v3466
    %v3468 = vand.u32 %v93, 4294901760
    %3469 = vmatmul.f32.gmra.mxu0 %v3468
    %v3470 = vpop.f32.mrf.mxu0
    %v3471 = vadd.f32 %v3152, %v3470
    %v3472 = vand.u32 %v95, 4294901760
    %3473 = vmatmul.f32.gmra.mxu0 %v3472
    %v3474 = vpop.f32.mrf.mxu0
    %v3475 = vadd.f32 %v3158, %v3474
    %v3476 = vand.u32 %v97, 4294901760
    %3477 = vmatmul.f32.gmra.mxu0 %v3476
    %v3478 = vpop.f32.mrf.mxu0
    %v3479 = vadd.f32 %v3164, %v3478
    %v3480 = vand.u32 %v99, 4294901760
    %3481 = vmatmul.f32.gmra.mxu0 %v3480
    %v3482 = vpop.f32.mrf.mxu0
    %v3483 = vadd.f32 %v3170, %v3482
    %v3484 = vand.u32 %v101, 4294901760
    %3485 = vmatmul.f32.gmra.mxu0 %v3484
    %v3486 = vpop.f32.mrf.mxu0
    %v3487 = vadd.f32 %v3176, %v3486
    %v3488 = vand.u32 %v103, 4294901760
    %3489 = vmatmul.f32.gmra.mxu0 %v3488
    %v3490 = vpop.f32.mrf.mxu0
    %v3491 = vadd.f32 %v3182, %v3490
    %v3492 = vand.u32 %v105, 4294901760
    %3493 = vmatmul.f32.gmra.mxu0 %v3492
    %v3494 = vpop.f32.mrf.mxu0
    %v3495 = vadd.f32 %v3188, %v3494
    %v3496 = vand.u32 %v107, 4294901760
    %3497 = vmatmul.f32.gmra.mxu0 %v3496
    %v3498 = vpop.f32.mrf.mxu0
    %v3499 = vadd.f32 %v3194, %v3498
    %v3500 = vand.u32 %v109, 4294901760
    %3501 = vmatmul.f32.gmra.mxu0 %v3500
    %v3502 = vpop.f32.mrf.mxu0
    %v3503 = vadd.f32 %v3200, %v3502
    %v3504 = vand.u32 %v111, 4294901760
    %3505 = vmatmul.f32.gmra.mxu0 %v3504
    %v3506 = vpop.f32.mrf.mxu0
    %v3507 = vadd.f32 %v3206, %v3506
    %v3508 = vand.u32 %v113, 4294901760
    %3509 = vmatmul.f32.gmra.mxu0 %v3508
    %v3510 = vpop.f32.mrf.mxu0
    %v3511 = vadd.f32 %v3212, %v3510
    %v3512 = vand.u32 %v115, 4294901760
    %3513 = vmatmul.f32.gmra.mxu0 %v3512
    %v3514 = vpop.f32.mrf.mxu0
    %v3515 = vadd.f32 %v3218, %v3514
    %v3516 = vand.u32 %v117, 4294901760
    %3517 = vmatmul.f32.gmra.mxu0 %v3516
    %v3518 = vpop.f32.mrf.mxu0
    %v3519 = vadd.f32 %v3224, %v3518
    %v3520 = vand.u32 %v119, 4294901760
    %3521 = vmatmul.f32.gmra.mxu0 %v3520
    %v3522 = vpop.f32.mrf.mxu0
    %v3523 = vadd.f32 %v3230, %v3522
    %v3524 = vand.u32 %v121, 4294901760
    %3525 = vmatmul.f32.gmra.mxu0 %v3524
    %v3526 = vpop.f32.mrf.mxu0
    %v3527 = vadd.f32 %v3236, %v3526
    %v3528 = vand.u32 %v123, 4294901760
    %3529 = vmatmul.f32.gmra.mxu0 %v3528
    %v3530 = vpop.f32.mrf.mxu0
    %v3531 = vadd.f32 %v3242, %v3530
    %v3532 = vand.u32 %v125, 4294901760
    %3533 = vmatmul.f32.gmra.mxu0 %v3532
    %v3534 = vpop.f32.mrf.mxu0
    %v3535 = vadd.f32 %v3248, %v3534
    %v3536 = vand.u32 %v127, 4294901760
    %3537 = vmatmul.f32.gmra.mxu0 %v3536
    %v3538 = vpop.f32.mrf.mxu0
    %v3539 = vadd.f32 %v3254, %v3538
    %v3540 = vand.u32 %v129, 4294901760
    %3541 = vmatmul.f32.gmra.mxu0 %v3540
    %v3542 = vpop.f32.mrf.mxu0
    %v3543 = vadd.f32 %v3260, %v3542
    %v3544 = vand.u32 %v131, 4294901760
    %3545 = vmatmul.f32.gmra.mxu0 %v3544
    %v3546 = vpop.f32.mrf.mxu0
    %v3547 = vadd.f32 %v3266, %v3546
    %v3548 = vand.u32 %v133, 4294901760
    %3549 = vmatmul.f32.gmra.mxu0 %v3548
    %v3550 = vpop.f32.mrf.mxu0
    %v3551 = vadd.f32 %v3272, %v3550
    %v3552 = vand.u32 %v135, 4294901760
    %3553 = vmatmul.f32.gmra.mxu0 %v3552
    %v3554 = vpop.f32.mrf.mxu0
    %v3555 = vadd.f32 %v3278, %v3554
    %v3556 = vand.u32 %v137, 4294901760
    %3557 = vmatmul.f32.gmra.mxu0 %v3556
    %v3558 = vpop.f32.mrf.mxu0
    %v3559 = vadd.f32 %v3284, %v3558
    %v3560 = vand.u32 %v139, 4294901760
    %3561 = vmatmul.f32.gmra.mxu0 %v3560
    %v3562 = vpop.f32.mrf.mxu0
    %v3563 = vadd.f32 %v3290, %v3562
    %v3564 = vand.u32 %v141, 4294901760
    %3565 = vmatmul.f32.gmra.mxu0 %v3564
    %v3566 = vpop.f32.mrf.mxu0
    %v3567 = vadd.f32 %v3296, %v3566
    %v3568 = vand.u32 %v143, 4294901760
    %3569 = vmatmul.f32.gmra.mxu0 %v3568
    %v3570 = vpop.f32.mrf.mxu0
    %v3571 = vadd.f32 %v3302, %v3570
    %v3572 = vand.u32 %v145, 4294901760
    %3573 = vmatmul.f32.gmra.mxu0 %v3572
    %v3574 = vpop.f32.mrf.mxu0
    %v3575 = vadd.f32 %v3308, %v3574
    %v3576 = vand.u32 %v147, 4294901760
    %3577 = vmatmul.f32.gmra.mxu0 %v3576
    %v3578 = vpop.f32.mrf.mxu0
    %v3579 = vadd.f32 %v3314, %v3578
    %v3580 = vand.u32 %v149, 4294901760
    %3581 = vmatmul.f32.gmra.mxu0 %v3580
    %v3582 = vpop.f32.mrf.mxu0
    %v3583 = vadd.f32 %v3320, %v3582
    %v3584 = vand.u32 %v151, 4294901760
    %3585 = vmatmul.f32.gmra.mxu0 %v3584
    %v3586 = vpop.f32.mrf.mxu0
    %v3587 = vadd.f32 %v3326, %v3586
    %v3588 = vand.u32 %v153, 4294901760
    %3589 = vmatmul.f32.gmra.mxu0 %v3588
    %v3590 = vpop.f32.mrf.mxu0
    %v3591 = vadd.f32 %v3332, %v3590
    %v3592 = vand.u32 %v155, 4294901760
    %3593 = vmatmul.f32.gmra.mxu0 %v3592
    %v3594 = vpop.f32.mrf.mxu0
    %v3595 = vadd.f32 %v3338, %v3594
    %3596 = vdwg.mxu0
    %v3597 = vand.u32 %v218, 4294901760
    %3598 = vmatpush.msra.mxu0 %v3597
    %v3599 = vand.u32 %v216, 4294901760
    %3600 = vmatpush.msra.mxu0 %v3599
    %v3601 = vand.u32 %v214, 4294901760
    %3602 = vmatpush.msra.mxu0 %v3601
    %v3603 = vand.u32 %v212, 4294901760
    %3604 = vmatpush.msra.mxu0 %v3603
    %v3605 = vand.u32 %v210, 4294901760
    %3606 = vmatpush.msra.mxu0 %v3605
    %v3607 = vand.u32 %v208, 4294901760
    %3608 = vmatpush.msra.mxu0 %v3607
    %v3609 = vand.u32 %v206, 4294901760
    %3610 = vmatpush.msra.mxu0 %v3609
    %v3611 = vand.u32 %v204, 4294901760
    %3612 = vmatpush.msra.mxu0 %v3611
    %v3613 = vand.u32 %v202, 4294901760
    %3614 = vmatpush.msra.mxu0 %v3613
    %v3615 = vand.u32 %v200, 4294901760
    %3616 = vmatpush.msra.mxu0 %v3615
    %v3617 = vand.u32 %v198, 4294901760
    %3618 = vmatpush.msra.mxu0 %v3617
    %v3619 = vand.u32 %v196, 4294901760
    %3620 = vmatpush.msra.mxu0 %v3619
    %v3621 = vand.u32 %v194, 4294901760
    %3622 = vmatpush.msra.mxu0 %v3621
    %v3623 = vand.u32 %v192, 4294901760
    %3624 = vmatpush.msra.mxu0 %v3623
    %v3625 = vand.u32 %v190, 4294901760
    %3626 = vmatpush.msra.mxu0 %v3625
    %v3627 = vand.u32 %v188, 4294901760
    %3628 = vmatpush.msra.mxu0 %v3627
    %v3629 = vand.u32 %v61, 4294901760
    %3630 = vmatmul.f32.gmra.mxu0 %v3629
    %v3631 = vpop.f32.mrf.mxu0
    %v3632 = vadd.f32 %v3407, %v3631
    %v3633 = vand.u32 %v63, 4294901760
    %3634 = vmatmul.f32.gmra.mxu0 %v3633
    %v3635 = vpop.f32.mrf.mxu0
    %v3636 = vadd.f32 %v3411, %v3635
    %v3637 = vand.u32 %v65, 4294901760
    %3638 = vmatmul.f32.gmra.mxu0 %v3637
    %v3639 = vpop.f32.mrf.mxu0
    %v3640 = vadd.f32 %v3415, %v3639
    %v3641 = vand.u32 %v67, 4294901760
    %3642 = vmatmul.f32.gmra.mxu0 %v3641
    %v3643 = vpop.f32.mrf.mxu0
    %v3644 = vadd.f32 %v3419, %v3643
    %v3645 = vand.u32 %v69, 4294901760
    %3646 = vmatmul.f32.gmra.mxu0 %v3645
    %v3647 = vpop.f32.mrf.mxu0
    %v3648 = vadd.f32 %v3423, %v3647
    %v3649 = vand.u32 %v71, 4294901760
    %3650 = vmatmul.f32.gmra.mxu0 %v3649
    %v3651 = vpop.f32.mrf.mxu0
    %v3652 = vadd.f32 %v3427, %v3651
    %v3653 = vand.u32 %v73, 4294901760
    %3654 = vmatmul.f32.gmra.mxu0 %v3653
    %v3655 = vpop.f32.mrf.mxu0
    %v3656 = vadd.f32 %v3431, %v3655
    %v3657 = vand.u32 %v75, 4294901760
    %3658 = vmatmul.f32.gmra.mxu0 %v3657
    %v3659 = vpop.f32.mrf.mxu0
    %v3660 = vadd.f32 %v3435, %v3659
    %v3661 = vand.u32 %v77, 4294901760
    %3662 = vmatmul.f32.gmra.mxu0 %v3661
    %v3663 = vpop.f32.mrf.mxu0
    %v3664 = vadd.f32 %v3439, %v3663
    %v3665 = vand.u32 %v79, 4294901760
    %3666 = vmatmul.f32.gmra.mxu0 %v3665
    %v3667 = vpop.f32.mrf.mxu0
    %v3668 = vadd.f32 %v3443, %v3667
    %v3669 = vand.u32 %v81, 4294901760
    %3670 = vmatmul.f32.gmra.mxu0 %v3669
    %v3671 = vpop.f32.mrf.mxu0
    %v3672 = vadd.f32 %v3447, %v3671
    %v3673 = vand.u32 %v83, 4294901760
    %3674 = vmatmul.f32.gmra.mxu0 %v3673
    %v3675 = vpop.f32.mrf.mxu0
    %v3676 = vadd.f32 %v3451, %v3675
    %v3677 = vand.u32 %v85, 4294901760
    %3678 = vmatmul.f32.gmra.mxu0 %v3677
    %v3679 = vpop.f32.mrf.mxu0
    %v3680 = vadd.f32 %v3455, %v3679
    %v3681 = vand.u32 %v87, 4294901760
    %3682 = vmatmul.f32.gmra.mxu0 %v3681
    %v3683 = vpop.f32.mrf.mxu0
    %v3684 = vadd.f32 %v3459, %v3683
    %v3685 = vand.u32 %v89, 4294901760
    %3686 = vmatmul.f32.gmra.mxu0 %v3685
    %v3687 = vpop.f32.mrf.mxu0
    %v3688 = vadd.f32 %v3463, %v3687
    %v3689 = vand.u32 %v91, 4294901760
    %3690 = vmatmul.f32.gmra.mxu0 %v3689
    %v3691 = vpop.f32.mrf.mxu0
    %v3692 = vadd.f32 %v3467, %v3691
    %v3693 = vand.u32 %v93, 4294901760
    %3694 = vmatmul.f32.gmra.mxu0 %v3693
    %v3695 = vpop.f32.mrf.mxu0
    %v3696 = vadd.f32 %v3471, %v3695
    %v3697 = vand.u32 %v95, 4294901760
    %3698 = vmatmul.f32.gmra.mxu0 %v3697
    %v3699 = vpop.f32.mrf.mxu0
    %v3700 = vadd.f32 %v3475, %v3699
    %v3701 = vand.u32 %v97, 4294901760
    %3702 = vmatmul.f32.gmra.mxu0 %v3701
    %v3703 = vpop.f32.mrf.mxu0
    %v3704 = vadd.f32 %v3479, %v3703
    %v3705 = vand.u32 %v99, 4294901760
    %3706 = vmatmul.f32.gmra.mxu0 %v3705
    %v3707 = vpop.f32.mrf.mxu0
    %v3708 = vadd.f32 %v3483, %v3707
    %v3709 = vand.u32 %v101, 4294901760
    %3710 = vmatmul.f32.gmra.mxu0 %v3709
    %v3711 = vpop.f32.mrf.mxu0
    %v3712 = vadd.f32 %v3487, %v3711
    %v3713 = vand.u32 %v103, 4294901760
    %3714 = vmatmul.f32.gmra.mxu0 %v3713
    %v3715 = vpop.f32.mrf.mxu0
    %v3716 = vadd.f32 %v3491, %v3715
    %v3717 = vand.u32 %v105, 4294901760
    %3718 = vmatmul.f32.gmra.mxu0 %v3717
    %v3719 = vpop.f32.mrf.mxu0
    %v3720 = vadd.f32 %v3495, %v3719
    %v3721 = vand.u32 %v107, 4294901760
    %3722 = vmatmul.f32.gmra.mxu0 %v3721
    %v3723 = vpop.f32.mrf.mxu0
    %v3724 = vadd.f32 %v3499, %v3723
    %v3725 = vand.u32 %v109, 4294901760
    %3726 = vmatmul.f32.gmra.mxu0 %v3725
    %v3727 = vpop.f32.mrf.mxu0
    %v3728 = vadd.f32 %v3503, %v3727
    %v3729 = vand.u32 %v111, 4294901760
    %3730 = vmatmul.f32.gmra.mxu0 %v3729
    %v3731 = vpop.f32.mrf.mxu0
    %v3732 = vadd.f32 %v3507, %v3731
    %v3733 = vand.u32 %v113, 4294901760
    %3734 = vmatmul.f32.gmra.mxu0 %v3733
    %v3735 = vpop.f32.mrf.mxu0
    %v3736 = vadd.f32 %v3511, %v3735
    %v3737 = vand.u32 %v115, 4294901760
    %3738 = vmatmul.f32.gmra.mxu0 %v3737
    %v3739 = vpop.f32.mrf.mxu0
    %v3740 = vadd.f32 %v3515, %v3739
    %v3741 = vand.u32 %v117, 4294901760
    %3742 = vmatmul.f32.gmra.mxu0 %v3741
    %v3743 = vpop.f32.mrf.mxu0
    %v3744 = vadd.f32 %v3519, %v3743
    %v3745 = vand.u32 %v119, 4294901760
    %3746 = vmatmul.f32.gmra.mxu0 %v3745
    %v3747 = vpop.f32.mrf.mxu0
    %v3748 = vadd.f32 %v3523, %v3747
    %v3749 = vand.u32 %v121, 4294901760
    %3750 = vmatmul.f32.gmra.mxu0 %v3749
    %v3751 = vpop.f32.mrf.mxu0
    %v3752 = vadd.f32 %v3527, %v3751
    %v3753 = vand.u32 %v123, 4294901760
    %3754 = vmatmul.f32.gmra.mxu0 %v3753
    %v3755 = vpop.f32.mrf.mxu0
    %v3756 = vadd.f32 %v3531, %v3755
    %v3757 = vand.u32 %v125, 4294901760
    %3758 = vmatmul.f32.gmra.mxu0 %v3757
    %v3759 = vpop.f32.mrf.mxu0
    %v3760 = vadd.f32 %v3535, %v3759
    %v3761 = vand.u32 %v127, 4294901760
    %3762 = vmatmul.f32.gmra.mxu0 %v3761
    %v3763 = vpop.f32.mrf.mxu0
    %v3764 = vadd.f32 %v3539, %v3763
    %v3765 = vand.u32 %v129, 4294901760
    %3766 = vmatmul.f32.gmra.mxu0 %v3765
    %v3767 = vpop.f32.mrf.mxu0
    %v3768 = vadd.f32 %v3543, %v3767
    %v3769 = vand.u32 %v131, 4294901760
    %3770 = vmatmul.f32.gmra.mxu0 %v3769
    %v3771 = vpop.f32.mrf.mxu0
    %v3772 = vadd.f32 %v3547, %v3771
    %v3773 = vand.u32 %v133, 4294901760
    %3774 = vmatmul.f32.gmra.mxu0 %v3773
    %v3775 = vpop.f32.mrf.mxu0
    %v3776 = vadd.f32 %v3551, %v3775
    %v3777 = vand.u32 %v135, 4294901760
    %3778 = vmatmul.f32.gmra.mxu0 %v3777
    %v3779 = vpop.f32.mrf.mxu0
    %v3780 = vadd.f32 %v3555, %v3779
    %v3781 = vand.u32 %v137, 4294901760
    %3782 = vmatmul.f32.gmra.mxu0 %v3781
    %v3783 = vpop.f32.mrf.mxu0
    %v3784 = vadd.f32 %v3559, %v3783
    %v3785 = vand.u32 %v139, 4294901760
    %3786 = vmatmul.f32.gmra.mxu0 %v3785
    %v3787 = vpop.f32.mrf.mxu0
    %v3788 = vadd.f32 %v3563, %v3787
    %v3789 = vand.u32 %v141, 4294901760
    %3790 = vmatmul.f32.gmra.mxu0 %v3789
    %v3791 = vpop.f32.mrf.mxu0
    %v3792 = vadd.f32 %v3567, %v3791
    %v3793 = vand.u32 %v143, 4294901760
    %3794 = vmatmul.f32.gmra.mxu0 %v3793
    %v3795 = vpop.f32.mrf.mxu0
    %v3796 = vadd.f32 %v3571, %v3795
    %v3797 = vand.u32 %v145, 4294901760
    %3798 = vmatmul.f32.gmra.mxu0 %v3797
    %v3799 = vpop.f32.mrf.mxu0
    %v3800 = vadd.f32 %v3575, %v3799
    %v3801 = vand.u32 %v147, 4294901760
    %3802 = vmatmul.f32.gmra.mxu0 %v3801
    %v3803 = vpop.f32.mrf.mxu0
    %v3804 = vadd.f32 %v3579, %v3803
    %v3805 = vand.u32 %v149, 4294901760
    %3806 = vmatmul.f32.gmra.mxu0 %v3805
    %v3807 = vpop.f32.mrf.mxu0
    %v3808 = vadd.f32 %v3583, %v3807
    %v3809 = vand.u32 %v151, 4294901760
    %3810 = vmatmul.f32.gmra.mxu0 %v3809
    %v3811 = vpop.f32.mrf.mxu0
    %v3812 = vadd.f32 %v3587, %v3811
    %v3813 = vand.u32 %v153, 4294901760
    %3814 = vmatmul.f32.gmra.mxu0 %v3813
    %v3815 = vpop.f32.mrf.mxu0
    %v3816 = vadd.f32 %v3591, %v3815
    %v3817 = vand.u32 %v155, 4294901760
    %3818 = vmatmul.f32.gmra.mxu0 %v3817
    %v3819 = vpop.f32.mrf.mxu0
    %v3820 = vadd.f32 %v3595, %v3819
    %3821 = vdwg.mxu0
    %v3822 = vand.u32 %v187, 4294901760
    %3823 = vmatpush.msra.mxu0 %v3822
    %v3824 = vand.u32 %v185, 4294901760
    %3825 = vmatpush.msra.mxu0 %v3824
    %v3826 = vand.u32 %v183, 4294901760
    %3827 = vmatpush.msra.mxu0 %v3826
    %v3828 = vand.u32 %v181, 4294901760
    %3829 = vmatpush.msra.mxu0 %v3828
    %v3830 = vand.u32 %v179, 4294901760
    %3831 = vmatpush.msra.mxu0 %v3830
    %v3832 = vand.u32 %v177, 4294901760
    %3833 = vmatpush.msra.mxu0 %v3832
    %v3834 = vand.u32 %v175, 4294901760
    %3835 = vmatpush.msra.mxu0 %v3834
    %v3836 = vand.u32 %v173, 4294901760
    %3837 = vmatpush.msra.mxu0 %v3836
    %v3838 = vand.u32 %v171, 4294901760
    %3839 = vmatpush.msra.mxu0 %v3838
    %v3840 = vand.u32 %v169, 4294901760
    %3841 = vmatpush.msra.mxu0 %v3840
    %v3842 = vand.u32 %v167, 4294901760
    %3843 = vmatpush.msra.mxu0 %v3842
    %v3844 = vand.u32 %v165, 4294901760
    %3845 = vmatpush.msra.mxu0 %v3844
    %v3846 = vand.u32 %v163, 4294901760
    %3847 = vmatpush.msra.mxu0 %v3846
    %v3848 = vand.u32 %v161, 4294901760
    %3849 = vmatpush.msra.mxu0 %v3848
    %v3850 = vand.u32 %v159, 4294901760
    %3851 = vmatpush.msra.mxu0 %v3850
    %v3852 = vand.u32 %v157, 4294901760
    %3853 = vmatpush.msra.mxu0 %v3852
    %v3854 = vand.u32 %v60, 4294901760
    %v3855 = vsub.f32 %v60, %v3854
    %v3856 = vand.u32 %v3855, 4294901760
    %v3857 = vsub.f32 %v3855, %v3856
    %v3858 = vand.u32 %v3857, 4294901760
    %3859 = vmatmul.f32.gmra.mxu0 %v3858
    %v3860 = vpop.f32.mrf.mxu0
    %v3861 = vadd.f32 %v223, %v3860
    %v3862 = vand.u32 %v62, 4294901760
    %v3863 = vsub.f32 %v62, %v3862
    %v3864 = vand.u32 %v3863, 4294901760
    %v3865 = vsub.f32 %v3863, %v3864
    %v3866 = vand.u32 %v3865, 4294901760
    %3867 = vmatmul.f32.gmra.mxu0 %v3866
    %v3868 = vpop.f32.mrf.mxu0
    %v3869 = vadd.f32 %v223, %v3868
    %v3870 = vand.u32 %v64, 4294901760
    %v3871 = vsub.f32 %v64, %v3870
    %v3872 = vand.u32 %v3871, 4294901760
    %v3873 = vsub.f32 %v3871, %v3872
    %v3874 = vand.u32 %v3873, 4294901760
    %3875 = vmatmul.f32.gmra.mxu0 %v3874
    %v3876 = vpop.f32.mrf.mxu0
    %v3877 = vadd.f32 %v223, %v3876
    %v3878 = vand.u32 %v66, 4294901760
    %v3879 = vsub.f32 %v66, %v3878
    %v3880 = vand.u32 %v3879, 4294901760
    %v3881 = vsub.f32 %v3879, %v3880
    %v3882 = vand.u32 %v3881, 4294901760
    %3883 = vmatmul.f32.gmra.mxu0 %v3882
    %v3884 = vpop.f32.mrf.mxu0
    %v3885 = vadd.f32 %v223, %v3884
    %v3886 = vand.u32 %v68, 4294901760
    %v3887 = vsub.f32 %v68, %v3886
    %v3888 = vand.u32 %v3887, 4294901760
    %v3889 = vsub.f32 %v3887, %v3888
    %v3890 = vand.u32 %v3889, 4294901760
    %3891 = vmatmul.f32.gmra.mxu0 %v3890
    %v3892 = vpop.f32.mrf.mxu0
    %v3893 = vadd.f32 %v223, %v3892
    %v3894 = vand.u32 %v70, 4294901760
    %v3895 = vsub.f32 %v70, %v3894
    %v3896 = vand.u32 %v3895, 4294901760
    %v3897 = vsub.f32 %v3895, %v3896
    %v3898 = vand.u32 %v3897, 4294901760
    %3899 = vmatmul.f32.gmra.mxu0 %v3898
    %v3900 = vpop.f32.mrf.mxu0
    %v3901 = vadd.f32 %v223, %v3900
    %v3902 = vand.u32 %v72, 4294901760
    %v3903 = vsub.f32 %v72, %v3902
    %v3904 = vand.u32 %v3903, 4294901760
    %v3905 = vsub.f32 %v3903, %v3904
    %v3906 = vand.u32 %v3905, 4294901760
    %3907 = vmatmul.f32.gmra.mxu0 %v3906
    %v3908 = vpop.f32.mrf.mxu0
    %v3909 = vadd.f32 %v223, %v3908
    %v3910 = vand.u32 %v74, 4294901760
    %v3911 = vsub.f32 %v74, %v3910
    %v3912 = vand.u32 %v3911, 4294901760
    %v3913 = vsub.f32 %v3911, %v3912
    %v3914 = vand.u32 %v3913, 4294901760
    %3915 = vmatmul.f32.gmra.mxu0 %v3914
    %v3916 = vpop.f32.mrf.mxu0
    %v3917 = vadd.f32 %v223, %v3916
    %v3918 = vand.u32 %v76, 4294901760
    %v3919 = vsub.f32 %v76, %v3918
    %v3920 = vand.u32 %v3919, 4294901760
    %v3921 = vsub.f32 %v3919, %v3920
    %v3922 = vand.u32 %v3921, 4294901760
    %3923 = vmatmul.f32.gmra.mxu0 %v3922
    %v3924 = vpop.f32.mrf.mxu0
    %v3925 = vadd.f32 %v223, %v3924
    %v3926 = vand.u32 %v78, 4294901760
    %v3927 = vsub.f32 %v78, %v3926
    %v3928 = vand.u32 %v3927, 4294901760
    %v3929 = vsub.f32 %v3927, %v3928
    %v3930 = vand.u32 %v3929, 4294901760
    %3931 = vmatmul.f32.gmra.mxu0 %v3930
    %v3932 = vpop.f32.mrf.mxu0
    %v3933 = vadd.f32 %v223, %v3932
    %v3934 = vand.u32 %v80, 4294901760
    %v3935 = vsub.f32 %v80, %v3934
    %v3936 = vand.u32 %v3935, 4294901760
    %v3937 = vsub.f32 %v3935, %v3936
    %v3938 = vand.u32 %v3937, 4294901760
    %3939 = vmatmul.f32.gmra.mxu0 %v3938
    %v3940 = vpop.f32.mrf.mxu0
    %v3941 = vadd.f32 %v223, %v3940
    %v3942 = vand.u32 %v82, 4294901760
    %v3943 = vsub.f32 %v82, %v3942
    %v3944 = vand.u32 %v3943, 4294901760
    %v3945 = vsub.f32 %v3943, %v3944
    %v3946 = vand.u32 %v3945, 4294901760
    %3947 = vmatmul.f32.gmra.mxu0 %v3946
    %v3948 = vpop.f32.mrf.mxu0
    %v3949 = vadd.f32 %v223, %v3948
    %v3950 = vand.u32 %v84, 4294901760
    %v3951 = vsub.f32 %v84, %v3950
    %v3952 = vand.u32 %v3951, 4294901760
    %v3953 = vsub.f32 %v3951, %v3952
    %v3954 = vand.u32 %v3953, 4294901760
    %3955 = vmatmul.f32.gmra.mxu0 %v3954
    %v3956 = vpop.f32.mrf.mxu0
    %v3957 = vadd.f32 %v223, %v3956
    %v3958 = vand.u32 %v86, 4294901760
    %v3959 = vsub.f32 %v86, %v3958
    %v3960 = vand.u32 %v3959, 4294901760
    %v3961 = vsub.f32 %v3959, %v3960
    %v3962 = vand.u32 %v3961, 4294901760
    %3963 = vmatmul.f32.gmra.mxu0 %v3962
    %v3964 = vpop.f32.mrf.mxu0
    %v3965 = vadd.f32 %v223, %v3964
    %v3966 = vand.u32 %v88, 4294901760
    %v3967 = vsub.f32 %v88, %v3966
    %v3968 = vand.u32 %v3967, 4294901760
    %v3969 = vsub.f32 %v3967, %v3968
    %v3970 = vand.u32 %v3969, 4294901760
    %3971 = vmatmul.f32.gmra.mxu0 %v3970
    %v3972 = vpop.f32.mrf.mxu0
    %v3973 = vadd.f32 %v223, %v3972
    %v3974 = vand.u32 %v90, 4294901760
    %v3975 = vsub.f32 %v90, %v3974
    %v3976 = vand.u32 %v3975, 4294901760
    %v3977 = vsub.f32 %v3975, %v3976
    %v3978 = vand.u32 %v3977, 4294901760
    %3979 = vmatmul.f32.gmra.mxu0 %v3978
    %v3980 = vpop.f32.mrf.mxu0
    %v3981 = vadd.f32 %v223, %v3980
    %v3982 = vand.u32 %v92, 4294901760
    %v3983 = vsub.f32 %v92, %v3982
    %v3984 = vand.u32 %v3983, 4294901760
    %v3985 = vsub.f32 %v3983, %v3984
    %v3986 = vand.u32 %v3985, 4294901760
    %3987 = vmatmul.f32.gmra.mxu0 %v3986
    %v3988 = vpop.f32.mrf.mxu0
    %v3989 = vadd.f32 %v223, %v3988
    %v3990 = vand.u32 %v94, 4294901760
    %v3991 = vsub.f32 %v94, %v3990
    %v3992 = vand.u32 %v3991, 4294901760
    %v3993 = vsub.f32 %v3991, %v3992
    %v3994 = vand.u32 %v3993, 4294901760
    %3995 = vmatmul.f32.gmra.mxu0 %v3994
    %v3996 = vpop.f32.mrf.mxu0
    %v3997 = vadd.f32 %v223, %v3996
    %v3998 = vand.u32 %v96, 4294901760
    %v3999 = vsub.f32 %v96, %v3998
    %v4000 = vand.u32 %v3999, 4294901760
    %v4001 = vsub.f32 %v3999, %v4000
    %v4002 = vand.u32 %v4001, 4294901760
    %4003 = vmatmul.f32.gmra.mxu0 %v4002
    %v4004 = vpop.f32.mrf.mxu0
    %v4005 = vadd.f32 %v223, %v4004
    %v4006 = vand.u32 %v98, 4294901760
    %v4007 = vsub.f32 %v98, %v4006
    %v4008 = vand.u32 %v4007, 4294901760
    %v4009 = vsub.f32 %v4007, %v4008
    %v4010 = vand.u32 %v4009, 4294901760
    %4011 = vmatmul.f32.gmra.mxu0 %v4010
    %v4012 = vpop.f32.mrf.mxu0
    %v4013 = vadd.f32 %v223, %v4012
    %v4014 = vand.u32 %v100, 4294901760
    %v4015 = vsub.f32 %v100, %v4014
    %v4016 = vand.u32 %v4015, 4294901760
    %v4017 = vsub.f32 %v4015, %v4016
    %v4018 = vand.u32 %v4017, 4294901760
    %4019 = vmatmul.f32.gmra.mxu0 %v4018
    %v4020 = vpop.f32.mrf.mxu0
    %v4021 = vadd.f32 %v223, %v4020
    %v4022 = vand.u32 %v102, 4294901760
    %v4023 = vsub.f32 %v102, %v4022
    %v4024 = vand.u32 %v4023, 4294901760
    %v4025 = vsub.f32 %v4023, %v4024
    %v4026 = vand.u32 %v4025, 4294901760
    %4027 = vmatmul.f32.gmra.mxu0 %v4026
    %v4028 = vpop.f32.mrf.mxu0
    %v4029 = vadd.f32 %v223, %v4028
    %v4030 = vand.u32 %v104, 4294901760
    %v4031 = vsub.f32 %v104, %v4030
    %v4032 = vand.u32 %v4031, 4294901760
    %v4033 = vsub.f32 %v4031, %v4032
    %v4034 = vand.u32 %v4033, 4294901760
    %4035 = vmatmul.f32.gmra.mxu0 %v4034
    %v4036 = vpop.f32.mrf.mxu0
    %v4037 = vadd.f32 %v223, %v4036
    %v4038 = vand.u32 %v106, 4294901760
    %v4039 = vsub.f32 %v106, %v4038
    %v4040 = vand.u32 %v4039, 4294901760
    %v4041 = vsub.f32 %v4039, %v4040
    %v4042 = vand.u32 %v4041, 4294901760
    %4043 = vmatmul.f32.gmra.mxu0 %v4042
    %v4044 = vpop.f32.mrf.mxu0
    %v4045 = vadd.f32 %v223, %v4044
    %v4046 = vand.u32 %v108, 4294901760
    %v4047 = vsub.f32 %v108, %v4046
    %v4048 = vand.u32 %v4047, 4294901760
    %v4049 = vsub.f32 %v4047, %v4048
    %v4050 = vand.u32 %v4049, 4294901760
    %4051 = vmatmul.f32.gmra.mxu0 %v4050
    %v4052 = vpop.f32.mrf.mxu0
    %v4053 = vadd.f32 %v223, %v4052
    %v4054 = vand.u32 %v110, 4294901760
    %v4055 = vsub.f32 %v110, %v4054
    %v4056 = vand.u32 %v4055, 4294901760
    %v4057 = vsub.f32 %v4055, %v4056
    %v4058 = vand.u32 %v4057, 4294901760
    %4059 = vmatmul.f32.gmra.mxu0 %v4058
    %v4060 = vpop.f32.mrf.mxu0
    %v4061 = vadd.f32 %v223, %v4060
    %v4062 = vand.u32 %v112, 4294901760
    %v4063 = vsub.f32 %v112, %v4062
    %v4064 = vand.u32 %v4063, 4294901760
    %v4065 = vsub.f32 %v4063, %v4064
    %v4066 = vand.u32 %v4065, 4294901760
    %4067 = vmatmul.f32.gmra.mxu0 %v4066
    %v4068 = vpop.f32.mrf.mxu0
    %v4069 = vadd.f32 %v223, %v4068
    %v4070 = vand.u32 %v114, 4294901760
    %v4071 = vsub.f32 %v114, %v4070
    %v4072 = vand.u32 %v4071, 4294901760
    %v4073 = vsub.f32 %v4071, %v4072
    %v4074 = vand.u32 %v4073, 4294901760
    %4075 = vmatmul.f32.gmra.mxu0 %v4074
    %v4076 = vpop.f32.mrf.mxu0
    %v4077 = vadd.f32 %v223, %v4076
    %v4078 = vand.u32 %v116, 4294901760
    %v4079 = vsub.f32 %v116, %v4078
    %v4080 = vand.u32 %v4079, 4294901760
    %v4081 = vsub.f32 %v4079, %v4080
    %v4082 = vand.u32 %v4081, 4294901760
    %4083 = vmatmul.f32.gmra.mxu0 %v4082
    %v4084 = vpop.f32.mrf.mxu0
    %v4085 = vadd.f32 %v223, %v4084
    %v4086 = vand.u32 %v118, 4294901760
    %v4087 = vsub.f32 %v118, %v4086
    %v4088 = vand.u32 %v4087, 4294901760
    %v4089 = vsub.f32 %v4087, %v4088
    %v4090 = vand.u32 %v4089, 4294901760
    %4091 = vmatmul.f32.gmra.mxu0 %v4090
    %v4092 = vpop.f32.mrf.mxu0
    %v4093 = vadd.f32 %v223, %v4092
    %v4094 = vand.u32 %v120, 4294901760
    %v4095 = vsub.f32 %v120, %v4094
    %v4096 = vand.u32 %v4095, 4294901760
    %v4097 = vsub.f32 %v4095, %v4096
    %v4098 = vand.u32 %v4097, 4294901760
    %4099 = vmatmul.f32.gmra.mxu0 %v4098
    %v4100 = vpop.f32.mrf.mxu0
    %v4101 = vadd.f32 %v223, %v4100
    %v4102 = vand.u32 %v122, 4294901760
    %v4103 = vsub.f32 %v122, %v4102
    %v4104 = vand.u32 %v4103, 4294901760
    %v4105 = vsub.f32 %v4103, %v4104
    %v4106 = vand.u32 %v4105, 4294901760
    %4107 = vmatmul.f32.gmra.mxu0 %v4106
    %v4108 = vpop.f32.mrf.mxu0
    %v4109 = vadd.f32 %v223, %v4108
    %v4110 = vand.u32 %v124, 4294901760
    %v4111 = vsub.f32 %v124, %v4110
    %v4112 = vand.u32 %v4111, 4294901760
    %v4113 = vsub.f32 %v4111, %v4112
    %v4114 = vand.u32 %v4113, 4294901760
    %4115 = vmatmul.f32.gmra.mxu0 %v4114
    %v4116 = vpop.f32.mrf.mxu0
    %v4117 = vadd.f32 %v223, %v4116
    %v4118 = vand.u32 %v126, 4294901760
    %v4119 = vsub.f32 %v126, %v4118
    %v4120 = vand.u32 %v4119, 4294901760
    %v4121 = vsub.f32 %v4119, %v4120
    %v4122 = vand.u32 %v4121, 4294901760
    %4123 = vmatmul.f32.gmra.mxu0 %v4122
    %v4124 = vpop.f32.mrf.mxu0
    %v4125 = vadd.f32 %v223, %v4124
    %v4126 = vand.u32 %v128, 4294901760
    %v4127 = vsub.f32 %v128, %v4126
    %v4128 = vand.u32 %v4127, 4294901760
    %v4129 = vsub.f32 %v4127, %v4128
    %v4130 = vand.u32 %v4129, 4294901760
    %4131 = vmatmul.f32.gmra.mxu0 %v4130
    %v4132 = vpop.f32.mrf.mxu0
    %v4133 = vadd.f32 %v223, %v4132
    %v4134 = vand.u32 %v130, 4294901760
    %v4135 = vsub.f32 %v130, %v4134
    %v4136 = vand.u32 %v4135, 4294901760
    %v4137 = vsub.f32 %v4135, %v4136
    %v4138 = vand.u32 %v4137, 4294901760
    %4139 = vmatmul.f32.gmra.mxu0 %v4138
    %v4140 = vpop.f32.mrf.mxu0
    %v4141 = vadd.f32 %v223, %v4140
    %v4142 = vand.u32 %v132, 4294901760
    %v4143 = vsub.f32 %v132, %v4142
    %v4144 = vand.u32 %v4143, 4294901760
    %v4145 = vsub.f32 %v4143, %v4144
    %v4146 = vand.u32 %v4145, 4294901760
    %4147 = vmatmul.f32.gmra.mxu0 %v4146
    %v4148 = vpop.f32.mrf.mxu0
    %v4149 = vadd.f32 %v223, %v4148
    %v4150 = vand.u32 %v134, 4294901760
    %v4151 = vsub.f32 %v134, %v4150
    %v4152 = vand.u32 %v4151, 4294901760
    %v4153 = vsub.f32 %v4151, %v4152
    %v4154 = vand.u32 %v4153, 4294901760
    %4155 = vmatmul.f32.gmra.mxu0 %v4154
    %v4156 = vpop.f32.mrf.mxu0
    %v4157 = vadd.f32 %v223, %v4156
    %v4158 = vand.u32 %v136, 4294901760
    %v4159 = vsub.f32 %v136, %v4158
    %v4160 = vand.u32 %v4159, 4294901760
    %v4161 = vsub.f32 %v4159, %v4160
    %v4162 = vand.u32 %v4161, 4294901760
    %4163 = vmatmul.f32.gmra.mxu0 %v4162
    %v4164 = vpop.f32.mrf.mxu0
    %v4165 = vadd.f32 %v223, %v4164
    %v4166 = vand.u32 %v138, 4294901760
    %v4167 = vsub.f32 %v138, %v4166
    %v4168 = vand.u32 %v4167, 4294901760
    %v4169 = vsub.f32 %v4167, %v4168
    %v4170 = vand.u32 %v4169, 4294901760
    %4171 = vmatmul.f32.gmra.mxu0 %v4170
    %v4172 = vpop.f32.mrf.mxu0
    %v4173 = vadd.f32 %v223, %v4172
    %v4174 = vand.u32 %v140, 4294901760
    %v4175 = vsub.f32 %v140, %v4174
    %v4176 = vand.u32 %v4175, 4294901760
    %v4177 = vsub.f32 %v4175, %v4176
    %v4178 = vand.u32 %v4177, 4294901760
    %4179 = vmatmul.f32.gmra.mxu0 %v4178
    %v4180 = vpop.f32.mrf.mxu0
    %v4181 = vadd.f32 %v223, %v4180
    %v4182 = vand.u32 %v142, 4294901760
    %v4183 = vsub.f32 %v142, %v4182
    %v4184 = vand.u32 %v4183, 4294901760
    %v4185 = vsub.f32 %v4183, %v4184
    %v4186 = vand.u32 %v4185, 4294901760
    %4187 = vmatmul.f32.gmra.mxu0 %v4186
    %v4188 = vpop.f32.mrf.mxu0
    %v4189 = vadd.f32 %v223, %v4188
    %v4190 = vand.u32 %v144, 4294901760
    %v4191 = vsub.f32 %v144, %v4190
    %v4192 = vand.u32 %v4191, 4294901760
    %v4193 = vsub.f32 %v4191, %v4192
    %v4194 = vand.u32 %v4193, 4294901760
    %4195 = vmatmul.f32.gmra.mxu0 %v4194
    %v4196 = vpop.f32.mrf.mxu0
    %v4197 = vadd.f32 %v223, %v4196
    %v4198 = vand.u32 %v146, 4294901760
    %v4199 = vsub.f32 %v146, %v4198
    %v4200 = vand.u32 %v4199, 4294901760
    %v4201 = vsub.f32 %v4199, %v4200
    %v4202 = vand.u32 %v4201, 4294901760
    %4203 = vmatmul.f32.gmra.mxu0 %v4202
    %v4204 = vpop.f32.mrf.mxu0
    %v4205 = vadd.f32 %v223, %v4204
    %v4206 = vand.u32 %v148, 4294901760
    %v4207 = vsub.f32 %v148, %v4206
    %v4208 = vand.u32 %v4207, 4294901760
    %v4209 = vsub.f32 %v4207, %v4208
    %v4210 = vand.u32 %v4209, 4294901760
    %4211 = vmatmul.f32.gmra.mxu0 %v4210
    %v4212 = vpop.f32.mrf.mxu0
    %v4213 = vadd.f32 %v223, %v4212
    %v4214 = vand.u32 %v150, 4294901760
    %v4215 = vsub.f32 %v150, %v4214
    %v4216 = vand.u32 %v4215, 4294901760
    %v4217 = vsub.f32 %v4215, %v4216
    %v4218 = vand.u32 %v4217, 4294901760
    %4219 = vmatmul.f32.gmra.mxu0 %v4218
    %v4220 = vpop.f32.mrf.mxu0
    %v4221 = vadd.f32 %v223, %v4220
    %v4222 = vand.u32 %v152, 4294901760
    %v4223 = vsub.f32 %v152, %v4222
    %v4224 = vand.u32 %v4223, 4294901760
    %v4225 = vsub.f32 %v4223, %v4224
    %v4226 = vand.u32 %v4225, 4294901760
    %4227 = vmatmul.f32.gmra.mxu0 %v4226
    %v4228 = vpop.f32.mrf.mxu0
    %v4229 = vadd.f32 %v223, %v4228
    %v4230 = vand.u32 %v154, 4294901760
    %v4231 = vsub.f32 %v154, %v4230
    %v4232 = vand.u32 %v4231, 4294901760
    %v4233 = vsub.f32 %v4231, %v4232
    %v4234 = vand.u32 %v4233, 4294901760
    %4235 = vmatmul.f32.gmra.mxu0 %v4234
    %v4236 = vpop.f32.mrf.mxu0
    %v4237 = vadd.f32 %v223, %v4236
    %4238 = vdwg.mxu0
    %v4239 = vand.u32 %v187, 4294901760
    %v4240 = vsub.f32 %v187, %v4239
    %v4241 = vand.u32 %v4240, 4294901760
    %v4242 = vsub.f32 %v4240, %v4241
    %v4243 = vand.u32 %v4242, 4294901760
    %4244 = vmatpush.msra.mxu0 %v4243
    %v4245 = vand.u32 %v185, 4294901760
    %v4246 = vsub.f32 %v185, %v4245
    %v4247 = vand.u32 %v4246, 4294901760
    %v4248 = vsub.f32 %v4246, %v4247
    %v4249 = vand.u32 %v4248, 4294901760
    %4250 = vmatpush.msra.mxu0 %v4249
    %v4251 = vand.u32 %v183, 4294901760
    %v4252 = vsub.f32 %v183, %v4251
    %v4253 = vand.u32 %v4252, 4294901760
    %v4254 = vsub.f32 %v4252, %v4253
    %v4255 = vand.u32 %v4254, 4294901760
    %4256 = vmatpush.msra.mxu0 %v4255
    %v4257 = vand.u32 %v181, 4294901760
    %v4258 = vsub.f32 %v181, %v4257
    %v4259 = vand.u32 %v4258, 4294901760
    %v4260 = vsub.f32 %v4258, %v4259
    %v4261 = vand.u32 %v4260, 4294901760
    %4262 = vmatpush.msra.mxu0 %v4261
    %v4263 = vand.u32 %v179, 4294901760
    %v4264 = vsub.f32 %v179, %v4263
    %v4265 = vand.u32 %v4264, 4294901760
    %v4266 = vsub.f32 %v4264, %v4265
    %v4267 = vand.u32 %v4266, 4294901760
    %4268 = vmatpush.msra.mxu0 %v4267
    %v4269 = vand.u32 %v177, 4294901760
    %v4270 = vsub.f32 %v177, %v4269
    %v4271 = vand.u32 %v4270, 4294901760
    %v4272 = vsub.f32 %v4270, %v4271
    %v4273 = vand.u32 %v4272, 4294901760
    %4274 = vmatpush.msra.mxu0 %v4273
    %v4275 = vand.u32 %v175, 4294901760
    %v4276 = vsub.f32 %v175, %v4275
    %v4277 = vand.u32 %v4276, 4294901760
    %v4278 = vsub.f32 %v4276, %v4277
    %v4279 = vand.u32 %v4278, 4294901760
    %4280 = vmatpush.msra.mxu0 %v4279
    %v4281 = vand.u32 %v173, 4294901760
    %v4282 = vsub.f32 %v173, %v4281
    %v4283 = vand.u32 %v4282, 4294901760
    %v4284 = vsub.f32 %v4282, %v4283
    %v4285 = vand.u32 %v4284, 4294901760
    %4286 = vmatpush.msra.mxu0 %v4285
    %v4287 = vand.u32 %v171, 4294901760
    %v4288 = vsub.f32 %v171, %v4287
    %v4289 = vand.u32 %v4288, 4294901760
    %v4290 = vsub.f32 %v4288, %v4289
    %v4291 = vand.u32 %v4290, 4294901760
    %4292 = vmatpush.msra.mxu0 %v4291
    %v4293 = vand.u32 %v169, 4294901760
    %v4294 = vsub.f32 %v169, %v4293
    %v4295 = vand.u32 %v4294, 4294901760
    %v4296 = vsub.f32 %v4294, %v4295
    %v4297 = vand.u32 %v4296, 4294901760
    %4298 = vmatpush.msra.mxu0 %v4297
    %v4299 = vand.u32 %v167, 4294901760
    %v4300 = vsub.f32 %v167, %v4299
    %v4301 = vand.u32 %v4300, 4294901760
    %v4302 = vsub.f32 %v4300, %v4301
    %v4303 = vand.u32 %v4302, 4294901760
    %4304 = vmatpush.msra.mxu0 %v4303
    %v4305 = vand.u32 %v165, 4294901760
    %v4306 = vsub.f32 %v165, %v4305
    %v4307 = vand.u32 %v4306, 4294901760
    %v4308 = vsub.f32 %v4306, %v4307
    %v4309 = vand.u32 %v4308, 4294901760
    %4310 = vmatpush.msra.mxu0 %v4309
    %v4311 = vand.u32 %v163, 4294901760
    %v4312 = vsub.f32 %v163, %v4311
    %v4313 = vand.u32 %v4312, 4294901760
    %v4314 = vsub.f32 %v4312, %v4313
    %v4315 = vand.u32 %v4314, 4294901760
    %4316 = vmatpush.msra.mxu0 %v4315
    %v4317 = vand.u32 %v161, 4294901760
    %v4318 = vsub.f32 %v161, %v4317
    %v4319 = vand.u32 %v4318, 4294901760
    %v4320 = vsub.f32 %v4318, %v4319
    %v4321 = vand.u32 %v4320, 4294901760
    %4322 = vmatpush.msra.mxu0 %v4321
    %v4323 = vand.u32 %v159, 4294901760
    %v4324 = vsub.f32 %v159, %v4323
    %v4325 = vand.u32 %v4324, 4294901760
    %v4326 = vsub.f32 %v4324, %v4325
    %v4327 = vand.u32 %v4326, 4294901760
    %4328 = vmatpush.msra.mxu0 %v4327
    %v4329 = vand.u32 %v157, 4294901760
    %v4330 = vsub.f32 %v157, %v4329
    %v4331 = vand.u32 %v4330, 4294901760
    %v4332 = vsub.f32 %v4330, %v4331
    %v4333 = vand.u32 %v4332, 4294901760
    %4334 = vmatpush.msra.mxu0 %v4333
    %v4335 = vand.u32 %v60, 4294901760
    %4336 = vmatmul.f32.gmra.mxu0 %v4335
    %v4337 = vpop.f32.mrf.mxu0
    %v4338 = vadd.f32 %v3861, %v4337
    %v4339 = vand.u32 %v62, 4294901760
    %4340 = vmatmul.f32.gmra.mxu0 %v4339
    %v4341 = vpop.f32.mrf.mxu0
    %v4342 = vadd.f32 %v3869, %v4341
    %v4343 = vand.u32 %v64, 4294901760
    %4344 = vmatmul.f32.gmra.mxu0 %v4343
    %v4345 = vpop.f32.mrf.mxu0
    %v4346 = vadd.f32 %v3877, %v4345
    %v4347 = vand.u32 %v66, 4294901760
    %4348 = vmatmul.f32.gmra.mxu0 %v4347
    %v4349 = vpop.f32.mrf.mxu0
    %v4350 = vadd.f32 %v3885, %v4349
    %v4351 = vand.u32 %v68, 4294901760
    %4352 = vmatmul.f32.gmra.mxu0 %v4351
    %v4353 = vpop.f32.mrf.mxu0
    %v4354 = vadd.f32 %v3893, %v4353
    %v4355 = vand.u32 %v70, 4294901760
    %4356 = vmatmul.f32.gmra.mxu0 %v4355
    %v4357 = vpop.f32.mrf.mxu0
    %v4358 = vadd.f32 %v3901, %v4357
    %v4359 = vand.u32 %v72, 4294901760
    %4360 = vmatmul.f32.gmra.mxu0 %v4359
    %v4361 = vpop.f32.mrf.mxu0
    %v4362 = vadd.f32 %v3909, %v4361
    %v4363 = vand.u32 %v74, 4294901760
    %4364 = vmatmul.f32.gmra.mxu0 %v4363
    %v4365 = vpop.f32.mrf.mxu0
    %v4366 = vadd.f32 %v3917, %v4365
    %v4367 = vand.u32 %v76, 4294901760
    %4368 = vmatmul.f32.gmra.mxu0 %v4367
    %v4369 = vpop.f32.mrf.mxu0
    %v4370 = vadd.f32 %v3925, %v4369
    %v4371 = vand.u32 %v78, 4294901760
    %4372 = vmatmul.f32.gmra.mxu0 %v4371
    %v4373 = vpop.f32.mrf.mxu0
    %v4374 = vadd.f32 %v3933, %v4373
    %v4375 = vand.u32 %v80, 4294901760
    %4376 = vmatmul.f32.gmra.mxu0 %v4375
    %v4377 = vpop.f32.mrf.mxu0
    %v4378 = vadd.f32 %v3941, %v4377
    %v4379 = vand.u32 %v82, 4294901760
    %4380 = vmatmul.f32.gmra.mxu0 %v4379
    %v4381 = vpop.f32.mrf.mxu0
    %v4382 = vadd.f32 %v3949, %v4381
    %v4383 = vand.u32 %v84, 4294901760
    %4384 = vmatmul.f32.gmra.mxu0 %v4383
    %v4385 = vpop.f32.mrf.mxu0
    %v4386 = vadd.f32 %v3957, %v4385
    %v4387 = vand.u32 %v86, 4294901760
    %4388 = vmatmul.f32.gmra.mxu0 %v4387
    %v4389 = vpop.f32.mrf.mxu0
    %v4390 = vadd.f32 %v3965, %v4389
    %v4391 = vand.u32 %v88, 4294901760
    %4392 = vmatmul.f32.gmra.mxu0 %v4391
    %v4393 = vpop.f32.mrf.mxu0
    %v4394 = vadd.f32 %v3973, %v4393
    %v4395 = vand.u32 %v90, 4294901760
    %4396 = vmatmul.f32.gmra.mxu0 %v4395
    %v4397 = vpop.f32.mrf.mxu0
    %v4398 = vadd.f32 %v3981, %v4397
    %v4399 = vand.u32 %v92, 4294901760
    %4400 = vmatmul.f32.gmra.mxu0 %v4399
    %v4401 = vpop.f32.mrf.mxu0
    %v4402 = vadd.f32 %v3989, %v4401
    %v4403 = vand.u32 %v94, 4294901760
    %4404 = vmatmul.f32.gmra.mxu0 %v4403
    %v4405 = vpop.f32.mrf.mxu0
    %v4406 = vadd.f32 %v3997, %v4405
    %v4407 = vand.u32 %v96, 4294901760
    %4408 = vmatmul.f32.gmra.mxu0 %v4407
    %v4409 = vpop.f32.mrf.mxu0
    %v4410 = vadd.f32 %v4005, %v4409
    %v4411 = vand.u32 %v98, 4294901760
    %4412 = vmatmul.f32.gmra.mxu0 %v4411
    %v4413 = vpop.f32.mrf.mxu0
    %v4414 = vadd.f32 %v4013, %v4413
    %v4415 = vand.u32 %v100, 4294901760
    %4416 = vmatmul.f32.gmra.mxu0 %v4415
    %v4417 = vpop.f32.mrf.mxu0
    %v4418 = vadd.f32 %v4021, %v4417
    %v4419 = vand.u32 %v102, 4294901760
    %4420 = vmatmul.f32.gmra.mxu0 %v4419
    %v4421 = vpop.f32.mrf.mxu0
    %v4422 = vadd.f32 %v4029, %v4421
    %v4423 = vand.u32 %v104, 4294901760
    %4424 = vmatmul.f32.gmra.mxu0 %v4423
    %v4425 = vpop.f32.mrf.mxu0
    %v4426 = vadd.f32 %v4037, %v4425
    %v4427 = vand.u32 %v106, 4294901760
    %4428 = vmatmul.f32.gmra.mxu0 %v4427
    %v4429 = vpop.f32.mrf.mxu0
    %v4430 = vadd.f32 %v4045, %v4429
    %v4431 = vand.u32 %v108, 4294901760
    %4432 = vmatmul.f32.gmra.mxu0 %v4431
    %v4433 = vpop.f32.mrf.mxu0
    %v4434 = vadd.f32 %v4053, %v4433
    %v4435 = vand.u32 %v110, 4294901760
    %4436 = vmatmul.f32.gmra.mxu0 %v4435
    %v4437 = vpop.f32.mrf.mxu0
    %v4438 = vadd.f32 %v4061, %v4437
    %v4439 = vand.u32 %v112, 4294901760
    %4440 = vmatmul.f32.gmra.mxu0 %v4439
    %v4441 = vpop.f32.mrf.mxu0
    %v4442 = vadd.f32 %v4069, %v4441
    %v4443 = vand.u32 %v114, 4294901760
    %4444 = vmatmul.f32.gmra.mxu0 %v4443
    %v4445 = vpop.f32.mrf.mxu0
    %v4446 = vadd.f32 %v4077, %v4445
    %v4447 = vand.u32 %v116, 4294901760
    %4448 = vmatmul.f32.gmra.mxu0 %v4447
    %v4449 = vpop.f32.mrf.mxu0
    %v4450 = vadd.f32 %v4085, %v4449
    %v4451 = vand.u32 %v118, 4294901760
    %4452 = vmatmul.f32.gmra.mxu0 %v4451
    %v4453 = vpop.f32.mrf.mxu0
    %v4454 = vadd.f32 %v4093, %v4453
    %v4455 = vand.u32 %v120, 4294901760
    %4456 = vmatmul.f32.gmra.mxu0 %v4455
    %v4457 = vpop.f32.mrf.mxu0
    %v4458 = vadd.f32 %v4101, %v4457
    %v4459 = vand.u32 %v122, 4294901760
    %4460 = vmatmul.f32.gmra.mxu0 %v4459
    %v4461 = vpop.f32.mrf.mxu0
    %v4462 = vadd.f32 %v4109, %v4461
    %v4463 = vand.u32 %v124, 4294901760
    %4464 = vmatmul.f32.gmra.mxu0 %v4463
    %v4465 = vpop.f32.mrf.mxu0
    %v4466 = vadd.f32 %v4117, %v4465
    %v4467 = vand.u32 %v126, 4294901760
    %4468 = vmatmul.f32.gmra.mxu0 %v4467
    %v4469 = vpop.f32.mrf.mxu0
    %v4470 = vadd.f32 %v4125, %v4469
    %v4471 = vand.u32 %v128, 4294901760
    %4472 = vmatmul.f32.gmra.mxu0 %v4471
    %v4473 = vpop.f32.mrf.mxu0
    %v4474 = vadd.f32 %v4133, %v4473
    %v4475 = vand.u32 %v130, 4294901760
    %4476 = vmatmul.f32.gmra.mxu0 %v4475
    %v4477 = vpop.f32.mrf.mxu0
    %v4478 = vadd.f32 %v4141, %v4477
    %v4479 = vand.u32 %v132, 4294901760
    %4480 = vmatmul.f32.gmra.mxu0 %v4479
    %v4481 = vpop.f32.mrf.mxu0
    %v4482 = vadd.f32 %v4149, %v4481
    %v4483 = vand.u32 %v134, 4294901760
    %4484 = vmatmul.f32.gmra.mxu0 %v4483
    %v4485 = vpop.f32.mrf.mxu0
    %v4486 = vadd.f32 %v4157, %v4485
    %v4487 = vand.u32 %v136, 4294901760
    %4488 = vmatmul.f32.gmra.mxu0 %v4487
    %v4489 = vpop.f32.mrf.mxu0
    %v4490 = vadd.f32 %v4165, %v4489
    %v4491 = vand.u32 %v138, 4294901760
    %4492 = vmatmul.f32.gmra.mxu0 %v4491
    %v4493 = vpop.f32.mrf.mxu0
    %v4494 = vadd.f32 %v4173, %v4493
    %v4495 = vand.u32 %v140, 4294901760
    %4496 = vmatmul.f32.gmra.mxu0 %v4495
    %v4497 = vpop.f32.mrf.mxu0
    %v4498 = vadd.f32 %v4181, %v4497
    %v4499 = vand.u32 %v142, 4294901760
    %4500 = vmatmul.f32.gmra.mxu0 %v4499
    %v4501 = vpop.f32.mrf.mxu0
    %v4502 = vadd.f32 %v4189, %v4501
    %v4503 = vand.u32 %v144, 4294901760
    %4504 = vmatmul.f32.gmra.mxu0 %v4503
    %v4505 = vpop.f32.mrf.mxu0
    %v4506 = vadd.f32 %v4197, %v4505
    %v4507 = vand.u32 %v146, 4294901760
    %4508 = vmatmul.f32.gmra.mxu0 %v4507
    %v4509 = vpop.f32.mrf.mxu0
    %v4510 = vadd.f32 %v4205, %v4509
    %v4511 = vand.u32 %v148, 4294901760
    %4512 = vmatmul.f32.gmra.mxu0 %v4511
    %v4513 = vpop.f32.mrf.mxu0
    %v4514 = vadd.f32 %v4213, %v4513
    %v4515 = vand.u32 %v150, 4294901760
    %4516 = vmatmul.f32.gmra.mxu0 %v4515
    %v4517 = vpop.f32.mrf.mxu0
    %v4518 = vadd.f32 %v4221, %v4517
    %v4519 = vand.u32 %v152, 4294901760
    %4520 = vmatmul.f32.gmra.mxu0 %v4519
    %v4521 = vpop.f32.mrf.mxu0
    %v4522 = vadd.f32 %v4229, %v4521
    %v4523 = vand.u32 %v154, 4294901760
    %4524 = vmatmul.f32.gmra.mxu0 %v4523
    %v4525 = vpop.f32.mrf.mxu0
    %v4526 = vadd.f32 %v4237, %v4525
    %4527 = vdwg.mxu0
    %v4528 = vand.u32 %v187, 4294901760
    %v4529 = vsub.f32 %v187, %v4528
    %4530 = vmatpush.msra.mxu0 %v4529
    %v4531 = vand.u32 %v185, 4294901760
    %v4532 = vsub.f32 %v185, %v4531
    %4533 = vmatpush.msra.mxu0 %v4532
    %v4534 = vand.u32 %v183, 4294901760
    %v4535 = vsub.f32 %v183, %v4534
    %4536 = vmatpush.msra.mxu0 %v4535
    %v4537 = vand.u32 %v181, 4294901760
    %v4538 = vsub.f32 %v181, %v4537
    %4539 = vmatpush.msra.mxu0 %v4538
    %v4540 = vand.u32 %v179, 4294901760
    %v4541 = vsub.f32 %v179, %v4540
    %4542 = vmatpush.msra.mxu0 %v4541
    %v4543 = vand.u32 %v177, 4294901760
    %v4544 = vsub.f32 %v177, %v4543
    %4545 = vmatpush.msra.mxu0 %v4544
    %v4546 = vand.u32 %v175, 4294901760
    %v4547 = vsub.f32 %v175, %v4546
    %4548 = vmatpush.msra.mxu0 %v4547
    %v4549 = vand.u32 %v173, 4294901760
    %v4550 = vsub.f32 %v173, %v4549
    %4551 = vmatpush.msra.mxu0 %v4550
    %v4552 = vand.u32 %v171, 4294901760
    %v4553 = vsub.f32 %v171, %v4552
    %4554 = vmatpush.msra.mxu0 %v4553
    %v4555 = vand.u32 %v169, 4294901760
    %v4556 = vsub.f32 %v169, %v4555
    %4557 = vmatpush.msra.mxu0 %v4556
    %v4558 = vand.u32 %v167, 4294901760
    %v4559 = vsub.f32 %v167, %v4558
    %4560 = vmatpush.msra.mxu0 %v4559
    %v4561 = vand.u32 %v165, 4294901760
    %v4562 = vsub.f32 %v165, %v4561
    %4563 = vmatpush.msra.mxu0 %v4562
    %v4564 = vand.u32 %v163, 4294901760
    %v4565 = vsub.f32 %v163, %v4564
    %4566 = vmatpush.msra.mxu0 %v4565
    %v4567 = vand.u32 %v161, 4294901760
    %v4568 = vsub.f32 %v161, %v4567
    %4569 = vmatpush.msra.mxu0 %v4568
    %v4570 = vand.u32 %v159, 4294901760
    %v4571 = vsub.f32 %v159, %v4570
    %4572 = vmatpush.msra.mxu0 %v4571
    %v4573 = vand.u32 %v157, 4294901760
    %v4574 = vsub.f32 %v157, %v4573
    %4575 = vmatpush.msra.mxu0 %v4574
    %v4576 = vand.u32 %v60, 4294901760
    %v4577 = vsub.f32 %v60, %v4576
    %4578 = vmatmul.f32.gmra.mxu0 %v4577
    %v4579 = vpop.f32.mrf.mxu0
    %v4580 = vadd.f32 %v4338, %v4579
    %v4581 = vand.u32 %v62, 4294901760
    %v4582 = vsub.f32 %v62, %v4581
    %4583 = vmatmul.f32.gmra.mxu0 %v4582
    %v4584 = vpop.f32.mrf.mxu0
    %v4585 = vadd.f32 %v4342, %v4584
    %v4586 = vand.u32 %v64, 4294901760
    %v4587 = vsub.f32 %v64, %v4586
    %4588 = vmatmul.f32.gmra.mxu0 %v4587
    %v4589 = vpop.f32.mrf.mxu0
    %v4590 = vadd.f32 %v4346, %v4589
    %v4591 = vand.u32 %v66, 4294901760
    %v4592 = vsub.f32 %v66, %v4591
    %4593 = vmatmul.f32.gmra.mxu0 %v4592
    %v4594 = vpop.f32.mrf.mxu0
    %v4595 = vadd.f32 %v4350, %v4594
    %v4596 = vand.u32 %v68, 4294901760
    %v4597 = vsub.f32 %v68, %v4596
    %4598 = vmatmul.f32.gmra.mxu0 %v4597
    %v4599 = vpop.f32.mrf.mxu0
    %v4600 = vadd.f32 %v4354, %v4599
    %v4601 = vand.u32 %v70, 4294901760
    %v4602 = vsub.f32 %v70, %v4601
    %4603 = vmatmul.f32.gmra.mxu0 %v4602
    %v4604 = vpop.f32.mrf.mxu0
    %v4605 = vadd.f32 %v4358, %v4604
    %v4606 = vand.u32 %v72, 4294901760
    %v4607 = vsub.f32 %v72, %v4606
    %4608 = vmatmul.f32.gmra.mxu0 %v4607
    %v4609 = vpop.f32.mrf.mxu0
    %v4610 = vadd.f32 %v4362, %v4609
    %v4611 = vand.u32 %v74, 4294901760
    %v4612 = vsub.f32 %v74, %v4611
    %4613 = vmatmul.f32.gmra.mxu0 %v4612
    %v4614 = vpop.f32.mrf.mxu0
    %v4615 = vadd.f32 %v4366, %v4614
    %v4616 = vand.u32 %v76, 4294901760
    %v4617 = vsub.f32 %v76, %v4616
    %4618 = vmatmul.f32.gmra.mxu0 %v4617
    %v4619 = vpop.f32.mrf.mxu0
    %v4620 = vadd.f32 %v4370, %v4619
    %v4621 = vand.u32 %v78, 4294901760
    %v4622 = vsub.f32 %v78, %v4621
    %4623 = vmatmul.f32.gmra.mxu0 %v4622
    %v4624 = vpop.f32.mrf.mxu0
    %v4625 = vadd.f32 %v4374, %v4624
    %v4626 = vand.u32 %v80, 4294901760
    %v4627 = vsub.f32 %v80, %v4626
    %4628 = vmatmul.f32.gmra.mxu0 %v4627
    %v4629 = vpop.f32.mrf.mxu0
    %v4630 = vadd.f32 %v4378, %v4629
    %v4631 = vand.u32 %v82, 4294901760
    %v4632 = vsub.f32 %v82, %v4631
    %4633 = vmatmul.f32.gmra.mxu0 %v4632
    %v4634 = vpop.f32.mrf.mxu0
    %v4635 = vadd.f32 %v4382, %v4634
    %v4636 = vand.u32 %v84, 4294901760
    %v4637 = vsub.f32 %v84, %v4636
    %4638 = vmatmul.f32.gmra.mxu0 %v4637
    %v4639 = vpop.f32.mrf.mxu0
    %v4640 = vadd.f32 %v4386, %v4639
    %v4641 = vand.u32 %v86, 4294901760
    %v4642 = vsub.f32 %v86, %v4641
    %4643 = vmatmul.f32.gmra.mxu0 %v4642
    %v4644 = vpop.f32.mrf.mxu0
    %v4645 = vadd.f32 %v4390, %v4644
    %v4646 = vand.u32 %v88, 4294901760
    %v4647 = vsub.f32 %v88, %v4646
    %4648 = vmatmul.f32.gmra.mxu0 %v4647
    %v4649 = vpop.f32.mrf.mxu0
    %v4650 = vadd.f32 %v4394, %v4649
    %v4651 = vand.u32 %v90, 4294901760
    %v4652 = vsub.f32 %v90, %v4651
    %4653 = vmatmul.f32.gmra.mxu0 %v4652
    %v4654 = vpop.f32.mrf.mxu0
    %v4655 = vadd.f32 %v4398, %v4654
    %v4656 = vand.u32 %v92, 4294901760
    %v4657 = vsub.f32 %v92, %v4656
    %4658 = vmatmul.f32.gmra.mxu0 %v4657
    %v4659 = vpop.f32.mrf.mxu0
    %v4660 = vadd.f32 %v4402, %v4659
    %v4661 = vand.u32 %v94, 4294901760
    %v4662 = vsub.f32 %v94, %v4661
    %4663 = vmatmul.f32.gmra.mxu0 %v4662
    %v4664 = vpop.f32.mrf.mxu0
    %v4665 = vadd.f32 %v4406, %v4664
    %v4666 = vand.u32 %v96, 4294901760
    %v4667 = vsub.f32 %v96, %v4666
    %4668 = vmatmul.f32.gmra.mxu0 %v4667
    %v4669 = vpop.f32.mrf.mxu0
    %v4670 = vadd.f32 %v4410, %v4669
    %v4671 = vand.u32 %v98, 4294901760
    %v4672 = vsub.f32 %v98, %v4671
    %4673 = vmatmul.f32.gmra.mxu0 %v4672
    %v4674 = vpop.f32.mrf.mxu0
    %v4675 = vadd.f32 %v4414, %v4674
    %v4676 = vand.u32 %v100, 4294901760
    %v4677 = vsub.f32 %v100, %v4676
    %4678 = vmatmul.f32.gmra.mxu0 %v4677
    %v4679 = vpop.f32.mrf.mxu0
    %v4680 = vadd.f32 %v4418, %v4679
    %v4681 = vand.u32 %v102, 4294901760
    %v4682 = vsub.f32 %v102, %v4681
    %4683 = vmatmul.f32.gmra.mxu0 %v4682
    %v4684 = vpop.f32.mrf.mxu0
    %v4685 = vadd.f32 %v4422, %v4684
    %v4686 = vand.u32 %v104, 4294901760
    %v4687 = vsub.f32 %v104, %v4686
    %4688 = vmatmul.f32.gmra.mxu0 %v4687
    %v4689 = vpop.f32.mrf.mxu0
    %v4690 = vadd.f32 %v4426, %v4689
    %v4691 = vand.u32 %v106, 4294901760
    %v4692 = vsub.f32 %v106, %v4691
    %4693 = vmatmul.f32.gmra.mxu0 %v4692
    %v4694 = vpop.f32.mrf.mxu0
    %v4695 = vadd.f32 %v4430, %v4694
    %v4696 = vand.u32 %v108, 4294901760
    %v4697 = vsub.f32 %v108, %v4696
    %4698 = vmatmul.f32.gmra.mxu0 %v4697
    %v4699 = vpop.f32.mrf.mxu0
    %v4700 = vadd.f32 %v4434, %v4699
    %v4701 = vand.u32 %v110, 4294901760
    %v4702 = vsub.f32 %v110, %v4701
    %4703 = vmatmul.f32.gmra.mxu0 %v4702
    %v4704 = vpop.f32.mrf.mxu0
    %v4705 = vadd.f32 %v4438, %v4704
    %v4706 = vand.u32 %v112, 4294901760
    %v4707 = vsub.f32 %v112, %v4706
    %4708 = vmatmul.f32.gmra.mxu0 %v4707
    %v4709 = vpop.f32.mrf.mxu0
    %v4710 = vadd.f32 %v4442, %v4709
    %v4711 = vand.u32 %v114, 4294901760
    %v4712 = vsub.f32 %v114, %v4711
    %4713 = vmatmul.f32.gmra.mxu0 %v4712
    %v4714 = vpop.f32.mrf.mxu0
    %v4715 = vadd.f32 %v4446, %v4714
    %v4716 = vand.u32 %v116, 4294901760
    %v4717 = vsub.f32 %v116, %v4716
    %4718 = vmatmul.f32.gmra.mxu0 %v4717
    %v4719 = vpop.f32.mrf.mxu0
    %v4720 = vadd.f32 %v4450, %v4719
    %v4721 = vand.u32 %v118, 4294901760
    %v4722 = vsub.f32 %v118, %v4721
    %4723 = vmatmul.f32.gmra.mxu0 %v4722
    %v4724 = vpop.f32.mrf.mxu0
    %v4725 = vadd.f32 %v4454, %v4724
    %v4726 = vand.u32 %v120, 4294901760
    %v4727 = vsub.f32 %v120, %v4726
    %4728 = vmatmul.f32.gmra.mxu0 %v4727
    %v4729 = vpop.f32.mrf.mxu0
    %v4730 = vadd.f32 %v4458, %v4729
    %v4731 = vand.u32 %v122, 4294901760
    %v4732 = vsub.f32 %v122, %v4731
    %4733 = vmatmul.f32.gmra.mxu0 %v4732
    %v4734 = vpop.f32.mrf.mxu0
    %v4735 = vadd.f32 %v4462, %v4734
    %v4736 = vand.u32 %v124, 4294901760
    %v4737 = vsub.f32 %v124, %v4736
    %4738 = vmatmul.f32.gmra.mxu0 %v4737
    %v4739 = vpop.f32.mrf.mxu0
    %v4740 = vadd.f32 %v4466, %v4739
    %v4741 = vand.u32 %v126, 4294901760
    %v4742 = vsub.f32 %v126, %v4741
    %4743 = vmatmul.f32.gmra.mxu0 %v4742
    %v4744 = vpop.f32.mrf.mxu0
    %v4745 = vadd.f32 %v4470, %v4744
    %v4746 = vand.u32 %v128, 4294901760
    %v4747 = vsub.f32 %v128, %v4746
    %4748 = vmatmul.f32.gmra.mxu0 %v4747
    %v4749 = vpop.f32.mrf.mxu0
    %v4750 = vadd.f32 %v4474, %v4749
    %v4751 = vand.u32 %v130, 4294901760
    %v4752 = vsub.f32 %v130, %v4751
    %4753 = vmatmul.f32.gmra.mxu0 %v4752
    %v4754 = vpop.f32.mrf.mxu0
    %v4755 = vadd.f32 %v4478, %v4754
    %v4756 = vand.u32 %v132, 4294901760
    %v4757 = vsub.f32 %v132, %v4756
    %4758 = vmatmul.f32.gmra.mxu0 %v4757
    %v4759 = vpop.f32.mrf.mxu0
    %v4760 = vadd.f32 %v4482, %v4759
    %v4761 = vand.u32 %v134, 4294901760
    %v4762 = vsub.f32 %v134, %v4761
    %4763 = vmatmul.f32.gmra.mxu0 %v4762
    %v4764 = vpop.f32.mrf.mxu0
    %v4765 = vadd.f32 %v4486, %v4764
    %v4766 = vand.u32 %v136, 4294901760
    %v4767 = vsub.f32 %v136, %v4766
    %4768 = vmatmul.f32.gmra.mxu0 %v4767
    %v4769 = vpop.f32.mrf.mxu0
    %v4770 = vadd.f32 %v4490, %v4769
    %v4771 = vand.u32 %v138, 4294901760
    %v4772 = vsub.f32 %v138, %v4771
    %4773 = vmatmul.f32.gmra.mxu0 %v4772
    %v4774 = vpop.f32.mrf.mxu0
    %v4775 = vadd.f32 %v4494, %v4774
    %v4776 = vand.u32 %v140, 4294901760
    %v4777 = vsub.f32 %v140, %v4776
    %4778 = vmatmul.f32.gmra.mxu0 %v4777
    %v4779 = vpop.f32.mrf.mxu0
    %v4780 = vadd.f32 %v4498, %v4779
    %v4781 = vand.u32 %v142, 4294901760
    %v4782 = vsub.f32 %v142, %v4781
    %4783 = vmatmul.f32.gmra.mxu0 %v4782
    %v4784 = vpop.f32.mrf.mxu0
    %v4785 = vadd.f32 %v4502, %v4784
    %v4786 = vand.u32 %v144, 4294901760
    %v4787 = vsub.f32 %v144, %v4786
    %4788 = vmatmul.f32.gmra.mxu0 %v4787
    %v4789 = vpop.f32.mrf.mxu0
    %v4790 = vadd.f32 %v4506, %v4789
    %v4791 = vand.u32 %v146, 4294901760
    %v4792 = vsub.f32 %v146, %v4791
    %4793 = vmatmul.f32.gmra.mxu0 %v4792
    %v4794 = vpop.f32.mrf.mxu0
    %v4795 = vadd.f32 %v4510, %v4794
    %v4796 = vand.u32 %v148, 4294901760
    %v4797 = vsub.f32 %v148, %v4796
    %4798 = vmatmul.f32.gmra.mxu0 %v4797
    %v4799 = vpop.f32.mrf.mxu0
    %v4800 = vadd.f32 %v4514, %v4799
    %v4801 = vand.u32 %v150, 4294901760
    %v4802 = vsub.f32 %v150, %v4801
    %4803 = vmatmul.f32.gmra.mxu0 %v4802
    %v4804 = vpop.f32.mrf.mxu0
    %v4805 = vadd.f32 %v4518, %v4804
    %v4806 = vand.u32 %v152, 4294901760
    %v4807 = vsub.f32 %v152, %v4806
    %4808 = vmatmul.f32.gmra.mxu0 %v4807
    %v4809 = vpop.f32.mrf.mxu0
    %v4810 = vadd.f32 %v4522, %v4809
    %v4811 = vand.u32 %v154, 4294901760
    %v4812 = vsub.f32 %v154, %v4811
    %4813 = vmatmul.f32.gmra.mxu0 %v4812
    %v4814 = vpop.f32.mrf.mxu0
    %v4815 = vadd.f32 %v4526, %v4814
    %4816 = vdwg.mxu0
    %v4817 = vand.u32 %v187, 4294901760
    %4818 = vmatpush.msra.mxu0 %v4817
    %v4819 = vand.u32 %v185, 4294901760
    %4820 = vmatpush.msra.mxu0 %v4819
    %v4821 = vand.u32 %v183, 4294901760
    %4822 = vmatpush.msra.mxu0 %v4821
    %v4823 = vand.u32 %v181, 4294901760
    %4824 = vmatpush.msra.mxu0 %v4823
    %v4825 = vand.u32 %v179, 4294901760
    %4826 = vmatpush.msra.mxu0 %v4825
    %v4827 = vand.u32 %v177, 4294901760
    %4828 = vmatpush.msra.mxu0 %v4827
    %v4829 = vand.u32 %v175, 4294901760
    %4830 = vmatpush.msra.mxu0 %v4829
    %v4831 = vand.u32 %v173, 4294901760
    %4832 = vmatpush.msra.mxu0 %v4831
    %v4833 = vand.u32 %v171, 4294901760
    %4834 = vmatpush.msra.mxu0 %v4833
    %v4835 = vand.u32 %v169, 4294901760
    %4836 = vmatpush.msra.mxu0 %v4835
    %v4837 = vand.u32 %v167, 4294901760
    %4838 = vmatpush.msra.mxu0 %v4837
    %v4839 = vand.u32 %v165, 4294901760
    %4840 = vmatpush.msra.mxu0 %v4839
    %v4841 = vand.u32 %v163, 4294901760
    %4842 = vmatpush.msra.mxu0 %v4841
    %v4843 = vand.u32 %v161, 4294901760
    %4844 = vmatpush.msra.mxu0 %v4843
    %v4845 = vand.u32 %v159, 4294901760
    %4846 = vmatpush.msra.mxu0 %v4845
    %v4847 = vand.u32 %v157, 4294901760
    %4848 = vmatpush.msra.mxu0 %v4847
    %v4849 = vand.u32 %v60, 4294901760
    %v4850 = vsub.f32 %v60, %v4849
    %v4851 = vand.u32 %v4850, 4294901760
    %4852 = vmatmul.f32.gmra.mxu0 %v4851
    %v4853 = vpop.f32.mrf.mxu0
    %v4854 = vadd.f32 %v4580, %v4853
    %v4855 = vand.u32 %v62, 4294901760
    %v4856 = vsub.f32 %v62, %v4855
    %v4857 = vand.u32 %v4856, 4294901760
    %4858 = vmatmul.f32.gmra.mxu0 %v4857
    %v4859 = vpop.f32.mrf.mxu0
    %v4860 = vadd.f32 %v4585, %v4859
    %v4861 = vand.u32 %v64, 4294901760
    %v4862 = vsub.f32 %v64, %v4861
    %v4863 = vand.u32 %v4862, 4294901760
    %4864 = vmatmul.f32.gmra.mxu0 %v4863
    %v4865 = vpop.f32.mrf.mxu0
    %v4866 = vadd.f32 %v4590, %v4865
    %v4867 = vand.u32 %v66, 4294901760
    %v4868 = vsub.f32 %v66, %v4867
    %v4869 = vand.u32 %v4868, 4294901760
    %4870 = vmatmul.f32.gmra.mxu0 %v4869
    %v4871 = vpop.f32.mrf.mxu0
    %v4872 = vadd.f32 %v4595, %v4871
    %v4873 = vand.u32 %v68, 4294901760
    %v4874 = vsub.f32 %v68, %v4873
    %v4875 = vand.u32 %v4874, 4294901760
    %4876 = vmatmul.f32.gmra.mxu0 %v4875
    %v4877 = vpop.f32.mrf.mxu0
    %v4878 = vadd.f32 %v4600, %v4877
    %v4879 = vand.u32 %v70, 4294901760
    %v4880 = vsub.f32 %v70, %v4879
    %v4881 = vand.u32 %v4880, 4294901760
    %4882 = vmatmul.f32.gmra.mxu0 %v4881
    %v4883 = vpop.f32.mrf.mxu0
    %v4884 = vadd.f32 %v4605, %v4883
    %v4885 = vand.u32 %v72, 4294901760
    %v4886 = vsub.f32 %v72, %v4885
    %v4887 = vand.u32 %v4886, 4294901760
    %4888 = vmatmul.f32.gmra.mxu0 %v4887
    %v4889 = vpop.f32.mrf.mxu0
    %v4890 = vadd.f32 %v4610, %v4889
    %v4891 = vand.u32 %v74, 4294901760
    %v4892 = vsub.f32 %v74, %v4891
    %v4893 = vand.u32 %v4892, 4294901760
    %4894 = vmatmul.f32.gmra.mxu0 %v4893
    %v4895 = vpop.f32.mrf.mxu0
    %v4896 = vadd.f32 %v4615, %v4895
    %v4897 = vand.u32 %v76, 4294901760
    %v4898 = vsub.f32 %v76, %v4897
    %v4899 = vand.u32 %v4898, 4294901760
    %4900 = vmatmul.f32.gmra.mxu0 %v4899
    %v4901 = vpop.f32.mrf.mxu0
    %v4902 = vadd.f32 %v4620, %v4901
    %v4903 = vand.u32 %v78, 4294901760
    %v4904 = vsub.f32 %v78, %v4903
    %v4905 = vand.u32 %v4904, 4294901760
    %4906 = vmatmul.f32.gmra.mxu0 %v4905
    %v4907 = vpop.f32.mrf.mxu0
    %v4908 = vadd.f32 %v4625, %v4907
    %v4909 = vand.u32 %v80, 4294901760
    %v4910 = vsub.f32 %v80, %v4909
    %v4911 = vand.u32 %v4910, 4294901760
    %4912 = vmatmul.f32.gmra.mxu0 %v4911
    %v4913 = vpop.f32.mrf.mxu0
    %v4914 = vadd.f32 %v4630, %v4913
    %v4915 = vand.u32 %v82, 4294901760
    %v4916 = vsub.f32 %v82, %v4915
    %v4917 = vand.u32 %v4916, 4294901760
    %4918 = vmatmul.f32.gmra.mxu0 %v4917
    %v4919 = vpop.f32.mrf.mxu0
    %v4920 = vadd.f32 %v4635, %v4919
    %v4921 = vand.u32 %v84, 4294901760
    %v4922 = vsub.f32 %v84, %v4921
    %v4923 = vand.u32 %v4922, 4294901760
    %4924 = vmatmul.f32.gmra.mxu0 %v4923
    %v4925 = vpop.f32.mrf.mxu0
    %v4926 = vadd.f32 %v4640, %v4925
    %v4927 = vand.u32 %v86, 4294901760
    %v4928 = vsub.f32 %v86, %v4927
    %v4929 = vand.u32 %v4928, 4294901760
    %4930 = vmatmul.f32.gmra.mxu0 %v4929
    %v4931 = vpop.f32.mrf.mxu0
    %v4932 = vadd.f32 %v4645, %v4931
    %v4933 = vand.u32 %v88, 4294901760
    %v4934 = vsub.f32 %v88, %v4933
    %v4935 = vand.u32 %v4934, 4294901760
    %4936 = vmatmul.f32.gmra.mxu0 %v4935
    %v4937 = vpop.f32.mrf.mxu0
    %v4938 = vadd.f32 %v4650, %v4937
    %v4939 = vand.u32 %v90, 4294901760
    %v4940 = vsub.f32 %v90, %v4939
    %v4941 = vand.u32 %v4940, 4294901760
    %4942 = vmatmul.f32.gmra.mxu0 %v4941
    %v4943 = vpop.f32.mrf.mxu0
    %v4944 = vadd.f32 %v4655, %v4943
    %v4945 = vand.u32 %v92, 4294901760
    %v4946 = vsub.f32 %v92, %v4945
    %v4947 = vand.u32 %v4946, 4294901760
    %4948 = vmatmul.f32.gmra.mxu0 %v4947
    %v4949 = vpop.f32.mrf.mxu0
    %v4950 = vadd.f32 %v4660, %v4949
    %v4951 = vand.u32 %v94, 4294901760
    %v4952 = vsub.f32 %v94, %v4951
    %v4953 = vand.u32 %v4952, 4294901760
    %4954 = vmatmul.f32.gmra.mxu0 %v4953
    %v4955 = vpop.f32.mrf.mxu0
    %v4956 = vadd.f32 %v4665, %v4955
    %v4957 = vand.u32 %v96, 4294901760
    %v4958 = vsub.f32 %v96, %v4957
    %v4959 = vand.u32 %v4958, 4294901760
    %4960 = vmatmul.f32.gmra.mxu0 %v4959
    %v4961 = vpop.f32.mrf.mxu0
    %v4962 = vadd.f32 %v4670, %v4961
    %v4963 = vand.u32 %v98, 4294901760
    %v4964 = vsub.f32 %v98, %v4963
    %v4965 = vand.u32 %v4964, 4294901760
    %4966 = vmatmul.f32.gmra.mxu0 %v4965
    %v4967 = vpop.f32.mrf.mxu0
    %v4968 = vadd.f32 %v4675, %v4967
    %v4969 = vand.u32 %v100, 4294901760
    %v4970 = vsub.f32 %v100, %v4969
    %v4971 = vand.u32 %v4970, 4294901760
    %4972 = vmatmul.f32.gmra.mxu0 %v4971
    %v4973 = vpop.f32.mrf.mxu0
    %v4974 = vadd.f32 %v4680, %v4973
    %v4975 = vand.u32 %v102, 4294901760
    %v4976 = vsub.f32 %v102, %v4975
    %v4977 = vand.u32 %v4976, 4294901760
    %4978 = vmatmul.f32.gmra.mxu0 %v4977
    %v4979 = vpop.f32.mrf.mxu0
    %v4980 = vadd.f32 %v4685, %v4979
    %v4981 = vand.u32 %v104, 4294901760
    %v4982 = vsub.f32 %v104, %v4981
    %v4983 = vand.u32 %v4982, 4294901760
    %4984 = vmatmul.f32.gmra.mxu0 %v4983
    %v4985 = vpop.f32.mrf.mxu0
    %v4986 = vadd.f32 %v4690, %v4985
    %v4987 = vand.u32 %v106, 4294901760
    %v4988 = vsub.f32 %v106, %v4987
    %v4989 = vand.u32 %v4988, 4294901760
    %4990 = vmatmul.f32.gmra.mxu0 %v4989
    %v4991 = vpop.f32.mrf.mxu0
    %v4992 = vadd.f32 %v4695, %v4991
    %v4993 = vand.u32 %v108, 4294901760
    %v4994 = vsub.f32 %v108, %v4993
    %v4995 = vand.u32 %v4994, 4294901760
    %4996 = vmatmul.f32.gmra.mxu0 %v4995
    %v4997 = vpop.f32.mrf.mxu0
    %v4998 = vadd.f32 %v4700, %v4997
    %v4999 = vand.u32 %v110, 4294901760
    %v5000 = vsub.f32 %v110, %v4999
    %v5001 = vand.u32 %v5000, 4294901760
    %5002 = vmatmul.f32.gmra.mxu0 %v5001
    %v5003 = vpop.f32.mrf.mxu0
    %v5004 = vadd.f32 %v4705, %v5003
    %v5005 = vand.u32 %v112, 4294901760
    %v5006 = vsub.f32 %v112, %v5005
    %v5007 = vand.u32 %v5006, 4294901760
    %5008 = vmatmul.f32.gmra.mxu0 %v5007
    %v5009 = vpop.f32.mrf.mxu0
    %v5010 = vadd.f32 %v4710, %v5009
    %v5011 = vand.u32 %v114, 4294901760
    %v5012 = vsub.f32 %v114, %v5011
    %v5013 = vand.u32 %v5012, 4294901760
    %5014 = vmatmul.f32.gmra.mxu0 %v5013
    %v5015 = vpop.f32.mrf.mxu0
    %v5016 = vadd.f32 %v4715, %v5015
    %v5017 = vand.u32 %v116, 4294901760
    %v5018 = vsub.f32 %v116, %v5017
    %v5019 = vand.u32 %v5018, 4294901760
    %5020 = vmatmul.f32.gmra.mxu0 %v5019
    %v5021 = vpop.f32.mrf.mxu0
    %v5022 = vadd.f32 %v4720, %v5021
    %v5023 = vand.u32 %v118, 4294901760
    %v5024 = vsub.f32 %v118, %v5023
    %v5025 = vand.u32 %v5024, 4294901760
    %5026 = vmatmul.f32.gmra.mxu0 %v5025
    %v5027 = vpop.f32.mrf.mxu0
    %v5028 = vadd.f32 %v4725, %v5027
    %v5029 = vand.u32 %v120, 4294901760
    %v5030 = vsub.f32 %v120, %v5029
    %v5031 = vand.u32 %v5030, 4294901760
    %5032 = vmatmul.f32.gmra.mxu0 %v5031
    %v5033 = vpop.f32.mrf.mxu0
    %v5034 = vadd.f32 %v4730, %v5033
    %v5035 = vand.u32 %v122, 4294901760
    %v5036 = vsub.f32 %v122, %v5035
    %v5037 = vand.u32 %v5036, 4294901760
    %5038 = vmatmul.f32.gmra.mxu0 %v5037
    %v5039 = vpop.f32.mrf.mxu0
    %v5040 = vadd.f32 %v4735, %v5039
    %v5041 = vand.u32 %v124, 4294901760
    %v5042 = vsub.f32 %v124, %v5041
    %v5043 = vand.u32 %v5042, 4294901760
    %5044 = vmatmul.f32.gmra.mxu0 %v5043
    %v5045 = vpop.f32.mrf.mxu0
    %v5046 = vadd.f32 %v4740, %v5045
    %v5047 = vand.u32 %v126, 4294901760
    %v5048 = vsub.f32 %v126, %v5047
    %v5049 = vand.u32 %v5048, 4294901760
    %5050 = vmatmul.f32.gmra.mxu0 %v5049
    %v5051 = vpop.f32.mrf.mxu0
    %v5052 = vadd.f32 %v4745, %v5051
    %v5053 = vand.u32 %v128, 4294901760
    %v5054 = vsub.f32 %v128, %v5053
    %v5055 = vand.u32 %v5054, 4294901760
    %5056 = vmatmul.f32.gmra.mxu0 %v5055
    %v5057 = vpop.f32.mrf.mxu0
    %v5058 = vadd.f32 %v4750, %v5057
    %v5059 = vand.u32 %v130, 4294901760
    %v5060 = vsub.f32 %v130, %v5059
    %v5061 = vand.u32 %v5060, 4294901760
    %5062 = vmatmul.f32.gmra.mxu0 %v5061
    %v5063 = vpop.f32.mrf.mxu0
    %v5064 = vadd.f32 %v4755, %v5063
    %v5065 = vand.u32 %v132, 4294901760
    %v5066 = vsub.f32 %v132, %v5065
    %v5067 = vand.u32 %v5066, 4294901760
    %5068 = vmatmul.f32.gmra.mxu0 %v5067
    %v5069 = vpop.f32.mrf.mxu0
    %v5070 = vadd.f32 %v4760, %v5069
    %v5071 = vand.u32 %v134, 4294901760
    %v5072 = vsub.f32 %v134, %v5071
    %v5073 = vand.u32 %v5072, 4294901760
    %5074 = vmatmul.f32.gmra.mxu0 %v5073
    %v5075 = vpop.f32.mrf.mxu0
    %v5076 = vadd.f32 %v4765, %v5075
    %v5077 = vand.u32 %v136, 4294901760
    %v5078 = vsub.f32 %v136, %v5077
    %v5079 = vand.u32 %v5078, 4294901760
    %5080 = vmatmul.f32.gmra.mxu0 %v5079
    %v5081 = vpop.f32.mrf.mxu0
    %v5082 = vadd.f32 %v4770, %v5081
    %v5083 = vand.u32 %v138, 4294901760
    %v5084 = vsub.f32 %v138, %v5083
    %v5085 = vand.u32 %v5084, 4294901760
    %5086 = vmatmul.f32.gmra.mxu0 %v5085
    %v5087 = vpop.f32.mrf.mxu0
    %v5088 = vadd.f32 %v4775, %v5087
    %v5089 = vand.u32 %v140, 4294901760
    %v5090 = vsub.f32 %v140, %v5089
    %v5091 = vand.u32 %v5090, 4294901760
    %5092 = vmatmul.f32.gmra.mxu0 %v5091
    %v5093 = vpop.f32.mrf.mxu0
    %v5094 = vadd.f32 %v4780, %v5093
    %v5095 = vand.u32 %v142, 4294901760
    %v5096 = vsub.f32 %v142, %v5095
    %v5097 = vand.u32 %v5096, 4294901760
    %5098 = vmatmul.f32.gmra.mxu0 %v5097
    %v5099 = vpop.f32.mrf.mxu0
    %v5100 = vadd.f32 %v4785, %v5099
    %v5101 = vand.u32 %v144, 4294901760
    %v5102 = vsub.f32 %v144, %v5101
    %v5103 = vand.u32 %v5102, 4294901760
    %5104 = vmatmul.f32.gmra.mxu0 %v5103
    %v5105 = vpop.f32.mrf.mxu0
    %v5106 = vadd.f32 %v4790, %v5105
    %v5107 = vand.u32 %v146, 4294901760
    %v5108 = vsub.f32 %v146, %v5107
    %v5109 = vand.u32 %v5108, 4294901760
    %5110 = vmatmul.f32.gmra.mxu0 %v5109
    %v5111 = vpop.f32.mrf.mxu0
    %v5112 = vadd.f32 %v4795, %v5111
    %v5113 = vand.u32 %v148, 4294901760
    %v5114 = vsub.f32 %v148, %v5113
    %v5115 = vand.u32 %v5114, 4294901760
    %5116 = vmatmul.f32.gmra.mxu0 %v5115
    %v5117 = vpop.f32.mrf.mxu0
    %v5118 = vadd.f32 %v4800, %v5117
    %v5119 = vand.u32 %v150, 4294901760
    %v5120 = vsub.f32 %v150, %v5119
    %v5121 = vand.u32 %v5120, 4294901760
    %5122 = vmatmul.f32.gmra.mxu0 %v5121
    %v5123 = vpop.f32.mrf.mxu0
    %v5124 = vadd.f32 %v4805, %v5123
    %v5125 = vand.u32 %v152, 4294901760
    %v5126 = vsub.f32 %v152, %v5125
    %v5127 = vand.u32 %v5126, 4294901760
    %5128 = vmatmul.f32.gmra.mxu0 %v5127
    %v5129 = vpop.f32.mrf.mxu0
    %v5130 = vadd.f32 %v4810, %v5129
    %v5131 = vand.u32 %v154, 4294901760
    %v5132 = vsub.f32 %v154, %v5131
    %v5133 = vand.u32 %v5132, 4294901760
    %5134 = vmatmul.f32.gmra.mxu0 %v5133
    %v5135 = vpop.f32.mrf.mxu0
    %v5136 = vadd.f32 %v4815, %v5135
    %5137 = vdwg.mxu0
    %v5138 = vand.u32 %v187, 4294901760
    %v5139 = vsub.f32 %v187, %v5138
    %v5140 = vand.u32 %v5139, 4294901760
    %5141 = vmatpush.msra.mxu0 %v5140
    %v5142 = vand.u32 %v185, 4294901760
    %v5143 = vsub.f32 %v185, %v5142
    %v5144 = vand.u32 %v5143, 4294901760
    %5145 = vmatpush.msra.mxu0 %v5144
    %v5146 = vand.u32 %v183, 4294901760
    %v5147 = vsub.f32 %v183, %v5146
    %v5148 = vand.u32 %v5147, 4294901760
    %5149 = vmatpush.msra.mxu0 %v5148
    %v5150 = vand.u32 %v181, 4294901760
    %v5151 = vsub.f32 %v181, %v5150
    %v5152 = vand.u32 %v5151, 4294901760
    %5153 = vmatpush.msra.mxu0 %v5152
    %v5154 = vand.u32 %v179, 4294901760
    %v5155 = vsub.f32 %v179, %v5154
    %v5156 = vand.u32 %v5155, 4294901760
    %5157 = vmatpush.msra.mxu0 %v5156
    %v5158 = vand.u32 %v177, 4294901760
    %v5159 = vsub.f32 %v177, %v5158
    %v5160 = vand.u32 %v5159, 4294901760
    %5161 = vmatpush.msra.mxu0 %v5160
    %v5162 = vand.u32 %v175, 4294901760
    %v5163 = vsub.f32 %v175, %v5162
    %v5164 = vand.u32 %v5163, 4294901760
    %5165 = vmatpush.msra.mxu0 %v5164
    %v5166 = vand.u32 %v173, 4294901760
    %v5167 = vsub.f32 %v173, %v5166
    %v5168 = vand.u32 %v5167, 4294901760
    %5169 = vmatpush.msra.mxu0 %v5168
    %v5170 = vand.u32 %v171, 4294901760
    %v5171 = vsub.f32 %v171, %v5170
    %v5172 = vand.u32 %v5171, 4294901760
    %5173 = vmatpush.msra.mxu0 %v5172
    %v5174 = vand.u32 %v169, 4294901760
    %v5175 = vsub.f32 %v169, %v5174
    %v5176 = vand.u32 %v5175, 4294901760
    %5177 = vmatpush.msra.mxu0 %v5176
    %v5178 = vand.u32 %v167, 4294901760
    %v5179 = vsub.f32 %v167, %v5178
    %v5180 = vand.u32 %v5179, 4294901760
    %5181 = vmatpush.msra.mxu0 %v5180
    %v5182 = vand.u32 %v165, 4294901760
    %v5183 = vsub.f32 %v165, %v5182
    %v5184 = vand.u32 %v5183, 4294901760
    %5185 = vmatpush.msra.mxu0 %v5184
    %v5186 = vand.u32 %v163, 4294901760
    %v5187 = vsub.f32 %v163, %v5186
    %v5188 = vand.u32 %v5187, 4294901760
    %5189 = vmatpush.msra.mxu0 %v5188
    %v5190 = vand.u32 %v161, 4294901760
    %v5191 = vsub.f32 %v161, %v5190
    %v5192 = vand.u32 %v5191, 4294901760
    %5193 = vmatpush.msra.mxu0 %v5192
    %v5194 = vand.u32 %v159, 4294901760
    %v5195 = vsub.f32 %v159, %v5194
    %v5196 = vand.u32 %v5195, 4294901760
    %5197 = vmatpush.msra.mxu0 %v5196
    %v5198 = vand.u32 %v157, 4294901760
    %v5199 = vsub.f32 %v157, %v5198
    %v5200 = vand.u32 %v5199, 4294901760
    %5201 = vmatpush.msra.mxu0 %v5200
    %v5202 = vand.u32 %v60, 4294901760
    %5203 = vmatmul.f32.gmra.mxu0 %v5202
    %v5204 = vpop.f32.mrf.mxu0
    %v5205 = vadd.f32 %v4854, %v5204
    %v5206 = vand.u32 %v62, 4294901760
    %5207 = vmatmul.f32.gmra.mxu0 %v5206
    %v5208 = vpop.f32.mrf.mxu0
    %v5209 = vadd.f32 %v4860, %v5208
    %v5210 = vand.u32 %v64, 4294901760
    %5211 = vmatmul.f32.gmra.mxu0 %v5210
    %v5212 = vpop.f32.mrf.mxu0
    %v5213 = vadd.f32 %v4866, %v5212
    %v5214 = vand.u32 %v66, 4294901760
    %5215 = vmatmul.f32.gmra.mxu0 %v5214
    %v5216 = vpop.f32.mrf.mxu0
    %v5217 = vadd.f32 %v4872, %v5216
    %v5218 = vand.u32 %v68, 4294901760
    %5219 = vmatmul.f32.gmra.mxu0 %v5218
    %v5220 = vpop.f32.mrf.mxu0
    %v5221 = vadd.f32 %v4878, %v5220
    %v5222 = vand.u32 %v70, 4294901760
    %5223 = vmatmul.f32.gmra.mxu0 %v5222
    %v5224 = vpop.f32.mrf.mxu0
    %v5225 = vadd.f32 %v4884, %v5224
    %v5226 = vand.u32 %v72, 4294901760
    %5227 = vmatmul.f32.gmra.mxu0 %v5226
    %v5228 = vpop.f32.mrf.mxu0
    %v5229 = vadd.f32 %v4890, %v5228
    %v5230 = vand.u32 %v74, 4294901760
    %5231 = vmatmul.f32.gmra.mxu0 %v5230
    %v5232 = vpop.f32.mrf.mxu0
    %v5233 = vadd.f32 %v4896, %v5232
    %v5234 = vand.u32 %v76, 4294901760
    %5235 = vmatmul.f32.gmra.mxu0 %v5234
    %v5236 = vpop.f32.mrf.mxu0
    %v5237 = vadd.f32 %v4902, %v5236
    %v5238 = vand.u32 %v78, 4294901760
    %5239 = vmatmul.f32.gmra.mxu0 %v5238
    %v5240 = vpop.f32.mrf.mxu0
    %v5241 = vadd.f32 %v4908, %v5240
    %v5242 = vand.u32 %v80, 4294901760
    %5243 = vmatmul.f32.gmra.mxu0 %v5242
    %v5244 = vpop.f32.mrf.mxu0
    %v5245 = vadd.f32 %v4914, %v5244
    %v5246 = vand.u32 %v82, 4294901760
    %5247 = vmatmul.f32.gmra.mxu0 %v5246
    %v5248 = vpop.f32.mrf.mxu0
    %v5249 = vadd.f32 %v4920, %v5248
    %v5250 = vand.u32 %v84, 4294901760
    %5251 = vmatmul.f32.gmra.mxu0 %v5250
    %v5252 = vpop.f32.mrf.mxu0
    %v5253 = vadd.f32 %v4926, %v5252
    %v5254 = vand.u32 %v86, 4294901760
    %5255 = vmatmul.f32.gmra.mxu0 %v5254
    %v5256 = vpop.f32.mrf.mxu0
    %v5257 = vadd.f32 %v4932, %v5256
    %v5258 = vand.u32 %v88, 4294901760
    %5259 = vmatmul.f32.gmra.mxu0 %v5258
    %v5260 = vpop.f32.mrf.mxu0
    %v5261 = vadd.f32 %v4938, %v5260
    %v5262 = vand.u32 %v90, 4294901760
    %5263 = vmatmul.f32.gmra.mxu0 %v5262
    %v5264 = vpop.f32.mrf.mxu0
    %v5265 = vadd.f32 %v4944, %v5264
    %v5266 = vand.u32 %v92, 4294901760
    %5267 = vmatmul.f32.gmra.mxu0 %v5266
    %v5268 = vpop.f32.mrf.mxu0
    %v5269 = vadd.f32 %v4950, %v5268
    %v5270 = vand.u32 %v94, 4294901760
    %5271 = vmatmul.f32.gmra.mxu0 %v5270
    %v5272 = vpop.f32.mrf.mxu0
    %v5273 = vadd.f32 %v4956, %v5272
    %v5274 = vand.u32 %v96, 4294901760
    %5275 = vmatmul.f32.gmra.mxu0 %v5274
    %v5276 = vpop.f32.mrf.mxu0
    %v5277 = vadd.f32 %v4962, %v5276
    %v5278 = vand.u32 %v98, 4294901760
    %5279 = vmatmul.f32.gmra.mxu0 %v5278
    %v5280 = vpop.f32.mrf.mxu0
    %v5281 = vadd.f32 %v4968, %v5280
    %v5282 = vand.u32 %v100, 4294901760
    %5283 = vmatmul.f32.gmra.mxu0 %v5282
    %v5284 = vpop.f32.mrf.mxu0
    %v5285 = vadd.f32 %v4974, %v5284
    %v5286 = vand.u32 %v102, 4294901760
    %5287 = vmatmul.f32.gmra.mxu0 %v5286
    %v5288 = vpop.f32.mrf.mxu0
    %v5289 = vadd.f32 %v4980, %v5288
    %v5290 = vand.u32 %v104, 4294901760
    %5291 = vmatmul.f32.gmra.mxu0 %v5290
    %v5292 = vpop.f32.mrf.mxu0
    %v5293 = vadd.f32 %v4986, %v5292
    %v5294 = vand.u32 %v106, 4294901760
    %5295 = vmatmul.f32.gmra.mxu0 %v5294
    %v5296 = vpop.f32.mrf.mxu0
    %v5297 = vadd.f32 %v4992, %v5296
    %v5298 = vand.u32 %v108, 4294901760
    %5299 = vmatmul.f32.gmra.mxu0 %v5298
    %v5300 = vpop.f32.mrf.mxu0
    %v5301 = vadd.f32 %v4998, %v5300
    %v5302 = vand.u32 %v110, 4294901760
    %5303 = vmatmul.f32.gmra.mxu0 %v5302
    %v5304 = vpop.f32.mrf.mxu0
    %v5305 = vadd.f32 %v5004, %v5304
    %v5306 = vand.u32 %v112, 4294901760
    %5307 = vmatmul.f32.gmra.mxu0 %v5306
    %v5308 = vpop.f32.mrf.mxu0
    %v5309 = vadd.f32 %v5010, %v5308
    %v5310 = vand.u32 %v114, 4294901760
    %5311 = vmatmul.f32.gmra.mxu0 %v5310
    %v5312 = vpop.f32.mrf.mxu0
    %v5313 = vadd.f32 %v5016, %v5312
    %v5314 = vand.u32 %v116, 4294901760
    %5315 = vmatmul.f32.gmra.mxu0 %v5314
    %v5316 = vpop.f32.mrf.mxu0
    %v5317 = vadd.f32 %v5022, %v5316
    %v5318 = vand.u32 %v118, 4294901760
    %5319 = vmatmul.f32.gmra.mxu0 %v5318
    %v5320 = vpop.f32.mrf.mxu0
    %v5321 = vadd.f32 %v5028, %v5320
    %v5322 = vand.u32 %v120, 4294901760
    %5323 = vmatmul.f32.gmra.mxu0 %v5322
    %v5324 = vpop.f32.mrf.mxu0
    %v5325 = vadd.f32 %v5034, %v5324
    %v5326 = vand.u32 %v122, 4294901760
    %5327 = vmatmul.f32.gmra.mxu0 %v5326
    %v5328 = vpop.f32.mrf.mxu0
    %v5329 = vadd.f32 %v5040, %v5328
    %v5330 = vand.u32 %v124, 4294901760
    %5331 = vmatmul.f32.gmra.mxu0 %v5330
    %v5332 = vpop.f32.mrf.mxu0
    %v5333 = vadd.f32 %v5046, %v5332
    %v5334 = vand.u32 %v126, 4294901760
    %5335 = vmatmul.f32.gmra.mxu0 %v5334
    %v5336 = vpop.f32.mrf.mxu0
    %v5337 = vadd.f32 %v5052, %v5336
    %v5338 = vand.u32 %v128, 4294901760
    %5339 = vmatmul.f32.gmra.mxu0 %v5338
    %v5340 = vpop.f32.mrf.mxu0
    %v5341 = vadd.f32 %v5058, %v5340
    %v5342 = vand.u32 %v130, 4294901760
    %5343 = vmatmul.f32.gmra.mxu0 %v5342
    %v5344 = vpop.f32.mrf.mxu0
    %v5345 = vadd.f32 %v5064, %v5344
    %v5346 = vand.u32 %v132, 4294901760
    %5347 = vmatmul.f32.gmra.mxu0 %v5346
    %v5348 = vpop.f32.mrf.mxu0
    %v5349 = vadd.f32 %v5070, %v5348
    %v5350 = vand.u32 %v134, 4294901760
    %5351 = vmatmul.f32.gmra.mxu0 %v5350
    %v5352 = vpop.f32.mrf.mxu0
    %v5353 = vadd.f32 %v5076, %v5352
    %v5354 = vand.u32 %v136, 4294901760
    %5355 = vmatmul.f32.gmra.mxu0 %v5354
    %v5356 = vpop.f32.mrf.mxu0
    %v5357 = vadd.f32 %v5082, %v5356
    %v5358 = vand.u32 %v138, 4294901760
    %5359 = vmatmul.f32.gmra.mxu0 %v5358
    %v5360 = vpop.f32.mrf.mxu0
    %v5361 = vadd.f32 %v5088, %v5360
    %v5362 = vand.u32 %v140, 4294901760
    %5363 = vmatmul.f32.gmra.mxu0 %v5362
    %v5364 = vpop.f32.mrf.mxu0
    %v5365 = vadd.f32 %v5094, %v5364
    %v5366 = vand.u32 %v142, 4294901760
    %5367 = vmatmul.f32.gmra.mxu0 %v5366
    %v5368 = vpop.f32.mrf.mxu0
    %v5369 = vadd.f32 %v5100, %v5368
    %v5370 = vand.u32 %v144, 4294901760
    %5371 = vmatmul.f32.gmra.mxu0 %v5370
    %v5372 = vpop.f32.mrf.mxu0
    %v5373 = vadd.f32 %v5106, %v5372
    %v5374 = vand.u32 %v146, 4294901760
    %5375 = vmatmul.f32.gmra.mxu0 %v5374
    %v5376 = vpop.f32.mrf.mxu0
    %v5377 = vadd.f32 %v5112, %v5376
    %v5378 = vand.u32 %v148, 4294901760
    %5379 = vmatmul.f32.gmra.mxu0 %v5378
    %v5380 = vpop.f32.mrf.mxu0
    %v5381 = vadd.f32 %v5118, %v5380
    %v5382 = vand.u32 %v150, 4294901760
    %5383 = vmatmul.f32.gmra.mxu0 %v5382
    %v5384 = vpop.f32.mrf.mxu0
    %v5385 = vadd.f32 %v5124, %v5384
    %v5386 = vand.u32 %v152, 4294901760
    %5387 = vmatmul.f32.gmra.mxu0 %v5386
    %v5388 = vpop.f32.mrf.mxu0
    %v5389 = vadd.f32 %v5130, %v5388
    %v5390 = vand.u32 %v154, 4294901760
    %5391 = vmatmul.f32.gmra.mxu0 %v5390
    %v5392 = vpop.f32.mrf.mxu0
    %v5393 = vadd.f32 %v5136, %v5392
    %5394 = vdwg.mxu0
    %v5395 = vand.u32 %v187, 4294901760
    %5396 = vmatpush.msra.mxu0 %v5395
    %v5397 = vand.u32 %v185, 4294901760
    %5398 = vmatpush.msra.mxu0 %v5397
    %v5399 = vand.u32 %v183, 4294901760
    %5400 = vmatpush.msra.mxu0 %v5399
    %v5401 = vand.u32 %v181, 4294901760
    %5402 = vmatpush.msra.mxu0 %v5401
    %v5403 = vand.u32 %v179, 4294901760
    %5404 = vmatpush.msra.mxu0 %v5403
    %v5405 = vand.u32 %v177, 4294901760
    %5406 = vmatpush.msra.mxu0 %v5405
    %v5407 = vand.u32 %v175, 4294901760
    %5408 = vmatpush.msra.mxu0 %v5407
    %v5409 = vand.u32 %v173, 4294901760
    %5410 = vmatpush.msra.mxu0 %v5409
    %v5411 = vand.u32 %v171, 4294901760
    %5412 = vmatpush.msra.mxu0 %v5411
    %v5413 = vand.u32 %v169, 4294901760
    %5414 = vmatpush.msra.mxu0 %v5413
    %v5415 = vand.u32 %v167, 4294901760
    %5416 = vmatpush.msra.mxu0 %v5415
    %v5417 = vand.u32 %v165, 4294901760
    %5418 = vmatpush.msra.mxu0 %v5417
    %v5419 = vand.u32 %v163, 4294901760
    %5420 = vmatpush.msra.mxu0 %v5419
    %v5421 = vand.u32 %v161, 4294901760
    %5422 = vmatpush.msra.mxu0 %v5421
    %v5423 = vand.u32 %v159, 4294901760
    %5424 = vmatpush.msra.mxu0 %v5423
    %v5425 = vand.u32 %v157, 4294901760
    %5426 = vmatpush.msra.mxu0 %v5425
    %v5427 = vand.u32 %v60, 4294901760
    %5428 = vmatmul.f32.gmra.mxu0 %v5427
    %v5429 = vpop.f32.mrf.mxu0
    %v5430 = vadd.f32 %v5205, %v5429
    %v5431 = vand.u32 %v62, 4294901760
    %5432 = vmatmul.f32.gmra.mxu0 %v5431
    %v5433 = vpop.f32.mrf.mxu0
    %v5434 = vadd.f32 %v5209, %v5433
    %v5435 = vand.u32 %v64, 4294901760
    %5436 = vmatmul.f32.gmra.mxu0 %v5435
    %v5437 = vpop.f32.mrf.mxu0
    %v5438 = vadd.f32 %v5213, %v5437
    %v5439 = vand.u32 %v66, 4294901760
    %5440 = vmatmul.f32.gmra.mxu0 %v5439
    %v5441 = vpop.f32.mrf.mxu0
    %v5442 = vadd.f32 %v5217, %v5441
    %v5443 = vand.u32 %v68, 4294901760
    %5444 = vmatmul.f32.gmra.mxu0 %v5443
    %v5445 = vpop.f32.mrf.mxu0
    %v5446 = vadd.f32 %v5221, %v5445
    %v5447 = vand.u32 %v70, 4294901760
    %5448 = vmatmul.f32.gmra.mxu0 %v5447
    %v5449 = vpop.f32.mrf.mxu0
    %v5450 = vadd.f32 %v5225, %v5449
    %v5451 = vand.u32 %v72, 4294901760
    %5452 = vmatmul.f32.gmra.mxu0 %v5451
    %v5453 = vpop.f32.mrf.mxu0
    %v5454 = vadd.f32 %v5229, %v5453
    %v5455 = vand.u32 %v74, 4294901760
    %5456 = vmatmul.f32.gmra.mxu0 %v5455
    %v5457 = vpop.f32.mrf.mxu0
    %v5458 = vadd.f32 %v5233, %v5457
    %v5459 = vand.u32 %v76, 4294901760
    %5460 = vmatmul.f32.gmra.mxu0 %v5459
    %v5461 = vpop.f32.mrf.mxu0
    %v5462 = vadd.f32 %v5237, %v5461
    %v5463 = vand.u32 %v78, 4294901760
    %5464 = vmatmul.f32.gmra.mxu0 %v5463
    %v5465 = vpop.f32.mrf.mxu0
    %v5466 = vadd.f32 %v5241, %v5465
    %v5467 = vand.u32 %v80, 4294901760
    %5468 = vmatmul.f32.gmra.mxu0 %v5467
    %v5469 = vpop.f32.mrf.mxu0
    %v5470 = vadd.f32 %v5245, %v5469
    %v5471 = vand.u32 %v82, 4294901760
    %5472 = vmatmul.f32.gmra.mxu0 %v5471
    %v5473 = vpop.f32.mrf.mxu0
    %v5474 = vadd.f32 %v5249, %v5473
    %v5475 = vand.u32 %v84, 4294901760
    %5476 = vmatmul.f32.gmra.mxu0 %v5475
    %v5477 = vpop.f32.mrf.mxu0
    %v5478 = vadd.f32 %v5253, %v5477
    %v5479 = vand.u32 %v86, 4294901760
    %5480 = vmatmul.f32.gmra.mxu0 %v5479
    %v5481 = vpop.f32.mrf.mxu0
    %v5482 = vadd.f32 %v5257, %v5481
    %v5483 = vand.u32 %v88, 4294901760
    %5484 = vmatmul.f32.gmra.mxu0 %v5483
    %v5485 = vpop.f32.mrf.mxu0
    %v5486 = vadd.f32 %v5261, %v5485
    %v5487 = vand.u32 %v90, 4294901760
    %5488 = vmatmul.f32.gmra.mxu0 %v5487
    %v5489 = vpop.f32.mrf.mxu0
    %v5490 = vadd.f32 %v5265, %v5489
    %v5491 = vand.u32 %v92, 4294901760
    %5492 = vmatmul.f32.gmra.mxu0 %v5491
    %v5493 = vpop.f32.mrf.mxu0
    %v5494 = vadd.f32 %v5269, %v5493
    %v5495 = vand.u32 %v94, 4294901760
    %5496 = vmatmul.f32.gmra.mxu0 %v5495
    %v5497 = vpop.f32.mrf.mxu0
    %v5498 = vadd.f32 %v5273, %v5497
    %v5499 = vand.u32 %v96, 4294901760
    %5500 = vmatmul.f32.gmra.mxu0 %v5499
    %v5501 = vpop.f32.mrf.mxu0
    %v5502 = vadd.f32 %v5277, %v5501
    %v5503 = vand.u32 %v98, 4294901760
    %5504 = vmatmul.f32.gmra.mxu0 %v5503
    %v5505 = vpop.f32.mrf.mxu0
    %v5506 = vadd.f32 %v5281, %v5505
    %v5507 = vand.u32 %v100, 4294901760
    %5508 = vmatmul.f32.gmra.mxu0 %v5507
    %v5509 = vpop.f32.mrf.mxu0
    %v5510 = vadd.f32 %v5285, %v5509
    %v5511 = vand.u32 %v102, 4294901760
    %5512 = vmatmul.f32.gmra.mxu0 %v5511
    %v5513 = vpop.f32.mrf.mxu0
    %v5514 = vadd.f32 %v5289, %v5513
    %v5515 = vand.u32 %v104, 4294901760
    %5516 = vmatmul.f32.gmra.mxu0 %v5515
    %v5517 = vpop.f32.mrf.mxu0
    %v5518 = vadd.f32 %v5293, %v5517
    %v5519 = vand.u32 %v106, 4294901760
    %5520 = vmatmul.f32.gmra.mxu0 %v5519
    %v5521 = vpop.f32.mrf.mxu0
    %v5522 = vadd.f32 %v5297, %v5521
    %v5523 = vand.u32 %v108, 4294901760
    %5524 = vmatmul.f32.gmra.mxu0 %v5523
    %v5525 = vpop.f32.mrf.mxu0
    %v5526 = vadd.f32 %v5301, %v5525
    %v5527 = vand.u32 %v110, 4294901760
    %5528 = vmatmul.f32.gmra.mxu0 %v5527
    %v5529 = vpop.f32.mrf.mxu0
    %v5530 = vadd.f32 %v5305, %v5529
    %v5531 = vand.u32 %v112, 4294901760
    %5532 = vmatmul.f32.gmra.mxu0 %v5531
    %v5533 = vpop.f32.mrf.mxu0
    %v5534 = vadd.f32 %v5309, %v5533
    %v5535 = vand.u32 %v114, 4294901760
    %5536 = vmatmul.f32.gmra.mxu0 %v5535
    %v5537 = vpop.f32.mrf.mxu0
    %v5538 = vadd.f32 %v5313, %v5537
    %v5539 = vand.u32 %v116, 4294901760
    %5540 = vmatmul.f32.gmra.mxu0 %v5539
    %v5541 = vpop.f32.mrf.mxu0
    %v5542 = vadd.f32 %v5317, %v5541
    %v5543 = vand.u32 %v118, 4294901760
    %5544 = vmatmul.f32.gmra.mxu0 %v5543
    %v5545 = vpop.f32.mrf.mxu0
    %v5546 = vadd.f32 %v5321, %v5545
    %v5547 = vand.u32 %v120, 4294901760
    %5548 = vmatmul.f32.gmra.mxu0 %v5547
    %v5549 = vpop.f32.mrf.mxu0
    %v5550 = vadd.f32 %v5325, %v5549
    %v5551 = vand.u32 %v122, 4294901760
    %5552 = vmatmul.f32.gmra.mxu0 %v5551
    %v5553 = vpop.f32.mrf.mxu0
    %v5554 = vadd.f32 %v5329, %v5553
    %v5555 = vand.u32 %v124, 4294901760
    %5556 = vmatmul.f32.gmra.mxu0 %v5555
    %v5557 = vpop.f32.mrf.mxu0
    %v5558 = vadd.f32 %v5333, %v5557
    %v5559 = vand.u32 %v126, 4294901760
    %5560 = vmatmul.f32.gmra.mxu0 %v5559
    %v5561 = vpop.f32.mrf.mxu0
    %v5562 = vadd.f32 %v5337, %v5561
    %v5563 = vand.u32 %v128, 4294901760
    %5564 = vmatmul.f32.gmra.mxu0 %v5563
    %v5565 = vpop.f32.mrf.mxu0
    %v5566 = vadd.f32 %v5341, %v5565
    %v5567 = vand.u32 %v130, 4294901760
    %5568 = vmatmul.f32.gmra.mxu0 %v5567
    %v5569 = vpop.f32.mrf.mxu0
    %v5570 = vadd.f32 %v5345, %v5569
    %v5571 = vand.u32 %v132, 4294901760
    %5572 = vmatmul.f32.gmra.mxu0 %v5571
    %v5573 = vpop.f32.mrf.mxu0
    %v5574 = vadd.f32 %v5349, %v5573
    %v5575 = vand.u32 %v134, 4294901760
    %5576 = vmatmul.f32.gmra.mxu0 %v5575
    %v5577 = vpop.f32.mrf.mxu0
    %v5578 = vadd.f32 %v5353, %v5577
    %v5579 = vand.u32 %v136, 4294901760
    %5580 = vmatmul.f32.gmra.mxu0 %v5579
    %v5581 = vpop.f32.mrf.mxu0
    %v5582 = vadd.f32 %v5357, %v5581
    %v5583 = vand.u32 %v138, 4294901760
    %5584 = vmatmul.f32.gmra.mxu0 %v5583
    %v5585 = vpop.f32.mrf.mxu0
    %v5586 = vadd.f32 %v5361, %v5585
    %v5587 = vand.u32 %v140, 4294901760
    %5588 = vmatmul.f32.gmra.mxu0 %v5587
    %v5589 = vpop.f32.mrf.mxu0
    %v5590 = vadd.f32 %v5365, %v5589
    %v5591 = vand.u32 %v142, 4294901760
    %5592 = vmatmul.f32.gmra.mxu0 %v5591
    %v5593 = vpop.f32.mrf.mxu0
    %v5594 = vadd.f32 %v5369, %v5593
    %v5595 = vand.u32 %v144, 4294901760
    %5596 = vmatmul.f32.gmra.mxu0 %v5595
    %v5597 = vpop.f32.mrf.mxu0
    %v5598 = vadd.f32 %v5373, %v5597
    %v5599 = vand.u32 %v146, 4294901760
    %5600 = vmatmul.f32.gmra.mxu0 %v5599
    %v5601 = vpop.f32.mrf.mxu0
    %v5602 = vadd.f32 %v5377, %v5601
    %v5603 = vand.u32 %v148, 4294901760
    %5604 = vmatmul.f32.gmra.mxu0 %v5603
    %v5605 = vpop.f32.mrf.mxu0
    %v5606 = vadd.f32 %v5381, %v5605
    %v5607 = vand.u32 %v150, 4294901760
    %5608 = vmatmul.f32.gmra.mxu0 %v5607
    %v5609 = vpop.f32.mrf.mxu0
    %v5610 = vadd.f32 %v5385, %v5609
    %v5611 = vand.u32 %v152, 4294901760
    %5612 = vmatmul.f32.gmra.mxu0 %v5611
    %v5613 = vpop.f32.mrf.mxu0
    %v5614 = vadd.f32 %v5389, %v5613
    %v5615 = vand.u32 %v154, 4294901760
    %5616 = vmatmul.f32.gmra.mxu0 %v5615
    %v5617 = vpop.f32.mrf.mxu0
    %v5618 = vadd.f32 %v5393, %v5617
    %5619 = vdwg.mxu0
    %v5620 = vand.u32 %v219, 4294901760
    %5621 = vmatpush.msra.mxu0 %v5620
    %v5622 = vand.u32 %v217, 4294901760
    %5623 = vmatpush.msra.mxu0 %v5622
    %v5624 = vand.u32 %v215, 4294901760
    %5625 = vmatpush.msra.mxu0 %v5624
    %v5626 = vand.u32 %v213, 4294901760
    %5627 = vmatpush.msra.mxu0 %v5626
    %v5628 = vand.u32 %v211, 4294901760
    %5629 = vmatpush.msra.mxu0 %v5628
    %v5630 = vand.u32 %v209, 4294901760
    %5631 = vmatpush.msra.mxu0 %v5630
    %v5632 = vand.u32 %v207, 4294901760
    %5633 = vmatpush.msra.mxu0 %v5632
    %v5634 = vand.u32 %v205, 4294901760
    %5635 = vmatpush.msra.mxu0 %v5634
    %v5636 = vand.u32 %v203, 4294901760
    %5637 = vmatpush.msra.mxu0 %v5636
    %v5638 = vand.u32 %v201, 4294901760
    %5639 = vmatpush.msra.mxu0 %v5638
    %v5640 = vand.u32 %v199, 4294901760
    %5641 = vmatpush.msra.mxu0 %v5640
    %v5642 = vand.u32 %v197, 4294901760
    %5643 = vmatpush.msra.mxu0 %v5642
    %v5644 = vand.u32 %v195, 4294901760
    %5645 = vmatpush.msra.mxu0 %v5644
    %v5646 = vand.u32 %v193, 4294901760
    %5647 = vmatpush.msra.mxu0 %v5646
    %v5648 = vand.u32 %v191, 4294901760
    %5649 = vmatpush.msra.mxu0 %v5648
    %v5650 = vand.u32 %v189, 4294901760
    %5651 = vmatpush.msra.mxu0 %v5650
    %v5652 = vand.u32 %v61, 4294901760
    %v5653 = vsub.f32 %v61, %v5652
    %v5654 = vand.u32 %v5653, 4294901760
    %v5655 = vsub.f32 %v5653, %v5654
    %v5656 = vand.u32 %v5655, 4294901760
    %5657 = vmatmul.f32.gmra.mxu0 %v5656
    %v5658 = vpop.f32.mrf.mxu0
    %v5659 = vadd.f32 %v5430, %v5658
    %v5660 = vand.u32 %v63, 4294901760
    %v5661 = vsub.f32 %v63, %v5660
    %v5662 = vand.u32 %v5661, 4294901760
    %v5663 = vsub.f32 %v5661, %v5662
    %v5664 = vand.u32 %v5663, 4294901760
    %5665 = vmatmul.f32.gmra.mxu0 %v5664
    %v5666 = vpop.f32.mrf.mxu0
    %v5667 = vadd.f32 %v5434, %v5666
    %v5668 = vand.u32 %v65, 4294901760
    %v5669 = vsub.f32 %v65, %v5668
    %v5670 = vand.u32 %v5669, 4294901760
    %v5671 = vsub.f32 %v5669, %v5670
    %v5672 = vand.u32 %v5671, 4294901760
    %5673 = vmatmul.f32.gmra.mxu0 %v5672
    %v5674 = vpop.f32.mrf.mxu0
    %v5675 = vadd.f32 %v5438, %v5674
    %v5676 = vand.u32 %v67, 4294901760
    %v5677 = vsub.f32 %v67, %v5676
    %v5678 = vand.u32 %v5677, 4294901760
    %v5679 = vsub.f32 %v5677, %v5678
    %v5680 = vand.u32 %v5679, 4294901760
    %5681 = vmatmul.f32.gmra.mxu0 %v5680
    %v5682 = vpop.f32.mrf.mxu0
    %v5683 = vadd.f32 %v5442, %v5682
    %v5684 = vand.u32 %v69, 4294901760
    %v5685 = vsub.f32 %v69, %v5684
    %v5686 = vand.u32 %v5685, 4294901760
    %v5687 = vsub.f32 %v5685, %v5686
    %v5688 = vand.u32 %v5687, 4294901760
    %5689 = vmatmul.f32.gmra.mxu0 %v5688
    %v5690 = vpop.f32.mrf.mxu0
    %v5691 = vadd.f32 %v5446, %v5690
    %v5692 = vand.u32 %v71, 4294901760
    %v5693 = vsub.f32 %v71, %v5692
    %v5694 = vand.u32 %v5693, 4294901760
    %v5695 = vsub.f32 %v5693, %v5694
    %v5696 = vand.u32 %v5695, 4294901760
    %5697 = vmatmul.f32.gmra.mxu0 %v5696
    %v5698 = vpop.f32.mrf.mxu0
    %v5699 = vadd.f32 %v5450, %v5698
    %v5700 = vand.u32 %v73, 4294901760
    %v5701 = vsub.f32 %v73, %v5700
    %v5702 = vand.u32 %v5701, 4294901760
    %v5703 = vsub.f32 %v5701, %v5702
    %v5704 = vand.u32 %v5703, 4294901760
    %5705 = vmatmul.f32.gmra.mxu0 %v5704
    %v5706 = vpop.f32.mrf.mxu0
    %v5707 = vadd.f32 %v5454, %v5706
    %v5708 = vand.u32 %v75, 4294901760
    %v5709 = vsub.f32 %v75, %v5708
    %v5710 = vand.u32 %v5709, 4294901760
    %v5711 = vsub.f32 %v5709, %v5710
    %v5712 = vand.u32 %v5711, 4294901760
    %5713 = vmatmul.f32.gmra.mxu0 %v5712
    %v5714 = vpop.f32.mrf.mxu0
    %v5715 = vadd.f32 %v5458, %v5714
    %v5716 = vand.u32 %v77, 4294901760
    %v5717 = vsub.f32 %v77, %v5716
    %v5718 = vand.u32 %v5717, 4294901760
    %v5719 = vsub.f32 %v5717, %v5718
    %v5720 = vand.u32 %v5719, 4294901760
    %5721 = vmatmul.f32.gmra.mxu0 %v5720
    %v5722 = vpop.f32.mrf.mxu0
    %v5723 = vadd.f32 %v5462, %v5722
    %v5724 = vand.u32 %v79, 4294901760
    %v5725 = vsub.f32 %v79, %v5724
    %v5726 = vand.u32 %v5725, 4294901760
    %v5727 = vsub.f32 %v5725, %v5726
    %v5728 = vand.u32 %v5727, 4294901760
    %5729 = vmatmul.f32.gmra.mxu0 %v5728
    %v5730 = vpop.f32.mrf.mxu0
    %v5731 = vadd.f32 %v5466, %v5730
    %v5732 = vand.u32 %v81, 4294901760
    %v5733 = vsub.f32 %v81, %v5732
    %v5734 = vand.u32 %v5733, 4294901760
    %v5735 = vsub.f32 %v5733, %v5734
    %v5736 = vand.u32 %v5735, 4294901760
    %5737 = vmatmul.f32.gmra.mxu0 %v5736
    %v5738 = vpop.f32.mrf.mxu0
    %v5739 = vadd.f32 %v5470, %v5738
    %v5740 = vand.u32 %v83, 4294901760
    %v5741 = vsub.f32 %v83, %v5740
    %v5742 = vand.u32 %v5741, 4294901760
    %v5743 = vsub.f32 %v5741, %v5742
    %v5744 = vand.u32 %v5743, 4294901760
    %5745 = vmatmul.f32.gmra.mxu0 %v5744
    %v5746 = vpop.f32.mrf.mxu0
    %v5747 = vadd.f32 %v5474, %v5746
    %v5748 = vand.u32 %v85, 4294901760
    %v5749 = vsub.f32 %v85, %v5748
    %v5750 = vand.u32 %v5749, 4294901760
    %v5751 = vsub.f32 %v5749, %v5750
    %v5752 = vand.u32 %v5751, 4294901760
    %5753 = vmatmul.f32.gmra.mxu0 %v5752
    %v5754 = vpop.f32.mrf.mxu0
    %v5755 = vadd.f32 %v5478, %v5754
    %v5756 = vand.u32 %v87, 4294901760
    %v5757 = vsub.f32 %v87, %v5756
    %v5758 = vand.u32 %v5757, 4294901760
    %v5759 = vsub.f32 %v5757, %v5758
    %v5760 = vand.u32 %v5759, 4294901760
    %5761 = vmatmul.f32.gmra.mxu0 %v5760
    %v5762 = vpop.f32.mrf.mxu0
    %v5763 = vadd.f32 %v5482, %v5762
    %v5764 = vand.u32 %v89, 4294901760
    %v5765 = vsub.f32 %v89, %v5764
    %v5766 = vand.u32 %v5765, 4294901760
    %v5767 = vsub.f32 %v5765, %v5766
    %v5768 = vand.u32 %v5767, 4294901760
    %5769 = vmatmul.f32.gmra.mxu0 %v5768
    %v5770 = vpop.f32.mrf.mxu0
    %v5771 = vadd.f32 %v5486, %v5770
    %v5772 = vand.u32 %v91, 4294901760
    %v5773 = vsub.f32 %v91, %v5772
    %v5774 = vand.u32 %v5773, 4294901760
    %v5775 = vsub.f32 %v5773, %v5774
    %v5776 = vand.u32 %v5775, 4294901760
    %5777 = vmatmul.f32.gmra.mxu0 %v5776
    %v5778 = vpop.f32.mrf.mxu0
    %v5779 = vadd.f32 %v5490, %v5778
    %v5780 = vand.u32 %v93, 4294901760
    %v5781 = vsub.f32 %v93, %v5780
    %v5782 = vand.u32 %v5781, 4294901760
    %v5783 = vsub.f32 %v5781, %v5782
    %v5784 = vand.u32 %v5783, 4294901760
    %5785 = vmatmul.f32.gmra.mxu0 %v5784
    %v5786 = vpop.f32.mrf.mxu0
    %v5787 = vadd.f32 %v5494, %v5786
    %v5788 = vand.u32 %v95, 4294901760
    %v5789 = vsub.f32 %v95, %v5788
    %v5790 = vand.u32 %v5789, 4294901760
    %v5791 = vsub.f32 %v5789, %v5790
    %v5792 = vand.u32 %v5791, 4294901760
    %5793 = vmatmul.f32.gmra.mxu0 %v5792
    %v5794 = vpop.f32.mrf.mxu0
    %v5795 = vadd.f32 %v5498, %v5794
    %v5796 = vand.u32 %v97, 4294901760
    %v5797 = vsub.f32 %v97, %v5796
    %v5798 = vand.u32 %v5797, 4294901760
    %v5799 = vsub.f32 %v5797, %v5798
    %v5800 = vand.u32 %v5799, 4294901760
    %5801 = vmatmul.f32.gmra.mxu0 %v5800
    %v5802 = vpop.f32.mrf.mxu0
    %v5803 = vadd.f32 %v5502, %v5802
    %v5804 = vand.u32 %v99, 4294901760
    %v5805 = vsub.f32 %v99, %v5804
    %v5806 = vand.u32 %v5805, 4294901760
    %v5807 = vsub.f32 %v5805, %v5806
    %v5808 = vand.u32 %v5807, 4294901760
    %5809 = vmatmul.f32.gmra.mxu0 %v5808
    %v5810 = vpop.f32.mrf.mxu0
    %v5811 = vadd.f32 %v5506, %v5810
    %v5812 = vand.u32 %v101, 4294901760
    %v5813 = vsub.f32 %v101, %v5812
    %v5814 = vand.u32 %v5813, 4294901760
    %v5815 = vsub.f32 %v5813, %v5814
    %v5816 = vand.u32 %v5815, 4294901760
    %5817 = vmatmul.f32.gmra.mxu0 %v5816
    %v5818 = vpop.f32.mrf.mxu0
    %v5819 = vadd.f32 %v5510, %v5818
    %v5820 = vand.u32 %v103, 4294901760
    %v5821 = vsub.f32 %v103, %v5820
    %v5822 = vand.u32 %v5821, 4294901760
    %v5823 = vsub.f32 %v5821, %v5822
    %v5824 = vand.u32 %v5823, 4294901760
    %5825 = vmatmul.f32.gmra.mxu0 %v5824
    %v5826 = vpop.f32.mrf.mxu0
    %v5827 = vadd.f32 %v5514, %v5826
    %v5828 = vand.u32 %v105, 4294901760
    %v5829 = vsub.f32 %v105, %v5828
    %v5830 = vand.u32 %v5829, 4294901760
    %v5831 = vsub.f32 %v5829, %v5830
    %v5832 = vand.u32 %v5831, 4294901760
    %5833 = vmatmul.f32.gmra.mxu0 %v5832
    %v5834 = vpop.f32.mrf.mxu0
    %v5835 = vadd.f32 %v5518, %v5834
    %v5836 = vand.u32 %v107, 4294901760
    %v5837 = vsub.f32 %v107, %v5836
    %v5838 = vand.u32 %v5837, 4294901760
    %v5839 = vsub.f32 %v5837, %v5838
    %v5840 = vand.u32 %v5839, 4294901760
    %5841 = vmatmul.f32.gmra.mxu0 %v5840
    %v5842 = vpop.f32.mrf.mxu0
    %v5843 = vadd.f32 %v5522, %v5842
    %v5844 = vand.u32 %v109, 4294901760
    %v5845 = vsub.f32 %v109, %v5844
    %v5846 = vand.u32 %v5845, 4294901760
    %v5847 = vsub.f32 %v5845, %v5846
    %v5848 = vand.u32 %v5847, 4294901760
    %5849 = vmatmul.f32.gmra.mxu0 %v5848
    %v5850 = vpop.f32.mrf.mxu0
    %v5851 = vadd.f32 %v5526, %v5850
    %v5852 = vand.u32 %v111, 4294901760
    %v5853 = vsub.f32 %v111, %v5852
    %v5854 = vand.u32 %v5853, 4294901760
    %v5855 = vsub.f32 %v5853, %v5854
    %v5856 = vand.u32 %v5855, 4294901760
    %5857 = vmatmul.f32.gmra.mxu0 %v5856
    %v5858 = vpop.f32.mrf.mxu0
    %v5859 = vadd.f32 %v5530, %v5858
    %v5860 = vand.u32 %v113, 4294901760
    %v5861 = vsub.f32 %v113, %v5860
    %v5862 = vand.u32 %v5861, 4294901760
    %v5863 = vsub.f32 %v5861, %v5862
    %v5864 = vand.u32 %v5863, 4294901760
    %5865 = vmatmul.f32.gmra.mxu0 %v5864
    %v5866 = vpop.f32.mrf.mxu0
    %v5867 = vadd.f32 %v5534, %v5866
    %v5868 = vand.u32 %v115, 4294901760
    %v5869 = vsub.f32 %v115, %v5868
    %v5870 = vand.u32 %v5869, 4294901760
    %v5871 = vsub.f32 %v5869, %v5870
    %v5872 = vand.u32 %v5871, 4294901760
    %5873 = vmatmul.f32.gmra.mxu0 %v5872
    %v5874 = vpop.f32.mrf.mxu0
    %v5875 = vadd.f32 %v5538, %v5874
    %v5876 = vand.u32 %v117, 4294901760
    %v5877 = vsub.f32 %v117, %v5876
    %v5878 = vand.u32 %v5877, 4294901760
    %v5879 = vsub.f32 %v5877, %v5878
    %v5880 = vand.u32 %v5879, 4294901760
    %5881 = vmatmul.f32.gmra.mxu0 %v5880
    %v5882 = vpop.f32.mrf.mxu0
    %v5883 = vadd.f32 %v5542, %v5882
    %v5884 = vand.u32 %v119, 4294901760
    %v5885 = vsub.f32 %v119, %v5884
    %v5886 = vand.u32 %v5885, 4294901760
    %v5887 = vsub.f32 %v5885, %v5886
    %v5888 = vand.u32 %v5887, 4294901760
    %5889 = vmatmul.f32.gmra.mxu0 %v5888
    %v5890 = vpop.f32.mrf.mxu0
    %v5891 = vadd.f32 %v5546, %v5890
    %v5892 = vand.u32 %v121, 4294901760
    %v5893 = vsub.f32 %v121, %v5892
    %v5894 = vand.u32 %v5893, 4294901760
    %v5895 = vsub.f32 %v5893, %v5894
    %v5896 = vand.u32 %v5895, 4294901760
    %5897 = vmatmul.f32.gmra.mxu0 %v5896
    %v5898 = vpop.f32.mrf.mxu0
    %v5899 = vadd.f32 %v5550, %v5898
    %v5900 = vand.u32 %v123, 4294901760
    %v5901 = vsub.f32 %v123, %v5900
    %v5902 = vand.u32 %v5901, 4294901760
    %v5903 = vsub.f32 %v5901, %v5902
    %v5904 = vand.u32 %v5903, 4294901760
    %5905 = vmatmul.f32.gmra.mxu0 %v5904
    %v5906 = vpop.f32.mrf.mxu0
    %v5907 = vadd.f32 %v5554, %v5906
    %v5908 = vand.u32 %v125, 4294901760
    %v5909 = vsub.f32 %v125, %v5908
    %v5910 = vand.u32 %v5909, 4294901760
    %v5911 = vsub.f32 %v5909, %v5910
    %v5912 = vand.u32 %v5911, 4294901760
    %5913 = vmatmul.f32.gmra.mxu0 %v5912
    %v5914 = vpop.f32.mrf.mxu0
    %v5915 = vadd.f32 %v5558, %v5914
    %v5916 = vand.u32 %v127, 4294901760
    %v5917 = vsub.f32 %v127, %v5916
    %v5918 = vand.u32 %v5917, 4294901760
    %v5919 = vsub.f32 %v5917, %v5918
    %v5920 = vand.u32 %v5919, 4294901760
    %5921 = vmatmul.f32.gmra.mxu0 %v5920
    %v5922 = vpop.f32.mrf.mxu0
    %v5923 = vadd.f32 %v5562, %v5922
    %v5924 = vand.u32 %v129, 4294901760
    %v5925 = vsub.f32 %v129, %v5924
    %v5926 = vand.u32 %v5925, 4294901760
    %v5927 = vsub.f32 %v5925, %v5926
    %v5928 = vand.u32 %v5927, 4294901760
    %5929 = vmatmul.f32.gmra.mxu0 %v5928
    %v5930 = vpop.f32.mrf.mxu0
    %v5931 = vadd.f32 %v5566, %v5930
    %v5932 = vand.u32 %v131, 4294901760
    %v5933 = vsub.f32 %v131, %v5932
    %v5934 = vand.u32 %v5933, 4294901760
    %v5935 = vsub.f32 %v5933, %v5934
    %v5936 = vand.u32 %v5935, 4294901760
    %5937 = vmatmul.f32.gmra.mxu0 %v5936
    %v5938 = vpop.f32.mrf.mxu0
    %v5939 = vadd.f32 %v5570, %v5938
    %v5940 = vand.u32 %v133, 4294901760
    %v5941 = vsub.f32 %v133, %v5940
    %v5942 = vand.u32 %v5941, 4294901760
    %v5943 = vsub.f32 %v5941, %v5942
    %v5944 = vand.u32 %v5943, 4294901760
    %5945 = vmatmul.f32.gmra.mxu0 %v5944
    %v5946 = vpop.f32.mrf.mxu0
    %v5947 = vadd.f32 %v5574, %v5946
    %v5948 = vand.u32 %v135, 4294901760
    %v5949 = vsub.f32 %v135, %v5948
    %v5950 = vand.u32 %v5949, 4294901760
    %v5951 = vsub.f32 %v5949, %v5950
    %v5952 = vand.u32 %v5951, 4294901760
    %5953 = vmatmul.f32.gmra.mxu0 %v5952
    %v5954 = vpop.f32.mrf.mxu0
    %v5955 = vadd.f32 %v5578, %v5954
    %v5956 = vand.u32 %v137, 4294901760
    %v5957 = vsub.f32 %v137, %v5956
    %v5958 = vand.u32 %v5957, 4294901760
    %v5959 = vsub.f32 %v5957, %v5958
    %v5960 = vand.u32 %v5959, 4294901760
    %5961 = vmatmul.f32.gmra.mxu0 %v5960
    %v5962 = vpop.f32.mrf.mxu0
    %v5963 = vadd.f32 %v5582, %v5962
    %v5964 = vand.u32 %v139, 4294901760
    %v5965 = vsub.f32 %v139, %v5964
    %v5966 = vand.u32 %v5965, 4294901760
    %v5967 = vsub.f32 %v5965, %v5966
    %v5968 = vand.u32 %v5967, 4294901760
    %5969 = vmatmul.f32.gmra.mxu0 %v5968
    %v5970 = vpop.f32.mrf.mxu0
    %v5971 = vadd.f32 %v5586, %v5970
    %v5972 = vand.u32 %v141, 4294901760
    %v5973 = vsub.f32 %v141, %v5972
    %v5974 = vand.u32 %v5973, 4294901760
    %v5975 = vsub.f32 %v5973, %v5974
    %v5976 = vand.u32 %v5975, 4294901760
    %5977 = vmatmul.f32.gmra.mxu0 %v5976
    %v5978 = vpop.f32.mrf.mxu0
    %v5979 = vadd.f32 %v5590, %v5978
    %v5980 = vand.u32 %v143, 4294901760
    %v5981 = vsub.f32 %v143, %v5980
    %v5982 = vand.u32 %v5981, 4294901760
    %v5983 = vsub.f32 %v5981, %v5982
    %v5984 = vand.u32 %v5983, 4294901760
    %5985 = vmatmul.f32.gmra.mxu0 %v5984
    %v5986 = vpop.f32.mrf.mxu0
    %v5987 = vadd.f32 %v5594, %v5986
    %v5988 = vand.u32 %v145, 4294901760
    %v5989 = vsub.f32 %v145, %v5988
    %v5990 = vand.u32 %v5989, 4294901760
    %v5991 = vsub.f32 %v5989, %v5990
    %v5992 = vand.u32 %v5991, 4294901760
    %5993 = vmatmul.f32.gmra.mxu0 %v5992
    %v5994 = vpop.f32.mrf.mxu0
    %v5995 = vadd.f32 %v5598, %v5994
    %v5996 = vand.u32 %v147, 4294901760
    %v5997 = vsub.f32 %v147, %v5996
    %v5998 = vand.u32 %v5997, 4294901760
    %v5999 = vsub.f32 %v5997, %v5998
    %v6000 = vand.u32 %v5999, 4294901760
    %6001 = vmatmul.f32.gmra.mxu0 %v6000
    %v6002 = vpop.f32.mrf.mxu0
    %v6003 = vadd.f32 %v5602, %v6002
    %v6004 = vand.u32 %v149, 4294901760
    %v6005 = vsub.f32 %v149, %v6004
    %v6006 = vand.u32 %v6005, 4294901760
    %v6007 = vsub.f32 %v6005, %v6006
    %v6008 = vand.u32 %v6007, 4294901760
    %6009 = vmatmul.f32.gmra.mxu0 %v6008
    %v6010 = vpop.f32.mrf.mxu0
    %v6011 = vadd.f32 %v5606, %v6010
    %v6012 = vand.u32 %v151, 4294901760
    %v6013 = vsub.f32 %v151, %v6012
    %v6014 = vand.u32 %v6013, 4294901760
    %v6015 = vsub.f32 %v6013, %v6014
    %v6016 = vand.u32 %v6015, 4294901760
    %6017 = vmatmul.f32.gmra.mxu0 %v6016
    %v6018 = vpop.f32.mrf.mxu0
    %v6019 = vadd.f32 %v5610, %v6018
    %v6020 = vand.u32 %v153, 4294901760
    %v6021 = vsub.f32 %v153, %v6020
    %v6022 = vand.u32 %v6021, 4294901760
    %v6023 = vsub.f32 %v6021, %v6022
    %v6024 = vand.u32 %v6023, 4294901760
    %6025 = vmatmul.f32.gmra.mxu0 %v6024
    %v6026 = vpop.f32.mrf.mxu0
    %v6027 = vadd.f32 %v5614, %v6026
    %v6028 = vand.u32 %v155, 4294901760
    %v6029 = vsub.f32 %v155, %v6028
    %v6030 = vand.u32 %v6029, 4294901760
    %v6031 = vsub.f32 %v6029, %v6030
    %v6032 = vand.u32 %v6031, 4294901760
    %6033 = vmatmul.f32.gmra.mxu0 %v6032
    %v6034 = vpop.f32.mrf.mxu0
    %v6035 = vadd.f32 %v5618, %v6034
    %6036 = vdwg.mxu0
    %v6037 = vand.u32 %v219, 4294901760
    %v6038 = vsub.f32 %v219, %v6037
    %v6039 = vand.u32 %v6038, 4294901760
    %v6040 = vsub.f32 %v6038, %v6039
    %v6041 = vand.u32 %v6040, 4294901760
    %6042 = vmatpush.msra.mxu0 %v6041
    %v6043 = vand.u32 %v217, 4294901760
    %v6044 = vsub.f32 %v217, %v6043
    %v6045 = vand.u32 %v6044, 4294901760
    %v6046 = vsub.f32 %v6044, %v6045
    %v6047 = vand.u32 %v6046, 4294901760
    %6048 = vmatpush.msra.mxu0 %v6047
    %v6049 = vand.u32 %v215, 4294901760
    %v6050 = vsub.f32 %v215, %v6049
    %v6051 = vand.u32 %v6050, 4294901760
    %v6052 = vsub.f32 %v6050, %v6051
    %v6053 = vand.u32 %v6052, 4294901760
    %6054 = vmatpush.msra.mxu0 %v6053
    %v6055 = vand.u32 %v213, 4294901760
    %v6056 = vsub.f32 %v213, %v6055
    %v6057 = vand.u32 %v6056, 4294901760
    %v6058 = vsub.f32 %v6056, %v6057
    %v6059 = vand.u32 %v6058, 4294901760
    %6060 = vmatpush.msra.mxu0 %v6059
    %v6061 = vand.u32 %v211, 4294901760
    %v6062 = vsub.f32 %v211, %v6061
    %v6063 = vand.u32 %v6062, 4294901760
    %v6064 = vsub.f32 %v6062, %v6063
    %v6065 = vand.u32 %v6064, 4294901760
    %6066 = vmatpush.msra.mxu0 %v6065
    %v6067 = vand.u32 %v209, 4294901760
    %v6068 = vsub.f32 %v209, %v6067
    %v6069 = vand.u32 %v6068, 4294901760
    %v6070 = vsub.f32 %v6068, %v6069
    %v6071 = vand.u32 %v6070, 4294901760
    %6072 = vmatpush.msra.mxu0 %v6071
    %v6073 = vand.u32 %v207, 4294901760
    %v6074 = vsub.f32 %v207, %v6073
    %v6075 = vand.u32 %v6074, 4294901760
    %v6076 = vsub.f32 %v6074, %v6075
    %v6077 = vand.u32 %v6076, 4294901760
    %6078 = vmatpush.msra.mxu0 %v6077
    %v6079 = vand.u32 %v205, 4294901760
    %v6080 = vsub.f32 %v205, %v6079
    %v6081 = vand.u32 %v6080, 4294901760
    %v6082 = vsub.f32 %v6080, %v6081
    %v6083 = vand.u32 %v6082, 4294901760
    %6084 = vmatpush.msra.mxu0 %v6083
    %v6085 = vand.u32 %v203, 4294901760
    %v6086 = vsub.f32 %v203, %v6085
    %v6087 = vand.u32 %v6086, 4294901760
    %v6088 = vsub.f32 %v6086, %v6087
    %v6089 = vand.u32 %v6088, 4294901760
    %6090 = vmatpush.msra.mxu0 %v6089
    %v6091 = vand.u32 %v201, 4294901760
    %v6092 = vsub.f32 %v201, %v6091
    %v6093 = vand.u32 %v6092, 4294901760
    %v6094 = vsub.f32 %v6092, %v6093
    %v6095 = vand.u32 %v6094, 4294901760
    %6096 = vmatpush.msra.mxu0 %v6095
    %v6097 = vand.u32 %v199, 4294901760
    %v6098 = vsub.f32 %v199, %v6097
    %v6099 = vand.u32 %v6098, 4294901760
    %v6100 = vsub.f32 %v6098, %v6099
    %v6101 = vand.u32 %v6100, 4294901760
    %6102 = vmatpush.msra.mxu0 %v6101
    %v6103 = vand.u32 %v197, 4294901760
    %v6104 = vsub.f32 %v197, %v6103
    %v6105 = vand.u32 %v6104, 4294901760
    %v6106 = vsub.f32 %v6104, %v6105
    %v6107 = vand.u32 %v6106, 4294901760
    %6108 = vmatpush.msra.mxu0 %v6107
    %v6109 = vand.u32 %v195, 4294901760
    %v6110 = vsub.f32 %v195, %v6109
    %v6111 = vand.u32 %v6110, 4294901760
    %v6112 = vsub.f32 %v6110, %v6111
    %v6113 = vand.u32 %v6112, 4294901760
    %6114 = vmatpush.msra.mxu0 %v6113
    %v6115 = vand.u32 %v193, 4294901760
    %v6116 = vsub.f32 %v193, %v6115
    %v6117 = vand.u32 %v6116, 4294901760
    %v6118 = vsub.f32 %v6116, %v6117
    %v6119 = vand.u32 %v6118, 4294901760
    %6120 = vmatpush.msra.mxu0 %v6119
    %v6121 = vand.u32 %v191, 4294901760
    %v6122 = vsub.f32 %v191, %v6121
    %v6123 = vand.u32 %v6122, 4294901760
    %v6124 = vsub.f32 %v6122, %v6123
    %v6125 = vand.u32 %v6124, 4294901760
    %6126 = vmatpush.msra.mxu0 %v6125
    %v6127 = vand.u32 %v189, 4294901760
    %v6128 = vsub.f32 %v189, %v6127
    %v6129 = vand.u32 %v6128, 4294901760
    %v6130 = vsub.f32 %v6128, %v6129
    %v6131 = vand.u32 %v6130, 4294901760
    %6132 = vmatpush.msra.mxu0 %v6131
    %v6133 = vand.u32 %v61, 4294901760
    %6134 = vmatmul.f32.gmra.mxu0 %v6133
    %v6135 = vpop.f32.mrf.mxu0
    %v6136 = vadd.f32 %v5659, %v6135
    %v6137 = vand.u32 %v63, 4294901760
    %6138 = vmatmul.f32.gmra.mxu0 %v6137
    %v6139 = vpop.f32.mrf.mxu0
    %v6140 = vadd.f32 %v5667, %v6139
    %v6141 = vand.u32 %v65, 4294901760
    %6142 = vmatmul.f32.gmra.mxu0 %v6141
    %v6143 = vpop.f32.mrf.mxu0
    %v6144 = vadd.f32 %v5675, %v6143
    %v6145 = vand.u32 %v67, 4294901760
    %6146 = vmatmul.f32.gmra.mxu0 %v6145
    %v6147 = vpop.f32.mrf.mxu0
    %v6148 = vadd.f32 %v5683, %v6147
    %v6149 = vand.u32 %v69, 4294901760
    %6150 = vmatmul.f32.gmra.mxu0 %v6149
    %v6151 = vpop.f32.mrf.mxu0
    %v6152 = vadd.f32 %v5691, %v6151
    %v6153 = vand.u32 %v71, 4294901760
    %6154 = vmatmul.f32.gmra.mxu0 %v6153
    %v6155 = vpop.f32.mrf.mxu0
    %v6156 = vadd.f32 %v5699, %v6155
    %v6157 = vand.u32 %v73, 4294901760
    %6158 = vmatmul.f32.gmra.mxu0 %v6157
    %v6159 = vpop.f32.mrf.mxu0
    %v6160 = vadd.f32 %v5707, %v6159
    %v6161 = vand.u32 %v75, 4294901760
    %6162 = vmatmul.f32.gmra.mxu0 %v6161
    %v6163 = vpop.f32.mrf.mxu0
    %v6164 = vadd.f32 %v5715, %v6163
    %v6165 = vand.u32 %v77, 4294901760
    %6166 = vmatmul.f32.gmra.mxu0 %v6165
    %v6167 = vpop.f32.mrf.mxu0
    %v6168 = vadd.f32 %v5723, %v6167
    %v6169 = vand.u32 %v79, 4294901760
    %6170 = vmatmul.f32.gmra.mxu0 %v6169
    %v6171 = vpop.f32.mrf.mxu0
    %v6172 = vadd.f32 %v5731, %v6171
    %v6173 = vand.u32 %v81, 4294901760
    %6174 = vmatmul.f32.gmra.mxu0 %v6173
    %v6175 = vpop.f32.mrf.mxu0
    %v6176 = vadd.f32 %v5739, %v6175
    %v6177 = vand.u32 %v83, 4294901760
    %6178 = vmatmul.f32.gmra.mxu0 %v6177
    %v6179 = vpop.f32.mrf.mxu0
    %v6180 = vadd.f32 %v5747, %v6179
    %v6181 = vand.u32 %v85, 4294901760
    %6182 = vmatmul.f32.gmra.mxu0 %v6181
    %v6183 = vpop.f32.mrf.mxu0
    %v6184 = vadd.f32 %v5755, %v6183
    %v6185 = vand.u32 %v87, 4294901760
    %6186 = vmatmul.f32.gmra.mxu0 %v6185
    %v6187 = vpop.f32.mrf.mxu0
    %v6188 = vadd.f32 %v5763, %v6187
    %v6189 = vand.u32 %v89, 4294901760
    %6190 = vmatmul.f32.gmra.mxu0 %v6189
    %v6191 = vpop.f32.mrf.mxu0
    %v6192 = vadd.f32 %v5771, %v6191
    %v6193 = vand.u32 %v91, 4294901760
    %6194 = vmatmul.f32.gmra.mxu0 %v6193
    %v6195 = vpop.f32.mrf.mxu0
    %v6196 = vadd.f32 %v5779, %v6195
    %v6197 = vand.u32 %v93, 4294901760
    %6198 = vmatmul.f32.gmra.mxu0 %v6197
    %v6199 = vpop.f32.mrf.mxu0
    %v6200 = vadd.f32 %v5787, %v6199
    %v6201 = vand.u32 %v95, 4294901760
    %6202 = vmatmul.f32.gmra.mxu0 %v6201
    %v6203 = vpop.f32.mrf.mxu0
    %v6204 = vadd.f32 %v5795, %v6203
    %v6205 = vand.u32 %v97, 4294901760
    %6206 = vmatmul.f32.gmra.mxu0 %v6205
    %v6207 = vpop.f32.mrf.mxu0
    %v6208 = vadd.f32 %v5803, %v6207
    %v6209 = vand.u32 %v99, 4294901760
    %6210 = vmatmul.f32.gmra.mxu0 %v6209
    %v6211 = vpop.f32.mrf.mxu0
    %v6212 = vadd.f32 %v5811, %v6211
    %v6213 = vand.u32 %v101, 4294901760
    %6214 = vmatmul.f32.gmra.mxu0 %v6213
    %v6215 = vpop.f32.mrf.mxu0
    %v6216 = vadd.f32 %v5819, %v6215
    %v6217 = vand.u32 %v103, 4294901760
    %6218 = vmatmul.f32.gmra.mxu0 %v6217
    %v6219 = vpop.f32.mrf.mxu0
    %v6220 = vadd.f32 %v5827, %v6219
    %v6221 = vand.u32 %v105, 4294901760
    %6222 = vmatmul.f32.gmra.mxu0 %v6221
    %v6223 = vpop.f32.mrf.mxu0
    %v6224 = vadd.f32 %v5835, %v6223
    %v6225 = vand.u32 %v107, 4294901760
    %6226 = vmatmul.f32.gmra.mxu0 %v6225
    %v6227 = vpop.f32.mrf.mxu0
    %v6228 = vadd.f32 %v5843, %v6227
    %v6229 = vand.u32 %v109, 4294901760
    %6230 = vmatmul.f32.gmra.mxu0 %v6229
    %v6231 = vpop.f32.mrf.mxu0
    %v6232 = vadd.f32 %v5851, %v6231
    %v6233 = vand.u32 %v111, 4294901760
    %6234 = vmatmul.f32.gmra.mxu0 %v6233
    %v6235 = vpop.f32.mrf.mxu0
    %v6236 = vadd.f32 %v5859, %v6235
    %v6237 = vand.u32 %v113, 4294901760
    %6238 = vmatmul.f32.gmra.mxu0 %v6237
    %v6239 = vpop.f32.mrf.mxu0
    %v6240 = vadd.f32 %v5867, %v6239
    %v6241 = vand.u32 %v115, 4294901760
    %6242 = vmatmul.f32.gmra.mxu0 %v6241
    %v6243 = vpop.f32.mrf.mxu0
    %v6244 = vadd.f32 %v5875, %v6243
    %v6245 = vand.u32 %v117, 4294901760
    %6246 = vmatmul.f32.gmra.mxu0 %v6245
    %v6247 = vpop.f32.mrf.mxu0
    %v6248 = vadd.f32 %v5883, %v6247
    %v6249 = vand.u32 %v119, 4294901760
    %6250 = vmatmul.f32.gmra.mxu0 %v6249
    %v6251 = vpop.f32.mrf.mxu0
    %v6252 = vadd.f32 %v5891, %v6251
    %v6253 = vand.u32 %v121, 4294901760
    %6254 = vmatmul.f32.gmra.mxu0 %v6253
    %v6255 = vpop.f32.mrf.mxu0
    %v6256 = vadd.f32 %v5899, %v6255
    %v6257 = vand.u32 %v123, 4294901760
    %6258 = vmatmul.f32.gmra.mxu0 %v6257
    %v6259 = vpop.f32.mrf.mxu0
    %v6260 = vadd.f32 %v5907, %v6259
    %v6261 = vand.u32 %v125, 4294901760
    %6262 = vmatmul.f32.gmra.mxu0 %v6261
    %v6263 = vpop.f32.mrf.mxu0
    %v6264 = vadd.f32 %v5915, %v6263
    %v6265 = vand.u32 %v127, 4294901760
    %6266 = vmatmul.f32.gmra.mxu0 %v6265
    %v6267 = vpop.f32.mrf.mxu0
    %v6268 = vadd.f32 %v5923, %v6267
    %v6269 = vand.u32 %v129, 4294901760
    %6270 = vmatmul.f32.gmra.mxu0 %v6269
    %v6271 = vpop.f32.mrf.mxu0
    %v6272 = vadd.f32 %v5931, %v6271
    %v6273 = vand.u32 %v131, 4294901760
    %6274 = vmatmul.f32.gmra.mxu0 %v6273
    %v6275 = vpop.f32.mrf.mxu0
    %v6276 = vadd.f32 %v5939, %v6275
    %v6277 = vand.u32 %v133, 4294901760
    %6278 = vmatmul.f32.gmra.mxu0 %v6277
    %v6279 = vpop.f32.mrf.mxu0
    %v6280 = vadd.f32 %v5947, %v6279
    %v6281 = vand.u32 %v135, 4294901760
    %6282 = vmatmul.f32.gmra.mxu0 %v6281
    %v6283 = vpop.f32.mrf.mxu0
    %v6284 = vadd.f32 %v5955, %v6283
    %v6285 = vand.u32 %v137, 4294901760
    %6286 = vmatmul.f32.gmra.mxu0 %v6285
    %v6287 = vpop.f32.mrf.mxu0
    %v6288 = vadd.f32 %v5963, %v6287
    %v6289 = vand.u32 %v139, 4294901760
    %6290 = vmatmul.f32.gmra.mxu0 %v6289
    %v6291 = vpop.f32.mrf.mxu0
    %v6292 = vadd.f32 %v5971, %v6291
    %v6293 = vand.u32 %v141, 4294901760
    %6294 = vmatmul.f32.gmra.mxu0 %v6293
    %v6295 = vpop.f32.mrf.mxu0
    %v6296 = vadd.f32 %v5979, %v6295
    %v6297 = vand.u32 %v143, 4294901760
    %6298 = vmatmul.f32.gmra.mxu0 %v6297
    %v6299 = vpop.f32.mrf.mxu0
    %v6300 = vadd.f32 %v5987, %v6299
    %v6301 = vand.u32 %v145, 4294901760
    %6302 = vmatmul.f32.gmra.mxu0 %v6301
    %v6303 = vpop.f32.mrf.mxu0
    %v6304 = vadd.f32 %v5995, %v6303
    %v6305 = vand.u32 %v147, 4294901760
    %6306 = vmatmul.f32.gmra.mxu0 %v6305
    %v6307 = vpop.f32.mrf.mxu0
    %v6308 = vadd.f32 %v6003, %v6307
    %v6309 = vand.u32 %v149, 4294901760
    %6310 = vmatmul.f32.gmra.mxu0 %v6309
    %v6311 = vpop.f32.mrf.mxu0
    %v6312 = vadd.f32 %v6011, %v6311
    %v6313 = vand.u32 %v151, 4294901760
    %6314 = vmatmul.f32.gmra.mxu0 %v6313
    %v6315 = vpop.f32.mrf.mxu0
    %v6316 = vadd.f32 %v6019, %v6315
    %v6317 = vand.u32 %v153, 4294901760
    %6318 = vmatmul.f32.gmra.mxu0 %v6317
    %v6319 = vpop.f32.mrf.mxu0
    %v6320 = vadd.f32 %v6027, %v6319
    %v6321 = vand.u32 %v155, 4294901760
    %6322 = vmatmul.f32.gmra.mxu0 %v6321
    %v6323 = vpop.f32.mrf.mxu0
    %v6324 = vadd.f32 %v6035, %v6323
    %6325 = vdwg.mxu0
    %v6326 = vand.u32 %v219, 4294901760
    %v6327 = vsub.f32 %v219, %v6326
    %6328 = vmatpush.msra.mxu0 %v6327
    %v6329 = vand.u32 %v217, 4294901760
    %v6330 = vsub.f32 %v217, %v6329
    %6331 = vmatpush.msra.mxu0 %v6330
    %v6332 = vand.u32 %v215, 4294901760
    %v6333 = vsub.f32 %v215, %v6332
    %6334 = vmatpush.msra.mxu0 %v6333
    %v6335 = vand.u32 %v213, 4294901760
    %v6336 = vsub.f32 %v213, %v6335
    %6337 = vmatpush.msra.mxu0 %v6336
    %v6338 = vand.u32 %v211, 4294901760
    %v6339 = vsub.f32 %v211, %v6338
    %6340 = vmatpush.msra.mxu0 %v6339
    %v6341 = vand.u32 %v209, 4294901760
    %v6342 = vsub.f32 %v209, %v6341
    %6343 = vmatpush.msra.mxu0 %v6342
    %v6344 = vand.u32 %v207, 4294901760
    %v6345 = vsub.f32 %v207, %v6344
    %6346 = vmatpush.msra.mxu0 %v6345
    %v6347 = vand.u32 %v205, 4294901760
    %v6348 = vsub.f32 %v205, %v6347
    %6349 = vmatpush.msra.mxu0 %v6348
    %v6350 = vand.u32 %v203, 4294901760
    %v6351 = vsub.f32 %v203, %v6350
    %6352 = vmatpush.msra.mxu0 %v6351
    %v6353 = vand.u32 %v201, 4294901760
    %v6354 = vsub.f32 %v201, %v6353
    %6355 = vmatpush.msra.mxu0 %v6354
    %v6356 = vand.u32 %v199, 4294901760
    %v6357 = vsub.f32 %v199, %v6356
    %6358 = vmatpush.msra.mxu0 %v6357
    %v6359 = vand.u32 %v197, 4294901760
    %v6360 = vsub.f32 %v197, %v6359
    %6361 = vmatpush.msra.mxu0 %v6360
    %v6362 = vand.u32 %v195, 4294901760
    %v6363 = vsub.f32 %v195, %v6362
    %6364 = vmatpush.msra.mxu0 %v6363
    %v6365 = vand.u32 %v193, 4294901760
    %v6366 = vsub.f32 %v193, %v6365
    %6367 = vmatpush.msra.mxu0 %v6366
    %v6368 = vand.u32 %v191, 4294901760
    %v6369 = vsub.f32 %v191, %v6368
    %6370 = vmatpush.msra.mxu0 %v6369
    %v6371 = vand.u32 %v189, 4294901760
    %v6372 = vsub.f32 %v189, %v6371
    %6373 = vmatpush.msra.mxu0 %v6372
    %v6374 = vand.u32 %v61, 4294901760
    %v6375 = vsub.f32 %v61, %v6374
    %6376 = vmatmul.f32.gmra.mxu0 %v6375
    %v6377 = vpop.f32.mrf.mxu0
    %v6378 = vadd.f32 %v6136, %v6377
    %v6379 = vand.u32 %v63, 4294901760
    %v6380 = vsub.f32 %v63, %v6379
    %6381 = vmatmul.f32.gmra.mxu0 %v6380
    %v6382 = vpop.f32.mrf.mxu0
    %v6383 = vadd.f32 %v6140, %v6382
    %v6384 = vand.u32 %v65, 4294901760
    %v6385 = vsub.f32 %v65, %v6384
    %6386 = vmatmul.f32.gmra.mxu0 %v6385
    %v6387 = vpop.f32.mrf.mxu0
    %v6388 = vadd.f32 %v6144, %v6387
    %v6389 = vand.u32 %v67, 4294901760
    %v6390 = vsub.f32 %v67, %v6389
    %6391 = vmatmul.f32.gmra.mxu0 %v6390
    %v6392 = vpop.f32.mrf.mxu0
    %v6393 = vadd.f32 %v6148, %v6392
    %v6394 = vand.u32 %v69, 4294901760
    %v6395 = vsub.f32 %v69, %v6394
    %6396 = vmatmul.f32.gmra.mxu0 %v6395
    %v6397 = vpop.f32.mrf.mxu0
    %v6398 = vadd.f32 %v6152, %v6397
    %v6399 = vand.u32 %v71, 4294901760
    %v6400 = vsub.f32 %v71, %v6399
    %6401 = vmatmul.f32.gmra.mxu0 %v6400
    %v6402 = vpop.f32.mrf.mxu0
    %v6403 = vadd.f32 %v6156, %v6402
    %v6404 = vand.u32 %v73, 4294901760
    %v6405 = vsub.f32 %v73, %v6404
    %6406 = vmatmul.f32.gmra.mxu0 %v6405
    %v6407 = vpop.f32.mrf.mxu0
    %v6408 = vadd.f32 %v6160, %v6407
    %v6409 = vand.u32 %v75, 4294901760
    %v6410 = vsub.f32 %v75, %v6409
    %6411 = vmatmul.f32.gmra.mxu0 %v6410
    %v6412 = vpop.f32.mrf.mxu0
    %v6413 = vadd.f32 %v6164, %v6412
    %v6414 = vand.u32 %v77, 4294901760
    %v6415 = vsub.f32 %v77, %v6414
    %6416 = vmatmul.f32.gmra.mxu0 %v6415
    %v6417 = vpop.f32.mrf.mxu0
    %v6418 = vadd.f32 %v6168, %v6417
    %v6419 = vand.u32 %v79, 4294901760
    %v6420 = vsub.f32 %v79, %v6419
    %6421 = vmatmul.f32.gmra.mxu0 %v6420
    %v6422 = vpop.f32.mrf.mxu0
    %v6423 = vadd.f32 %v6172, %v6422
    %v6424 = vand.u32 %v81, 4294901760
    %v6425 = vsub.f32 %v81, %v6424
    %6426 = vmatmul.f32.gmra.mxu0 %v6425
    %v6427 = vpop.f32.mrf.mxu0
    %v6428 = vadd.f32 %v6176, %v6427
    %v6429 = vand.u32 %v83, 4294901760
    %v6430 = vsub.f32 %v83, %v6429
    %6431 = vmatmul.f32.gmra.mxu0 %v6430
    %v6432 = vpop.f32.mrf.mxu0
    %v6433 = vadd.f32 %v6180, %v6432
    %v6434 = vand.u32 %v85, 4294901760
    %v6435 = vsub.f32 %v85, %v6434
    %6436 = vmatmul.f32.gmra.mxu0 %v6435
    %v6437 = vpop.f32.mrf.mxu0
    %v6438 = vadd.f32 %v6184, %v6437
    %v6439 = vand.u32 %v87, 4294901760
    %v6440 = vsub.f32 %v87, %v6439
    %6441 = vmatmul.f32.gmra.mxu0 %v6440
    %v6442 = vpop.f32.mrf.mxu0
    %v6443 = vadd.f32 %v6188, %v6442
    %v6444 = vand.u32 %v89, 4294901760
    %v6445 = vsub.f32 %v89, %v6444
    %6446 = vmatmul.f32.gmra.mxu0 %v6445
    %v6447 = vpop.f32.mrf.mxu0
    %v6448 = vadd.f32 %v6192, %v6447
    %v6449 = vand.u32 %v91, 4294901760
    %v6450 = vsub.f32 %v91, %v6449
    %6451 = vmatmul.f32.gmra.mxu0 %v6450
    %v6452 = vpop.f32.mrf.mxu0
    %v6453 = vadd.f32 %v6196, %v6452
    %v6454 = vand.u32 %v93, 4294901760
    %v6455 = vsub.f32 %v93, %v6454
    %6456 = vmatmul.f32.gmra.mxu0 %v6455
    %v6457 = vpop.f32.mrf.mxu0
    %v6458 = vadd.f32 %v6200, %v6457
    %v6459 = vand.u32 %v95, 4294901760
    %v6460 = vsub.f32 %v95, %v6459
    %6461 = vmatmul.f32.gmra.mxu0 %v6460
    %v6462 = vpop.f32.mrf.mxu0
    %v6463 = vadd.f32 %v6204, %v6462
    %v6464 = vand.u32 %v97, 4294901760
    %v6465 = vsub.f32 %v97, %v6464
    %6466 = vmatmul.f32.gmra.mxu0 %v6465
    %v6467 = vpop.f32.mrf.mxu0
    %v6468 = vadd.f32 %v6208, %v6467
    %v6469 = vand.u32 %v99, 4294901760
    %v6470 = vsub.f32 %v99, %v6469
    %6471 = vmatmul.f32.gmra.mxu0 %v6470
    %v6472 = vpop.f32.mrf.mxu0
    %v6473 = vadd.f32 %v6212, %v6472
    %v6474 = vand.u32 %v101, 4294901760
    %v6475 = vsub.f32 %v101, %v6474
    %6476 = vmatmul.f32.gmra.mxu0 %v6475
    %v6477 = vpop.f32.mrf.mxu0
    %v6478 = vadd.f32 %v6216, %v6477
    %v6479 = vand.u32 %v103, 4294901760
    %v6480 = vsub.f32 %v103, %v6479
    %6481 = vmatmul.f32.gmra.mxu0 %v6480
    %v6482 = vpop.f32.mrf.mxu0
    %v6483 = vadd.f32 %v6220, %v6482
    %v6484 = vand.u32 %v105, 4294901760
    %v6485 = vsub.f32 %v105, %v6484
    %6486 = vmatmul.f32.gmra.mxu0 %v6485
    %v6487 = vpop.f32.mrf.mxu0
    %v6488 = vadd.f32 %v6224, %v6487
    %v6489 = vand.u32 %v107, 4294901760
    %v6490 = vsub.f32 %v107, %v6489
    %6491 = vmatmul.f32.gmra.mxu0 %v6490
    %v6492 = vpop.f32.mrf.mxu0
    %v6493 = vadd.f32 %v6228, %v6492
    %v6494 = vand.u32 %v109, 4294901760
    %v6495 = vsub.f32 %v109, %v6494
    %6496 = vmatmul.f32.gmra.mxu0 %v6495
    %v6497 = vpop.f32.mrf.mxu0
    %v6498 = vadd.f32 %v6232, %v6497
    %v6499 = vand.u32 %v111, 4294901760
    %v6500 = vsub.f32 %v111, %v6499
    %6501 = vmatmul.f32.gmra.mxu0 %v6500
    %v6502 = vpop.f32.mrf.mxu0
    %v6503 = vadd.f32 %v6236, %v6502
    %v6504 = vand.u32 %v113, 4294901760
    %v6505 = vsub.f32 %v113, %v6504
    %6506 = vmatmul.f32.gmra.mxu0 %v6505
    %v6507 = vpop.f32.mrf.mxu0
    %v6508 = vadd.f32 %v6240, %v6507
    %v6509 = vand.u32 %v115, 4294901760
    %v6510 = vsub.f32 %v115, %v6509
    %6511 = vmatmul.f32.gmra.mxu0 %v6510
    %v6512 = vpop.f32.mrf.mxu0
    %v6513 = vadd.f32 %v6244, %v6512
    %v6514 = vand.u32 %v117, 4294901760
    %v6515 = vsub.f32 %v117, %v6514
    %6516 = vmatmul.f32.gmra.mxu0 %v6515
    %v6517 = vpop.f32.mrf.mxu0
    %v6518 = vadd.f32 %v6248, %v6517
    %v6519 = vand.u32 %v119, 4294901760
    %v6520 = vsub.f32 %v119, %v6519
    %6521 = vmatmul.f32.gmra.mxu0 %v6520
    %v6522 = vpop.f32.mrf.mxu0
    %v6523 = vadd.f32 %v6252, %v6522
    %v6524 = vand.u32 %v121, 4294901760
    %v6525 = vsub.f32 %v121, %v6524
    %6526 = vmatmul.f32.gmra.mxu0 %v6525
    %v6527 = vpop.f32.mrf.mxu0
    %v6528 = vadd.f32 %v6256, %v6527
    %v6529 = vand.u32 %v123, 4294901760
    %v6530 = vsub.f32 %v123, %v6529
    %6531 = vmatmul.f32.gmra.mxu0 %v6530
    %v6532 = vpop.f32.mrf.mxu0
    %v6533 = vadd.f32 %v6260, %v6532
    %v6534 = vand.u32 %v125, 4294901760
    %v6535 = vsub.f32 %v125, %v6534
    %6536 = vmatmul.f32.gmra.mxu0 %v6535
    %v6537 = vpop.f32.mrf.mxu0
    %v6538 = vadd.f32 %v6264, %v6537
    %v6539 = vand.u32 %v127, 4294901760
    %v6540 = vsub.f32 %v127, %v6539
    %6541 = vmatmul.f32.gmra.mxu0 %v6540
    %v6542 = vpop.f32.mrf.mxu0
    %v6543 = vadd.f32 %v6268, %v6542
    %v6544 = vand.u32 %v129, 4294901760
    %v6545 = vsub.f32 %v129, %v6544
    %6546 = vmatmul.f32.gmra.mxu0 %v6545
    %v6547 = vpop.f32.mrf.mxu0
    %v6548 = vadd.f32 %v6272, %v6547
    %v6549 = vand.u32 %v131, 4294901760
    %v6550 = vsub.f32 %v131, %v6549
    %6551 = vmatmul.f32.gmra.mxu0 %v6550
    %v6552 = vpop.f32.mrf.mxu0
    %v6553 = vadd.f32 %v6276, %v6552
    %v6554 = vand.u32 %v133, 4294901760
    %v6555 = vsub.f32 %v133, %v6554
    %6556 = vmatmul.f32.gmra.mxu0 %v6555
    %v6557 = vpop.f32.mrf.mxu0
    %v6558 = vadd.f32 %v6280, %v6557
    %v6559 = vand.u32 %v135, 4294901760
    %v6560 = vsub.f32 %v135, %v6559
    %6561 = vmatmul.f32.gmra.mxu0 %v6560
    %v6562 = vpop.f32.mrf.mxu0
    %v6563 = vadd.f32 %v6284, %v6562
    %v6564 = vand.u32 %v137, 4294901760
    %v6565 = vsub.f32 %v137, %v6564
    %6566 = vmatmul.f32.gmra.mxu0 %v6565
    %v6567 = vpop.f32.mrf.mxu0
    %v6568 = vadd.f32 %v6288, %v6567
    %v6569 = vand.u32 %v139, 4294901760
    %v6570 = vsub.f32 %v139, %v6569
    %6571 = vmatmul.f32.gmra.mxu0 %v6570
    %v6572 = vpop.f32.mrf.mxu0
    %v6573 = vadd.f32 %v6292, %v6572
    %v6574 = vand.u32 %v141, 4294901760
    %v6575 = vsub.f32 %v141, %v6574
    %6576 = vmatmul.f32.gmra.mxu0 %v6575
    %v6577 = vpop.f32.mrf.mxu0
    %v6578 = vadd.f32 %v6296, %v6577
    %v6579 = vand.u32 %v143, 4294901760
    %v6580 = vsub.f32 %v143, %v6579
    %6581 = vmatmul.f32.gmra.mxu0 %v6580
    %v6582 = vpop.f32.mrf.mxu0
    %v6583 = vadd.f32 %v6300, %v6582
    %v6584 = vand.u32 %v145, 4294901760
    %v6585 = vsub.f32 %v145, %v6584
    %6586 = vmatmul.f32.gmra.mxu0 %v6585
    %v6587 = vpop.f32.mrf.mxu0
    %v6588 = vadd.f32 %v6304, %v6587
    %v6589 = vand.u32 %v147, 4294901760
    %v6590 = vsub.f32 %v147, %v6589
    %6591 = vmatmul.f32.gmra.mxu0 %v6590
    %v6592 = vpop.f32.mrf.mxu0
    %v6593 = vadd.f32 %v6308, %v6592
    %v6594 = vand.u32 %v149, 4294901760
    %v6595 = vsub.f32 %v149, %v6594
    %6596 = vmatmul.f32.gmra.mxu0 %v6595
    %v6597 = vpop.f32.mrf.mxu0
    %v6598 = vadd.f32 %v6312, %v6597
    %v6599 = vand.u32 %v151, 4294901760
    %v6600 = vsub.f32 %v151, %v6599
    %6601 = vmatmul.f32.gmra.mxu0 %v6600
    %v6602 = vpop.f32.mrf.mxu0
    %v6603 = vadd.f32 %v6316, %v6602
    %v6604 = vand.u32 %v153, 4294901760
    %v6605 = vsub.f32 %v153, %v6604
    %6606 = vmatmul.f32.gmra.mxu0 %v6605
    %v6607 = vpop.f32.mrf.mxu0
    %v6608 = vadd.f32 %v6320, %v6607
    %v6609 = vand.u32 %v155, 4294901760
    %v6610 = vsub.f32 %v155, %v6609
    %6611 = vmatmul.f32.gmra.mxu0 %v6610
    %v6612 = vpop.f32.mrf.mxu0
    %v6613 = vadd.f32 %v6324, %v6612
    %6614 = vdwg.mxu0
    %v6615 = vand.u32 %v219, 4294901760
    %6616 = vmatpush.msra.mxu0 %v6615
    %v6617 = vand.u32 %v217, 4294901760
    %6618 = vmatpush.msra.mxu0 %v6617
    %v6619 = vand.u32 %v215, 4294901760
    %6620 = vmatpush.msra.mxu0 %v6619
    %v6621 = vand.u32 %v213, 4294901760
    %6622 = vmatpush.msra.mxu0 %v6621
    %v6623 = vand.u32 %v211, 4294901760
    %6624 = vmatpush.msra.mxu0 %v6623
    %v6625 = vand.u32 %v209, 4294901760
    %6626 = vmatpush.msra.mxu0 %v6625
    %v6627 = vand.u32 %v207, 4294901760
    %6628 = vmatpush.msra.mxu0 %v6627
    %v6629 = vand.u32 %v205, 4294901760
    %6630 = vmatpush.msra.mxu0 %v6629
    %v6631 = vand.u32 %v203, 4294901760
    %6632 = vmatpush.msra.mxu0 %v6631
    %v6633 = vand.u32 %v201, 4294901760
    %6634 = vmatpush.msra.mxu0 %v6633
    %v6635 = vand.u32 %v199, 4294901760
    %6636 = vmatpush.msra.mxu0 %v6635
    %v6637 = vand.u32 %v197, 4294901760
    %6638 = vmatpush.msra.mxu0 %v6637
    %v6639 = vand.u32 %v195, 4294901760
    %6640 = vmatpush.msra.mxu0 %v6639
    %v6641 = vand.u32 %v193, 4294901760
    %6642 = vmatpush.msra.mxu0 %v6641
    %v6643 = vand.u32 %v191, 4294901760
    %6644 = vmatpush.msra.mxu0 %v6643
    %v6645 = vand.u32 %v189, 4294901760
    %6646 = vmatpush.msra.mxu0 %v6645
    %v6647 = vand.u32 %v61, 4294901760
    %v6648 = vsub.f32 %v61, %v6647
    %v6649 = vand.u32 %v6648, 4294901760
    %6650 = vmatmul.f32.gmra.mxu0 %v6649
    %v6651 = vpop.f32.mrf.mxu0
    %v6652 = vadd.f32 %v6378, %v6651
    %v6653 = vand.u32 %v63, 4294901760
    %v6654 = vsub.f32 %v63, %v6653
    %v6655 = vand.u32 %v6654, 4294901760
    %6656 = vmatmul.f32.gmra.mxu0 %v6655
    %v6657 = vpop.f32.mrf.mxu0
    %v6658 = vadd.f32 %v6383, %v6657
    %v6659 = vand.u32 %v65, 4294901760
    %v6660 = vsub.f32 %v65, %v6659
    %v6661 = vand.u32 %v6660, 4294901760
    %6662 = vmatmul.f32.gmra.mxu0 %v6661
    %v6663 = vpop.f32.mrf.mxu0
    %v6664 = vadd.f32 %v6388, %v6663
    %v6665 = vand.u32 %v67, 4294901760
    %v6666 = vsub.f32 %v67, %v6665
    %v6667 = vand.u32 %v6666, 4294901760
    %6668 = vmatmul.f32.gmra.mxu0 %v6667
    %v6669 = vpop.f32.mrf.mxu0
    %v6670 = vadd.f32 %v6393, %v6669
    %v6671 = vand.u32 %v69, 4294901760
    %v6672 = vsub.f32 %v69, %v6671
    %v6673 = vand.u32 %v6672, 4294901760
    %6674 = vmatmul.f32.gmra.mxu0 %v6673
    %v6675 = vpop.f32.mrf.mxu0
    %v6676 = vadd.f32 %v6398, %v6675
    %v6677 = vand.u32 %v71, 4294901760
    %v6678 = vsub.f32 %v71, %v6677
    %v6679 = vand.u32 %v6678, 4294901760
    %6680 = vmatmul.f32.gmra.mxu0 %v6679
    %v6681 = vpop.f32.mrf.mxu0
    %v6682 = vadd.f32 %v6403, %v6681
    %v6683 = vand.u32 %v73, 4294901760
    %v6684 = vsub.f32 %v73, %v6683
    %v6685 = vand.u32 %v6684, 4294901760
    %6686 = vmatmul.f32.gmra.mxu0 %v6685
    %v6687 = vpop.f32.mrf.mxu0
    %v6688 = vadd.f32 %v6408, %v6687
    %v6689 = vand.u32 %v75, 4294901760
    %v6690 = vsub.f32 %v75, %v6689
    %v6691 = vand.u32 %v6690, 4294901760
    %6692 = vmatmul.f32.gmra.mxu0 %v6691
    %v6693 = vpop.f32.mrf.mxu0
    %v6694 = vadd.f32 %v6413, %v6693
    %v6695 = vand.u32 %v77, 4294901760
    %v6696 = vsub.f32 %v77, %v6695
    %v6697 = vand.u32 %v6696, 4294901760
    %6698 = vmatmul.f32.gmra.mxu0 %v6697
    %v6699 = vpop.f32.mrf.mxu0
    %v6700 = vadd.f32 %v6418, %v6699
    %v6701 = vand.u32 %v79, 4294901760
    %v6702 = vsub.f32 %v79, %v6701
    %v6703 = vand.u32 %v6702, 4294901760
    %6704 = vmatmul.f32.gmra.mxu0 %v6703
    %v6705 = vpop.f32.mrf.mxu0
    %v6706 = vadd.f32 %v6423, %v6705
    %v6707 = vand.u32 %v81, 4294901760
    %v6708 = vsub.f32 %v81, %v6707
    %v6709 = vand.u32 %v6708, 4294901760
    %6710 = vmatmul.f32.gmra.mxu0 %v6709
    %v6711 = vpop.f32.mrf.mxu0
    %v6712 = vadd.f32 %v6428, %v6711
    %v6713 = vand.u32 %v83, 4294901760
    %v6714 = vsub.f32 %v83, %v6713
    %v6715 = vand.u32 %v6714, 4294901760
    %6716 = vmatmul.f32.gmra.mxu0 %v6715
    %v6717 = vpop.f32.mrf.mxu0
    %v6718 = vadd.f32 %v6433, %v6717
    %v6719 = vand.u32 %v85, 4294901760
    %v6720 = vsub.f32 %v85, %v6719
    %v6721 = vand.u32 %v6720, 4294901760
    %6722 = vmatmul.f32.gmra.mxu0 %v6721
    %v6723 = vpop.f32.mrf.mxu0
    %v6724 = vadd.f32 %v6438, %v6723
    %v6725 = vand.u32 %v87, 4294901760
    %v6726 = vsub.f32 %v87, %v6725
    %v6727 = vand.u32 %v6726, 4294901760
    %6728 = vmatmul.f32.gmra.mxu0 %v6727
    %v6729 = vpop.f32.mrf.mxu0
    %v6730 = vadd.f32 %v6443, %v6729
    %v6731 = vand.u32 %v89, 4294901760
    %v6732 = vsub.f32 %v89, %v6731
    %v6733 = vand.u32 %v6732, 4294901760
    %6734 = vmatmul.f32.gmra.mxu0 %v6733
    %v6735 = vpop.f32.mrf.mxu0
    %v6736 = vadd.f32 %v6448, %v6735
    %v6737 = vand.u32 %v91, 4294901760
    %v6738 = vsub.f32 %v91, %v6737
    %v6739 = vand.u32 %v6738, 4294901760
    %6740 = vmatmul.f32.gmra.mxu0 %v6739
    %v6741 = vpop.f32.mrf.mxu0
    %v6742 = vadd.f32 %v6453, %v6741
    %v6743 = vand.u32 %v93, 4294901760
    %v6744 = vsub.f32 %v93, %v6743
    %v6745 = vand.u32 %v6744, 4294901760
    %6746 = vmatmul.f32.gmra.mxu0 %v6745
    %v6747 = vpop.f32.mrf.mxu0
    %v6748 = vadd.f32 %v6458, %v6747
    %v6749 = vand.u32 %v95, 4294901760
    %v6750 = vsub.f32 %v95, %v6749
    %v6751 = vand.u32 %v6750, 4294901760
    %6752 = vmatmul.f32.gmra.mxu0 %v6751
    %v6753 = vpop.f32.mrf.mxu0
    %v6754 = vadd.f32 %v6463, %v6753
    %v6755 = vand.u32 %v97, 4294901760
    %v6756 = vsub.f32 %v97, %v6755
    %v6757 = vand.u32 %v6756, 4294901760
    %6758 = vmatmul.f32.gmra.mxu0 %v6757
    %v6759 = vpop.f32.mrf.mxu0
    %v6760 = vadd.f32 %v6468, %v6759
    %v6761 = vand.u32 %v99, 4294901760
    %v6762 = vsub.f32 %v99, %v6761
    %v6763 = vand.u32 %v6762, 4294901760
    %6764 = vmatmul.f32.gmra.mxu0 %v6763
    %v6765 = vpop.f32.mrf.mxu0
    %v6766 = vadd.f32 %v6473, %v6765
    %v6767 = vand.u32 %v101, 4294901760
    %v6768 = vsub.f32 %v101, %v6767
    %v6769 = vand.u32 %v6768, 4294901760
    %6770 = vmatmul.f32.gmra.mxu0 %v6769
    %v6771 = vpop.f32.mrf.mxu0
    %v6772 = vadd.f32 %v6478, %v6771
    %v6773 = vand.u32 %v103, 4294901760
    %v6774 = vsub.f32 %v103, %v6773
    %v6775 = vand.u32 %v6774, 4294901760
    %6776 = vmatmul.f32.gmra.mxu0 %v6775
    %v6777 = vpop.f32.mrf.mxu0
    %v6778 = vadd.f32 %v6483, %v6777
    %v6779 = vand.u32 %v105, 4294901760
    %v6780 = vsub.f32 %v105, %v6779
    %v6781 = vand.u32 %v6780, 4294901760
    %6782 = vmatmul.f32.gmra.mxu0 %v6781
    %v6783 = vpop.f32.mrf.mxu0
    %v6784 = vadd.f32 %v6488, %v6783
    %v6785 = vand.u32 %v107, 4294901760
    %v6786 = vsub.f32 %v107, %v6785
    %v6787 = vand.u32 %v6786, 4294901760
    %6788 = vmatmul.f32.gmra.mxu0 %v6787
    %v6789 = vpop.f32.mrf.mxu0
    %v6790 = vadd.f32 %v6493, %v6789
    %v6791 = vand.u32 %v109, 4294901760
    %v6792 = vsub.f32 %v109, %v6791
    %v6793 = vand.u32 %v6792, 4294901760
    %6794 = vmatmul.f32.gmra.mxu0 %v6793
    %v6795 = vpop.f32.mrf.mxu0
    %v6796 = vadd.f32 %v6498, %v6795
    %v6797 = vand.u32 %v111, 4294901760
    %v6798 = vsub.f32 %v111, %v6797
    %v6799 = vand.u32 %v6798, 4294901760
    %6800 = vmatmul.f32.gmra.mxu0 %v6799
    %v6801 = vpop.f32.mrf.mxu0
    %v6802 = vadd.f32 %v6503, %v6801
    %v6803 = vand.u32 %v113, 4294901760
    %v6804 = vsub.f32 %v113, %v6803
    %v6805 = vand.u32 %v6804, 4294901760
    %6806 = vmatmul.f32.gmra.mxu0 %v6805
    %v6807 = vpop.f32.mrf.mxu0
    %v6808 = vadd.f32 %v6508, %v6807
    %v6809 = vand.u32 %v115, 4294901760
    %v6810 = vsub.f32 %v115, %v6809
    %v6811 = vand.u32 %v6810, 4294901760
    %6812 = vmatmul.f32.gmra.mxu0 %v6811
    %v6813 = vpop.f32.mrf.mxu0
    %v6814 = vadd.f32 %v6513, %v6813
    %v6815 = vand.u32 %v117, 4294901760
    %v6816 = vsub.f32 %v117, %v6815
    %v6817 = vand.u32 %v6816, 4294901760
    %6818 = vmatmul.f32.gmra.mxu0 %v6817
    %v6819 = vpop.f32.mrf.mxu0
    %v6820 = vadd.f32 %v6518, %v6819
    %v6821 = vand.u32 %v119, 4294901760
    %v6822 = vsub.f32 %v119, %v6821
    %v6823 = vand.u32 %v6822, 4294901760
    %6824 = vmatmul.f32.gmra.mxu0 %v6823
    %v6825 = vpop.f32.mrf.mxu0
    %v6826 = vadd.f32 %v6523, %v6825
    %v6827 = vand.u32 %v121, 4294901760
    %v6828 = vsub.f32 %v121, %v6827
    %v6829 = vand.u32 %v6828, 4294901760
    %6830 = vmatmul.f32.gmra.mxu0 %v6829
    %v6831 = vpop.f32.mrf.mxu0
    %v6832 = vadd.f32 %v6528, %v6831
    %v6833 = vand.u32 %v123, 4294901760
    %v6834 = vsub.f32 %v123, %v6833
    %v6835 = vand.u32 %v6834, 4294901760
    %6836 = vmatmul.f32.gmra.mxu0 %v6835
    %v6837 = vpop.f32.mrf.mxu0
    %v6838 = vadd.f32 %v6533, %v6837
    %v6839 = vand.u32 %v125, 4294901760
    %v6840 = vsub.f32 %v125, %v6839
    %v6841 = vand.u32 %v6840, 4294901760
    %6842 = vmatmul.f32.gmra.mxu0 %v6841
    %v6843 = vpop.f32.mrf.mxu0
    %v6844 = vadd.f32 %v6538, %v6843
    %v6845 = vand.u32 %v127, 4294901760
    %v6846 = vsub.f32 %v127, %v6845
    %v6847 = vand.u32 %v6846, 4294901760
    %6848 = vmatmul.f32.gmra.mxu0 %v6847
    %v6849 = vpop.f32.mrf.mxu0
    %v6850 = vadd.f32 %v6543, %v6849
    %v6851 = vand.u32 %v129, 4294901760
    %v6852 = vsub.f32 %v129, %v6851
    %v6853 = vand.u32 %v6852, 4294901760
    %6854 = vmatmul.f32.gmra.mxu0 %v6853
    %v6855 = vpop.f32.mrf.mxu0
    %v6856 = vadd.f32 %v6548, %v6855
    %v6857 = vand.u32 %v131, 4294901760
    %v6858 = vsub.f32 %v131, %v6857
    %v6859 = vand.u32 %v6858, 4294901760
    %6860 = vmatmul.f32.gmra.mxu0 %v6859
    %v6861 = vpop.f32.mrf.mxu0
    %v6862 = vadd.f32 %v6553, %v6861
    %v6863 = vand.u32 %v133, 4294901760
    %v6864 = vsub.f32 %v133, %v6863
    %v6865 = vand.u32 %v6864, 4294901760
    %6866 = vmatmul.f32.gmra.mxu0 %v6865
    %v6867 = vpop.f32.mrf.mxu0
    %v6868 = vadd.f32 %v6558, %v6867
    %v6869 = vand.u32 %v135, 4294901760
    %v6870 = vsub.f32 %v135, %v6869
    %v6871 = vand.u32 %v6870, 4294901760
    %6872 = vmatmul.f32.gmra.mxu0 %v6871
    %v6873 = vpop.f32.mrf.mxu0
    %v6874 = vadd.f32 %v6563, %v6873
    %v6875 = vand.u32 %v137, 4294901760
    %v6876 = vsub.f32 %v137, %v6875
    %v6877 = vand.u32 %v6876, 4294901760
    %6878 = vmatmul.f32.gmra.mxu0 %v6877
    %v6879 = vpop.f32.mrf.mxu0
    %v6880 = vadd.f32 %v6568, %v6879
    %v6881 = vand.u32 %v139, 4294901760
    %v6882 = vsub.f32 %v139, %v6881
    %v6883 = vand.u32 %v6882, 4294901760
    %6884 = vmatmul.f32.gmra.mxu0 %v6883
    %v6885 = vpop.f32.mrf.mxu0
    %v6886 = vadd.f32 %v6573, %v6885
    %v6887 = vand.u32 %v141, 4294901760
    %v6888 = vsub.f32 %v141, %v6887
    %v6889 = vand.u32 %v6888, 4294901760
    %6890 = vmatmul.f32.gmra.mxu0 %v6889
    %v6891 = vpop.f32.mrf.mxu0
    %v6892 = vadd.f32 %v6578, %v6891
    %v6893 = vand.u32 %v143, 4294901760
    %v6894 = vsub.f32 %v143, %v6893
    %v6895 = vand.u32 %v6894, 4294901760
    %6896 = vmatmul.f32.gmra.mxu0 %v6895
    %v6897 = vpop.f32.mrf.mxu0
    %v6898 = vadd.f32 %v6583, %v6897
    %v6899 = vand.u32 %v145, 4294901760
    %v6900 = vsub.f32 %v145, %v6899
    %v6901 = vand.u32 %v6900, 4294901760
    %6902 = vmatmul.f32.gmra.mxu0 %v6901
    %v6903 = vpop.f32.mrf.mxu0
    %v6904 = vadd.f32 %v6588, %v6903
    %v6905 = vand.u32 %v147, 4294901760
    %v6906 = vsub.f32 %v147, %v6905
    %v6907 = vand.u32 %v6906, 4294901760
    %6908 = vmatmul.f32.gmra.mxu0 %v6907
    %v6909 = vpop.f32.mrf.mxu0
    %v6910 = vadd.f32 %v6593, %v6909
    %v6911 = vand.u32 %v149, 4294901760
    %v6912 = vsub.f32 %v149, %v6911
    %v6913 = vand.u32 %v6912, 4294901760
    %6914 = vmatmul.f32.gmra.mxu0 %v6913
    %v6915 = vpop.f32.mrf.mxu0
    %v6916 = vadd.f32 %v6598, %v6915
    %v6917 = vand.u32 %v151, 4294901760
    %v6918 = vsub.f32 %v151, %v6917
    %v6919 = vand.u32 %v6918, 4294901760
    %6920 = vmatmul.f32.gmra.mxu0 %v6919
    %v6921 = vpop.f32.mrf.mxu0
    %v6922 = vadd.f32 %v6603, %v6921
    %v6923 = vand.u32 %v153, 4294901760
    %v6924 = vsub.f32 %v153, %v6923
    %v6925 = vand.u32 %v6924, 4294901760
    %6926 = vmatmul.f32.gmra.mxu0 %v6925
    %v6927 = vpop.f32.mrf.mxu0
    %v6928 = vadd.f32 %v6608, %v6927
    %v6929 = vand.u32 %v155, 4294901760
    %v6930 = vsub.f32 %v155, %v6929
    %v6931 = vand.u32 %v6930, 4294901760
    %6932 = vmatmul.f32.gmra.mxu0 %v6931
    %v6933 = vpop.f32.mrf.mxu0
    %v6934 = vadd.f32 %v6613, %v6933
    %6935 = vdwg.mxu0
    %v6936 = vand.u32 %v219, 4294901760
    %v6937 = vsub.f32 %v219, %v6936
    %v6938 = vand.u32 %v6937, 4294901760
    %6939 = vmatpush.msra.mxu0 %v6938
    %v6940 = vand.u32 %v217, 4294901760
    %v6941 = vsub.f32 %v217, %v6940
    %v6942 = vand.u32 %v6941, 4294901760
    %6943 = vmatpush.msra.mxu0 %v6942
    %v6944 = vand.u32 %v215, 4294901760
    %v6945 = vsub.f32 %v215, %v6944
    %v6946 = vand.u32 %v6945, 4294901760
    %6947 = vmatpush.msra.mxu0 %v6946
    %v6948 = vand.u32 %v213, 4294901760
    %v6949 = vsub.f32 %v213, %v6948
    %v6950 = vand.u32 %v6949, 4294901760
    %6951 = vmatpush.msra.mxu0 %v6950
    %v6952 = vand.u32 %v211, 4294901760
    %v6953 = vsub.f32 %v211, %v6952
    %v6954 = vand.u32 %v6953, 4294901760
    %6955 = vmatpush.msra.mxu0 %v6954
    %v6956 = vand.u32 %v209, 4294901760
    %v6957 = vsub.f32 %v209, %v6956
    %v6958 = vand.u32 %v6957, 4294901760
    %6959 = vmatpush.msra.mxu0 %v6958
    %v6960 = vand.u32 %v207, 4294901760
    %v6961 = vsub.f32 %v207, %v6960
    %v6962 = vand.u32 %v6961, 4294901760
    %6963 = vmatpush.msra.mxu0 %v6962
    %v6964 = vand.u32 %v205, 4294901760
    %v6965 = vsub.f32 %v205, %v6964
    %v6966 = vand.u32 %v6965, 4294901760
    %6967 = vmatpush.msra.mxu0 %v6966
    %v6968 = vand.u32 %v203, 4294901760
    %v6969 = vsub.f32 %v203, %v6968
    %v6970 = vand.u32 %v6969, 4294901760
    %6971 = vmatpush.msra.mxu0 %v6970
    %v6972 = vand.u32 %v201, 4294901760
    %v6973 = vsub.f32 %v201, %v6972
    %v6974 = vand.u32 %v6973, 4294901760
    %6975 = vmatpush.msra.mxu0 %v6974
    %v6976 = vand.u32 %v199, 4294901760
    %v6977 = vsub.f32 %v199, %v6976
    %v6978 = vand.u32 %v6977, 4294901760
    %6979 = vmatpush.msra.mxu0 %v6978
    %v6980 = vand.u32 %v197, 4294901760
    %v6981 = vsub.f32 %v197, %v6980
    %v6982 = vand.u32 %v6981, 4294901760
    %6983 = vmatpush.msra.mxu0 %v6982
    %v6984 = vand.u32 %v195, 4294901760
    %v6985 = vsub.f32 %v195, %v6984
    %v6986 = vand.u32 %v6985, 4294901760
    %6987 = vmatpush.msra.mxu0 %v6986
    %v6988 = vand.u32 %v193, 4294901760
    %v6989 = vsub.f32 %v193, %v6988
    %v6990 = vand.u32 %v6989, 4294901760
    %6991 = vmatpush.msra.mxu0 %v6990
    %v6992 = vand.u32 %v191, 4294901760
    %v6993 = vsub.f32 %v191, %v6992
    %v6994 = vand.u32 %v6993, 4294901760
    %6995 = vmatpush.msra.mxu0 %v6994
    %v6996 = vand.u32 %v189, 4294901760
    %v6997 = vsub.f32 %v189, %v6996
    %v6998 = vand.u32 %v6997, 4294901760
    %6999 = vmatpush.msra.mxu0 %v6998
    %v7000 = vand.u32 %v61, 4294901760
    %7001 = vmatmul.f32.gmra.mxu0 %v7000
    %v7002 = vpop.f32.mrf.mxu0
    %v7003 = vadd.f32 %v6652, %v7002
    %v7004 = vand.u32 %v63, 4294901760
    %7005 = vmatmul.f32.gmra.mxu0 %v7004
    %v7006 = vpop.f32.mrf.mxu0
    %v7007 = vadd.f32 %v6658, %v7006
    %v7008 = vand.u32 %v65, 4294901760
    %7009 = vmatmul.f32.gmra.mxu0 %v7008
    %v7010 = vpop.f32.mrf.mxu0
    %v7011 = vadd.f32 %v6664, %v7010
    %v7012 = vand.u32 %v67, 4294901760
    %7013 = vmatmul.f32.gmra.mxu0 %v7012
    %v7014 = vpop.f32.mrf.mxu0
    %v7015 = vadd.f32 %v6670, %v7014
    %v7016 = vand.u32 %v69, 4294901760
    %7017 = vmatmul.f32.gmra.mxu0 %v7016
    %v7018 = vpop.f32.mrf.mxu0
    %v7019 = vadd.f32 %v6676, %v7018
    %v7020 = vand.u32 %v71, 4294901760
    %7021 = vmatmul.f32.gmra.mxu0 %v7020
    %v7022 = vpop.f32.mrf.mxu0
    %v7023 = vadd.f32 %v6682, %v7022
    %v7024 = vand.u32 %v73, 4294901760
    %7025 = vmatmul.f32.gmra.mxu0 %v7024
    %v7026 = vpop.f32.mrf.mxu0
    %v7027 = vadd.f32 %v6688, %v7026
    %v7028 = vand.u32 %v75, 4294901760
    %7029 = vmatmul.f32.gmra.mxu0 %v7028
    %v7030 = vpop.f32.mrf.mxu0
    %v7031 = vadd.f32 %v6694, %v7030
    %v7032 = vand.u32 %v77, 4294901760
    %7033 = vmatmul.f32.gmra.mxu0 %v7032
    %v7034 = vpop.f32.mrf.mxu0
    %v7035 = vadd.f32 %v6700, %v7034
    %v7036 = vand.u32 %v79, 4294901760
    %7037 = vmatmul.f32.gmra.mxu0 %v7036
    %v7038 = vpop.f32.mrf.mxu0
    %v7039 = vadd.f32 %v6706, %v7038
    %v7040 = vand.u32 %v81, 4294901760
    %7041 = vmatmul.f32.gmra.mxu0 %v7040
    %v7042 = vpop.f32.mrf.mxu0
    %v7043 = vadd.f32 %v6712, %v7042
    %v7044 = vand.u32 %v83, 4294901760
    %7045 = vmatmul.f32.gmra.mxu0 %v7044
    %v7046 = vpop.f32.mrf.mxu0
    %v7047 = vadd.f32 %v6718, %v7046
    %v7048 = vand.u32 %v85, 4294901760
    %7049 = vmatmul.f32.gmra.mxu0 %v7048
    %v7050 = vpop.f32.mrf.mxu0
    %v7051 = vadd.f32 %v6724, %v7050
    %v7052 = vand.u32 %v87, 4294901760
    %7053 = vmatmul.f32.gmra.mxu0 %v7052
    %v7054 = vpop.f32.mrf.mxu0
    %v7055 = vadd.f32 %v6730, %v7054
    %v7056 = vand.u32 %v89, 4294901760
    %7057 = vmatmul.f32.gmra.mxu0 %v7056
    %v7058 = vpop.f32.mrf.mxu0
    %v7059 = vadd.f32 %v6736, %v7058
    %v7060 = vand.u32 %v91, 4294901760
    %7061 = vmatmul.f32.gmra.mxu0 %v7060
    %v7062 = vpop.f32.mrf.mxu0
    %v7063 = vadd.f32 %v6742, %v7062
    %v7064 = vand.u32 %v93, 4294901760
    %7065 = vmatmul.f32.gmra.mxu0 %v7064
    %v7066 = vpop.f32.mrf.mxu0
    %v7067 = vadd.f32 %v6748, %v7066
    %v7068 = vand.u32 %v95, 4294901760
    %7069 = vmatmul.f32.gmra.mxu0 %v7068
    %v7070 = vpop.f32.mrf.mxu0
    %v7071 = vadd.f32 %v6754, %v7070
    %v7072 = vand.u32 %v97, 4294901760
    %7073 = vmatmul.f32.gmra.mxu0 %v7072
    %v7074 = vpop.f32.mrf.mxu0
    %v7075 = vadd.f32 %v6760, %v7074
    %v7076 = vand.u32 %v99, 4294901760
    %7077 = vmatmul.f32.gmra.mxu0 %v7076
    %v7078 = vpop.f32.mrf.mxu0
    %v7079 = vadd.f32 %v6766, %v7078
    %v7080 = vand.u32 %v101, 4294901760
    %7081 = vmatmul.f32.gmra.mxu0 %v7080
    %v7082 = vpop.f32.mrf.mxu0
    %v7083 = vadd.f32 %v6772, %v7082
    %v7084 = vand.u32 %v103, 4294901760
    %7085 = vmatmul.f32.gmra.mxu0 %v7084
    %v7086 = vpop.f32.mrf.mxu0
    %v7087 = vadd.f32 %v6778, %v7086
    %v7088 = vand.u32 %v105, 4294901760
    %7089 = vmatmul.f32.gmra.mxu0 %v7088
    %v7090 = vpop.f32.mrf.mxu0
    %v7091 = vadd.f32 %v6784, %v7090
    %v7092 = vand.u32 %v107, 4294901760
    %7093 = vmatmul.f32.gmra.mxu0 %v7092
    %v7094 = vpop.f32.mrf.mxu0
    %v7095 = vadd.f32 %v6790, %v7094
    %v7096 = vand.u32 %v109, 4294901760
    %7097 = vmatmul.f32.gmra.mxu0 %v7096
    %v7098 = vpop.f32.mrf.mxu0
    %v7099 = vadd.f32 %v6796, %v7098
    %v7100 = vand.u32 %v111, 4294901760
    %7101 = vmatmul.f32.gmra.mxu0 %v7100
    %v7102 = vpop.f32.mrf.mxu0
    %v7103 = vadd.f32 %v6802, %v7102
    %v7104 = vand.u32 %v113, 4294901760
    %7105 = vmatmul.f32.gmra.mxu0 %v7104
    %v7106 = vpop.f32.mrf.mxu0
    %v7107 = vadd.f32 %v6808, %v7106
    %v7108 = vand.u32 %v115, 4294901760
    %7109 = vmatmul.f32.gmra.mxu0 %v7108
    %v7110 = vpop.f32.mrf.mxu0
    %v7111 = vadd.f32 %v6814, %v7110
    %v7112 = vand.u32 %v117, 4294901760
    %7113 = vmatmul.f32.gmra.mxu0 %v7112
    %v7114 = vpop.f32.mrf.mxu0
    %v7115 = vadd.f32 %v6820, %v7114
    %v7116 = vand.u32 %v119, 4294901760
    %7117 = vmatmul.f32.gmra.mxu0 %v7116
    %v7118 = vpop.f32.mrf.mxu0
    %v7119 = vadd.f32 %v6826, %v7118
    %v7120 = vand.u32 %v121, 4294901760
    %7121 = vmatmul.f32.gmra.mxu0 %v7120
    %v7122 = vpop.f32.mrf.mxu0
    %v7123 = vadd.f32 %v6832, %v7122
    %v7124 = vand.u32 %v123, 4294901760
    %7125 = vmatmul.f32.gmra.mxu0 %v7124
    %v7126 = vpop.f32.mrf.mxu0
    %v7127 = vadd.f32 %v6838, %v7126
    %v7128 = vand.u32 %v125, 4294901760
    %7129 = vmatmul.f32.gmra.mxu0 %v7128
    %v7130 = vpop.f32.mrf.mxu0
    %v7131 = vadd.f32 %v6844, %v7130
    %v7132 = vand.u32 %v127, 4294901760
    %7133 = vmatmul.f32.gmra.mxu0 %v7132
    %v7134 = vpop.f32.mrf.mxu0
    %v7135 = vadd.f32 %v6850, %v7134
    %v7136 = vand.u32 %v129, 4294901760
    %7137 = vmatmul.f32.gmra.mxu0 %v7136
    %v7138 = vpop.f32.mrf.mxu0
    %v7139 = vadd.f32 %v6856, %v7138
    %v7140 = vand.u32 %v131, 4294901760
    %7141 = vmatmul.f32.gmra.mxu0 %v7140
    %v7142 = vpop.f32.mrf.mxu0
    %v7143 = vadd.f32 %v6862, %v7142
    %v7144 = vand.u32 %v133, 4294901760
    %7145 = vmatmul.f32.gmra.mxu0 %v7144
    %v7146 = vpop.f32.mrf.mxu0
    %v7147 = vadd.f32 %v6868, %v7146
    %v7148 = vand.u32 %v135, 4294901760
    %7149 = vmatmul.f32.gmra.mxu0 %v7148
    %v7150 = vpop.f32.mrf.mxu0
    %v7151 = vadd.f32 %v6874, %v7150
    %v7152 = vand.u32 %v137, 4294901760
    %7153 = vmatmul.f32.gmra.mxu0 %v7152
    %v7154 = vpop.f32.mrf.mxu0
    %v7155 = vadd.f32 %v6880, %v7154
    %v7156 = vand.u32 %v139, 4294901760
    %7157 = vmatmul.f32.gmra.mxu0 %v7156
    %v7158 = vpop.f32.mrf.mxu0
    %v7159 = vadd.f32 %v6886, %v7158
    %v7160 = vand.u32 %v141, 4294901760
    %7161 = vmatmul.f32.gmra.mxu0 %v7160
    %v7162 = vpop.f32.mrf.mxu0
    %v7163 = vadd.f32 %v6892, %v7162
    %v7164 = vand.u32 %v143, 4294901760
    %7165 = vmatmul.f32.gmra.mxu0 %v7164
    %v7166 = vpop.f32.mrf.mxu0
    %v7167 = vadd.f32 %v6898, %v7166
    %v7168 = vand.u32 %v145, 4294901760
    %7169 = vmatmul.f32.gmra.mxu0 %v7168
    %v7170 = vpop.f32.mrf.mxu0
    %v7171 = vadd.f32 %v6904, %v7170
    %v7172 = vand.u32 %v147, 4294901760
    %7173 = vmatmul.f32.gmra.mxu0 %v7172
    %v7174 = vpop.f32.mrf.mxu0
    %v7175 = vadd.f32 %v6910, %v7174
    %v7176 = vand.u32 %v149, 4294901760
    %7177 = vmatmul.f32.gmra.mxu0 %v7176
    %v7178 = vpop.f32.mrf.mxu0
    %v7179 = vadd.f32 %v6916, %v7178
    %v7180 = vand.u32 %v151, 4294901760
    %7181 = vmatmul.f32.gmra.mxu0 %v7180
    %v7182 = vpop.f32.mrf.mxu0
    %v7183 = vadd.f32 %v6922, %v7182
    %v7184 = vand.u32 %v153, 4294901760
    %7185 = vmatmul.f32.gmra.mxu0 %v7184
    %v7186 = vpop.f32.mrf.mxu0
    %v7187 = vadd.f32 %v6928, %v7186
    %v7188 = vand.u32 %v155, 4294901760
    %7189 = vmatmul.f32.gmra.mxu0 %v7188
    %v7190 = vpop.f32.mrf.mxu0
    %v7191 = vadd.f32 %v6934, %v7190
    %7192 = vdwg.mxu0
    %v7193 = vand.u32 %v219, 4294901760
    %7194 = vmatpush.msra.mxu0 %v7193
    %v7195 = vand.u32 %v217, 4294901760
    %7196 = vmatpush.msra.mxu0 %v7195
    %v7197 = vand.u32 %v215, 4294901760
    %7198 = vmatpush.msra.mxu0 %v7197
    %v7199 = vand.u32 %v213, 4294901760
    %7200 = vmatpush.msra.mxu0 %v7199
    %v7201 = vand.u32 %v211, 4294901760
    %7202 = vmatpush.msra.mxu0 %v7201
    %v7203 = vand.u32 %v209, 4294901760
    %7204 = vmatpush.msra.mxu0 %v7203
    %v7205 = vand.u32 %v207, 4294901760
    %7206 = vmatpush.msra.mxu0 %v7205
    %v7207 = vand.u32 %v205, 4294901760
    %7208 = vmatpush.msra.mxu0 %v7207
    %v7209 = vand.u32 %v203, 4294901760
    %7210 = vmatpush.msra.mxu0 %v7209
    %v7211 = vand.u32 %v201, 4294901760
    %7212 = vmatpush.msra.mxu0 %v7211
    %v7213 = vand.u32 %v199, 4294901760
    %7214 = vmatpush.msra.mxu0 %v7213
    %v7215 = vand.u32 %v197, 4294901760
    %7216 = vmatpush.msra.mxu0 %v7215
    %v7217 = vand.u32 %v195, 4294901760
    %7218 = vmatpush.msra.mxu0 %v7217
    %v7219 = vand.u32 %v193, 4294901760
    %7220 = vmatpush.msra.mxu0 %v7219
    %v7221 = vand.u32 %v191, 4294901760
    %7222 = vmatpush.msra.mxu0 %v7221
    %v7223 = vand.u32 %v189, 4294901760
    %7224 = vmatpush.msra.mxu0 %v7223
    %v7225 = vand.u32 %v61, 4294901760
    %7226 = vmatmul.f32.gmra.mxu0 %v7225
    %v7227 = vpop.f32.mrf.mxu0
    %v7228 = vadd.f32 %v7003, %v7227
    %v7229 = vand.u32 %v63, 4294901760
    %7230 = vmatmul.f32.gmra.mxu0 %v7229
    %v7231 = vpop.f32.mrf.mxu0
    %v7232 = vadd.f32 %v7007, %v7231
    %v7233 = vand.u32 %v65, 4294901760
    %7234 = vmatmul.f32.gmra.mxu0 %v7233
    %v7235 = vpop.f32.mrf.mxu0
    %v7236 = vadd.f32 %v7011, %v7235
    %v7237 = vand.u32 %v67, 4294901760
    %7238 = vmatmul.f32.gmra.mxu0 %v7237
    %v7239 = vpop.f32.mrf.mxu0
    %v7240 = vadd.f32 %v7015, %v7239
    %v7241 = vand.u32 %v69, 4294901760
    %7242 = vmatmul.f32.gmra.mxu0 %v7241
    %v7243 = vpop.f32.mrf.mxu0
    %v7244 = vadd.f32 %v7019, %v7243
    %v7245 = vand.u32 %v71, 4294901760
    %7246 = vmatmul.f32.gmra.mxu0 %v7245
    %v7247 = vpop.f32.mrf.mxu0
    %v7248 = vadd.f32 %v7023, %v7247
    %v7249 = vand.u32 %v73, 4294901760
    %7250 = vmatmul.f32.gmra.mxu0 %v7249
    %v7251 = vpop.f32.mrf.mxu0
    %v7252 = vadd.f32 %v7027, %v7251
    %v7253 = vand.u32 %v75, 4294901760
    %7254 = vmatmul.f32.gmra.mxu0 %v7253
    %v7255 = vpop.f32.mrf.mxu0
    %v7256 = vadd.f32 %v7031, %v7255
    %v7257 = vand.u32 %v77, 4294901760
    %7258 = vmatmul.f32.gmra.mxu0 %v7257
    %v7259 = vpop.f32.mrf.mxu0
    %v7260 = vadd.f32 %v7035, %v7259
    %v7261 = vand.u32 %v79, 4294901760
    %7262 = vmatmul.f32.gmra.mxu0 %v7261
    %v7263 = vpop.f32.mrf.mxu0
    %v7264 = vadd.f32 %v7039, %v7263
    %v7265 = vand.u32 %v81, 4294901760
    %7266 = vmatmul.f32.gmra.mxu0 %v7265
    %v7267 = vpop.f32.mrf.mxu0
    %v7268 = vadd.f32 %v7043, %v7267
    %v7269 = vand.u32 %v83, 4294901760
    %7270 = vmatmul.f32.gmra.mxu0 %v7269
    %v7271 = vpop.f32.mrf.mxu0
    %v7272 = vadd.f32 %v7047, %v7271
    %v7273 = vand.u32 %v85, 4294901760
    %7274 = vmatmul.f32.gmra.mxu0 %v7273
    %v7275 = vpop.f32.mrf.mxu0
    %v7276 = vadd.f32 %v7051, %v7275
    %v7277 = vand.u32 %v87, 4294901760
    %7278 = vmatmul.f32.gmra.mxu0 %v7277
    %v7279 = vpop.f32.mrf.mxu0
    %v7280 = vadd.f32 %v7055, %v7279
    %v7281 = vand.u32 %v89, 4294901760
    %7282 = vmatmul.f32.gmra.mxu0 %v7281
    %v7283 = vpop.f32.mrf.mxu0
    %v7284 = vadd.f32 %v7059, %v7283
    %v7285 = vand.u32 %v91, 4294901760
    %7286 = vmatmul.f32.gmra.mxu0 %v7285
    %v7287 = vpop.f32.mrf.mxu0
    %v7288 = vadd.f32 %v7063, %v7287
    %v7289 = vand.u32 %v93, 4294901760
    %7290 = vmatmul.f32.gmra.mxu0 %v7289
    %v7291 = vpop.f32.mrf.mxu0
    %v7292 = vadd.f32 %v7067, %v7291
    %v7293 = vand.u32 %v95, 4294901760
    %7294 = vmatmul.f32.gmra.mxu0 %v7293
    %v7295 = vpop.f32.mrf.mxu0
    %v7296 = vadd.f32 %v7071, %v7295
    %v7297 = vand.u32 %v97, 4294901760
    %7298 = vmatmul.f32.gmra.mxu0 %v7297
    %v7299 = vpop.f32.mrf.mxu0
    %v7300 = vadd.f32 %v7075, %v7299
    %v7301 = vand.u32 %v99, 4294901760
    %7302 = vmatmul.f32.gmra.mxu0 %v7301
    %v7303 = vpop.f32.mrf.mxu0
    %v7304 = vadd.f32 %v7079, %v7303
    %v7305 = vand.u32 %v101, 4294901760
    %7306 = vmatmul.f32.gmra.mxu0 %v7305
    %v7307 = vpop.f32.mrf.mxu0
    %v7308 = vadd.f32 %v7083, %v7307
    %v7309 = vand.u32 %v103, 4294901760
    %7310 = vmatmul.f32.gmra.mxu0 %v7309
    %v7311 = vpop.f32.mrf.mxu0
    %v7312 = vadd.f32 %v7087, %v7311
    %v7313 = vand.u32 %v105, 4294901760
    %7314 = vmatmul.f32.gmra.mxu0 %v7313
    %v7315 = vpop.f32.mrf.mxu0
    %v7316 = vadd.f32 %v7091, %v7315
    %v7317 = vand.u32 %v107, 4294901760
    %7318 = vmatmul.f32.gmra.mxu0 %v7317
    %v7319 = vpop.f32.mrf.mxu0
    %v7320 = vadd.f32 %v7095, %v7319
    %v7321 = vand.u32 %v109, 4294901760
    %7322 = vmatmul.f32.gmra.mxu0 %v7321
    %v7323 = vpop.f32.mrf.mxu0
    %v7324 = vadd.f32 %v7099, %v7323
    %v7325 = vand.u32 %v111, 4294901760
    %7326 = vmatmul.f32.gmra.mxu0 %v7325
    %v7327 = vpop.f32.mrf.mxu0
    %v7328 = vadd.f32 %v7103, %v7327
    %v7329 = vand.u32 %v113, 4294901760
    %7330 = vmatmul.f32.gmra.mxu0 %v7329
    %v7331 = vpop.f32.mrf.mxu0
    %v7332 = vadd.f32 %v7107, %v7331
    %v7333 = vand.u32 %v115, 4294901760
    %7334 = vmatmul.f32.gmra.mxu0 %v7333
    %v7335 = vpop.f32.mrf.mxu0
    %v7336 = vadd.f32 %v7111, %v7335
    %v7337 = vand.u32 %v117, 4294901760
    %7338 = vmatmul.f32.gmra.mxu0 %v7337
    %v7339 = vpop.f32.mrf.mxu0
    %v7340 = vadd.f32 %v7115, %v7339
    %v7341 = vand.u32 %v119, 4294901760
    %7342 = vmatmul.f32.gmra.mxu0 %v7341
    %v7343 = vpop.f32.mrf.mxu0
    %v7344 = vadd.f32 %v7119, %v7343
    %v7345 = vand.u32 %v121, 4294901760
    %7346 = vmatmul.f32.gmra.mxu0 %v7345
    %v7347 = vpop.f32.mrf.mxu0
    %v7348 = vadd.f32 %v7123, %v7347
    %v7349 = vand.u32 %v123, 4294901760
    %7350 = vmatmul.f32.gmra.mxu0 %v7349
    %v7351 = vpop.f32.mrf.mxu0
    %v7352 = vadd.f32 %v7127, %v7351
    %v7353 = vand.u32 %v125, 4294901760
    %7354 = vmatmul.f32.gmra.mxu0 %v7353
    %v7355 = vpop.f32.mrf.mxu0
    %v7356 = vadd.f32 %v7131, %v7355
    %v7357 = vand.u32 %v127, 4294901760
    %7358 = vmatmul.f32.gmra.mxu0 %v7357
    %v7359 = vpop.f32.mrf.mxu0
    %v7360 = vadd.f32 %v7135, %v7359
    %v7361 = vand.u32 %v129, 4294901760
    %7362 = vmatmul.f32.gmra.mxu0 %v7361
    %v7363 = vpop.f32.mrf.mxu0
    %v7364 = vadd.f32 %v7139, %v7363
    %v7365 = vand.u32 %v131, 4294901760
    %7366 = vmatmul.f32.gmra.mxu0 %v7365
    %v7367 = vpop.f32.mrf.mxu0
    %v7368 = vadd.f32 %v7143, %v7367
    %v7369 = vand.u32 %v133, 4294901760
    %7370 = vmatmul.f32.gmra.mxu0 %v7369
    %v7371 = vpop.f32.mrf.mxu0
    %v7372 = vadd.f32 %v7147, %v7371
    %v7373 = vand.u32 %v135, 4294901760
    %7374 = vmatmul.f32.gmra.mxu0 %v7373
    %v7375 = vpop.f32.mrf.mxu0
    %v7376 = vadd.f32 %v7151, %v7375
    %v7377 = vand.u32 %v137, 4294901760
    %7378 = vmatmul.f32.gmra.mxu0 %v7377
    %v7379 = vpop.f32.mrf.mxu0
    %v7380 = vadd.f32 %v7155, %v7379
    %v7381 = vand.u32 %v139, 4294901760
    %7382 = vmatmul.f32.gmra.mxu0 %v7381
    %v7383 = vpop.f32.mrf.mxu0
    %v7384 = vadd.f32 %v7159, %v7383
    %v7385 = vand.u32 %v141, 4294901760
    %7386 = vmatmul.f32.gmra.mxu0 %v7385
    %v7387 = vpop.f32.mrf.mxu0
    %v7388 = vadd.f32 %v7163, %v7387
    %v7389 = vand.u32 %v143, 4294901760
    %7390 = vmatmul.f32.gmra.mxu0 %v7389
    %v7391 = vpop.f32.mrf.mxu0
    %v7392 = vadd.f32 %v7167, %v7391
    %v7393 = vand.u32 %v145, 4294901760
    %7394 = vmatmul.f32.gmra.mxu0 %v7393
    %v7395 = vpop.f32.mrf.mxu0
    %v7396 = vadd.f32 %v7171, %v7395
    %v7397 = vand.u32 %v147, 4294901760
    %7398 = vmatmul.f32.gmra.mxu0 %v7397
    %v7399 = vpop.f32.mrf.mxu0
    %v7400 = vadd.f32 %v7175, %v7399
    %v7401 = vand.u32 %v149, 4294901760
    %7402 = vmatmul.f32.gmra.mxu0 %v7401
    %v7403 = vpop.f32.mrf.mxu0
    %v7404 = vadd.f32 %v7179, %v7403
    %v7405 = vand.u32 %v151, 4294901760
    %7406 = vmatmul.f32.gmra.mxu0 %v7405
    %v7407 = vpop.f32.mrf.mxu0
    %v7408 = vadd.f32 %v7183, %v7407
    %v7409 = vand.u32 %v153, 4294901760
    %7410 = vmatmul.f32.gmra.mxu0 %v7409
    %v7411 = vpop.f32.mrf.mxu0
    %v7412 = vadd.f32 %v7187, %v7411
    %v7413 = vand.u32 %v155, 4294901760
    %7414 = vmatmul.f32.gmra.mxu0 %v7413
    %v7415 = vpop.f32.mrf.mxu0
    %v7416 = vadd.f32 %v7191, %v7415
    %7417 = vdwg.mxu0
    %7418 = vst [vmem:[#allocation8] sm:$0xff] %v3632
    %7419 = vst [vmem:[#allocation8 + $0x8] sm:$0xff] %v7228
    %7420 = vst [vmem:[#allocation8 + $0x10] sm:$0xff] %v3636
    %7421 = vst [vmem:[#allocation8 + $0x18] sm:$0xff] %v7232
    %7422 = vst [vmem:[#allocation8 + $0x20] sm:$0xff] %v3640
    %7423 = vst [vmem:[#allocation8 + $0x28] sm:$0xff] %v7236
    %7424 = vst [vmem:[#allocation8 + $0x30] sm:$0xff] %v3644
    %7425 = vst [vmem:[#allocation8 + $0x38] sm:$0xff] %v7240
    %7426 = vst [vmem:[#allocation8 + $0x40] sm:$0xff] %v3648
    %7427 = vst [vmem:[#allocation8 + $0x48] sm:$0xff] %v7244
    %7428 = vst [vmem:[#allocation8 + $0x50] sm:$0xff] %v3652
    %7429 = vst [vmem:[#allocation8 + $0x58] sm:$0xff] %v7248
    %7430 = vst [vmem:[#allocation8 + $0x60] sm:$0xff] %v3656
    %7431 = vst [vmem:[#allocation8 + $0x68] sm:$0xff] %v7252
    %7432 = vst [vmem:[#allocation8 + $0x70] sm:$0xff] %v3660
    %7433 = vst [vmem:[#allocation8 + $0x78] sm:$0xff] %v7256
    %7434 = vst [vmem:[#allocation8 + $0x80] sm:$0xff] %v3664
    %7435 = vst [vmem:[#allocation8 + $0x88] sm:$0xff] %v7260
    %7436 = vst [vmem:[#allocation8 + $0x90] sm:$0xff] %v3668
    %7437 = vst [vmem:[#allocation8 + $0x98] sm:$0xff] %v7264
    %7438 = vst [vmem:[#allocation8 + $0xa0] sm:$0xff] %v3672
    %7439 = vst [vmem:[#allocation8 + $0xa8] sm:$0xff] %v7268
    %7440 = vst [vmem:[#allocation8 + $0xb0] sm:$0xff] %v3676
    %7441 = vst [vmem:[#allocation8 + $0xb8] sm:$0xff] %v7272
    %7442 = vst [vmem:[#allocation8 + $0xc0] sm:$0xff] %v3680
    %7443 = vst [vmem:[#allocation8 + $0xc8] sm:$0xff] %v7276
    %7444 = vst [vmem:[#allocation8 + $0xd0] sm:$0xff] %v3684
    %7445 = vst [vmem:[#allocation8 + $0xd8] sm:$0xff] %v7280
    %7446 = vst [vmem:[#allocation8 + $0xe0] sm:$0xff] %v3688
    %7447 = vst [vmem:[#allocation8 + $0xe8] sm:$0xff] %v7284
    %7448 = vst [vmem:[#allocation8 + $0xf0] sm:$0xff] %v3692
    %7449 = vst [vmem:[#allocation8 + $0xf8] sm:$0xff] %v7288
    %7450 = vst [vmem:[#allocation8 + $0x100] sm:$0xff] %v3696
    %7451 = vst [vmem:[#allocation8 + $0x108] sm:$0xff] %v7292
    %7452 = vst [vmem:[#allocation8 + $0x110] sm:$0xff] %v3700
    %7453 = vst [vmem:[#allocation8 + $0x118] sm:$0xff] %v7296
    %7454 = vst [vmem:[#allocation8 + $0x120] sm:$0xff] %v3704
    %7455 = vst [vmem:[#allocation8 + $0x128] sm:$0xff] %v7300
    %7456 = vst [vmem:[#allocation8 + $0x130] sm:$0xff] %v3708
    %7457 = vst [vmem:[#allocation8 + $0x138] sm:$0xff] %v7304
    %7458 = vst [vmem:[#allocation8 + $0x140] sm:$0xff] %v3712
    %7459 = vst [vmem:[#allocation8 + $0x148] sm:$0xff] %v7308
    %7460 = vst [vmem:[#allocation8 + $0x150] sm:$0xff] %v3716
    %7461 = vst [vmem:[#allocation8 + $0x158] sm:$0xff] %v7312
    %7462 = vst [vmem:[#allocation8 + $0x160] sm:$0xff] %v3720
    %7463 = vst [vmem:[#allocation8 + $0x168] sm:$0xff] %v7316
    %7464 = vst [vmem:[#allocation8 + $0x170] sm:$0xff] %v3724
    %7465 = vst [vmem:[#allocation8 + $0x178] sm:$0xff] %v7320
    %7466 = vst [vmem:[#allocation8 + $0x180] sm:$0xff] %v3728
    %7467 = vst [vmem:[#allocation8 + $0x188] sm:$0xff] %v7324
    %7468 = vst [vmem:[#allocation8 + $0x190] sm:$0xff] %v3732
    %7469 = vst [vmem:[#allocation8 + $0x198] sm:$0xff] %v7328
    %7470 = vst [vmem:[#allocation8 + $0x1a0] sm:$0xff] %v3736
    %7471 = vst [vmem:[#allocation8 + $0x1a8] sm:$0xff] %v7332
    %7472 = vst [vmem:[#allocation8 + $0x1b0] sm:$0xff] %v3740
    %7473 = vst [vmem:[#allocation8 + $0x1b8] sm:$0xff] %v7336
    %7474 = vst [vmem:[#allocation8 + $0x1c0] sm:$0xff] %v3744
    %7475 = vst [vmem:[#allocation8 + $0x1c8] sm:$0xff] %v7340
    %7476 = vst [vmem:[#allocation8 + $0x1d0] sm:$0xff] %v3748
    %7477 = vst [vmem:[#allocation8 + $0x1d8] sm:$0xff] %v7344
    %7478 = vst [vmem:[#allocation8 + $0x1e0] sm:$0xff] %v3752
    %7479 = vst [vmem:[#allocation8 + $0x1e8] sm:$0xff] %v7348
    %7480 = vst [vmem:[#allocation8 + $0x1f0] sm:$0xff] %v3756
    %7481 = vst [vmem:[#allocation8 + $0x1f8] sm:$0xff] %v7352
    %7482 = vst [vmem:[#allocation8 + $0x200] sm:$0xff] %v3760
    %7483 = vst [vmem:[#allocation8 + $0x208] sm:$0xff] %v7356
    %7484 = vst [vmem:[#allocation8 + $0x210] sm:$0xff] %v3764
    %7485 = vst [vmem:[#allocation8 + $0x218] sm:$0xff] %v7360
    %7486 = vst [vmem:[#allocation8 + $0x220] sm:$0xff] %v3768
    %7487 = vst [vmem:[#allocation8 + $0x228] sm:$0xff] %v7364
    %7488 = vst [vmem:[#allocation8 + $0x230] sm:$0xff] %v3772
    %7489 = vst [vmem:[#allocation8 + $0x238] sm:$0xff] %v7368
    %7490 = vst [vmem:[#allocation8 + $0x240] sm:$0xff] %v3776
    %7491 = vst [vmem:[#allocation8 + $0x248] sm:$0xff] %v7372
    %7492 = vst [vmem:[#allocation8 + $0x250] sm:$0xff] %v3780
    %7493 = vst [vmem:[#allocation8 + $0x258] sm:$0xff] %v7376
    %7494 = vst [vmem:[#allocation8 + $0x260] sm:$0xff] %v3784
    %7495 = vst [vmem:[#allocation8 + $0x268] sm:$0xff] %v7380
    %7496 = vst [vmem:[#allocation8 + $0x270] sm:$0xff] %v3788
    %7497 = vst [vmem:[#allocation8 + $0x278] sm:$0xff] %v7384
    %7498 = vst [vmem:[#allocation8 + $0x280] sm:$0xff] %v3792
    %7499 = vst [vmem:[#allocation8 + $0x288] sm:$0xff] %v7388
    %7500 = vst [vmem:[#allocation8 + $0x290] sm:$0xff] %v3796
    %7501 = vst [vmem:[#allocation8 + $0x298] sm:$0xff] %v7392
    %7502 = vst [vmem:[#allocation8 + $0x2a0] sm:$0xff] %v3800
    %7503 = vst [vmem:[#allocation8 + $0x2a8] sm:$0xff] %v7396
    %7504 = vst [vmem:[#allocation8 + $0x2b0] sm:$0xff] %v3804
    %7505 = vst [vmem:[#allocation8 + $0x2b8] sm:$0xff] %v7400
    %7506 = vst [vmem:[#allocation8 + $0x2c0] sm:$0xff] %v3808
    %7507 = vst [vmem:[#allocation8 + $0x2c8] sm:$0xff] %v7404
    %7508 = vst [vmem:[#allocation8 + $0x2d0] sm:$0xff] %v3812
    %7509 = vst [vmem:[#allocation8 + $0x2d8] sm:$0xff] %v7408
    %7510 = vst [vmem:[#allocation8 + $0x2e0] sm:$0xff] %v3816
    %7511 = vst [vmem:[#allocation8 + $0x2e8] sm:$0xff] %v7412
    %7512 = vst [vmem:[#allocation8 + $0x2f0] sm:$0xff] %v3820
    %7513 = vst [vmem:[#allocation8 + $0x2f8] sm:$0xff] %v7416
    // Predicated region
    $region26: #{tpu_custom_call.1} parent=1 // pred_check
      _
    $region27: #{tpu_custom_call.1} parent=1 // pred_check_branch
      %7515 = sbr.rel (0) target = $region29
    $region28: #{tpu_custom_call.1} parent=1 // pred_region
      %7517 = vsyncadd [#allocation4], 0
      %s7518 = sshll.u32 [#allocation8], 4
      %s7519 = int_to_ptr.vmem [resolvable:$true] %s7518
      %s7520 = sshll.u32 %s3, 4
      %s7521 = int_to_ptr.hbm [resolvable:$true] %s7520
      %7526 = dma.vmem_to_hbm [thread:$0]  %s7519, 12288, %s7521, [#allocation4], 256, 256, 16
    $region29: #{tpu_custom_call.1} parent=1 // pred_fallthru
      _
    // Predicated region
    $region30: #{tpu_custom_call.1} parent=1 // pred_check
      _
    $region31: #{tpu_custom_call.1} parent=1 // pred_check_branch
      %7528 = sbr.rel (0) target = $region33
    $region32: #{tpu_custom_call.1} parent=1 // pred_region
      %7530 = dma.done [#allocation4], 12288
    $region33: #{tpu_custom_call.1} parent=1 // pred_fallthru
      _
    %7531 = vsyncpa [#allocation3], 1
    %7532 = vsyncpa [#allocation6], 1
    %7533 = vsyncpa [#allocation4], 1

</llo_original>
